<compile_context>
chip_gen: v7x
topology: tpu7x:2x2x1
jax: 0.10.0
libtpu: 0.0.40
codegen_flags: <defaults>
</compile_context>

<pallas_src>
import functools

import jax
import jax.numpy as jnp
from jax.experimental import pallas as pl
from jax.experimental.pallas import tpu as pltpu


# ----------------------------------------------------------------------------
# helpers
# ----------------------------------------------------------------------------
def _pick_tile(m, cap=512):
    """Largest M-tile <= cap that divides m (multiple of 8).

    When that would yield a single grid step with a big tile (>=256 rows), split
    into two so v7x's two TensorCores both get work on the 'parallel' axis
    (per-step overhead ~0.35us is negligible at that tile size).
    """
    for t in (512, 256, 128, 64, 32, 16, 8):
        if t <= cap and m % t == 0:
            if t == m and m >= 256:
                return m // 2
            return t
    return m


def _pick_lane_tile(l):
    """Largest lane-dense tile (multiple of 128) that divides l, else l."""
    for t in (65536, 32768, 16384, 8192, 4096, 2048, 1024, 512, 256, 128):
        if l >= t and l % t == 0:
            return t
    return l


def _extract_patches(x, kh, kw, stride, pad):
    """im2col glue. x: (N, H, W, C) bf16 -> (N, Ho, Wo, kh*kw*C).

    Last-dim ordering is (dy, dx, c), matching the weight matrix built in
    conv_bn_act.  Zero padding (exact for conv; exact for the max-pool use too
    because its input is post-ReLU >= 0).
    """
    n, h, w, c = x.shape
    xp = jnp.pad(x, ((0, 0), (pad, pad), (pad, pad), (0, 0)))
    ho = (h + 2 * pad - kh) // stride + 1
    wo = (w + 2 * pad - kw) // stride + 1
    cols = []
    for dy in range(kh):
        for dx in range(kw):
            cols.append(
                xp[:, dy:dy + stride * ho:stride, dx:dx + stride * wo:stride, :])
    return jnp.concatenate(cols, axis=-1), ho, wo


# ----------------------------------------------------------------------------
# Pallas kernels
# ----------------------------------------------------------------------------
def _mm_affine_kernel(x_ref, w_ref, s_ref, b_ref, *rest, relu, residual):
    # (tm, K)bf16 @ (K, Cout)bf16 on the MXU, f32 accumulate; fused folded-BN
    # affine (+ optional residual add) (+ optional ReLU) epilogue on the VPU.
    if residual:
        r_ref, o_ref = rest
    else:
        (o_ref,) = rest
    acc = jnp.dot(x_ref[...], w_ref[...], preferred_element_type=jnp.float32)
    y = acc * s_ref[...] + b_ref[...]
    if residual:
        y = y + r_ref[...].astype(jnp.float32)
    if relu:
        y = jnp.maximum(y, 0.0)
    o_ref[...] = y.astype(o_ref.dtype)


def matmul_affine(x, w, scale, bias, relu, residual=None):
    """(M, K) @ (K, N) * scale + bias (+identity) (+ReLU), tiled over M. bf16 out."""
    m, k = x.shape
    n = w.shape[1]
    tm = _pick_tile(m)
    in_specs = [
        pl.BlockSpec((tm, k), lambda i: (i, 0)),
        pl.BlockSpec((k, n), lambda i: (0, 0)),
        pl.BlockSpec((1, n), lambda i: (0, 0)),
        pl.BlockSpec((1, n), lambda i: (0, 0)),
    ]
    args = [x, w, scale.reshape(1, n), bias.reshape(1, n)]
    if residual is not None:
        in_specs.append(pl.BlockSpec((tm, n), lambda i: (i, 0)))
        args.append(residual)
    kern = functools.partial(_mm_affine_kernel, relu=relu,
                             residual=residual is not None)
    return pl.pallas_call(
        kern,
        out_shape=jax.ShapeDtypeStruct((m, n), jnp.bfloat16),
        grid_spec=pltpu.PrefetchScalarGridSpec(
            num_scalar_prefetch=0,
            grid=(m // tm,),
            in_specs=in_specs,
            out_specs=pl.BlockSpec((tm, n), lambda i: (i, 0)),
        ),
        compiler_params=pltpu.CompilerParams(
            dimension_semantics=("parallel",)),
    )(*args)


def _maxpool_kernel(p_ref, o_ref):
    # p_ref: (KK, L) -- taps on the sublane axis, lane-dense L.
    x = p_ref[...].astype(jnp.float32)
    m = x[0:1, :]
    for kk in range(1, x.shape[0]):
        m = jnp.maximum(m, x[kk:kk + 1, :])
    o_ref[...] = m.astype(o_ref.dtype)


def maxpool_from_patches(p):
    kk, l = p.shape
    tl = _pick_lane_tile(l)
    return pl.pallas_call(
        _maxpool_kernel,
        out_shape=jax.ShapeDtypeStruct((1, l), jnp.bfloat16),
        grid_spec=pltpu.PrefetchScalarGridSpec(
            num_scalar_prefetch=0,
            grid=(l // tl,),
            in_specs=[pl.BlockSpec((kk, tl), lambda i: (0, i))],
            out_specs=pl.BlockSpec((1, tl), lambda i: (0, i)),
        ),
        compiler_params=pltpu.CompilerParams(
            dimension_semantics=("parallel",)),
    )(p)


def _pool_dist_kernel(f1_ref, f2_ref, o_ref):
    # Global average pool over the spatial axis fused with F.pairwise_distance.
    # Features are conceptually (N, C, 1, 1); the p=2 norm over the trailing
    # size-1 dim is |d + eps| (no sqrt needed).  f32 epilogue.
    hw = f1_ref.shape[1]
    s1 = f1_ref[:, 0, :].astype(jnp.float32)
    s2 = f2_ref[:, 0, :].astype(jnp.float32)
    for kk in range(1, hw):
        s1 = s1 + f1_ref[:, kk, :].astype(jnp.float32)
        s2 = s2 + f2_ref[:, kk, :].astype(jnp.float32)
    d = (s1 - s2) * (1.0 / float(hw)) + 1e-6
    o_ref[...] = jnp.abs(d)


def pool_pairwise_distance(f1, f2):
    n, hw, c = f1.shape
    return pl.pallas_call(
        _pool_dist_kernel,
        out_shape=jax.ShapeDtypeStruct((n, c), jnp.float32),
        grid_spec=pltpu.PrefetchScalarGridSpec(
            num_scalar_prefetch=0,
            grid=(1,),
            in_specs=[pl.BlockSpec((n, hw, c), lambda i: (0, 0, 0))] * 2,
            out_specs=pl.BlockSpec((n, c), lambda i: (0, 0)),
        ),
        compiler_params=pltpu.CompilerParams(
            dimension_semantics=("arbitrary",)),
    )(f1, f2)


# ----------------------------------------------------------------------------
# ResNet building blocks (glue around the Pallas kernels)
# ----------------------------------------------------------------------------
def conv_bn_act(x, w_pt, bn, stride, pad, relu, residual=None):
    """Conv2d (no bias) + folded BN (+residual) (+ReLU). w_pt: (Cout, Cin, kh, kw)."""
    cout, cin, kh, kw = w_pt.shape
    patches, ho, wo = _extract_patches(x, kh, kw, stride, pad)
    n = x.shape[0]
    m = n * ho * wo
    xmat = patches.reshape(m, kh * kw * cin)
    # row index = (dy*kw + dx)*Cin + cin -> matches _extract_patches ordering
    wmat = jnp.transpose(w_pt, (2, 3, 1, 0)).reshape(kh * kw * cin, cout)
    wmat = wmat.astype(jnp.bfloat16)
    gamma, beta, mean, var = bn
    scale = gamma / jnp.sqrt(var + 1e-5)   # kept in f32
    shift = beta - mean * scale
    res = None if residual is None else residual.reshape(m, cout)
    y = matmul_affine(xmat, wmat, scale, shift, relu, residual=res)
    return y.reshape(n, ho, wo, cout)


def maxpool2d(x, k=3, stride=2, pad=1):
    n, h, w, c = x.shape
    patches, ho, wo = _extract_patches(x, k, k, stride, pad)
    # (N, Ho, Wo, KK*C) -> (KK, N*Ho*Wo*C): taps on the sublane axis, everything
    # else flattened onto the lane axis (lane-dense, multiple of 128 here).
    p = patches.reshape(n, ho, wo, k * k, c)
    p = jnp.transpose(p, (3, 0, 1, 2, 4)).reshape(k * k, n * ho * wo * c)
    y = maxpool_from_patches(p)
    return y.reshape(n, ho, wo, c)


def basic_block(x, p):
    if 'down_w' in p:
        identity = conv_bn_act(x, p['down_w'], p['down_bn'],
                               p['stride'], 0, relu=False)
    else:
        identity = x
    out = conv_bn_act(x, p['conv1_w'], p['bn1'], p['stride'], 1, relu=True)
    # residual add + ReLU fused into the conv2 matmul epilogue
    out = conv_bn_act(out, p['conv2_w'], p['bn2'], 1, 1, relu=True,
                      residual=identity)
    return out


def resnet_features(x_nhwc, params):
    x = conv_bn_act(x_nhwc, params['conv1_w'], params['bn1'],
                    stride=2, pad=3, relu=True)
    x = maxpool2d(x)
    for layer in params['layers']:
        for blk in layer:
            x = basic_block(x, blk)
    return x  # (N, H, W, 2C); avg-pool is fused into the distance kernel


def scene_network_forward(merged_params, ge, gm):
    """ge, gm: NCHW float32. Returns F.pairwise_distance(feat1, feat2)."""
    del gm  # the reference module feeds `ge` into both branches
    x = jnp.transpose(ge, (0, 2, 3, 1)).astype(jnp.bfloat16)  # NCHW -> NHWC bf16
    f = resnet_features(x, merged_params)          # channels = [branch1 | branch2]
    n, h, w, c2 = f.shape
    c = c2 // 2
    feat = f.reshape(n, h * w, c2)
    dist = pool_pairwise_distance(feat[..., :c], feat[..., c:])
    # features are (N, C, 1, 1); norm over the trailing size-1 dim -> (N, C, 1)
    return dist.reshape(n, c, 1)


# ----------------------------------------------------------------------------
# deterministic synthetic parameter initialization + branch merging
# ----------------------------------------------------------------------------
def _init_conv(key, cout, cin, kh, kw):
    fan_in = cin * kh * kw
    return jax.random.normal(key, (cout, cin, kh, kw), jnp.float32) \
        * (2.0 / fan_in) ** 0.5


def _init_bn(key, c):
    k1, k2, k3, k4 = jax.random.split(key, 4)
    gamma = jax.random.uniform(k1, (c,), jnp.float32, 0.5, 1.5)
    beta = 0.1 * jax.random.normal(k2, (c,), jnp.float32)
    mean = 0.1 * jax.random.normal(k3, (c,), jnp.float32)
    var = jax.random.uniform(k4, (c,), jnp.float32, 0.5, 1.5)
    return gamma, beta, mean, var


def init_resnet_params(key, in_ch=3, widths=(8, 16, 32, 64), blocks=(2, 2, 2, 2)):
    keys = jax.random.split(key, 64)
    it = iter(range(64))
    p = {
        'conv1_w': _init_conv(keys[next(it)], widths[0], in_ch, 7, 7),
        'bn1': _init_bn(keys[next(it)], widths[0]),
    }
    layers = []
    cin = widths[0]
    for li, (w, nb) in enumerate(zip(widths, blocks)):
        layer = []
        for bi in range(nb):
            stride = 2 if (li > 0 and bi == 0) else 1
            blk = {
                'stride': stride,
                'conv1_w': _init_conv(keys[next(it)], w, cin, 3, 3),
                'bn1': _init_bn(keys[next(it)], w),
                'conv2_w': _init_conv(keys[next(it)], w, w, 3, 3),
                'bn2': _init_bn(keys[next(it)], w),
            }
            if stride != 1 or cin != w:
                blk['down_w'] = _init_conv(keys[next(it)], w, cin, 1, 1)
                blk['down_bn'] = _init_bn(keys[next(it)], w)
            layer.append(blk)
            cin = w
        layers.append(layer)
    p['layers'] = layers
    return p


def merge_branch_params(p1, p2):
    """Fuse the two identical-architecture backbones into one.

    Cout is concatenated; Cin is block-diagonal so branch channels never mix.
    The stem shares its 3-channel input, so only Cout is concatenated there.
    """
    def merge_bn(b1, b2):
        return tuple(jnp.concatenate([a, b], axis=0) for a, b in zip(b1, b2))

    def blockdiag_conv(w1, w2):
        co1, ci1, kh, kw = w1.shape
        co2, ci2, _, _ = w2.shape
        top = jnp.concatenate([w1, jnp.zeros((co1, ci2, kh, kw), w1.dtype)], axis=1)
        bot = jnp.concatenate([jnp.zeros((co2, ci1, kh, kw), w2.dtype), w2], axis=1)
        return jnp.concatenate([top, bot], axis=0)

    merged = {
        'conv1_w': jnp.concatenate([p1['conv1_w'], p2['conv1_w']], axis=0),
        'bn1': merge_bn(p1['bn1'], p2['bn1']),
    }
    layers = []
    for l1, l2 in zip(p1['layers'], p2['layers']):
        layer = []
        for b1, b2 in zip(l1, l2):
            blk = {
                'stride': b1['stride'],
                'conv1_w': blockdiag_conv(b1['conv1_w'], b2['conv1_w']),
                'bn1': merge_bn(b1['bn1'], b2['bn1']),
                'conv2_w': blockdiag_conv(b1['conv2_w'], b2['conv2_w']),
                'bn2': merge_bn(b1['bn2'], b2['bn2']),
            }
            if 'down_w' in b1:
                blk['down_w'] = blockdiag_conv(b1['down_w'], b2['down_w'])
                blk['down_bn'] = merge_bn(b1['down_bn'], b2['down_bn'])
            layer.append(blk)
        layers.append(layer)
    merged['layers'] = layers
    return merged


# ----------------------------------------------------------------------------
if __name__ == "__main__":
    key = jax.random.PRNGKey(0)
    kp1, kp2, kx1, kx2 = jax.random.split(key, 4)

    # two distinct deterministic parameter sets for resnet_1 / resnet_2
    params1 = init_resnet_params(kp1)
    params2 = init_resnet_params(kp2)
    merged = merge_branch_params(params1, params2)

    # small NCHW inputs consistent with the module (3-channel images)
    ge = jax.random.normal(kx1, (2, 3, 32, 32), jnp.float32)
    gm = jax.random.normal(kx2, (2, 3, 32, 32), jnp.float32)

    # jit the whole forward: parameters are closure constants (strides stay
    # static Python ints), all pallas_calls dispatch as one XLA program.
    fwd = jax.jit(lambda a, b: scene_network_forward(merged, a, b))

    out = fwd(ge, gm)
    out = jax.block_until_ready(out)

    assert out.shape == (2, 64, 1), out.shape
    assert bool(jnp.all(jnp.isfinite(out)))
    print("KERNEL_OK")
</pallas_src>

<mosaic_0001>
module attributes {stable_mosaic.version = 11 : i64} {
  func.func @_mm_affine_kernel(%arg0: i32, %arg1: memref<256x147xbf16, #tpu.memory_space<vmem>>, %arg2: memref<147x16xbf16, #tpu.memory_space<vmem>>, %arg3: memref<1x16xf32, #tpu.memory_space<vmem>>, %arg4: memref<1x16xf32, #tpu.memory_space<vmem>>, %arg5: memref<256x16xbf16, #tpu.memory_space<vmem>>) attributes {dimension_semantics = [#tpu.dimension_semantics<parallel>], iteration_bounds = array<i64: 2>, scalar_prefetch = 0 : i64, scratch_operands = 0 : i64, tpu.core_type = #tpu.core_type<tc>, window_params = [{transform_indices = @transform_0, window_bounds = array<i64: 256, 147>}, {pipeline_mode = #tpu.pipeline_mode<synchronous>, transform_indices = @transform_1, window_bounds = array<i64: 147, 16>}, {pipeline_mode = #tpu.pipeline_mode<synchronous>, transform_indices = @transform_2, window_bounds = array<i64: 1, 16>}, {pipeline_mode = #tpu.pipeline_mode<synchronous>, transform_indices = @transform_3, window_bounds = array<i64: 1, 16>}, {transform_indices = @transform_4, window_bounds = array<i64: 256, 16>}]} {
    %c0 = arith.constant 0 : index
    %c0_0 = arith.constant 0 : index
    %0 = vector.load %arg1[%c0, %c0_0] : memref<256x147xbf16, #tpu.memory_space<vmem>>, vector<256x147xbf16>
    %c0_1 = arith.constant 0 : index
    %c0_2 = arith.constant 0 : index
    %1 = vector.load %arg2[%c0_1, %c0_2] : memref<147x16xbf16, #tpu.memory_space<vmem>>, vector<147x16xbf16>
    %cst = arith.constant dense<0.000000e+00> : vector<256x16xf32>
    %2 = tpu.matmul %0, %1, %cst {dimension_numbers = #tpu.dot_dimension_numbers<[1], [0], [0], [1], [0, 0, 1, 1], [], []>} : vector<256x147xbf16>, vector<147x16xbf16>, vector<256x16xf32> -> vector<256x16xf32>
    %c0_3 = arith.constant 0 : index
    %c0_4 = arith.constant 0 : index
    %3 = vector.load %arg3[%c0_3, %c0_4] : memref<1x16xf32, #tpu.memory_space<vmem>>, vector<1x16xf32>
    %4 = vector.broadcast %3 : vector<1x16xf32> to vector<256x16xf32>
    %5 = arith.mulf %2, %4 : vector<256x16xf32>
    %c0_5 = arith.constant 0 : index
    %c0_6 = arith.constant 0 : index
    %6 = vector.load %arg4[%c0_5, %c0_6] : memref<1x16xf32, #tpu.memory_space<vmem>>, vector<1x16xf32>
    %7 = vector.broadcast %6 : vector<1x16xf32> to vector<256x16xf32>
    %8 = arith.addf %5, %7 : vector<256x16xf32>
    %cst_7 = arith.constant 0.000000e+00 : f32
    %9 = vector.broadcast %cst_7 : f32 to vector<256x16xf32>
    %10 = arith.maximumf %8, %9 : vector<256x16xf32>
    %11 = arith.truncf %10 : vector<256x16xf32> to vector<256x16xbf16>
    %c0_8 = arith.constant 0 : index
    %c0_9 = arith.constant 0 : index
    %12 = vector.load %arg5[%c0_8, %c0_9] : memref<256x16xbf16, #tpu.memory_space<vmem>>, vector<256x16xbf16>
    tpu.vector_store %arg5[%c0_8, %c0_9], %11 {strides = array<i32>} : memref<256x16xbf16, #tpu.memory_space<vmem>>, vector<256x16xbf16>,
    return
  }
  func.func @transform_0(%arg0: i32) -> (i32, i32) {
    %c0_i32 = arith.constant 0 : i32
    %c0_i32_0 = arith.constant 0 : i32
    return %arg0, %c0_i32 : i32, i32
  }
  func.func @transform_1(%arg0: i32) -> (i32, i32) {
    %c0_i32 = arith.constant 0 : i32
    %c0_i32_0 = arith.constant 0 : i32
    %c0_i32_1 = arith.constant 0 : i32
    return %c0_i32, %c0_i32_0 : i32, i32
  }
  func.func @transform_2(%arg0: i32) -> (i32, i32) {
    %c0_i32 = arith.constant 0 : i32
    %c0_i32_0 = arith.constant 0 : i32
    %c0_i32_1 = arith.constant 0 : i32
    return %c0_i32, %c0_i32_0 : i32, i32
  }
  func.func @transform_3(%arg0: i32) -> (i32, i32) {
    %c0_i32 = arith.constant 0 : i32
    %c0_i32_0 = arith.constant 0 : i32
    %c0_i32_1 = arith.constant 0 : i32
    return %c0_i32, %c0_i32_0 : i32, i32
  }
  func.func @transform_4(%arg0: i32) -> (i32, i32) {
    %c0_i32 = arith.constant 0 : i32
    %c0_i32_0 = arith.constant 0 : i32
    return %arg0, %c0_i32 : i32, i32
  }
}

module attributes {stable_mosaic.version = 11 : i64} {
  func.func @_maxpool_kernel(%arg0: i32, %arg1: memref<9x2048xbf16, #tpu.memory_space<vmem>>, %arg2: memref<1x2048xbf16, #tpu.memory_space<vmem>>) attributes {dimension_semantics = [#tpu.dimension_semantics<parallel>], iteration_bounds = array<i64: 1>, scalar_prefetch = 0 : i64, scratch_operands = 0 : i64, tpu.core_type = #tpu.core_type<tc>, window_params = [{transform_indices = @transform_0, window_bounds = array<i64: 9, 2048>}, {transform_indices = @transform_1, window_bounds = array<i64: 1, 2048>}]} {
    %c0 = arith.constant 0 : index
    %c0_0 = arith.constant 0 : index
    %0 = vector.load %arg1[%c0, %c0_0] : memref<9x2048xbf16, #tpu.memory_space<vmem>>, vector<9x2048xbf16>
    %1 = arith.extf %0 : vector<9x2048xbf16> to vector<9x2048xf32>
    %2 = vector.extract_strided_slice %1 {offsets = [0, 0], sizes = [1, 2048], strides = [1, 1]} : vector<9x2048xf32> to vector<1x2048xf32>
    %3 = vector.extract_strided_slice %1 {offsets = [1, 0], sizes = [1, 2048], strides = [1, 1]} : vector<9x2048xf32> to vector<1x2048xf32>
    %4 = arith.maximumf %2, %3 : vector<1x2048xf32>
    %5 = vector.extract_strided_slice %1 {offsets = [2, 0], sizes = [1, 2048], strides = [1, 1]} : vector<9x2048xf32> to vector<1x2048xf32>
    %6 = arith.maximumf %4, %5 : vector<1x2048xf32>
    %7 = vector.extract_strided_slice %1 {offsets = [3, 0], sizes = [1, 2048], strides = [1, 1]} : vector<9x2048xf32> to vector<1x2048xf32>
    %8 = arith.maximumf %6, %7 : vector<1x2048xf32>
    %9 = vector.extract_strided_slice %1 {offsets = [4, 0], sizes = [1, 2048], strides = [1, 1]} : vector<9x2048xf32> to vector<1x2048xf32>
    %10 = arith.maximumf %8, %9 : vector<1x2048xf32>
    %11 = vector.extract_strided_slice %1 {offsets = [5, 0], sizes = [1, 2048], strides = [1, 1]} : vector<9x2048xf32> to vector<1x2048xf32>
    %12 = arith.maximumf %10, %11 : vector<1x2048xf32>
    %13 = vector.extract_strided_slice %1 {offsets = [6, 0], sizes = [1, 2048], strides = [1, 1]} : vector<9x2048xf32> to vector<1x2048xf32>
    %14 = arith.maximumf %12, %13 : vector<1x2048xf32>
    %15 = vector.extract_strided_slice %1 {offsets = [7, 0], sizes = [1, 2048], strides = [1, 1]} : vector<9x2048xf32> to vector<1x2048xf32>
    %16 = arith.maximumf %14, %15 : vector<1x2048xf32>
    %17 = vector.extract_strided_slice %1 {offsets = [8, 0], sizes = [1, 2048], strides = [1, 1]} : vector<9x2048xf32> to vector<1x2048xf32>
    %18 = arith.maximumf %16, %17 : vector<1x2048xf32>
    %19 = arith.truncf %18 : vector<1x2048xf32> to vector<1x2048xbf16>
    %c0_1 = arith.constant 0 : index
    %c0_2 = arith.constant 0 : index
    %20 = vector.load %arg2[%c0_1, %c0_2] : memref<1x2048xbf16, #tpu.memory_space<vmem>>, vector<1x2048xbf16>
    tpu.vector_store %arg2[%c0_1, %c0_2], %19 {strides = array<i32>} : memref<1x2048xbf16, #tpu.memory_space<vmem>>, vector<1x2048xbf16>,
    return
  }
  func.func @transform_0(%arg0: i32) -> (i32, i32) {
    %c0_i32 = arith.constant 0 : i32
    %c0_i32_0 = arith.constant 0 : i32
    return %c0_i32, %arg0 : i32, i32
  }
  func.func @transform_1(%arg0: i32) -> (i32, i32) {
    %c0_i32 = arith.constant 0 : i32
    %c0_i32_0 = arith.constant 0 : i32
    return %c0_i32, %arg0 : i32, i32
  }
}

module attributes {stable_mosaic.version = 11 : i64} {
  func.func @_mm_affine_kernel(%arg0: i32, %arg1: memref<128x144xbf16, #tpu.memory_space<vmem>>, %arg2: memref<144x16xbf16, #tpu.memory_space<vmem>>, %arg3: memref<1x16xf32, #tpu.memory_space<vmem>>, %arg4: memref<1x16xf32, #tpu.memory_space<vmem>>, %arg5: memref<128x16xbf16, #tpu.memory_space<vmem>>) attributes {dimension_semantics = [#tpu.dimension_semantics<parallel>], iteration_bounds = array<i64: 1>, scalar_prefetch = 0 : i64, scratch_operands = 0 : i64, tpu.core_type = #tpu.core_type<tc>, window_params = [{transform_indices = @transform_0, window_bounds = array<i64: 128, 144>}, {pipeline_mode = #tpu.pipeline_mode<synchronous>, transform_indices = @transform_1, window_bounds = array<i64: 144, 16>}, {pipeline_mode = #tpu.pipeline_mode<synchronous>, transform_indices = @transform_2, window_bounds = array<i64: 1, 16>}, {pipeline_mode = #tpu.pipeline_mode<synchronous>, transform_indices = @transform_3, window_bounds = array<i64: 1, 16>}, {transform_indices = @transform_4, window_bounds = array<i64: 128, 16>}]} {
    %c0 = arith.constant 0 : index
    %c0_0 = arith.constant 0 : index
    %0 = vector.load %arg1[%c0, %c0_0] : memref<128x144xbf16, #tpu.memory_space<vmem>>, vector<128x144xbf16>
    %c0_1 = arith.constant 0 : index
    %c0_2 = arith.constant 0 : index
    %1 = vector.load %arg2[%c0_1, %c0_2] : memref<144x16xbf16, #tpu.memory_space<vmem>>, vector<144x16xbf16>
    %cst = arith.constant dense<0.000000e+00> : vector<128x16xf32>
    %2 = tpu.matmul %0, %1, %cst {dimension_numbers = #tpu.dot_dimension_numbers<[1], [0], [0], [1], [0, 0, 1, 1], [], []>} : vector<128x144xbf16>, vector<144x16xbf16>, vector<128x16xf32> -> vector<128x16xf32>
    %c0_3 = arith.constant 0 : index
    %c0_4 = arith.constant 0 : index
    %3 = vector.load %arg3[%c0_3, %c0_4] : memref<1x16xf32, #tpu.memory_space<vmem>>, vector<1x16xf32>
    %4 = vector.broadcast %3 : vector<1x16xf32> to vector<128x16xf32>
    %5 = arith.mulf %2, %4 : vector<128x16xf32>
    %c0_5 = arith.constant 0 : index
    %c0_6 = arith.constant 0 : index
    %6 = vector.load %arg4[%c0_5, %c0_6] : memref<1x16xf32, #tpu.memory_space<vmem>>, vector<1x16xf32>
    %7 = vector.broadcast %6 : vector<1x16xf32> to vector<128x16xf32>
    %8 = arith.addf %5, %7 : vector<128x16xf32>
    %cst_7 = arith.constant 0.000000e+00 : f32
    %9 = vector.broadcast %cst_7 : f32 to vector<128x16xf32>
    %10 = arith.maximumf %8, %9 : vector<128x16xf32>
    %11 = arith.truncf %10 : vector<128x16xf32> to vector<128x16xbf16>
    %c0_8 = arith.constant 0 : index
    %c0_9 = arith.constant 0 : index
    %12 = vector.load %arg5[%c0_8, %c0_9] : memref<128x16xbf16, #tpu.memory_space<vmem>>, vector<128x16xbf16>
    tpu.vector_store %arg5[%c0_8, %c0_9], %11 {strides = array<i32>} : memref<128x16xbf16, #tpu.memory_space<vmem>>, vector<128x16xbf16>,
    return
  }
  func.func @transform_0(%arg0: i32) -> (i32, i32) {
    %c0_i32 = arith.constant 0 : i32
    %c0_i32_0 = arith.constant 0 : i32
    return %arg0, %c0_i32 : i32, i32
  }
  func.func @transform_1(%arg0: i32) -> (i32, i32) {
    %c0_i32 = arith.constant 0 : i32
    %c0_i32_0 = arith.constant 0 : i32
    %c0_i32_1 = arith.constant 0 : i32
    return %c0_i32, %c0_i32_0 : i32, i32
  }
  func.func @transform_2(%arg0: i32) -> (i32, i32) {
    %c0_i32 = arith.constant 0 : i32
    %c0_i32_0 = arith.constant 0 : i32
    %c0_i32_1 = arith.constant 0 : i32
    return %c0_i32, %c0_i32_0 : i32, i32
  }
  func.func @transform_3(%arg0: i32) -> (i32, i32) {
    %c0_i32 = arith.constant 0 : i32
    %c0_i32_0 = arith.constant 0 : i32
    %c0_i32_1 = arith.constant 0 : i32
    return %c0_i32, %c0_i32_0 : i32, i32
  }
  func.func @transform_4(%arg0: i32) -> (i32, i32) {
    %c0_i32 = arith.constant 0 : i32
    %c0_i32_0 = arith.constant 0 : i32
    return %arg0, %c0_i32 : i32, i32
  }
}

module attributes {stable_mosaic.version = 11 : i64} {
  func.func @_mm_affine_kernel(%arg0: i32, %arg1: memref<128x144xbf16, #tpu.memory_space<vmem>>, %arg2: memref<144x16xbf16, #tpu.memory_space<vmem>>, %arg3: memref<1x16xf32, #tpu.memory_space<vmem>>, %arg4: memref<1x16xf32, #tpu.memory_space<vmem>>, %arg5: memref<128x16xbf16, #tpu.memory_space<vmem>>, %arg6: memref<128x16xbf16, #tpu.memory_space<vmem>>) attributes {dimension_semantics = [#tpu.dimension_semantics<parallel>], iteration_bounds = array<i64: 1>, scalar_prefetch = 0 : i64, scratch_operands = 0 : i64, tpu.core_type = #tpu.core_type<tc>, window_params = [{transform_indices = @transform_0, window_bounds = array<i64: 128, 144>}, {pipeline_mode = #tpu.pipeline_mode<synchronous>, transform_indices = @transform_1, window_bounds = array<i64: 144, 16>}, {pipeline_mode = #tpu.pipeline_mode<synchronous>, transform_indices = @transform_2, window_bounds = array<i64: 1, 16>}, {pipeline_mode = #tpu.pipeline_mode<synchronous>, transform_indices = @transform_3, window_bounds = array<i64: 1, 16>}, {transform_indices = @transform_4, window_bounds = array<i64: 128, 16>}, {transform_indices = @transform_5, window_bounds = array<i64: 128, 16>}]} {
    %c0 = arith.constant 0 : index
    %c0_0 = arith.constant 0 : index
    %0 = vector.load %arg1[%c0, %c0_0] : memref<128x144xbf16, #tpu.memory_space<vmem>>, vector<128x144xbf16>
    %c0_1 = arith.constant 0 : index
    %c0_2 = arith.constant 0 : index
    %1 = vector.load %arg2[%c0_1, %c0_2] : memref<144x16xbf16, #tpu.memory_space<vmem>>, vector<144x16xbf16>
    %cst = arith.constant dense<0.000000e+00> : vector<128x16xf32>
    %2 = tpu.matmul %0, %1, %cst {dimension_numbers = #tpu.dot_dimension_numbers<[1], [0], [0], [1], [0, 0, 1, 1], [], []>} : vector<128x144xbf16>, vector<144x16xbf16>, vector<128x16xf32> -> vector<128x16xf32>
    %c0_3 = arith.constant 0 : index
    %c0_4 = arith.constant 0 : index
    %3 = vector.load %arg3[%c0_3, %c0_4] : memref<1x16xf32, #tpu.memory_space<vmem>>, vector<1x16xf32>
    %4 = vector.broadcast %3 : vector<1x16xf32> to vector<128x16xf32>
    %5 = arith.mulf %2, %4 : vector<128x16xf32>
    %c0_5 = arith.constant 0 : index
    %c0_6 = arith.constant 0 : index
    %6 = vector.load %arg4[%c0_5, %c0_6] : memref<1x16xf32, #tpu.memory_space<vmem>>, vector<1x16xf32>
    %7 = vector.broadcast %6 : vector<1x16xf32> to vector<128x16xf32>
    %8 = arith.addf %5, %7 : vector<128x16xf32>
    %c0_7 = arith.constant 0 : index
    %c0_8 = arith.constant 0 : index
    %9 = vector.load %arg5[%c0_7, %c0_8] : memref<128x16xbf16, #tpu.memory_space<vmem>>, vector<128x16xbf16>
    %10 = arith.extf %9 : vector<128x16xbf16> to vector<128x16xf32>
    %11 = arith.addf %8, %10 : vector<128x16xf32>
    %cst_9 = arith.constant 0.000000e+00 : f32
    %12 = vector.broadcast %cst_9 : f32 to vector<128x16xf32>
    %13 = arith.maximumf %11, %12 : vector<128x16xf32>
    %14 = arith.truncf %13 : vector<128x16xf32> to vector<128x16xbf16>
    %c0_10 = arith.constant 0 : index
    %c0_11 = arith.constant 0 : index
    %15 = vector.load %arg6[%c0_10, %c0_11] : memref<128x16xbf16, #tpu.memory_space<vmem>>, vector<128x16xbf16>
    tpu.vector_store %arg6[%c0_10, %c0_11], %14 {strides = array<i32>} : memref<128x16xbf16, #tpu.memory_space<vmem>>, vector<128x16xbf16>,
    return
  }
  func.func @transform_0(%arg0: i32) -> (i32, i32) {
    %c0_i32 = arith.constant 0 : i32
    %c0_i32_0 = arith.constant 0 : i32
    return %arg0, %c0_i32 : i32, i32
  }
  func.func @transform_1(%arg0: i32) -> (i32, i32) {
    %c0_i32 = arith.constant 0 : i32
    %c0_i32_0 = arith.constant 0 : i32
    %c0_i32_1 = arith.constant 0 : i32
    return %c0_i32, %c0_i32_0 : i32, i32
  }
  func.func @transform_2(%arg0: i32) -> (i32, i32) {
    %c0_i32 = arith.constant 0 : i32
    %c0_i32_0 = arith.constant 0 : i32
    %c0_i32_1 = arith.constant 0 : i32
    return %c0_i32, %c0_i32_0 : i32, i32
  }
  func.func @transform_3(%arg0: i32) -> (i32, i32) {
    %c0_i32 = arith.constant 0 : i32
    %c0_i32_0 = arith.constant 0 : i32
    %c0_i32_1 = arith.constant 0 : i32
    return %c0_i32, %c0_i32_0 : i32, i32
  }
  func.func @transform_4(%arg0: i32) -> (i32, i32) {
    %c0_i32 = arith.constant 0 : i32
    %c0_i32_0 = arith.constant 0 : i32
    return %arg0, %c0_i32 : i32, i32
  }
  func.func @transform_5(%arg0: i32) -> (i32, i32) {
    %c0_i32 = arith.constant 0 : i32
    %c0_i32_0 = arith.constant 0 : i32
    return %arg0, %c0_i32 : i32, i32
  }
}

module attributes {stable_mosaic.version = 11 : i64} {
  func.func @_mm_affine_kernel(%arg0: i32, %arg1: memref<32x144xbf16, #tpu.memory_space<vmem>>, %arg2: memref<144x32xbf16, #tpu.memory_space<vmem>>, %arg3: memref<1x32xf32, #tpu.memory_space<vmem>>, %arg4: memref<1x32xf32, #tpu.memory_space<vmem>>, %arg5: memref<32x32xbf16, #tpu.memory_space<vmem>>) attributes {dimension_semantics = [#tpu.dimension_semantics<parallel>], iteration_bounds = array<i64: 1>, scalar_prefetch = 0 : i64, scratch_operands = 0 : i64, tpu.core_type = #tpu.core_type<tc>, window_params = [{transform_indices = @transform_0, window_bounds = array<i64: 32, 144>}, {pipeline_mode = #tpu.pipeline_mode<synchronous>, transform_indices = @transform_1, window_bounds = array<i64: 144, 32>}, {pipeline_mode = #tpu.pipeline_mode<synchronous>, transform_indices = @transform_2, window_bounds = array<i64: 1, 32>}, {pipeline_mode = #tpu.pipeline_mode<synchronous>, transform_indices = @transform_3, window_bounds = array<i64: 1, 32>}, {transform_indices = @transform_4, window_bounds = array<i64: 32, 32>}]} {
    %c0 = arith.constant 0 : index
    %c0_0 = arith.constant 0 : index
    %0 = vector.load %arg1[%c0, %c0_0] : memref<32x144xbf16, #tpu.memory_space<vmem>>, vector<32x144xbf16>
    %c0_1 = arith.constant 0 : index
    %c0_2 = arith.constant 0 : index
    %1 = vector.load %arg2[%c0_1, %c0_2] : memref<144x32xbf16, #tpu.memory_space<vmem>>, vector<144x32xbf16>
    %cst = arith.constant dense<0.000000e+00> : vector<32x32xf32>
    %2 = tpu.matmul %0, %1, %cst {dimension_numbers = #tpu.dot_dimension_numbers<[1], [0], [0], [1], [0, 0, 1, 1], [], []>} : vector<32x144xbf16>, vector<144x32xbf16>, vector<32x32xf32> -> vector<32x32xf32>
    %c0_3 = arith.constant 0 : index
    %c0_4 = arith.constant 0 : index
    %3 = vector.load %arg3[%c0_3, %c0_4] : memref<1x32xf32, #tpu.memory_space<vmem>>, vector<1x32xf32>
    %4 = vector.broadcast %3 : vector<1x32xf32> to vector<32x32xf32>
    %5 = arith.mulf %2, %4 : vector<32x32xf32>
    %c0_5 = arith.constant 0 : index
    %c0_6 = arith.constant 0 : index
    %6 = vector.load %arg4[%c0_5, %c0_6] : memref<1x32xf32, #tpu.memory_space<vmem>>, vector<1x32xf32>
    %7 = vector.broadcast %6 : vector<1x32xf32> to vector<32x32xf32>
    %8 = arith.addf %5, %7 : vector<32x32xf32>
    %cst_7 = arith.constant 0.000000e+00 : f32
    %9 = vector.broadcast %cst_7 : f32 to vector<32x32xf32>
    %10 = arith.maximumf %8, %9 : vector<32x32xf32>
    %11 = arith.truncf %10 : vector<32x32xf32> to vector<32x32xbf16>
    %c0_8 = arith.constant 0 : index
    %c0_9 = arith.constant 0 : index
    %12 = vector.load %arg5[%c0_8, %c0_9] : memref<32x32xbf16, #tpu.memory_space<vmem>>, vector<32x32xbf16>
    tpu.vector_store %arg5[%c0_8, %c0_9], %11 {strides = array<i32>} : memref<32x32xbf16, #tpu.memory_space<vmem>>, vector<32x32xbf16>,
    return
  }
  func.func @transform_0(%arg0: i32) -> (i32, i32) {
    %c0_i32 = arith.constant 0 : i32
    %c0_i32_0 = arith.constant 0 : i32
    return %arg0, %c0_i32 : i32, i32
  }
  func.func @transform_1(%arg0: i32) -> (i32, i32) {
    %c0_i32 = arith.constant 0 : i32
    %c0_i32_0 = arith.constant 0 : i32
    %c0_i32_1 = arith.constant 0 : i32
    return %c0_i32, %c0_i32_0 : i32, i32
  }
  func.func @transform_2(%arg0: i32) -> (i32, i32) {
    %c0_i32 = arith.constant 0 : i32
    %c0_i32_0 = arith.constant 0 : i32
    %c0_i32_1 = arith.constant 0 : i32
    return %c0_i32, %c0_i32_0 : i32, i32
  }
  func.func @transform_3(%arg0: i32) -> (i32, i32) {
    %c0_i32 = arith.constant 0 : i32
    %c0_i32_0 = arith.constant 0 : i32
    %c0_i32_1 = arith.constant 0 : i32
    return %c0_i32, %c0_i32_0 : i32, i32
  }
  func.func @transform_4(%arg0: i32) -> (i32, i32) {
    %c0_i32 = arith.constant 0 : i32
    %c0_i32_0 = arith.constant 0 : i32
    return %arg0, %c0_i32 : i32, i32
  }
}

module attributes {stable_mosaic.version = 11 : i64} {
  func.func @_mm_affine_kernel(%arg0: i32, %arg1: memref<32x288xbf16, #tpu.memory_space<vmem>>, %arg2: memref<288x32xbf16, #tpu.memory_space<vmem>>, %arg3: memref<1x32xf32, #tpu.memory_space<vmem>>, %arg4: memref<1x32xf32, #tpu.memory_space<vmem>>, %arg5: memref<32x32xbf16, #tpu.memory_space<vmem>>, %arg6: memref<32x32xbf16, #tpu.memory_space<vmem>>) attributes {dimension_semantics = [#tpu.dimension_semantics<parallel>], iteration_bounds = array<i64: 1>, scalar_prefetch = 0 : i64, scratch_operands = 0 : i64, tpu.core_type = #tpu.core_type<tc>, window_params = [{transform_indices = @transform_0, window_bounds = array<i64: 32, 288>}, {pipeline_mode = #tpu.pipeline_mode<synchronous>, transform_indices = @transform_1, window_bounds = array<i64: 288, 32>}, {pipeline_mode = #tpu.pipeline_mode<synchronous>, transform_indices = @transform_2, window_bounds = array<i64: 1, 32>}, {pipeline_mode = #tpu.pipeline_mode<synchronous>, transform_indices = @transform_3, window_bounds = array<i64: 1, 32>}, {transform_indices = @transform_4, window_bounds = array<i64: 32, 32>}, {transform_indices = @transform_5, window_bounds = array<i64: 32, 32>}]} {
    %c0 = arith.constant 0 : index
    %c0_0 = arith.constant 0 : index
    %0 = vector.load %arg1[%c0, %c0_0] : memref<32x288xbf16, #tpu.memory_space<vmem>>, vector<32x288xbf16>
    %c0_1 = arith.constant 0 : index
    %c0_2 = arith.constant 0 : index
    %1 = vector.load %arg2[%c0_1, %c0_2] : memref<288x32xbf16, #tpu.memory_space<vmem>>, vector<288x32xbf16>
    %cst = arith.constant dense<0.000000e+00> : vector<32x32xf32>
    %2 = tpu.matmul %0, %1, %cst {dimension_numbers = #tpu.dot_dimension_numbers<[1], [0], [0], [1], [0, 0, 1, 1], [], []>} : vector<32x288xbf16>, vector<288x32xbf16>, vector<32x32xf32> -> vector<32x32xf32>
    %c0_3 = arith.constant 0 : index
    %c0_4 = arith.constant 0 : index
    %3 = vector.load %arg3[%c0_3, %c0_4] : memref<1x32xf32, #tpu.memory_space<vmem>>, vector<1x32xf32>
    %4 = vector.broadcast %3 : vector<1x32xf32> to vector<32x32xf32>
    %5 = arith.mulf %2, %4 : vector<32x32xf32>
    %c0_5 = arith.constant 0 : index
    %c0_6 = arith.constant 0 : index
    %6 = vector.load %arg4[%c0_5, %c0_6] : memref<1x32xf32, #tpu.memory_space<vmem>>, vector<1x32xf32>
    %7 = vector.broadcast %6 : vector<1x32xf32> to vector<32x32xf32>
    %8 = arith.addf %5, %7 : vector<32x32xf32>
    %c0_7 = arith.constant 0 : index
    %c0_8 = arith.constant 0 : index
    %9 = vector.load %arg5[%c0_7, %c0_8] : memref<32x32xbf16, #tpu.memory_space<vmem>>, vector<32x32xbf16>
    %10 = arith.extf %9 : vector<32x32xbf16> to vector<32x32xf32>
    %11 = arith.addf %8, %10 : vector<32x32xf32>
    %cst_9 = arith.constant 0.000000e+00 : f32
    %12 = vector.broadcast %cst_9 : f32 to vector<32x32xf32>
    %13 = arith.maximumf %11, %12 : vector<32x32xf32>
    %14 = arith.truncf %13 : vector<32x32xf32> to vector<32x32xbf16>
    %c0_10 = arith.constant 0 : index
    %c0_11 = arith.constant 0 : index
    %15 = vector.load %arg6[%c0_10, %c0_11] : memref<32x32xbf16, #tpu.memory_space<vmem>>, vector<32x32xbf16>
    tpu.vector_store %arg6[%c0_10, %c0_11], %14 {strides = array<i32>} : memref<32x32xbf16, #tpu.memory_space<vmem>>, vector<32x32xbf16>,
    return
  }
  func.func @transform_0(%arg0: i32) -> (i32, i32) {
    %c0_i32 = arith.constant 0 : i32
    %c0_i32_0 = arith.constant 0 : i32
    return %arg0, %c0_i32 : i32, i32
  }
  func.func @transform_1(%arg0: i32) -> (i32, i32) {
    %c0_i32 = arith.constant 0 : i32
    %c0_i32_0 = arith.constant 0 : i32
    %c0_i32_1 = arith.constant 0 : i32
    return %c0_i32, %c0_i32_0 : i32, i32
  }
  func.func @transform_2(%arg0: i32) -> (i32, i32) {
    %c0_i32 = arith.constant 0 : i32
    %c0_i32_0 = arith.constant 0 : i32
    %c0_i32_1 = arith.constant 0 : i32
    return %c0_i32, %c0_i32_0 : i32, i32
  }
  func.func @transform_3(%arg0: i32) -> (i32, i32) {
    %c0_i32 = arith.constant 0 : i32
    %c0_i32_0 = arith.constant 0 : i32
    %c0_i32_1 = arith.constant 0 : i32
    return %c0_i32, %c0_i32_0 : i32, i32
  }
  func.func @transform_4(%arg0: i32) -> (i32, i32) {
    %c0_i32 = arith.constant 0 : i32
    %c0_i32_0 = arith.constant 0 : i32
    return %arg0, %c0_i32 : i32, i32
  }
  func.func @transform_5(%arg0: i32) -> (i32, i32) {
    %c0_i32 = arith.constant 0 : i32
    %c0_i32_0 = arith.constant 0 : i32
    return %arg0, %c0_i32 : i32, i32
  }
}

module attributes {stable_mosaic.version = 11 : i64} {
  func.func @_mm_affine_kernel(%arg0: i32, %arg1: memref<32x16xbf16, #tpu.memory_space<vmem>>, %arg2: memref<16x32xbf16, #tpu.memory_space<vmem>>, %arg3: memref<1x32xf32, #tpu.memory_space<vmem>>, %arg4: memref<1x32xf32, #tpu.memory_space<vmem>>, %arg5: memref<32x32xbf16, #tpu.memory_space<vmem>>) attributes {dimension_semantics = [#tpu.dimension_semantics<parallel>], iteration_bounds = array<i64: 1>, scalar_prefetch = 0 : i64, scratch_operands = 0 : i64, tpu.core_type = #tpu.core_type<tc>, window_params = [{transform_indices = @transform_0, window_bounds = array<i64: 32, 16>}, {pipeline_mode = #tpu.pipeline_mode<synchronous>, transform_indices = @transform_1, window_bounds = array<i64: 16, 32>}, {pipeline_mode = #tpu.pipeline_mode<synchronous>, transform_indices = @transform_2, window_bounds = array<i64: 1, 32>}, {pipeline_mode = #tpu.pipeline_mode<synchronous>, transform_indices = @transform_3, window_bounds = array<i64: 1, 32>}, {transform_indices = @transform_4, window_bounds = array<i64: 32, 32>}]} {
    %c0 = arith.constant 0 : index
    %c0_0 = arith.constant 0 : index
    %0 = vector.load %arg1[%c0, %c0_0] : memref<32x16xbf16, #tpu.memory_space<vmem>>, vector<32x16xbf16>
    %c0_1 = arith.constant 0 : index
    %c0_2 = arith.constant 0 : index
    %1 = vector.load %arg2[%c0_1, %c0_2] : memref<16x32xbf16, #tpu.memory_space<vmem>>, vector<16x32xbf16>
    %cst = arith.constant dense<0.000000e+00> : vector<32x32xf32>
    %2 = tpu.matmul %0, %1, %cst {dimension_numbers = #tpu.dot_dimension_numbers<[1], [0], [0], [1], [0, 0, 1, 1], [], []>} : vector<32x16xbf16>, vector<16x32xbf16>, vector<32x32xf32> -> vector<32x32xf32>
    %c0_3 = arith.constant 0 : index
    %c0_4 = arith.constant 0 : index
    %3 = vector.load %arg3[%c0_3, %c0_4] : memref<1x32xf32, #tpu.memory_space<vmem>>, vector<1x32xf32>
    %4 = vector.broadcast %3 : vector<1x32xf32> to vector<32x32xf32>
    %5 = arith.mulf %2, %4 : vector<32x32xf32>
    %c0_5 = arith.constant 0 : index
    %c0_6 = arith.constant 0 : index
    %6 = vector.load %arg4[%c0_5, %c0_6] : memref<1x32xf32, #tpu.memory_space<vmem>>, vector<1x32xf32>
    %7 = vector.broadcast %6 : vector<1x32xf32> to vector<32x32xf32>
    %8 = arith.addf %5, %7 : vector<32x32xf32>
    %9 = arith.truncf %8 : vector<32x32xf32> to vector<32x32xbf16>
    %c0_7 = arith.constant 0 : index
    %c0_8 = arith.constant 0 : index
    %10 = vector.load %arg5[%c0_7, %c0_8] : memref<32x32xbf16, #tpu.memory_space<vmem>>, vector<32x32xbf16>
    tpu.vector_store %arg5[%c0_7, %c0_8], %9 {strides = array<i32>} : memref<32x32xbf16, #tpu.memory_space<vmem>>, vector<32x32xbf16>,
    return
  }
  func.func @transform_0(%arg0: i32) -> (i32, i32) {
    %c0_i32 = arith.constant 0 : i32
    %c0_i32_0 = arith.constant 0 : i32
    return %arg0, %c0_i32 : i32, i32
  }
  func.func @transform_1(%arg0: i32) -> (i32, i32) {
    %c0_i32 = arith.constant 0 : i32
    %c0_i32_0 = arith.constant 0 : i32
    %c0_i32_1 = arith.constant 0 : i32
    return %c0_i32, %c0_i32_0 : i32, i32
  }
  func.func @transform_2(%arg0: i32) -> (i32, i32) {
    %c0_i32 = arith.constant 0 : i32
    %c0_i32_0 = arith.constant 0 : i32
    %c0_i32_1 = arith.constant 0 : i32
    return %c0_i32, %c0_i32_0 : i32, i32
  }
  func.func @transform_3(%arg0: i32) -> (i32, i32) {
    %c0_i32 = arith.constant 0 : i32
    %c0_i32_0 = arith.constant 0 : i32
    %c0_i32_1 = arith.constant 0 : i32
    return %c0_i32, %c0_i32_0 : i32, i32
  }
  func.func @transform_4(%arg0: i32) -> (i32, i32) {
    %c0_i32 = arith.constant 0 : i32
    %c0_i32_0 = arith.constant 0 : i32
    return %arg0, %c0_i32 : i32, i32
  }
}

module attributes {stable_mosaic.version = 11 : i64} {
  func.func @_mm_affine_kernel(%arg0: i32, %arg1: memref<32x288xbf16, #tpu.memory_space<vmem>>, %arg2: memref<288x32xbf16, #tpu.memory_space<vmem>>, %arg3: memref<1x32xf32, #tpu.memory_space<vmem>>, %arg4: memref<1x32xf32, #tpu.memory_space<vmem>>, %arg5: memref<32x32xbf16, #tpu.memory_space<vmem>>) attributes {dimension_semantics = [#tpu.dimension_semantics<parallel>], iteration_bounds = array<i64: 1>, scalar_prefetch = 0 : i64, scratch_operands = 0 : i64, tpu.core_type = #tpu.core_type<tc>, window_params = [{transform_indices = @transform_0, window_bounds = array<i64: 32, 288>}, {pipeline_mode = #tpu.pipeline_mode<synchronous>, transform_indices = @transform_1, window_bounds = array<i64: 288, 32>}, {pipeline_mode = #tpu.pipeline_mode<synchronous>, transform_indices = @transform_2, window_bounds = array<i64: 1, 32>}, {pipeline_mode = #tpu.pipeline_mode<synchronous>, transform_indices = @transform_3, window_bounds = array<i64: 1, 32>}, {transform_indices = @transform_4, window_bounds = array<i64: 32, 32>}]} {
    %c0 = arith.constant 0 : index
    %c0_0 = arith.constant 0 : index
    %0 = vector.load %arg1[%c0, %c0_0] : memref<32x288xbf16, #tpu.memory_space<vmem>>, vector<32x288xbf16>
    %c0_1 = arith.constant 0 : index
    %c0_2 = arith.constant 0 : index
    %1 = vector.load %arg2[%c0_1, %c0_2] : memref<288x32xbf16, #tpu.memory_space<vmem>>, vector<288x32xbf16>
    %cst = arith.constant dense<0.000000e+00> : vector<32x32xf32>
    %2 = tpu.matmul %0, %1, %cst {dimension_numbers = #tpu.dot_dimension_numbers<[1], [0], [0], [1], [0, 0, 1, 1], [], []>} : vector<32x288xbf16>, vector<288x32xbf16>, vector<32x32xf32> -> vector<32x32xf32>
    %c0_3 = arith.constant 0 : index
    %c0_4 = arith.constant 0 : index
    %3 = vector.load %arg3[%c0_3, %c0_4] : memref<1x32xf32, #tpu.memory_space<vmem>>, vector<1x32xf32>
    %4 = vector.broadcast %3 : vector<1x32xf32> to vector<32x32xf32>
    %5 = arith.mulf %2, %4 : vector<32x32xf32>
    %c0_5 = arith.constant 0 : index
    %c0_6 = arith.constant 0 : index
    %6 = vector.load %arg4[%c0_5, %c0_6] : memref<1x32xf32, #tpu.memory_space<vmem>>, vector<1x32xf32>
    %7 = vector.broadcast %6 : vector<1x32xf32> to vector<32x32xf32>
    %8 = arith.addf %5, %7 : vector<32x32xf32>
    %cst_7 = arith.constant 0.000000e+00 : f32
    %9 = vector.broadcast %cst_7 : f32 to vector<32x32xf32>
    %10 = arith.maximumf %8, %9 : vector<32x32xf32>
    %11 = arith.truncf %10 : vector<32x32xf32> to vector<32x32xbf16>
    %c0_8 = arith.constant 0 : index
    %c0_9 = arith.constant 0 : index
    %12 = vector.load %arg5[%c0_8, %c0_9] : memref<32x32xbf16, #tpu.memory_space<vmem>>, vector<32x32xbf16>
    tpu.vector_store %arg5[%c0_8, %c0_9], %11 {strides = array<i32>} : memref<32x32xbf16, #tpu.memory_space<vmem>>, vector<32x32xbf16>,
    return
  }
  func.func @transform_0(%arg0: i32) -> (i32, i32) {
    %c0_i32 = arith.constant 0 : i32
    %c0_i32_0 = arith.constant 0 : i32
    return %arg0, %c0_i32 : i32, i32
  }
  func.func @transform_1(%arg0: i32) -> (i32, i32) {
    %c0_i32 = arith.constant 0 : i32
    %c0_i32_0 = arith.constant 0 : i32
    %c0_i32_1 = arith.constant 0 : i32
    return %c0_i32, %c0_i32_0 : i32, i32
  }
  func.func @transform_2(%arg0: i32) -> (i32, i32) {
    %c0_i32 = arith.constant 0 : i32
    %c0_i32_0 = arith.constant 0 : i32
    %c0_i32_1 = arith.constant 0 : i32
    return %c0_i32, %c0_i32_0 : i32, i32
  }
  func.func @transform_3(%arg0: i32) -> (i32, i32) {
    %c0_i32 = arith.constant 0 : i32
    %c0_i32_0 = arith.constant 0 : i32
    %c0_i32_1 = arith.constant 0 : i32
    return %c0_i32, %c0_i32_0 : i32, i32
  }
  func.func @transform_4(%arg0: i32) -> (i32, i32) {
    %c0_i32 = arith.constant 0 : i32
    %c0_i32_0 = arith.constant 0 : i32
    return %arg0, %c0_i32 : i32, i32
  }
}

module attributes {stable_mosaic.version = 11 : i64} {
  func.func @_mm_affine_kernel(%arg0: i32, %arg1: memref<8x288xbf16, #tpu.memory_space<vmem>>, %arg2: memref<288x64xbf16, #tpu.memory_space<vmem>>, %arg3: memref<1x64xf32, #tpu.memory_space<vmem>>, %arg4: memref<1x64xf32, #tpu.memory_space<vmem>>, %arg5: memref<8x64xbf16, #tpu.memory_space<vmem>>) attributes {dimension_semantics = [#tpu.dimension_semantics<parallel>], iteration_bounds = array<i64: 1>, scalar_prefetch = 0 : i64, scratch_operands = 0 : i64, tpu.core_type = #tpu.core_type<tc>, window_params = [{transform_indices = @transform_0, window_bounds = array<i64: 8, 288>}, {pipeline_mode = #tpu.pipeline_mode<synchronous>, transform_indices = @transform_1, window_bounds = array<i64: 288, 64>}, {pipeline_mode = #tpu.pipeline_mode<synchronous>, transform_indices = @transform_2, window_bounds = array<i64: 1, 64>}, {pipeline_mode = #tpu.pipeline_mode<synchronous>, transform_indices = @transform_3, window_bounds = array<i64: 1, 64>}, {transform_indices = @transform_4, window_bounds = array<i64: 8, 64>}]} {
    %c0 = arith.constant 0 : index
    %c0_0 = arith.constant 0 : index
    %0 = vector.load %arg1[%c0, %c0_0] : memref<8x288xbf16, #tpu.memory_space<vmem>>, vector<8x288xbf16>
    %c0_1 = arith.constant 0 : index
    %c0_2 = arith.constant 0 : index
    %1 = vector.load %arg2[%c0_1, %c0_2] : memref<288x64xbf16, #tpu.memory_space<vmem>>, vector<288x64xbf16>
    %cst = arith.constant dense<0.000000e+00> : vector<8x64xf32>
    %2 = tpu.matmul %0, %1, %cst {dimension_numbers = #tpu.dot_dimension_numbers<[1], [0], [0], [1], [0, 0, 1, 1], [], []>} : vector<8x288xbf16>, vector<288x64xbf16>, vector<8x64xf32> -> vector<8x64xf32>
    %c0_3 = arith.constant 0 : index
    %c0_4 = arith.constant 0 : index
    %3 = vector.load %arg3[%c0_3, %c0_4] : memref<1x64xf32, #tpu.memory_space<vmem>>, vector<1x64xf32>
    %4 = vector.broadcast %3 : vector<1x64xf32> to vector<8x64xf32>
    %5 = arith.mulf %2, %4 : vector<8x64xf32>
    %c0_5 = arith.constant 0 : index
    %c0_6 = arith.constant 0 : index
    %6 = vector.load %arg4[%c0_5, %c0_6] : memref<1x64xf32, #tpu.memory_space<vmem>>, vector<1x64xf32>
    %7 = vector.broadcast %6 : vector<1x64xf32> to vector<8x64xf32>
    %8 = arith.addf %5, %7 : vector<8x64xf32>
    %cst_7 = arith.constant 0.000000e+00 : f32
    %9 = vector.broadcast %cst_7 : f32 to vector<8x64xf32>
    %10 = arith.maximumf %8, %9 : vector<8x64xf32>
    %11 = arith.truncf %10 : vector<8x64xf32> to vector<8x64xbf16>
    %c0_8 = arith.constant 0 : index
    %c0_9 = arith.constant 0 : index
    %12 = vector.load %arg5[%c0_8, %c0_9] : memref<8x64xbf16, #tpu.memory_space<vmem>>, vector<8x64xbf16>
    tpu.vector_store %arg5[%c0_8, %c0_9], %11 {strides = array<i32>} : memref<8x64xbf16, #tpu.memory_space<vmem>>, vector<8x64xbf16>,
    return
  }
  func.func @transform_0(%arg0: i32) -> (i32, i32) {
    %c0_i32 = arith.constant 0 : i32
    %c0_i32_0 = arith.constant 0 : i32
    return %arg0, %c0_i32 : i32, i32
  }
  func.func @transform_1(%arg0: i32) -> (i32, i32) {
    %c0_i32 = arith.constant 0 : i32
    %c0_i32_0 = arith.constant 0 : i32
    %c0_i32_1 = arith.constant 0 : i32
    return %c0_i32, %c0_i32_0 : i32, i32
  }
  func.func @transform_2(%arg0: i32) -> (i32, i32) {
    %c0_i32 = arith.constant 0 : i32
    %c0_i32_0 = arith.constant 0 : i32
    %c0_i32_1 = arith.constant 0 : i32
    return %c0_i32, %c0_i32_0 : i32, i32
  }
  func.func @transform_3(%arg0: i32) -> (i32, i32) {
    %c0_i32 = arith.constant 0 : i32
    %c0_i32_0 = arith.constant 0 : i32
    %c0_i32_1 = arith.constant 0 : i32
    return %c0_i32, %c0_i32_0 : i32, i32
  }
  func.func @transform_4(%arg0: i32) -> (i32, i32) {
    %c0_i32 = arith.constant 0 : i32
    %c0_i32_0 = arith.constant 0 : i32
    return %arg0, %c0_i32 : i32, i32
  }
}

module attributes {stable_mosaic.version = 11 : i64} {
  func.func @_mm_affine_kernel(%arg0: i32, %arg1: memref<8x576xbf16, #tpu.memory_space<vmem>>, %arg2: memref<576x64xbf16, #tpu.memory_space<vmem>>, %arg3: memref<1x64xf32, #tpu.memory_space<vmem>>, %arg4: memref<1x64xf32, #tpu.memory_space<vmem>>, %arg5: memref<8x64xbf16, #tpu.memory_space<vmem>>, %arg6: memref<8x64xbf16, #tpu.memory_space<vmem>>) attributes {dimension_semantics = [#tpu.dimension_semantics<parallel>], iteration_bounds = array<i64: 1>, scalar_prefetch = 0 : i64, scratch_operands = 0 : i64, tpu.core_type = #tpu.core_type<tc>, window_params = [{transform_indices = @transform_0, window_bounds = array<i64: 8, 576>}, {pipeline_mode = #tpu.pipeline_mode<synchronous>, transform_indices = @transform_1, window_bounds = array<i64: 576, 64>}, {pipeline_mode = #tpu.pipeline_mode<synchronous>, transform_indices = @transform_2, window_bounds = array<i64: 1, 64>}, {pipeline_mode = #tpu.pipeline_mode<synchronous>, transform_indices = @transform_3, window_bounds = array<i64: 1, 64>}, {transform_indices = @transform_4, window_bounds = array<i64: 8, 64>}, {transform_indices = @transform_5, window_bounds = array<i64: 8, 64>}]} {
    %c0 = arith.constant 0 : index
    %c0_0 = arith.constant 0 : index
    %0 = vector.load %arg1[%c0, %c0_0] : memref<8x576xbf16, #tpu.memory_space<vmem>>, vector<8x576xbf16>
    %c0_1 = arith.constant 0 : index
    %c0_2 = arith.constant 0 : index
    %1 = vector.load %arg2[%c0_1, %c0_2] : memref<576x64xbf16, #tpu.memory_space<vmem>>, vector<576x64xbf16>
    %cst = arith.constant dense<0.000000e+00> : vector<8x64xf32>
    %2 = tpu.matmul %0, %1, %cst {dimension_numbers = #tpu.dot_dimension_numbers<[1], [0], [0], [1], [0, 0, 1, 1], [], []>} : vector<8x576xbf16>, vector<576x64xbf16>, vector<8x64xf32> -> vector<8x64xf32>
    %c0_3 = arith.constant 0 : index
    %c0_4 = arith.constant 0 : index
    %3 = vector.load %arg3[%c0_3, %c0_4] : memref<1x64xf32, #tpu.memory_space<vmem>>, vector<1x64xf32>
    %4 = vector.broadcast %3 : vector<1x64xf32> to vector<8x64xf32>
    %5 = arith.mulf %2, %4 : vector<8x64xf32>
    %c0_5 = arith.constant 0 : index
    %c0_6 = arith.constant 0 : index
    %6 = vector.load %arg4[%c0_5, %c0_6] : memref<1x64xf32, #tpu.memory_space<vmem>>, vector<1x64xf32>
    %7 = vector.broadcast %6 : vector<1x64xf32> to vector<8x64xf32>
    %8 = arith.addf %5, %7 : vector<8x64xf32>
    %c0_7 = arith.constant 0 : index
    %c0_8 = arith.constant 0 : index
    %9 = vector.load %arg5[%c0_7, %c0_8] : memref<8x64xbf16, #tpu.memory_space<vmem>>, vector<8x64xbf16>
    %10 = arith.extf %9 : vector<8x64xbf16> to vector<8x64xf32>
    %11 = arith.addf %8, %10 : vector<8x64xf32>
    %cst_9 = arith.constant 0.000000e+00 : f32
    %12 = vector.broadcast %cst_9 : f32 to vector<8x64xf32>
    %13 = arith.maximumf %11, %12 : vector<8x64xf32>
    %14 = arith.truncf %13 : vector<8x64xf32> to vector<8x64xbf16>
    %c0_10 = arith.constant 0 : index
    %c0_11 = arith.constant 0 : index
    %15 = vector.load %arg6[%c0_10, %c0_11] : memref<8x64xbf16, #tpu.memory_space<vmem>>, vector<8x64xbf16>
    tpu.vector_store %arg6[%c0_10, %c0_11], %14 {strides = array<i32>} : memref<8x64xbf16, #tpu.memory_space<vmem>>, vector<8x64xbf16>,
    return
  }
  func.func @transform_0(%arg0: i32) -> (i32, i32) {
    %c0_i32 = arith.constant 0 : i32
    %c0_i32_0 = arith.constant 0 : i32
    return %arg0, %c0_i32 : i32, i32
  }
  func.func @transform_1(%arg0: i32) -> (i32, i32) {
    %c0_i32 = arith.constant 0 : i32
    %c0_i32_0 = arith.constant 0 : i32
    %c0_i32_1 = arith.constant 0 : i32
    return %c0_i32, %c0_i32_0 : i32, i32
  }
  func.func @transform_2(%arg0: i32) -> (i32, i32) {
    %c0_i32 = arith.constant 0 : i32
    %c0_i32_0 = arith.constant 0 : i32
    %c0_i32_1 = arith.constant 0 : i32
    return %c0_i32, %c0_i32_0 : i32, i32
  }
  func.func @transform_3(%arg0: i32) -> (i32, i32) {
    %c0_i32 = arith.constant 0 : i32
    %c0_i32_0 = arith.constant 0 : i32
    %c0_i32_1 = arith.constant 0 : i32
    return %c0_i32, %c0_i32_0 : i32, i32
  }
  func.func @transform_4(%arg0: i32) -> (i32, i32) {
    %c0_i32 = arith.constant 0 : i32
    %c0_i32_0 = arith.constant 0 : i32
    return %arg0, %c0_i32 : i32, i32
  }
  func.func @transform_5(%arg0: i32) -> (i32, i32) {
    %c0_i32 = arith.constant 0 : i32
    %c0_i32_0 = arith.constant 0 : i32
    return %arg0, %c0_i32 : i32, i32
  }
}

module attributes {stable_mosaic.version = 11 : i64} {
  func.func @_mm_affine_kernel(%arg0: i32, %arg1: memref<8x576xbf16, #tpu.memory_space<vmem>>, %arg2: memref<576x64xbf16, #tpu.memory_space<vmem>>, %arg3: memref<1x64xf32, #tpu.memory_space<vmem>>, %arg4: memref<1x64xf32, #tpu.memory_space<vmem>>, %arg5: memref<8x64xbf16, #tpu.memory_space<vmem>>) attributes {dimension_semantics = [#tpu.dimension_semantics<parallel>], iteration_bounds = array<i64: 1>, scalar_prefetch = 0 : i64, scratch_operands = 0 : i64, tpu.core_type = #tpu.core_type<tc>, window_params = [{transform_indices = @transform_0, window_bounds = array<i64: 8, 576>}, {pipeline_mode = #tpu.pipeline_mode<synchronous>, transform_indices = @transform_1, window_bounds = array<i64: 576, 64>}, {pipeline_mode = #tpu.pipeline_mode<synchronous>, transform_indices = @transform_2, window_bounds = array<i64: 1, 64>}, {pipeline_mode = #tpu.pipeline_mode<synchronous>, transform_indices = @transform_3, window_bounds = array<i64: 1, 64>}, {transform_indices = @transform_4, window_bounds = array<i64: 8, 64>}]} {
    %c0 = arith.constant 0 : index
    %c0_0 = arith.constant 0 : index
    %0 = vector.load %arg1[%c0, %c0_0] : memref<8x576xbf16, #tpu.memory_space<vmem>>, vector<8x576xbf16>
    %c0_1 = arith.constant 0 : index
    %c0_2 = arith.constant 0 : index
    %1 = vector.load %arg2[%c0_1, %c0_2] : memref<576x64xbf16, #tpu.memory_space<vmem>>, vector<576x64xbf16>
    %cst = arith.constant dense<0.000000e+00> : vector<8x64xf32>
    %2 = tpu.matmul %0, %1, %cst {dimension_numbers = #tpu.dot_dimension_numbers<[1], [0], [0], [1], [0, 0, 1, 1], [], []>} : vector<8x576xbf16>, vector<576x64xbf16>, vector<8x64xf32> -> vector<8x64xf32>
    %c0_3 = arith.constant 0 : index
    %c0_4 = arith.constant 0 : index
    %3 = vector.load %arg3[%c0_3, %c0_4] : memref<1x64xf32, #tpu.memory_space<vmem>>, vector<1x64xf32>
    %4 = vector.broadcast %3 : vector<1x64xf32> to vector<8x64xf32>
    %5 = arith.mulf %2, %4 : vector<8x64xf32>
    %c0_5 = arith.constant 0 : index
    %c0_6 = arith.constant 0 : index
    %6 = vector.load %arg4[%c0_5, %c0_6] : memref<1x64xf32, #tpu.memory_space<vmem>>, vector<1x64xf32>
    %7 = vector.broadcast %6 : vector<1x64xf32> to vector<8x64xf32>
    %8 = arith.addf %5, %7 : vector<8x64xf32>
    %cst_7 = arith.constant 0.000000e+00 : f32
    %9 = vector.broadcast %cst_7 : f32 to vector<8x64xf32>
    %10 = arith.maximumf %8, %9 : vector<8x64xf32>
    %11 = arith.truncf %10 : vector<8x64xf32> to vector<8x64xbf16>
    %c0_8 = arith.constant 0 : index
    %c0_9 = arith.constant 0 : index
    %12 = vector.load %arg5[%c0_8, %c0_9] : memref<8x64xbf16, #tpu.memory_space<vmem>>, vector<8x64xbf16>
    tpu.vector_store %arg5[%c0_8, %c0_9], %11 {strides = array<i32>} : memref<8x64xbf16, #tpu.memory_space<vmem>>, vector<8x64xbf16>,
    return
  }
  func.func @transform_0(%arg0: i32) -> (i32, i32) {
    %c0_i32 = arith.constant 0 : i32
    %c0_i32_0 = arith.constant 0 : i32
    return %arg0, %c0_i32 : i32, i32
  }
  func.func @transform_1(%arg0: i32) -> (i32, i32) {
    %c0_i32 = arith.constant 0 : i32
    %c0_i32_0 = arith.constant 0 : i32
    %c0_i32_1 = arith.constant 0 : i32
    return %c0_i32, %c0_i32_0 : i32, i32
  }
  func.func @transform_2(%arg0: i32) -> (i32, i32) {
    %c0_i32 = arith.constant 0 : i32
    %c0_i32_0 = arith.constant 0 : i32
    %c0_i32_1 = arith.constant 0 : i32
    return %c0_i32, %c0_i32_0 : i32, i32
  }
  func.func @transform_3(%arg0: i32) -> (i32, i32) {
    %c0_i32 = arith.constant 0 : i32
    %c0_i32_0 = arith.constant 0 : i32
    %c0_i32_1 = arith.constant 0 : i32
    return %c0_i32, %c0_i32_0 : i32, i32
  }
  func.func @transform_4(%arg0: i32) -> (i32, i32) {
    %c0_i32 = arith.constant 0 : i32
    %c0_i32_0 = arith.constant 0 : i32
    return %arg0, %c0_i32 : i32, i32
  }
}

module attributes {stable_mosaic.version = 11 : i64} {
  func.func @_mm_affine_kernel(%arg0: i32, %arg1: memref<8x32xbf16, #tpu.memory_space<vmem>>, %arg2: memref<32x64xbf16, #tpu.memory_space<vmem>>, %arg3: memref<1x64xf32, #tpu.memory_space<vmem>>, %arg4: memref<1x64xf32, #tpu.memory_space<vmem>>, %arg5: memref<8x64xbf16, #tpu.memory_space<vmem>>) attributes {dimension_semantics = [#tpu.dimension_semantics<parallel>], iteration_bounds = array<i64: 1>, scalar_prefetch = 0 : i64, scratch_operands = 0 : i64, tpu.core_type = #tpu.core_type<tc>, window_params = [{transform_indices = @transform_0, window_bounds = array<i64: 8, 32>}, {pipeline_mode = #tpu.pipeline_mode<synchronous>, transform_indices = @transform_1, window_bounds = array<i64: 32, 64>}, {pipeline_mode = #tpu.pipeline_mode<synchronous>, transform_indices = @transform_2, window_bounds = array<i64: 1, 64>}, {pipeline_mode = #tpu.pipeline_mode<synchronous>, transform_indices = @transform_3, window_bounds = array<i64: 1, 64>}, {transform_indices = @transform_4, window_bounds = array<i64: 8, 64>}]} {
    %c0 = arith.constant 0 : index
    %c0_0 = arith.constant 0 : index
    %0 = vector.load %arg1[%c0, %c0_0] : memref<8x32xbf16, #tpu.memory_space<vmem>>, vector<8x32xbf16>
    %c0_1 = arith.constant 0 : index
    %c0_2 = arith.constant 0 : index
    %1 = vector.load %arg2[%c0_1, %c0_2] : memref<32x64xbf16, #tpu.memory_space<vmem>>, vector<32x64xbf16>
    %cst = arith.constant dense<0.000000e+00> : vector<8x64xf32>
    %2 = tpu.matmul %0, %1, %cst {dimension_numbers = #tpu.dot_dimension_numbers<[1], [0], [0], [1], [0, 0, 1, 1], [], []>} : vector<8x32xbf16>, vector<32x64xbf16>, vector<8x64xf32> -> vector<8x64xf32>
    %c0_3 = arith.constant 0 : index
    %c0_4 = arith.constant 0 : index
    %3 = vector.load %arg3[%c0_3, %c0_4] : memref<1x64xf32, #tpu.memory_space<vmem>>, vector<1x64xf32>
    %4 = vector.broadcast %3 : vector<1x64xf32> to vector<8x64xf32>
    %5 = arith.mulf %2, %4 : vector<8x64xf32>
    %c0_5 = arith.constant 0 : index
    %c0_6 = arith.constant 0 : index
    %6 = vector.load %arg4[%c0_5, %c0_6] : memref<1x64xf32, #tpu.memory_space<vmem>>, vector<1x64xf32>
    %7 = vector.broadcast %6 : vector<1x64xf32> to vector<8x64xf32>
    %8 = arith.addf %5, %7 : vector<8x64xf32>
    %9 = arith.truncf %8 : vector<8x64xf32> to vector<8x64xbf16>
    %c0_7 = arith.constant 0 : index
    %c0_8 = arith.constant 0 : index
    %10 = vector.load %arg5[%c0_7, %c0_8] : memref<8x64xbf16, #tpu.memory_space<vmem>>, vector<8x64xbf16>
    tpu.vector_store %arg5[%c0_7, %c0_8], %9 {strides = array<i32>} : memref<8x64xbf16, #tpu.memory_space<vmem>>, vector<8x64xbf16>,
    return
  }
  func.func @transform_0(%arg0: i32) -> (i32, i32) {
    %c0_i32 = arith.constant 0 : i32
    %c0_i32_0 = arith.constant 0 : i32
    return %arg0, %c0_i32 : i32, i32
  }
  func.func @transform_1(%arg0: i32) -> (i32, i32) {
    %c0_i32 = arith.constant 0 : i32
    %c0_i32_0 = arith.constant 0 : i32
    %c0_i32_1 = arith.constant 0 : i32
    return %c0_i32, %c0_i32_0 : i32, i32
  }
  func.func @transform_2(%arg0: i32) -> (i32, i32) {
    %c0_i32 = arith.constant 0 : i32
    %c0_i32_0 = arith.constant 0 : i32
    %c0_i32_1 = arith.constant 0 : i32
    return %c0_i32, %c0_i32_0 : i32, i32
  }
  func.func @transform_3(%arg0: i32) -> (i32, i32) {
    %c0_i32 = arith.constant 0 : i32
    %c0_i32_0 = arith.constant 0 : i32
    %c0_i32_1 = arith.constant 0 : i32
    return %c0_i32, %c0_i32_0 : i32, i32
  }
  func.func @transform_4(%arg0: i32) -> (i32, i32) {
    %c0_i32 = arith.constant 0 : i32
    %c0_i32_0 = arith.constant 0 : i32
    return %arg0, %c0_i32 : i32, i32
  }
}

module attributes {stable_mosaic.version = 11 : i64} {
  func.func @_mm_affine_kernel(%arg0: i32, %arg1: memref<2x576xbf16, #tpu.memory_space<vmem>>, %arg2: memref<576x128xbf16, #tpu.memory_space<vmem>>, %arg3: memref<1x128xf32, #tpu.memory_space<vmem>>, %arg4: memref<1x128xf32, #tpu.memory_space<vmem>>, %arg5: memref<2x128xbf16, #tpu.memory_space<vmem>>) attributes {dimension_semantics = [#tpu.dimension_semantics<parallel>], iteration_bounds = array<i64: 1>, scalar_prefetch = 0 : i64, scratch_operands = 0 : i64, tpu.core_type = #tpu.core_type<tc>, window_params = [{transform_indices = @transform_0, window_bounds = array<i64: 2, 576>}, {pipeline_mode = #tpu.pipeline_mode<synchronous>, transform_indices = @transform_1, window_bounds = array<i64: 576, 128>}, {pipeline_mode = #tpu.pipeline_mode<synchronous>, transform_indices = @transform_2, window_bounds = array<i64: 1, 128>}, {pipeline_mode = #tpu.pipeline_mode<synchronous>, transform_indices = @transform_3, window_bounds = array<i64: 1, 128>}, {transform_indices = @transform_4, window_bounds = array<i64: 2, 128>}]} {
    %c0 = arith.constant 0 : index
    %c0_0 = arith.constant 0 : index
    %0 = vector.load %arg1[%c0, %c0_0] : memref<2x576xbf16, #tpu.memory_space<vmem>>, vector<2x576xbf16>
    %c0_1 = arith.constant 0 : index
    %c0_2 = arith.constant 0 : index
    %1 = vector.load %arg2[%c0_1, %c0_2] : memref<576x128xbf16, #tpu.memory_space<vmem>>, vector<576x128xbf16>
    %cst = arith.constant dense<0.000000e+00> : vector<2x128xf32>
    %2 = tpu.matmul %0, %1, %cst {dimension_numbers = #tpu.dot_dimension_numbers<[1], [0], [0], [1], [0, 0, 1, 1], [], []>} : vector<2x576xbf16>, vector<576x128xbf16>, vector<2x128xf32> -> vector<2x128xf32>
    %c0_3 = arith.constant 0 : index
    %c0_4 = arith.constant 0 : index
    %3 = vector.load %arg3[%c0_3, %c0_4] : memref<1x128xf32, #tpu.memory_space<vmem>>, vector<1x128xf32>
    %4 = vector.broadcast %3 : vector<1x128xf32> to vector<2x128xf32>
    %5 = arith.mulf %2, %4 : vector<2x128xf32>
    %c0_5 = arith.constant 0 : index
    %c0_6 = arith.constant 0 : index
    %6 = vector.load %arg4[%c0_5, %c0_6] : memref<1x128xf32, #tpu.memory_space<vmem>>, vector<1x128xf32>
    %7 = vector.broadcast %6 : vector<1x128xf32> to vector<2x128xf32>
    %8 = arith.addf %5, %7 : vector<2x128xf32>
    %cst_7 = arith.constant 0.000000e+00 : f32
    %9 = vector.broadcast %cst_7 : f32 to vector<2x128xf32>
    %10 = arith.maximumf %8, %9 : vector<2x128xf32>
    %11 = arith.truncf %10 : vector<2x128xf32> to vector<2x128xbf16>
    %c0_8 = arith.constant 0 : index
    %c0_9 = arith.constant 0 : index
    %12 = vector.load %arg5[%c0_8, %c0_9] : memref<2x128xbf16, #tpu.memory_space<vmem>>, vector<2x128xbf16>
    tpu.vector_store %arg5[%c0_8, %c0_9], %11 {strides = array<i32>} : memref<2x128xbf16, #tpu.memory_space<vmem>>, vector<2x128xbf16>,
    return
  }
  func.func @transform_0(%arg0: i32) -> (i32, i32) {
    %c0_i32 = arith.constant 0 : i32
    %c0_i32_0 = arith.constant 0 : i32
    return %arg0, %c0_i32 : i32, i32
  }
  func.func @transform_1(%arg0: i32) -> (i32, i32) {
    %c0_i32 = arith.constant 0 : i32
    %c0_i32_0 = arith.constant 0 : i32
    %c0_i32_1 = arith.constant 0 : i32
    return %c0_i32, %c0_i32_0 : i32, i32
  }
  func.func @transform_2(%arg0: i32) -> (i32, i32) {
    %c0_i32 = arith.constant 0 : i32
    %c0_i32_0 = arith.constant 0 : i32
    %c0_i32_1 = arith.constant 0 : i32
    return %c0_i32, %c0_i32_0 : i32, i32
  }
  func.func @transform_3(%arg0: i32) -> (i32, i32) {
    %c0_i32 = arith.constant 0 : i32
    %c0_i32_0 = arith.constant 0 : i32
    %c0_i32_1 = arith.constant 0 : i32
    return %c0_i32, %c0_i32_0 : i32, i32
  }
  func.func @transform_4(%arg0: i32) -> (i32, i32) {
    %c0_i32 = arith.constant 0 : i32
    %c0_i32_0 = arith.constant 0 : i32
    return %arg0, %c0_i32 : i32, i32
  }
}

module attributes {stable_mosaic.version = 11 : i64} {
  func.func @_mm_affine_kernel(%arg0: i32, %arg1: memref<2x64xbf16, #tpu.memory_space<vmem>>, %arg2: memref<64x128xbf16, #tpu.memory_space<vmem>>, %arg3: memref<1x128xf32, #tpu.memory_space<vmem>>, %arg4: memref<1x128xf32, #tpu.memory_space<vmem>>, %arg5: memref<2x128xbf16, #tpu.memory_space<vmem>>) attributes {dimension_semantics = [#tpu.dimension_semantics<parallel>], iteration_bounds = array<i64: 1>, scalar_prefetch = 0 : i64, scratch_operands = 0 : i64, tpu.core_type = #tpu.core_type<tc>, window_params = [{transform_indices = @transform_0, window_bounds = array<i64: 2, 64>}, {pipeline_mode = #tpu.pipeline_mode<synchronous>, transform_indices = @transform_1, window_bounds = array<i64: 64, 128>}, {pipeline_mode = #tpu.pipeline_mode<synchronous>, transform_indices = @transform_2, window_bounds = array<i64: 1, 128>}, {pipeline_mode = #tpu.pipeline_mode<synchronous>, transform_indices = @transform_3, window_bounds = array<i64: 1, 128>}, {transform_indices = @transform_4, window_bounds = array<i64: 2, 128>}]} {
    %c0 = arith.constant 0 : index
    %c0_0 = arith.constant 0 : index
    %0 = vector.load %arg1[%c0, %c0_0] : memref<2x64xbf16, #tpu.memory_space<vmem>>, vector<2x64xbf16>
    %c0_1 = arith.constant 0 : index
    %c0_2 = arith.constant 0 : index
    %1 = vector.load %arg2[%c0_1, %c0_2] : memref<64x128xbf16, #tpu.memory_space<vmem>>, vector<64x128xbf16>
    %cst = arith.constant dense<0.000000e+00> : vector<2x128xf32>
    %2 = tpu.matmul %0, %1, %cst {dimension_numbers = #tpu.dot_dimension_numbers<[1], [0], [0], [1], [0, 0, 1, 1], [], []>} : vector<2x64xbf16>, vector<64x128xbf16>, vector<2x128xf32> -> vector<2x128xf32>
    %c0_3 = arith.constant 0 : index
    %c0_4 = arith.constant 0 : index
    %3 = vector.load %arg3[%c0_3, %c0_4] : memref<1x128xf32, #tpu.memory_space<vmem>>, vector<1x128xf32>
    %4 = vector.broadcast %3 : vector<1x128xf32> to vector<2x128xf32>
    %5 = arith.mulf %2, %4 : vector<2x128xf32>
    %c0_5 = arith.constant 0 : index
    %c0_6 = arith.constant 0 : index
    %6 = vector.load %arg4[%c0_5, %c0_6] : memref<1x128xf32, #tpu.memory_space<vmem>>, vector<1x128xf32>
    %7 = vector.broadcast %6 : vector<1x128xf32> to vector<2x128xf32>
    %8 = arith.addf %5, %7 : vector<2x128xf32>
    %9 = arith.truncf %8 : vector<2x128xf32> to vector<2x128xbf16>
    %c0_7 = arith.constant 0 : index
    %c0_8 = arith.constant 0 : index
    %10 = vector.load %arg5[%c0_7, %c0_8] : memref<2x128xbf16, #tpu.memory_space<vmem>>, vector<2x128xbf16>
    tpu.vector_store %arg5[%c0_7, %c0_8], %9 {strides = array<i32>} : memref<2x128xbf16, #tpu.memory_space<vmem>>, vector<2x128xbf16>,
    return
  }
  func.func @transform_0(%arg0: i32) -> (i32, i32) {
    %c0_i32 = arith.constant 0 : i32
    %c0_i32_0 = arith.constant 0 : i32
    return %arg0, %c0_i32 : i32, i32
  }
  func.func @transform_1(%arg0: i32) -> (i32, i32) {
    %c0_i32 = arith.constant 0 : i32
    %c0_i32_0 = arith.constant 0 : i32
    %c0_i32_1 = arith.constant 0 : i32
    return %c0_i32, %c0_i32_0 : i32, i32
  }
  func.func @transform_2(%arg0: i32) -> (i32, i32) {
    %c0_i32 = arith.constant 0 : i32
    %c0_i32_0 = arith.constant 0 : i32
    %c0_i32_1 = arith.constant 0 : i32
    return %c0_i32, %c0_i32_0 : i32, i32
  }
  func.func @transform_3(%arg0: i32) -> (i32, i32) {
    %c0_i32 = arith.constant 0 : i32
    %c0_i32_0 = arith.constant 0 : i32
    %c0_i32_1 = arith.constant 0 : i32
    return %c0_i32, %c0_i32_0 : i32, i32
  }
  func.func @transform_4(%arg0: i32) -> (i32, i32) {
    %c0_i32 = arith.constant 0 : i32
    %c0_i32_0 = arith.constant 0 : i32
    return %arg0, %c0_i32 : i32, i32
  }
}

module attributes {stable_mosaic.version = 11 : i64} {
  func.func @_mm_affine_kernel(%arg0: i32, %arg1: memref<2x1152xbf16, #tpu.memory_space<vmem>>, %arg2: memref<1152x128xbf16, #tpu.memory_space<vmem>>, %arg3: memref<1x128xf32, #tpu.memory_space<vmem>>, %arg4: memref<1x128xf32, #tpu.memory_space<vmem>>, %arg5: memref<2x128xbf16, #tpu.memory_space<vmem>>, %arg6: memref<2x128xbf16, #tpu.memory_space<vmem>>) attributes {dimension_semantics = [#tpu.dimension_semantics<parallel>], iteration_bounds = array<i64: 1>, scalar_prefetch = 0 : i64, scratch_operands = 0 : i64, tpu.core_type = #tpu.core_type<tc>, window_params = [{transform_indices = @transform_0, window_bounds = array<i64: 2, 1152>}, {pipeline_mode = #tpu.pipeline_mode<synchronous>, transform_indices = @transform_1, window_bounds = array<i64: 1152, 128>}, {pipeline_mode = #tpu.pipeline_mode<synchronous>, transform_indices = @transform_2, window_bounds = array<i64: 1, 128>}, {pipeline_mode = #tpu.pipeline_mode<synchronous>, transform_indices = @transform_3, window_bounds = array<i64: 1, 128>}, {transform_indices = @transform_4, window_bounds = array<i64: 2, 128>}, {transform_indices = @transform_5, window_bounds = array<i64: 2, 128>}]} {
    %c0 = arith.constant 0 : index
    %c0_0 = arith.constant 0 : index
    %0 = vector.load %arg1[%c0, %c0_0] : memref<2x1152xbf16, #tpu.memory_space<vmem>>, vector<2x1152xbf16>
    %c0_1 = arith.constant 0 : index
    %c0_2 = arith.constant 0 : index
    %1 = vector.load %arg2[%c0_1, %c0_2] : memref<1152x128xbf16, #tpu.memory_space<vmem>>, vector<1152x128xbf16>
    %cst = arith.constant dense<0.000000e+00> : vector<2x128xf32>
    %2 = tpu.matmul %0, %1, %cst {dimension_numbers = #tpu.dot_dimension_numbers<[1], [0], [0], [1], [0, 0, 1, 1], [], []>} : vector<2x1152xbf16>, vector<1152x128xbf16>, vector<2x128xf32> -> vector<2x128xf32>
    %c0_3 = arith.constant 0 : index
    %c0_4 = arith.constant 0 : index
    %3 = vector.load %arg3[%c0_3, %c0_4] : memref<1x128xf32, #tpu.memory_space<vmem>>, vector<1x128xf32>
    %4 = vector.broadcast %3 : vector<1x128xf32> to vector<2x128xf32>
    %5 = arith.mulf %2, %4 : vector<2x128xf32>
    %c0_5 = arith.constant 0 : index
    %c0_6 = arith.constant 0 : index
    %6 = vector.load %arg4[%c0_5, %c0_6] : memref<1x128xf32, #tpu.memory_space<vmem>>, vector<1x128xf32>
    %7 = vector.broadcast %6 : vector<1x128xf32> to vector<2x128xf32>
    %8 = arith.addf %5, %7 : vector<2x128xf32>
    %c0_7 = arith.constant 0 : index
    %c0_8 = arith.constant 0 : index
    %9 = vector.load %arg5[%c0_7, %c0_8] : memref<2x128xbf16, #tpu.memory_space<vmem>>, vector<2x128xbf16>
    %10 = arith.extf %9 : vector<2x128xbf16> to vector<2x128xf32>
    %11 = arith.addf %8, %10 : vector<2x128xf32>
    %cst_9 = arith.constant 0.000000e+00 : f32
    %12 = vector.broadcast %cst_9 : f32 to vector<2x128xf32>
    %13 = arith.maximumf %11, %12 : vector<2x128xf32>
    %14 = arith.truncf %13 : vector<2x128xf32> to vector<2x128xbf16>
    %c0_10 = arith.constant 0 : index
    %c0_11 = arith.constant 0 : index
    %15 = vector.load %arg6[%c0_10, %c0_11] : memref<2x128xbf16, #tpu.memory_space<vmem>>, vector<2x128xbf16>
    tpu.vector_store %arg6[%c0_10, %c0_11], %14 {strides = array<i32>} : memref<2x128xbf16, #tpu.memory_space<vmem>>, vector<2x128xbf16>,
    return
  }
  func.func @transform_0(%arg0: i32) -> (i32, i32) {
    %c0_i32 = arith.constant 0 : i32
    %c0_i32_0 = arith.constant 0 : i32
    return %arg0, %c0_i32 : i32, i32
  }
  func.func @transform_1(%arg0: i32) -> (i32, i32) {
    %c0_i32 = arith.constant 0 : i32
    %c0_i32_0 = arith.constant 0 : i32
    %c0_i32_1 = arith.constant 0 : i32
    return %c0_i32, %c0_i32_0 : i32, i32
  }
  func.func @transform_2(%arg0: i32) -> (i32, i32) {
    %c0_i32 = arith.constant 0 : i32
    %c0_i32_0 = arith.constant 0 : i32
    %c0_i32_1 = arith.constant 0 : i32
    return %c0_i32, %c0_i32_0 : i32, i32
  }
  func.func @transform_3(%arg0: i32) -> (i32, i32) {
    %c0_i32 = arith.constant 0 : i32
    %c0_i32_0 = arith.constant 0 : i32
    %c0_i32_1 = arith.constant 0 : i32
    return %c0_i32, %c0_i32_0 : i32, i32
  }
  func.func @transform_4(%arg0: i32) -> (i32, i32) {
    %c0_i32 = arith.constant 0 : i32
    %c0_i32_0 = arith.constant 0 : i32
    return %arg0, %c0_i32 : i32, i32
  }
  func.func @transform_5(%arg0: i32) -> (i32, i32) {
    %c0_i32 = arith.constant 0 : i32
    %c0_i32_0 = arith.constant 0 : i32
    return %arg0, %c0_i32 : i32, i32
  }
}

module attributes {stable_mosaic.version = 11 : i64} {
  func.func @_mm_affine_kernel(%arg0: i32, %arg1: memref<2x1152xbf16, #tpu.memory_space<vmem>>, %arg2: memref<1152x128xbf16, #tpu.memory_space<vmem>>, %arg3: memref<1x128xf32, #tpu.memory_space<vmem>>, %arg4: memref<1x128xf32, #tpu.memory_space<vmem>>, %arg5: memref<2x128xbf16, #tpu.memory_space<vmem>>) attributes {dimension_semantics = [#tpu.dimension_semantics<parallel>], iteration_bounds = array<i64: 1>, scalar_prefetch = 0 : i64, scratch_operands = 0 : i64, tpu.core_type = #tpu.core_type<tc>, window_params = [{transform_indices = @transform_0, window_bounds = array<i64: 2, 1152>}, {pipeline_mode = #tpu.pipeline_mode<synchronous>, transform_indices = @transform_1, window_bounds = array<i64: 1152, 128>}, {pipeline_mode = #tpu.pipeline_mode<synchronous>, transform_indices = @transform_2, window_bounds = array<i64: 1, 128>}, {pipeline_mode = #tpu.pipeline_mode<synchronous>, transform_indices = @transform_3, window_bounds = array<i64: 1, 128>}, {transform_indices = @transform_4, window_bounds = array<i64: 2, 128>}]} {
    %c0 = arith.constant 0 : index
    %c0_0 = arith.constant 0 : index
    %0 = vector.load %arg1[%c0, %c0_0] : memref<2x1152xbf16, #tpu.memory_space<vmem>>, vector<2x1152xbf16>
    %c0_1 = arith.constant 0 : index
    %c0_2 = arith.constant 0 : index
    %1 = vector.load %arg2[%c0_1, %c0_2] : memref<1152x128xbf16, #tpu.memory_space<vmem>>, vector<1152x128xbf16>
    %cst = arith.constant dense<0.000000e+00> : vector<2x128xf32>
    %2 = tpu.matmul %0, %1, %cst {dimension_numbers = #tpu.dot_dimension_numbers<[1], [0], [0], [1], [0, 0, 1, 1], [], []>} : vector<2x1152xbf16>, vector<1152x128xbf16>, vector<2x128xf32> -> vector<2x128xf32>
    %c0_3 = arith.constant 0 : index
    %c0_4 = arith.constant 0 : index
    %3 = vector.load %arg3[%c0_3, %c0_4] : memref<1x128xf32, #tpu.memory_space<vmem>>, vector<1x128xf32>
    %4 = vector.broadcast %3 : vector<1x128xf32> to vector<2x128xf32>
    %5 = arith.mulf %2, %4 : vector<2x128xf32>
    %c0_5 = arith.constant 0 : index
    %c0_6 = arith.constant 0 : index
    %6 = vector.load %arg4[%c0_5, %c0_6] : memref<1x128xf32, #tpu.memory_space<vmem>>, vector<1x128xf32>
    %7 = vector.broadcast %6 : vector<1x128xf32> to vector<2x128xf32>
    %8 = arith.addf %5, %7 : vector<2x128xf32>
    %cst_7 = arith.constant 0.000000e+00 : f32
    %9 = vector.broadcast %cst_7 : f32 to vector<2x128xf32>
    %10 = arith.maximumf %8, %9 : vector<2x128xf32>
    %11 = arith.truncf %10 : vector<2x128xf32> to vector<2x128xbf16>
    %c0_8 = arith.constant 0 : index
    %c0_9 = arith.constant 0 : index
    %12 = vector.load %arg5[%c0_8, %c0_9] : memref<2x128xbf16, #tpu.memory_space<vmem>>, vector<2x128xbf16>
    tpu.vector_store %arg5[%c0_8, %c0_9], %11 {strides = array<i32>} : memref<2x128xbf16, #tpu.memory_space<vmem>>, vector<2x128xbf16>,
    return
  }
  func.func @transform_0(%arg0: i32) -> (i32, i32) {
    %c0_i32 = arith.constant 0 : i32
    %c0_i32_0 = arith.constant 0 : i32
    return %arg0, %c0_i32 : i32, i32
  }
  func.func @transform_1(%arg0: i32) -> (i32, i32) {
    %c0_i32 = arith.constant 0 : i32
    %c0_i32_0 = arith.constant 0 : i32
    %c0_i32_1 = arith.constant 0 : i32
    return %c0_i32, %c0_i32_0 : i32, i32
  }
  func.func @transform_2(%arg0: i32) -> (i32, i32) {
    %c0_i32 = arith.constant 0 : i32
    %c0_i32_0 = arith.constant 0 : i32
    %c0_i32_1 = arith.constant 0 : i32
    return %c0_i32, %c0_i32_0 : i32, i32
  }
  func.func @transform_3(%arg0: i32) -> (i32, i32) {
    %c0_i32 = arith.constant 0 : i32
    %c0_i32_0 = arith.constant 0 : i32
    %c0_i32_1 = arith.constant 0 : i32
    return %c0_i32, %c0_i32_0 : i32, i32
  }
  func.func @transform_4(%arg0: i32) -> (i32, i32) {
    %c0_i32 = arith.constant 0 : i32
    %c0_i32_0 = arith.constant 0 : i32
    return %arg0, %c0_i32 : i32, i32
  }
}

module attributes {stable_mosaic.version = 11 : i64} {
  func.func @_pool_dist_kernel(%arg0: i32, %arg1: memref<2x1x64xbf16, #tpu.memory_space<vmem>>, %arg2: memref<2x1x64xbf16, #tpu.memory_space<vmem>>, %arg3: memref<2x64xf32, #tpu.memory_space<vmem>>) attributes {dimension_semantics = [#tpu.dimension_semantics<arbitrary>], iteration_bounds = array<i64: 1>, scalar_prefetch = 0 : i64, scratch_operands = 0 : i64, tpu.core_type = #tpu.core_type<tc>, window_params = [{pipeline_mode = #tpu.pipeline_mode<synchronous>, transform_indices = @transform_0, window_bounds = array<i64: 2, 1, 64>}, {pipeline_mode = #tpu.pipeline_mode<synchronous>, transform_indices = @transform_1, window_bounds = array<i64: 2, 1, 64>}, {pipeline_mode = #tpu.pipeline_mode<synchronous>, transform_indices = @transform_2, window_bounds = array<i64: 2, 64>}]} {
    %c0 = arith.constant 0 : index
    %c0_0 = arith.constant 0 : index
    %c0_1 = arith.constant 0 : index
    %0 = vector.load %arg1[%c0, %c0_0, %c0_1] : memref<2x1x64xbf16, #tpu.memory_space<vmem>>, vector<2x1x64xbf16>
    %1 = vector.shape_cast %0 : vector<2x1x64xbf16> to vector<2x64xbf16>
    %2 = arith.extf %1 : vector<2x64xbf16> to vector<2x64xf32>
    %c0_2 = arith.constant 0 : index
    %c0_3 = arith.constant 0 : index
    %c0_4 = arith.constant 0 : index
    %3 = vector.load %arg2[%c0_2, %c0_3, %c0_4] : memref<2x1x64xbf16, #tpu.memory_space<vmem>>, vector<2x1x64xbf16>
    %4 = vector.shape_cast %3 : vector<2x1x64xbf16> to vector<2x64xbf16>
    %5 = arith.extf %4 : vector<2x64xbf16> to vector<2x64xf32>
    %6 = arith.subf %2, %5 : vector<2x64xf32>
    %cst = arith.constant 1.000000e+00 : f32
    %7 = vector.broadcast %cst : f32 to vector<2x64xf32>
    %8 = arith.mulf %6, %7 : vector<2x64xf32>
    %cst_5 = arith.constant 9.99999997E-7 : f32
    %9 = vector.broadcast %cst_5 : f32 to vector<2x64xf32>
    %10 = arith.addf %8, %9 : vector<2x64xf32>
    %11 = math.absf %10 : vector<2x64xf32>
    %c0_6 = arith.constant 0 : index
    %c0_7 = arith.constant 0 : index
    %12 = vector.load %arg3[%c0_6, %c0_7] : memref<2x64xf32, #tpu.memory_space<vmem>>, vector<2x64xf32>
    tpu.vector_store %arg3[%c0_6, %c0_7], %11 {strides = array<i32>} : memref<2x64xf32, #tpu.memory_space<vmem>>, vector<2x64xf32>,
    return
  }
  func.func @transform_0(%arg0: i32) -> (i32, i32, i32) {
    %c0_i32 = arith.constant 0 : i32
    %c0_i32_0 = arith.constant 0 : i32
    %c0_i32_1 = arith.constant 0 : i32
    %c0_i32_2 = arith.constant 0 : i32
    return %c0_i32, %c0_i32_0, %c0_i32_1 : i32, i32, i32
  }
  func.func @transform_1(%arg0: i32) -> (i32, i32, i32) {
    %c0_i32 = arith.constant 0 : i32
    %c0_i32_0 = arith.constant 0 : i32
    %c0_i32_1 = arith.constant 0 : i32
    %c0_i32_2 = arith.constant 0 : i32
    return %c0_i32, %c0_i32_0, %c0_i32_1 : i32, i32, i32
  }
  func.func @transform_2(%arg0: i32) -> (i32, i32) {
    %c0_i32 = arith.constant 0 : i32
    %c0_i32_0 = arith.constant 0 : i32
    %c0_i32_1 = arith.constant 0 : i32
    return %c0_i32, %c0_i32_0 : i32, i32
  }
}

</mosaic_0001>

<llo_original>
// kernel: _lambda_.22
$region0: #{_lambda_.22}
  #allocation0 [shape = 'u32[]', space=smem, size = 0x4, offset = 0x4, fixed_abs, tag = 'smem constant byte address 0x4 - core index']
  #allocation1 [shape = 'u32[144,128]{1,0:T(1,128)}', space=vmem, size = 0x12000, scoped, tag = 'internal scratch']
  %s0 = inlined_call_operand.vmem [shape: bf16[512,147], index: 0, kind: input, shape index: {}]
  %s1 = inlined_call_operand.vmem [shape: bf16[147,16], index: 1, kind: input, shape index: {}]
  %s2 = inlined_call_operand.vmem [shape: f32[1,16], index: 2, kind: input, shape index: {}]
  %s3 = inlined_call_operand.vmem [shape: f32[1,16], index: 3, kind: input, shape index: {}]
  %s4 = inlined_call_operand.vmem [shape: bf16[512,16], index: 4, kind: output, shape index: {}]
  %s5 = sld [smem:[#allocation0]]
  $region49: #{_lambda_.22} parent=0
    _
  %s7 = ssub.s32 1, %s5
  %s8 = scalar_select 0, %s7, %s5
  loop: start=0, step=1, limit=4
  $region2: #{_lambda_.22} parent=0 // loop_pre_header
    _
  $region3: #{_lambda_.22} parent=0 // loop_header
    %s10 = sphi 0, %s14
    %p11 = scmp.ge.s32.totalorder %s10, 4
    %s20 = sphi 0, %s22
    %s23 = sphi 0, %s20
    %s24 = sphi 0, %s23
    %s40 = sphi 0, %s24
    %s44 = sphi 0, %s44
    %s46 = sphi 0, %s44
    %s47 = sphi 0, %s46
    %s61 = sphi 0, %s47
    %s65 = sphi 0, %s65
    %s67 = sphi 0, %s65
    %s68 = sphi 0, %s67
    %s82 = sphi 0, %s68
    %s86 = sphi 0, %s86
    %s88 = sphi 0, %s86
    %s89 = sphi 0, %s88
    %s103 = sphi 0, %s89
    %s109 = sphi 0, %s111
    %s112 = sphi 0, %s109
    %s113 = sphi 0, %s112
    %s129 = sphi 0, %s113
  $region4: #{_lambda_.22} parent=0 // loop_header_branch
    %13 = sbr.rel (%p11) target = $region8
  $region5: #{_lambda_.22} parent=0 // loop_body
    %s15 = ssub.s32 %s10, 1
    %s16 = ssub.s32 %s10, 2
    %s17 = sadd.s32 %s10, 1
    %s18 = ssub.s32 %s10, %s17
    %p19 = scmp.eq.s32.totalorder %s18, 0
    %s21 = sadd.s32 %s20, 1
    %s22 = scalar_select %p19, %s20, %s21
    %p25 = pneg %p19
    %p26 = scmp.eq.s32.totalorder %s10, 1
    %p27 = por %p25, %p26
    %p28 = scmp.ne.s32.totalorder %s20, %s23
    %p29 = scmp.eq.s32.totalorder %s10, 0
    %p30 = por %p28, %p29
    %p31 = scmp.ne.s32.totalorder %s20, %s23
    %p32 = scmp.eq.s32.totalorder %s15, 1
    %p33 = por %p31, %p32
    %p34 = scmp.ne.s32.totalorder %s23, %s24
    %p35 = scmp.eq.s32.totalorder %s15, 0
    %p36 = por %p34, %p35
    %p37 = scmp.ne.s32.totalorder %s23, %s24
    %p38 = scmp.eq.s32.totalorder %s16, 1
    %p39 = por %p37, %p38
    %p41 = scmp.ne.s32.totalorder %s24, %s40
    %p42 = scmp.eq.s32.totalorder %s16, 0
    %p43 = por %p41, %p42
    %s45 = sadd.s32 %s44, 1
    %p48 = scmp.eq.s32.totalorder %s10, 1
    %p49 = scmp.ne.s32.totalorder %s44, %s46
    %p50 = scmp.eq.s32.totalorder %s10, 0
    %p51 = por %p49, %p50
    %p52 = scmp.ne.s32.totalorder %s44, %s46
    %p53 = scmp.eq.s32.totalorder %s15, 1
    %p54 = por %p52, %p53
    %p55 = scmp.ne.s32.totalorder %s46, %s47
    %p56 = scmp.eq.s32.totalorder %s15, 0
    %p57 = por %p55, %p56
    %p58 = scmp.ne.s32.totalorder %s46, %s47
    %p59 = scmp.eq.s32.totalorder %s16, 1
    %p60 = por %p58, %p59
    %p62 = scmp.ne.s32.totalorder %s47, %s61
    %p63 = scmp.eq.s32.totalorder %s16, 0
    %p64 = por %p62, %p63
    %s66 = sadd.s32 %s65, 1
    %p69 = scmp.eq.s32.totalorder %s10, 1
    %p70 = scmp.ne.s32.totalorder %s65, %s67
    %p71 = scmp.eq.s32.totalorder %s10, 0
    %p72 = por %p70, %p71
    %p73 = scmp.ne.s32.totalorder %s65, %s67
    %p74 = scmp.eq.s32.totalorder %s15, 1
    %p75 = por %p73, %p74
    %p76 = scmp.ne.s32.totalorder %s67, %s68
    %p77 = scmp.eq.s32.totalorder %s15, 0
    %p78 = por %p76, %p77
    %p79 = scmp.ne.s32.totalorder %s67, %s68
    %p80 = scmp.eq.s32.totalorder %s16, 1
    %p81 = por %p79, %p80
    %p83 = scmp.ne.s32.totalorder %s68, %s82
    %p84 = scmp.eq.s32.totalorder %s16, 0
    %p85 = por %p83, %p84
    %s87 = sadd.s32 %s86, 1
    %p90 = scmp.eq.s32.totalorder %s10, 1
    %p91 = scmp.ne.s32.totalorder %s86, %s88
    %p92 = scmp.eq.s32.totalorder %s10, 0
    %p93 = por %p91, %p92
    %p94 = scmp.ne.s32.totalorder %s86, %s88
    %p95 = scmp.eq.s32.totalorder %s15, 1
    %p96 = por %p94, %p95
    %p97 = scmp.ne.s32.totalorder %s88, %s89
    %p98 = scmp.eq.s32.totalorder %s15, 0
    %p99 = por %p97, %p98
    %p100 = scmp.ne.s32.totalorder %s88, %s89
    %p101 = scmp.eq.s32.totalorder %s16, 1
    %p102 = por %p100, %p101
    %p104 = scmp.ne.s32.totalorder %s89, %s103
    %p105 = scmp.eq.s32.totalorder %s16, 0
    %p106 = por %p104, %p105
    %s107 = ssub.s32 %s10, %s17
    %p108 = scmp.eq.s32.totalorder %s107, 0
    %s110 = sadd.s32 %s109, 1
    %s111 = scalar_select %p108, %s109, %s110
    %p114 = pneg %p108
    %p115 = scmp.eq.s32.totalorder %s10, 1
    %p116 = por %p114, %p115
    %p117 = scmp.ne.s32.totalorder %s109, %s112
    %p118 = scmp.eq.s32.totalorder %s10, 0
    %p119 = por %p117, %p118
    %p120 = scmp.ne.s32.totalorder %s109, %s112
    %p121 = scmp.eq.s32.totalorder %s15, 1
    %p122 = por %p120, %p121
    %p123 = scmp.ne.s32.totalorder %s112, %s113
    %p124 = scmp.eq.s32.totalorder %s15, 0
    %p125 = por %p123, %p124
    %p126 = scmp.ne.s32.totalorder %s112, %s113
    %p127 = scmp.eq.s32.totalorder %s16, 1
    %p128 = por %p126, %p127
    %p130 = scmp.ne.s32.totalorder %s113, %s129
    %p131 = scmp.eq.s32.totalorder %s16, 0
    %p132 = por %p130, %p131
    %p133 = scmp.le.s32.totalorder 1, %s10
    %p134 = scmp.lt.s32.totalorder %s10, 3
    %p135 = pnand %p133, %p134
    %p136 = pneg %p135
    // Predicated region
    $region9: #{_lambda_.22} parent=5 // pred_check
      _
    $region10: #{_lambda_.22} parent=5 // pred_check_branch
      %138 = sbr.rel (%p135) target = $region12
    $region11: #{_lambda_.22} parent=5 // pred_region
      %s139 = ssub.s32 %s10, 1
      // Predicated region
      $region13: #{_lambda_.22} parent=11 // pred_check
        %p140 = pneg %p57
      $region14: #{_lambda_.22} parent=11 // pred_check_branch
        %142 = sbr.rel (%p140) target = $region16
      $region15: #{_lambda_.22} parent=11 // pred_region
        _
      $region16: #{_lambda_.22} parent=11 // pred_fallthru
        _
      // Predicated region
      $region17: #{_lambda_.22} parent=11 // pred_check
        %p143 = pneg %p78
      $region18: #{_lambda_.22} parent=11 // pred_check_branch
        %145 = sbr.rel (%p143) target = $region20
      $region19: #{_lambda_.22} parent=11 // pred_region
        _
      $region20: #{_lambda_.22} parent=11 // pred_fallthru
        _
      // Predicated region
      $region21: #{_lambda_.22} parent=11 // pred_check
        %p146 = pneg %p99
      $region22: #{_lambda_.22} parent=11 // pred_check_branch
        %148 = sbr.rel (%p146) target = $region24
      $region23: #{_lambda_.22} parent=11 // pred_region
        _
      $region24: #{_lambda_.22} parent=11 // pred_fallthru
        _
    $region12: #{_lambda_.22} parent=5 // pred_fallthru
      _
    %p149 = scmp.lt.s32.totalorder %s10, 2
    // Predicated region
    $region25: #{_lambda_.22} parent=5 // pred_check
      %p150 = pneg %p149
    $region26: #{_lambda_.22} parent=5 // pred_check_branch
      %152 = sbr.rel (%p150) target = $region28
    $region27: #{_lambda_.22} parent=5 // pred_region
      // Predicated region
      $region29: #{_lambda_.22} parent=27 // pred_check
        %p153 = pneg %p30
      $region30: #{_lambda_.22} parent=27 // pred_check_branch
        %155 = sbr.rel (%p153) target = $region32
      $region31: #{_lambda_.22} parent=27 // pred_region
        %s156 = smul.u32 32, %s10
        %p157 = scmp.lt.s32.totalorder %s156, 63
        %s158 = scalar_select %p157, %s156, 63
        %s159 = smul.addr %s158, 2
        %s160 = smul.addr %s159, 4
        %s161 = scalar_lea.vmem %s0, %s160
        %s162 = smul.u32 32, %s10
      $region32: #{_lambda_.22} parent=27 // pred_fallthru
        _
    $region28: #{_lambda_.22} parent=5 // pred_fallthru
      _
    %p163 = scmp.le.s32.totalorder 1, %s10
    %p164 = scmp.lt.s32.totalorder %s10, 3
    %p165 = pnand %p163, %p164
    %p166 = pneg %p165
    // Predicated region
    $region33: #{_lambda_.22} parent=5 // pred_check
      _
    $region34: #{_lambda_.22} parent=5 // pred_check_branch
      %168 = sbr.rel (%p165) target = $region36
    $region35: #{_lambda_.22} parent=5 // pred_region
      %s169 = ssub.s32 %s10, 1
      %s170 = smul.u32 32, %s15
      %p171 = scmp.lt.s32.totalorder %s170, 63
      %s172 = scalar_select %p171, %s170, 63
      %s173 = smul.addr %s172, 2
      %s174 = smul.addr %s173, 4
      %s175 = scalar_lea.vmem %s0, %s174
      %p176 = pneg %p36
      %p177 = pneg %p33
      %p178 = pneg %p57
      %p179 = pneg %p54
      %p180 = pneg %p78
      %p181 = pneg %p75
      %p182 = pneg %p99
      %p183 = pneg %p96
      %p184 = pneg %p125
      %p185 = pneg %p122
      %s186 = smul.u32 32, %s15
      %p187 = scmp.lt.s32.totalorder %s186, 63
      %s188 = scalar_select %p187, %s186, 63
      %s189 = smul.addr %s188, 4
      %s190 = scalar_lea.vmem %s4, %s189
      %s191 = smul.u32 32, %s15
      %p192 = scmp.lt.s32.totalorder %s191, 63
      %s193 = scalar_select %p192, %s191, 63
      %s194 = smul.addr %s193, 2
      %s195 = smul.addr %s194, 4
      %s196 = scalar_lea.vmem %s0, %s195
      %s197 = smul.u32 32, %s15
      %s198 = smul.u32 32, %s15
      %p199 = scmp.lt.s32.totalorder %s198, 63
      %s200 = scalar_select %p199, %s198, 63
      %s201 = smul.addr %s200, 4
      %s202 = scalar_lea.vmem %s4, %s201
      %s203 = smul.u32 32, %s15
      %v205 = vld [vmem:[%s196] sm:$0xff]
      %v206 = vld [vmem:[%s196 + $0x8] sm:$0xff]
      %v207 = vld [vmem:[%s196 + $0x10] sm:$0xff]
      %v208 = vld [vmem:[%s196 + $0x18] sm:$0xff]
      %v209 = vld [vmem:[%s196 + $0x20] sm:$0xff]
      %v210 = vld [vmem:[%s196 + $0x28] sm:$0xff]
      %v211 = vld [vmem:[%s196 + $0x30] sm:$0xff]
      %v212 = vld [vmem:[%s196 + $0x38] sm:$0xff]
      %v213 = vld [vmem:[%s196 + $0x40] sm:$0xff]
      %v214 = vld [vmem:[%s196 + $0x48] sm:$0xff]
      %v215 = vld [vmem:[%s196 + $0x50] sm:$0xff]
      %v216 = vld [vmem:[%s196 + $0x58] sm:$0xff]
      %v217 = vld [vmem:[%s196 + $0x60] sm:$0xff]
      %v218 = vld [vmem:[%s196 + $0x68] sm:$0xff]
      %v219 = vld [vmem:[%s196 + $0x70] sm:$0xff]
      %v220 = vld [vmem:[%s196 + $0x78] sm:$0xff]
      %v221 = vld [vmem:[%s196 + $0x80] sm:$0xff]
      %v222 = vld [vmem:[%s196 + $0x88] sm:$0xff]
      %v223 = vld [vmem:[%s196 + $0x90] sm:$0xff]
      %v224 = vld [vmem:[%s196 + $0x98] sm:$0xff]
      %v225 = vld [vmem:[%s196 + $0xa0] sm:$0xff]
      %v226 = vld [vmem:[%s196 + $0xa8] sm:$0xff]
      %v227 = vld [vmem:[%s196 + $0xb0] sm:$0xff]
      %v228 = vld [vmem:[%s196 + $0xb8] sm:$0xff]
      %v229 = vld [vmem:[%s196 + $0xc0] sm:$0xff]
      %v230 = vld [vmem:[%s196 + $0xc8] sm:$0xff]
      %v231 = vld [vmem:[%s196 + $0xd0] sm:$0xff]
      %v232 = vld [vmem:[%s196 + $0xd8] sm:$0xff]
      %v233 = vld [vmem:[%s196 + $0xe0] sm:$0xff]
      %v234 = vld [vmem:[%s196 + $0xe8] sm:$0xff]
      %v235 = vld [vmem:[%s196 + $0xf0] sm:$0xff]
      %v236 = vld [vmem:[%s196 + $0xf8] sm:$0xff]
      %v237 = vld [vmem:[%s1] sm:$0xf]
      %v238 = vld [vmem:[%s1 + $0x4] sm:$0xf]
      %v239 = vld [vmem:[%s1 + $0x8] sm:$0xf]
      %v240 = vld [vmem:[%s1 + $0xc] sm:$0xf]
      %v241 = vld [vmem:[%s1 + $0x10] sm:$0xf]
      %v242 = vld [vmem:[%s1 + $0x14] sm:$0xf]
      %v243 = vld [vmem:[%s1 + $0x18] sm:$0xf]
      %v244 = vld [vmem:[%s1 + $0x1c] sm:$0xf]
      %v245 = vld [vmem:[%s1 + $0x20] sm:$0xf]
      %v246 = vld [vmem:[%s1 + $0x24] sm:$0xf]
      %v247 = vld [vmem:[%s1 + $0x28] sm:$0xf]
      %v248 = vld [vmem:[%s1 + $0x2c] sm:$0xf]
      %v249 = vld [vmem:[%s1 + $0x30] sm:$0xf]
      %v250 = vld [vmem:[%s1 + $0x34] sm:$0xf]
      %v251 = vld [vmem:[%s1 + $0x38] sm:$0xf]
      %v252 = vld [vmem:[%s1 + $0x3c] sm:$0xf]
      %v253 = vld [vmem:[%s1 + $0x40] sm:$0xf]
      %v254 = vld [vmem:[%s1 + $0x44] sm:$0xf]
      %v255 = vld [vmem:[%s1 + $0x48] sm:$0x3]
      %v288 = vunpack.c.l.b16 %v205
      %v289 = vunpack.c.h.b16 %v205
      %v290 = vunpack.c.l.b16 %v206
      %v291 = vunpack.c.h.b16 %v206
      %v292 = vunpack.c.l.b16 %v207
      %v293 = vunpack.c.h.b16 %v207
      %v294 = vunpack.c.l.b16 %v208
      %v295 = vunpack.c.h.b16 %v208
      %v296 = vunpack.c.l.b16 %v209
      %v297 = vunpack.c.h.b16 %v209
      %v298 = vunpack.c.l.b16 %v210
      %v299 = vunpack.c.h.b16 %v210
      %v300 = vunpack.c.l.b16 %v211
      %v301 = vunpack.c.h.b16 %v211
      %v302 = vunpack.c.l.b16 %v212
      %v303 = vunpack.c.h.b16 %v212
      %v304 = vunpack.c.l.b16 %v213
      %v305 = vunpack.c.h.b16 %v213
      %v306 = vunpack.c.l.b16 %v214
      %v307 = vunpack.c.h.b16 %v214
      %v308 = vunpack.c.l.b16 %v215
      %v309 = vunpack.c.h.b16 %v215
      %v310 = vunpack.c.l.b16 %v216
      %v311 = vunpack.c.h.b16 %v216
      %v312 = vunpack.c.l.b16 %v217
      %v313 = vunpack.c.h.b16 %v217
      %v314 = vunpack.c.l.b16 %v218
      %v315 = vunpack.c.h.b16 %v218
      %v316 = vunpack.c.l.b16 %v219
      %v317 = vunpack.c.h.b16 %v219
      %v318 = vunpack.c.l.b16 %v220
      %v319 = vunpack.c.h.b16 %v220
      %v320 = vunpack.c.l.b16 %v221
      %v321 = vunpack.c.h.b16 %v221
      %v322 = vunpack.c.l.b16 %v222
      %v323 = vunpack.c.h.b16 %v222
      %v324 = vunpack.c.l.b16 %v223
      %v325 = vunpack.c.h.b16 %v223
      %v326 = vunpack.c.l.b16 %v224
      %v327 = vunpack.c.h.b16 %v224
      %v328 = vunpack.c.l.b16 %v225
      %v329 = vunpack.c.h.b16 %v225
      %v330 = vunpack.c.l.b16 %v226
      %v331 = vunpack.c.h.b16 %v226
      %v332 = vunpack.c.l.b16 %v227
      %v333 = vunpack.c.h.b16 %v227
      %v334 = vunpack.c.l.b16 %v228
      %v335 = vunpack.c.h.b16 %v228
      %v336 = vunpack.c.l.b16 %v229
      %v337 = vunpack.c.h.b16 %v229
      %v338 = vunpack.c.l.b16 %v230
      %v339 = vunpack.c.h.b16 %v230
      %v340 = vunpack.c.l.b16 %v231
      %v341 = vunpack.c.h.b16 %v231
      %v342 = vunpack.c.l.b16 %v232
      %v343 = vunpack.c.h.b16 %v232
      %v344 = vunpack.c.l.b16 %v233
      %v345 = vunpack.c.h.b16 %v233
      %v346 = vunpack.c.l.b16 %v234
      %v347 = vunpack.c.h.b16 %v234
      %v348 = vunpack.c.l.b16 %v235
      %v349 = vunpack.c.h.b16 %v235
      %v350 = vunpack.c.l.b16 %v236
      %v351 = vunpack.c.h.b16 %v236
      %v352 = vpack.c.b16 %v290, %v288
      %v353 = vpack.c.b16 %v291, %v289
      %v354 = vpack.c.b16 %v294, %v292
      %v355 = vpack.c.b16 %v295, %v293
      %v356 = vpack.c.b16 %v298, %v296
      %v357 = vpack.c.b16 %v299, %v297
      %v358 = vpack.c.b16 %v302, %v300
      %v359 = vpack.c.b16 %v303, %v301
      %v360 = vpack.c.b16 %v306, %v304
      %v361 = vpack.c.b16 %v307, %v305
      %v362 = vpack.c.b16 %v310, %v308
      %v363 = vpack.c.b16 %v311, %v309
      %v364 = vpack.c.b16 %v314, %v312
      %v365 = vpack.c.b16 %v315, %v313
      %v366 = vpack.c.b16 %v318, %v316
      %v367 = vpack.c.b16 %v319, %v317
      %v368 = vpack.c.b16 %v322, %v320
      %v369 = vpack.c.b16 %v323, %v321
      %v370 = vpack.c.b16 %v326, %v324
      %v371 = vpack.c.b16 %v327, %v325
      %v372 = vpack.c.b16 %v330, %v328
      %v373 = vpack.c.b16 %v331, %v329
      %v374 = vpack.c.b16 %v334, %v332
      %v375 = vpack.c.b16 %v335, %v333
      %v376 = vpack.c.b16 %v338, %v336
      %v377 = vpack.c.b16 %v339, %v337
      %v378 = vpack.c.b16 %v342, %v340
      %v379 = vpack.c.b16 %v343, %v341
      %v380 = vpack.c.b16 %v346, %v344
      %v381 = vpack.c.b16 %v347, %v345
      %v382 = vpack.c.b16 %v350, %v348
      %v383 = vpack.c.b16 %v351, %v349
      %v419 = vunpack.c.l.b16 %v237
      %v420 = vunpack.c.l.b16 %v238
      %v421 = vunpack.c.l.b16 %v239
      %v422 = vunpack.c.l.b16 %v240
      %v423 = vunpack.c.l.b16 %v241
      %v424 = vunpack.c.l.b16 %v242
      %v425 = vunpack.c.l.b16 %v243
      %v426 = vunpack.c.l.b16 %v244
      %v427 = vunpack.c.l.b16 %v245
      %v428 = vunpack.c.l.b16 %v246
      %v429 = vunpack.c.l.b16 %v247
      %v430 = vunpack.c.l.b16 %v248
      %v431 = vunpack.c.l.b16 %v249
      %v432 = vunpack.c.l.b16 %v250
      %v433 = vunpack.c.l.b16 %v251
      %v434 = vunpack.c.l.b16 %v252
      %v435 = vunpack.c.l.b16 %v253
      %v436 = vunpack.c.l.b16 %v254
      %v437 = vunpack.c.l.b16 %v255
      %v438 = vpack.c.b16 %v420, %v419
      %v439 = vpack.c.b16 %v422, %v421
      %v440 = vpack.c.b16 %v424, %v423
      %v441 = vpack.c.b16 %v426, %v425
      %v442 = vpack.c.b16 %v428, %v427
      %v443 = vpack.c.b16 %v430, %v429
      %v444 = vpack.c.b16 %v432, %v431
      %v445 = vpack.c.b16 %v434, %v433
      %v446 = vpack.c.b16 %v436, %v435
      %v447 = vpack.c.b16 %v437, %v437
      %vm457 = vcmask 154624
      %v459 = vsel %vm457, %v353, 0
      %v462 = vsel %vm457, %v355, 0
      %v465 = vsel %vm457, %v357, 0
      %v468 = vsel %vm457, %v359, 0
      %v471 = vsel %vm457, %v361, 0
      %v474 = vsel %vm457, %v363, 0
      %v477 = vsel %vm457, %v365, 0
      %v480 = vsel %vm457, %v367, 0
      %v483 = vsel %vm457, %v369, 0
      %v486 = vsel %vm457, %v371, 0
      %v489 = vsel %vm457, %v373, 0
      %v492 = vsel %vm457, %v375, 0
      %v495 = vsel %vm457, %v377, 0
      %v498 = vsel %vm457, %v379, 0
      %v501 = vsel %vm457, %v381, 0
      %v504 = vsel %vm457, %v383, 0
      %vm506 = vcmask 1040384
      %vm507 = vcmask 1041408
      %v508 = vsel %vm506, 4294967295, 65535
      %v509 = vsel %vm507, %v508, 0
      %v511 = vand.u32 %v447, %v509
      %513 = vmatprep.subr.bf16.mxu0 0
      %514 = vmatpush1.bf16.msra.mxu0 %v438
      %515 = vmatprep.subr.bf16.mxu0 0
      %516 = vmatpush1.bf16.msra.mxu0 %v439
      %517 = vmatprep.subr.bf16.mxu0 0
      %518 = vmatpush1.bf16.msra.mxu0 %v440
      %519 = vmatprep.subr.bf16.mxu0 0
      %520 = vmatpush1.bf16.msra.mxu0 %v441
      %521 = vmatprep.subr.bf16.mxu0 0
      %522 = vmatpush1.bf16.msra.mxu0 %v442
      %523 = vmatprep.subr.bf16.mxu0 0
      %524 = vmatpush1.bf16.msra.mxu0 %v443
      %525 = vmatprep.subr.bf16.mxu0 0
      %526 = vmatpush1.bf16.msra.mxu0 %v444
      %527 = vmatprep.subr.bf16.mxu0 0
      %528 = vmatpush1.bf16.msra.mxu0 %v445
      %529 = vmatprep.subr.bf16.mxu0 0
      %530 = vmatpush1.bf16.msra.mxu0 %v446
      %531 = vmatprep.subr.bf16.mxu0 0
      %532 = vmatpush1.bf16.msra.mxu0 %v511
      %533 = vmatprep.subr.bf16.mxu0 0
      %534 = vmatpush1.bf16.msra.mxu0 0
      %535 = vmatprep.subr.bf16.mxu0 0
      %536 = vmatpush1.bf16.msra.mxu0 0
      %537 = vmatprep.subr.bf16.mxu0 0
      %538 = vmatpush1.bf16.msra.mxu0 0
      %539 = vmatprep.subr.bf16.mxu0 0
      %540 = vmatpush1.bf16.msra.mxu0 0
      %541 = vmatprep.subr.bf16.mxu0 0
      %542 = vmatpush1.bf16.msra.mxu0 0
      %543 = vmatprep.subr.bf16.mxu0 0
      %544 = vmatpush1.bf16.msra.mxu0 0
      %545 = vmatprep.mubr.bf16.mxu0 %v459
      %546 = vmatmul.mubr.bf16.gmra.mrb[0].mxu0 %v352
      %v547 = vpop.f32.mrb[0].mxu0
      %v548 = vadd.f32 0.0, %v547
      %v549 = vpop.f32.mrb[0].mxu0
      %v550 = vpop.f32.mrb[0].mxu0
      %v551 = vadd.f32 0.0, %v550
      %v552 = vpop.f32.mrb[0].mxu0
      %553 = vmatprep.mubr.bf16.mxu0 %v462
      %554 = vmatmul.mubr.bf16.gmra.mrb[0].mxu0 %v354
      %v555 = vpop.f32.mrb[0].mxu0
      %v556 = vadd.f32 0.0, %v555
      %v557 = vpop.f32.mrb[0].mxu0
      %v558 = vpop.f32.mrb[0].mxu0
      %v559 = vadd.f32 0.0, %v558
      %v560 = vpop.f32.mrb[0].mxu0
      %561 = vmatprep.mubr.bf16.mxu0 %v465
      %562 = vmatmul.mubr.bf16.gmra.mrb[0].mxu0 %v356
      %v563 = vpop.f32.mrb[0].mxu0
      %v564 = vadd.f32 0.0, %v563
      %v565 = vpop.f32.mrb[0].mxu0
      %v566 = vpop.f32.mrb[0].mxu0
      %v567 = vadd.f32 0.0, %v566
      %v568 = vpop.f32.mrb[0].mxu0
      %569 = vmatprep.mubr.bf16.mxu0 %v468
      %570 = vmatmul.mubr.bf16.gmra.mrb[0].mxu0 %v358
      %v571 = vpop.f32.mrb[0].mxu0
      %v572 = vadd.f32 0.0, %v571
      %v573 = vpop.f32.mrb[0].mxu0
      %v574 = vpop.f32.mrb[0].mxu0
      %v575 = vadd.f32 0.0, %v574
      %v576 = vpop.f32.mrb[0].mxu0
      %577 = vmatprep.mubr.bf16.mxu0 %v471
      %578 = vmatmul.mubr.bf16.gmra.mrb[0].mxu0 %v360
      %v579 = vpop.f32.mrb[0].mxu0
      %v580 = vadd.f32 0.0, %v579
      %v581 = vpop.f32.mrb[0].mxu0
      %v582 = vpop.f32.mrb[0].mxu0
      %v583 = vadd.f32 0.0, %v582
      %v584 = vpop.f32.mrb[0].mxu0
      %585 = vmatprep.mubr.bf16.mxu0 %v474
      %586 = vmatmul.mubr.bf16.gmra.mrb[0].mxu0 %v362
      %v587 = vpop.f32.mrb[0].mxu0
      %v588 = vadd.f32 0.0, %v587
      %v589 = vpop.f32.mrb[0].mxu0
      %v590 = vpop.f32.mrb[0].mxu0
      %v591 = vadd.f32 0.0, %v590
      %v592 = vpop.f32.mrb[0].mxu0
      %593 = vmatprep.mubr.bf16.mxu0 %v477
      %594 = vmatmul.mubr.bf16.gmra.mrb[0].mxu0 %v364
      %v595 = vpop.f32.mrb[0].mxu0
      %v596 = vadd.f32 0.0, %v595
      %v597 = vpop.f32.mrb[0].mxu0
      %v598 = vpop.f32.mrb[0].mxu0
      %v599 = vadd.f32 0.0, %v598
      %v600 = vpop.f32.mrb[0].mxu0
      %601 = vmatprep.mubr.bf16.mxu0 %v480
      %602 = vmatmul.mubr.bf16.gmra.mrb[0].mxu0 %v366
      %v603 = vpop.f32.mrb[0].mxu0
      %v604 = vadd.f32 0.0, %v603
      %v605 = vpop.f32.mrb[0].mxu0
      %v606 = vpop.f32.mrb[0].mxu0
      %v607 = vadd.f32 0.0, %v606
      %v608 = vpop.f32.mrb[0].mxu0
      %609 = vmatprep.mubr.bf16.mxu0 %v483
      %610 = vmatmul.mubr.bf16.gmra.mrb[0].mxu0 %v368
      %v611 = vpop.f32.mrb[0].mxu0
      %v612 = vadd.f32 0.0, %v611
      %v613 = vpop.f32.mrb[0].mxu0
      %v614 = vpop.f32.mrb[0].mxu0
      %v615 = vadd.f32 0.0, %v614
      %v616 = vpop.f32.mrb[0].mxu0
      %617 = vmatprep.mubr.bf16.mxu0 %v486
      %618 = vmatmul.mubr.bf16.gmra.mrb[0].mxu0 %v370
      %v619 = vpop.f32.mrb[0].mxu0
      %v620 = vadd.f32 0.0, %v619
      %v621 = vpop.f32.mrb[0].mxu0
      %v622 = vpop.f32.mrb[0].mxu0
      %v623 = vadd.f32 0.0, %v622
      %v624 = vpop.f32.mrb[0].mxu0
      %625 = vmatprep.mubr.bf16.mxu0 %v489
      %626 = vmatmul.mubr.bf16.gmra.mrb[0].mxu0 %v372
      %v627 = vpop.f32.mrb[0].mxu0
      %v628 = vadd.f32 0.0, %v627
      %v629 = vpop.f32.mrb[0].mxu0
      %v630 = vpop.f32.mrb[0].mxu0
      %v631 = vadd.f32 0.0, %v630
      %v632 = vpop.f32.mrb[0].mxu0
      %633 = vmatprep.mubr.bf16.mxu0 %v492
      %634 = vmatmul.mubr.bf16.gmra.mrb[0].mxu0 %v374
      %v635 = vpop.f32.mrb[0].mxu0
      %v636 = vadd.f32 0.0, %v635
      %v637 = vpop.f32.mrb[0].mxu0
      %v638 = vpop.f32.mrb[0].mxu0
      %v639 = vadd.f32 0.0, %v638
      %v640 = vpop.f32.mrb[0].mxu0
      %641 = vmatprep.mubr.bf16.mxu0 %v495
      %642 = vmatmul.mubr.bf16.gmra.mrb[0].mxu0 %v376
      %v643 = vpop.f32.mrb[0].mxu0
      %v644 = vadd.f32 0.0, %v643
      %v645 = vpop.f32.mrb[0].mxu0
      %v646 = vpop.f32.mrb[0].mxu0
      %v647 = vadd.f32 0.0, %v646
      %v648 = vpop.f32.mrb[0].mxu0
      %649 = vmatprep.mubr.bf16.mxu0 %v498
      %650 = vmatmul.mubr.bf16.gmra.mrb[0].mxu0 %v378
      %v651 = vpop.f32.mrb[0].mxu0
      %v652 = vadd.f32 0.0, %v651
      %v653 = vpop.f32.mrb[0].mxu0
      %v654 = vpop.f32.mrb[0].mxu0
      %v655 = vadd.f32 0.0, %v654
      %v656 = vpop.f32.mrb[0].mxu0
      %657 = vmatprep.mubr.bf16.mxu0 %v501
      %658 = vmatmul.mubr.bf16.gmra.mrb[0].mxu0 %v380
      %v659 = vpop.f32.mrb[0].mxu0
      %v660 = vadd.f32 0.0, %v659
      %v661 = vpop.f32.mrb[0].mxu0
      %v662 = vpop.f32.mrb[0].mxu0
      %v663 = vadd.f32 0.0, %v662
      %v664 = vpop.f32.mrb[0].mxu0
      %665 = vmatprep.mubr.bf16.mxu0 %v504
      %666 = vmatmul.mubr.bf16.gmra.mrb[0].mxu0 %v382
      %v667 = vpop.f32.mrb[0].mxu0
      %v668 = vadd.f32 0.0, %v667
      %v669 = vpop.f32.mrb[0].mxu0
      %v670 = vpop.f32.mrb[0].mxu0
      %v671 = vadd.f32 0.0, %v670
      %v672 = vpop.f32.mrb[0].mxu0
      %673 = vdwg.mxu0
      %v674 = vld [vmem:[%s2] sm:$0x1]
      %v676 = vlaneseq
      %v677 = vshrl.u32 %v676, 7
      %v678 = vsub.s32 0, %v677
      %v679 = vrot.slane %v674, %v678
      %v681 = vmul.f32 %v548, %v679
      %v682 = vmul.f32 %v551, %v679
      %v683 = vmul.f32 %v556, %v679
      %v684 = vmul.f32 %v559, %v679
      %v685 = vmul.f32 %v564, %v679
      %v686 = vmul.f32 %v567, %v679
      %v687 = vmul.f32 %v572, %v679
      %v688 = vmul.f32 %v575, %v679
      %v689 = vmul.f32 %v580, %v679
      %v690 = vmul.f32 %v583, %v679
      %v691 = vmul.f32 %v588, %v679
      %v692 = vmul.f32 %v591, %v679
      %v693 = vmul.f32 %v596, %v679
      %v694 = vmul.f32 %v599, %v679
      %v695 = vmul.f32 %v604, %v679
      %v696 = vmul.f32 %v607, %v679
      %v697 = vmul.f32 %v612, %v679
      %v698 = vmul.f32 %v615, %v679
      %v699 = vmul.f32 %v620, %v679
      %v700 = vmul.f32 %v623, %v679
      %v701 = vmul.f32 %v628, %v679
      %v702 = vmul.f32 %v631, %v679
      %v703 = vmul.f32 %v636, %v679
      %v704 = vmul.f32 %v639, %v679
      %v705 = vmul.f32 %v644, %v679
      %v706 = vmul.f32 %v647, %v679
      %v707 = vmul.f32 %v652, %v679
      %v708 = vmul.f32 %v655, %v679
      %v709 = vmul.f32 %v660, %v679
      %v710 = vmul.f32 %v663, %v679
      %v711 = vmul.f32 %v668, %v679
      %v712 = vmul.f32 %v671, %v679
      %v713 = vld [vmem:[%s3] sm:$0x1]
      %v715 = vlaneseq
      %v716 = vshrl.u32 %v715, 7
      %v717 = vsub.s32 0, %v716
      %v718 = vrot.slane %v713, %v717
      %v720 = vadd.f32 %v681, %v718
      %v721 = vadd.f32 %v682, %v718
      %v722 = vadd.f32 %v683, %v718
      %v723 = vadd.f32 %v684, %v718
      %v724 = vadd.f32 %v685, %v718
      %v725 = vadd.f32 %v686, %v718
      %v726 = vadd.f32 %v687, %v718
      %v727 = vadd.f32 %v688, %v718
      %v728 = vadd.f32 %v689, %v718
      %v729 = vadd.f32 %v690, %v718
      %v730 = vadd.f32 %v691, %v718
      %v731 = vadd.f32 %v692, %v718
      %v732 = vadd.f32 %v693, %v718
      %v733 = vadd.f32 %v694, %v718
      %v734 = vadd.f32 %v695, %v718
      %v735 = vadd.f32 %v696, %v718
      %v736 = vadd.f32 %v697, %v718
      %v737 = vadd.f32 %v698, %v718
      %v738 = vadd.f32 %v699, %v718
      %v739 = vadd.f32 %v700, %v718
      %v740 = vadd.f32 %v701, %v718
      %v741 = vadd.f32 %v702, %v718
      %v742 = vadd.f32 %v703, %v718
      %v743 = vadd.f32 %v704, %v718
      %v744 = vadd.f32 %v705, %v718
      %v745 = vadd.f32 %v706, %v718
      %v746 = vadd.f32 %v707, %v718
      %v747 = vadd.f32 %v708, %v718
      %v748 = vadd.f32 %v709, %v718
      %v749 = vadd.f32 %v710, %v718
      %v750 = vadd.f32 %v711, %v718
      %v751 = vadd.f32 %v712, %v718
      %v752 = vmax.f32 %v720, 0.0
      %v753 = vmax.f32 %v721, 0.0
      %v754 = vmax.f32 %v722, 0.0
      %v755 = vmax.f32 %v723, 0.0
      %v756 = vmax.f32 %v724, 0.0
      %v757 = vmax.f32 %v725, 0.0
      %v758 = vmax.f32 %v726, 0.0
      %v759 = vmax.f32 %v727, 0.0
      %v760 = vmax.f32 %v728, 0.0
      %v761 = vmax.f32 %v729, 0.0
      %v762 = vmax.f32 %v730, 0.0
      %v763 = vmax.f32 %v731, 0.0
      %v764 = vmax.f32 %v732, 0.0
      %v765 = vmax.f32 %v733, 0.0
      %v766 = vmax.f32 %v734, 0.0
      %v767 = vmax.f32 %v735, 0.0
      %v768 = vmax.f32 %v736, 0.0
      %v769 = vmax.f32 %v737, 0.0
      %v770 = vmax.f32 %v738, 0.0
      %v771 = vmax.f32 %v739, 0.0
      %v772 = vmax.f32 %v740, 0.0
      %v773 = vmax.f32 %v741, 0.0
      %v774 = vmax.f32 %v742, 0.0
      %v775 = vmax.f32 %v743, 0.0
      %v776 = vmax.f32 %v744, 0.0
      %v777 = vmax.f32 %v745, 0.0
      %v778 = vmax.f32 %v746, 0.0
      %v779 = vmax.f32 %v747, 0.0
      %v780 = vmax.f32 %v748, 0.0
      %v781 = vmax.f32 %v749, 0.0
      %v782 = vmax.f32 %v750, 0.0
      %v783 = vmax.f32 %v751, 0.0
      %v784 = vpack.c.bf16 %v753, %v752
      %v785 = vpack.c.bf16 %v755, %v754
      %v786 = vpack.c.bf16 %v757, %v756
      %v787 = vpack.c.bf16 %v759, %v758
      %v788 = vpack.c.bf16 %v761, %v760
      %v789 = vpack.c.bf16 %v763, %v762
      %v790 = vpack.c.bf16 %v765, %v764
      %v791 = vpack.c.bf16 %v767, %v766
      %v792 = vpack.c.bf16 %v769, %v768
      %v793 = vpack.c.bf16 %v771, %v770
      %v794 = vpack.c.bf16 %v773, %v772
      %v795 = vpack.c.bf16 %v775, %v774
      %v796 = vpack.c.bf16 %v777, %v776
      %v797 = vpack.c.bf16 %v779, %v778
      %v798 = vpack.c.bf16 %v781, %v780
      %v799 = vpack.c.bf16 %v783, %v782
      %v816 = vunpack.c.l.b16 %v784
      %v817 = vunpack.c.h.b16 %v784
      %v818 = vunpack.c.l.b16 %v785
      %v819 = vunpack.c.h.b16 %v785
      %v820 = vunpack.c.l.b16 %v786
      %v821 = vunpack.c.h.b16 %v786
      %v822 = vunpack.c.l.b16 %v787
      %v823 = vunpack.c.h.b16 %v787
      %v824 = vunpack.c.l.b16 %v788
      %v825 = vunpack.c.h.b16 %v788
      %v826 = vunpack.c.l.b16 %v789
      %v827 = vunpack.c.h.b16 %v789
      %v828 = vunpack.c.l.b16 %v790
      %v829 = vunpack.c.h.b16 %v790
      %v830 = vunpack.c.l.b16 %v791
      %v831 = vunpack.c.h.b16 %v791
      %v832 = vunpack.c.l.b16 %v792
      %v833 = vunpack.c.h.b16 %v792
      %v834 = vunpack.c.l.b16 %v793
      %v835 = vunpack.c.h.b16 %v793
      %v836 = vunpack.c.l.b16 %v794
      %v837 = vunpack.c.h.b16 %v794
      %v838 = vunpack.c.l.b16 %v795
      %v839 = vunpack.c.h.b16 %v795
      %v840 = vunpack.c.l.b16 %v796
      %v841 = vunpack.c.h.b16 %v796
      %v842 = vunpack.c.l.b16 %v797
      %v843 = vunpack.c.h.b16 %v797
      %v844 = vunpack.c.l.b16 %v798
      %v845 = vunpack.c.h.b16 %v798
      %v846 = vunpack.c.l.b16 %v799
      %v847 = vunpack.c.h.b16 %v799
      %v848 = vpack.c.b16 %v816, %v816
      %v849 = vpack.c.b16 %v817, %v817
      %v850 = vpack.c.b16 %v818, %v818
      %v851 = vpack.c.b16 %v819, %v819
      %v852 = vpack.c.b16 %v820, %v820
      %v853 = vpack.c.b16 %v821, %v821
      %v854 = vpack.c.b16 %v822, %v822
      %v855 = vpack.c.b16 %v823, %v823
      %v856 = vpack.c.b16 %v824, %v824
      %v857 = vpack.c.b16 %v825, %v825
      %v858 = vpack.c.b16 %v826, %v826
      %v859 = vpack.c.b16 %v827, %v827
      %v860 = vpack.c.b16 %v828, %v828
      %v861 = vpack.c.b16 %v829, %v829
      %v862 = vpack.c.b16 %v830, %v830
      %v863 = vpack.c.b16 %v831, %v831
      %v864 = vpack.c.b16 %v832, %v832
      %v865 = vpack.c.b16 %v833, %v833
      %v866 = vpack.c.b16 %v834, %v834
      %v867 = vpack.c.b16 %v835, %v835
      %v868 = vpack.c.b16 %v836, %v836
      %v869 = vpack.c.b16 %v837, %v837
      %v870 = vpack.c.b16 %v838, %v838
      %v871 = vpack.c.b16 %v839, %v839
      %v872 = vpack.c.b16 %v840, %v840
      %v873 = vpack.c.b16 %v841, %v841
      %v874 = vpack.c.b16 %v842, %v842
      %v875 = vpack.c.b16 %v843, %v843
      %v876 = vpack.c.b16 %v844, %v844
      %v877 = vpack.c.b16 %v845, %v845
      %v878 = vpack.c.b16 %v846, %v846
      %v879 = vpack.c.b16 %v847, %v847
      %vm912 = vcmask 125952
      %913 = vst.msk [vmem:[%s202] sm:$0xf] %vm912, %v848
      %914 = vst.msk [vmem:[%s202 + $0x4] sm:$0xf] %vm912, %v849
      %915 = vst.msk [vmem:[%s202 + $0x8] sm:$0xf] %vm912, %v850
      %916 = vst.msk [vmem:[%s202 + $0xc] sm:$0xf] %vm912, %v851
      %917 = vst.msk [vmem:[%s202 + $0x10] sm:$0xf] %vm912, %v852
      %918 = vst.msk [vmem:[%s202 + $0x14] sm:$0xf] %vm912, %v853
      %919 = vst.msk [vmem:[%s202 + $0x18] sm:$0xf] %vm912, %v854
      %920 = vst.msk [vmem:[%s202 + $0x1c] sm:$0xf] %vm912, %v855
      %921 = vst.msk [vmem:[%s202 + $0x20] sm:$0xf] %vm912, %v856
      %922 = vst.msk [vmem:[%s202 + $0x24] sm:$0xf] %vm912, %v857
      %923 = vst.msk [vmem:[%s202 + $0x28] sm:$0xf] %vm912, %v858
      %924 = vst.msk [vmem:[%s202 + $0x2c] sm:$0xf] %vm912, %v859
      %925 = vst.msk [vmem:[%s202 + $0x30] sm:$0xf] %vm912, %v860
      %926 = vst.msk [vmem:[%s202 + $0x34] sm:$0xf] %vm912, %v861
      %927 = vst.msk [vmem:[%s202 + $0x38] sm:$0xf] %vm912, %v862
      %928 = vst.msk [vmem:[%s202 + $0x3c] sm:$0xf] %vm912, %v863
      %929 = vst.msk [vmem:[%s202 + $0x40] sm:$0xf] %vm912, %v864
      %930 = vst.msk [vmem:[%s202 + $0x44] sm:$0xf] %vm912, %v865
      %931 = vst.msk [vmem:[%s202 + $0x48] sm:$0xf] %vm912, %v866
      %932 = vst.msk [vmem:[%s202 + $0x4c] sm:$0xf] %vm912, %v867
      %933 = vst.msk [vmem:[%s202 + $0x50] sm:$0xf] %vm912, %v868
      %934 = vst.msk [vmem:[%s202 + $0x54] sm:$0xf] %vm912, %v869
      %935 = vst.msk [vmem:[%s202 + $0x58] sm:$0xf] %vm912, %v870
      %936 = vst.msk [vmem:[%s202 + $0x5c] sm:$0xf] %vm912, %v871
      %937 = vst.msk [vmem:[%s202 + $0x60] sm:$0xf] %vm912, %v872
      %938 = vst.msk [vmem:[%s202 + $0x64] sm:$0xf] %vm912, %v873
      %939 = vst.msk [vmem:[%s202 + $0x68] sm:$0xf] %vm912, %v874
      %940 = vst.msk [vmem:[%s202 + $0x6c] sm:$0xf] %vm912, %v875
      %941 = vst.msk [vmem:[%s202 + $0x70] sm:$0xf] %vm912, %v876
      %942 = vst.msk [vmem:[%s202 + $0x74] sm:$0xf] %vm912, %v877
      %943 = vst.msk [vmem:[%s202 + $0x78] sm:$0xf] %vm912, %v878
      %944 = vst.msk [vmem:[%s202 + $0x7c] sm:$0xf] %vm912, %v879
      %s945 = smul.u32 32, %s15
      %p946 = scmp.lt.s32.totalorder %s945, 63
      %s947 = scalar_select %p946, %s945, 63
      %s948 = smul.addr %s947, 4
      %s949 = scalar_lea.vmem %s4, %s948
      // Predicated region
      $region37: #{_lambda_.22} parent=35 // pred_check
        %p950 = pneg %p122
      $region38: #{_lambda_.22} parent=35 // pred_check_branch
        %952 = sbr.rel (%p950) target = $region40
      $region39: #{_lambda_.22} parent=35 // pred_region
        %s953 = smul.u32 32, %s15
      $region40: #{_lambda_.22} parent=35 // pred_fallthru
        _
    $region36: #{_lambda_.22} parent=5 // pred_fallthru
      _
    %p954 = scmp.le.s32.totalorder 2, %s10
    // Predicated region
    $region41: #{_lambda_.22} parent=5 // pred_check
      %p955 = pneg %p954
    $region42: #{_lambda_.22} parent=5 // pred_check_branch
      %957 = sbr.rel (%p955) target = $region44
    $region43: #{_lambda_.22} parent=5 // pred_region
      %s958 = ssub.s32 %s10, 2
      // Predicated region
      $region45: #{_lambda_.22} parent=43 // pred_check
        %p959 = pneg %p128
      $region46: #{_lambda_.22} parent=43 // pred_check_branch
        %961 = sbr.rel (%p959) target = $region48
      $region47: #{_lambda_.22} parent=43 // pred_region
        %s962 = smul.u32 32, %s16
        %p963 = scmp.lt.s32.totalorder %s962, 63
        %s964 = scalar_select %p963, %s962, 63
        %s965 = smul.addr %s964, 4
        %s966 = scalar_lea.vmem %s4, %s965
      $region48: #{_lambda_.22} parent=43 // pred_fallthru
        _
    $region44: #{_lambda_.22} parent=5 // pred_fallthru
      _
  $region6: #{_lambda_.22} parent=0 // loop_footer
    %s14 = sadd.s32 1, %s10
  $region7: #{_lambda_.22} parent=0 // loop_footer_branch
    %9 = sbr.rel target = $region3
  $region8: #{_lambda_.22} parent=0 // loop_exit
    _

// kernel: _lambda_.23
$region0: #{_lambda_.23}
  #allocation0 [shape = 'u32[]', space=smem, size = 0x4, offset = 0x4, fixed_abs, tag = 'smem constant byte address 0x4 - core index']
  #allocation1 [shape = 'u32[144,128]{1,0:T(1,128)}', space=vmem, size = 0x12000, scoped, tag = 'internal scratch']
  %s0 = inlined_call_operand.vmem [shape: bf16[9,2048], index: 0, kind: input, shape index: {}]
  %s1 = inlined_call_operand.vmem [shape: bf16[1,2048], index: 1, kind: output, shape index: {}]
  %s2 = sld [smem:[#allocation0]]
  $region14: #{_lambda_.23} parent=0
    _
  %s4 = ssub.s32 1, %s2
  %s5 = scalar_select 0, %s4, %s2
  // Predicated region
  $region2: #{_lambda_.23} parent=0 // pred_check
    _
  $region3: #{_lambda_.23} parent=0 // pred_check_branch
    %7 = sbr.rel (0) target = $region5
  $region4: #{_lambda_.23} parent=0 // pred_region
    _
  $region5: #{_lambda_.23} parent=0 // pred_fallthru
    _
  %v8 = vld [vmem:[%s0] sm:$0xff]
  %v9 = vld [vmem:[%s0 + $0x8] sm:$0xff]
  %v10 = vld [vmem:[%s0 + $0x10] sm:$0xff]
  %v11 = vld [vmem:[%s0 + $0x18] sm:$0xff]
  %v12 = vld [vmem:[%s0 + $0x20] sm:$0xff]
  %v13 = vld [vmem:[%s0 + $0x28] sm:$0xff]
  %v14 = vld [vmem:[%s0 + $0x30] sm:$0xff]
  %v15 = vld [vmem:[%s0 + $0x38] sm:$0xff]
  %v16 = vld [vmem:[%s0 + $0x40] sm:$0x11]
  %v17 = vld [vmem:[%s0 + $0x48] sm:$0x11]
  %v18 = vld [vmem:[%s0 + $0x50] sm:$0x11]
  %v19 = vld [vmem:[%s0 + $0x58] sm:$0x11]
  %v20 = vld [vmem:[%s0 + $0x60] sm:$0x11]
  %v21 = vld [vmem:[%s0 + $0x68] sm:$0x11]
  %v22 = vld [vmem:[%s0 + $0x70] sm:$0x11]
  %v23 = vld [vmem:[%s0 + $0x78] sm:$0x11]
  %v24 = vunpack.c.l.bf16 %v8
  %v25 = vunpack.c.h.bf16 %v8
  %v26 = vunpack.c.l.bf16 %v9
  %v27 = vunpack.c.h.bf16 %v9
  %v28 = vunpack.c.l.bf16 %v10
  %v29 = vunpack.c.h.bf16 %v10
  %v30 = vunpack.c.l.bf16 %v11
  %v31 = vunpack.c.h.bf16 %v11
  %v32 = vunpack.c.l.bf16 %v12
  %v33 = vunpack.c.h.bf16 %v12
  %v34 = vunpack.c.l.bf16 %v13
  %v35 = vunpack.c.h.bf16 %v13
  %v36 = vunpack.c.l.bf16 %v14
  %v37 = vunpack.c.h.bf16 %v14
  %v38 = vunpack.c.l.bf16 %v15
  %v39 = vunpack.c.h.bf16 %v15
  %v40 = vunpack.c.l.bf16 %v16
  %v41 = vunpack.c.h.bf16 %v16
  %v42 = vunpack.c.l.bf16 %v17
  %v43 = vunpack.c.h.bf16 %v17
  %v44 = vunpack.c.l.bf16 %v18
  %v45 = vunpack.c.h.bf16 %v18
  %v46 = vunpack.c.l.bf16 %v19
  %v47 = vunpack.c.h.bf16 %v19
  %v48 = vunpack.c.l.bf16 %v20
  %v49 = vunpack.c.h.bf16 %v20
  %v50 = vunpack.c.l.bf16 %v21
  %v51 = vunpack.c.h.bf16 %v21
  %v52 = vunpack.c.l.bf16 %v22
  %v53 = vunpack.c.h.bf16 %v22
  %v54 = vunpack.c.l.bf16 %v23
  %v55 = vunpack.c.h.bf16 %v23
  %v72 = vrot.slane %v24, 1
  %v73 = vrot.slane %v25, 1
  %v74 = vrot.slane %v26, 1
  %v75 = vrot.slane %v27, 1
  %v76 = vrot.slane %v28, 1
  %v77 = vrot.slane %v29, 1
  %v78 = vrot.slane %v30, 1
  %v79 = vrot.slane %v31, 1
  %v80 = vrot.slane %v32, 1
  %v81 = vrot.slane %v33, 1
  %v82 = vrot.slane %v34, 1
  %v83 = vrot.slane %v35, 1
  %v84 = vrot.slane %v36, 1
  %v85 = vrot.slane %v37, 1
  %v86 = vrot.slane %v38, 1
  %v87 = vrot.slane %v39, 1
  %v104 = vmax.f32 %v24, %v72
  %v105 = vmax.f32 %v25, %v73
  %v106 = vmax.f32 %v26, %v74
  %v107 = vmax.f32 %v27, %v75
  %v108 = vmax.f32 %v28, %v76
  %v109 = vmax.f32 %v29, %v77
  %v110 = vmax.f32 %v30, %v78
  %v111 = vmax.f32 %v31, %v79
  %v112 = vmax.f32 %v32, %v80
  %v113 = vmax.f32 %v33, %v81
  %v114 = vmax.f32 %v34, %v82
  %v115 = vmax.f32 %v35, %v83
  %v116 = vmax.f32 %v36, %v84
  %v117 = vmax.f32 %v37, %v85
  %v118 = vmax.f32 %v38, %v86
  %v119 = vmax.f32 %v39, %v87
  %v120 = vrot.slane %v24, 2
  %v121 = vrot.slane %v25, 2
  %v122 = vrot.slane %v26, 2
  %v123 = vrot.slane %v27, 2
  %v124 = vrot.slane %v28, 2
  %v125 = vrot.slane %v29, 2
  %v126 = vrot.slane %v30, 2
  %v127 = vrot.slane %v31, 2
  %v128 = vrot.slane %v32, 2
  %v129 = vrot.slane %v33, 2
  %v130 = vrot.slane %v34, 2
  %v131 = vrot.slane %v35, 2
  %v132 = vrot.slane %v36, 2
  %v133 = vrot.slane %v37, 2
  %v134 = vrot.slane %v38, 2
  %v135 = vrot.slane %v39, 2
  %v152 = vmax.f32 %v104, %v120
  %v153 = vmax.f32 %v105, %v121
  %v154 = vmax.f32 %v106, %v122
  %v155 = vmax.f32 %v107, %v123
  %v156 = vmax.f32 %v108, %v124
  %v157 = vmax.f32 %v109, %v125
  %v158 = vmax.f32 %v110, %v126
  %v159 = vmax.f32 %v111, %v127
  %v160 = vmax.f32 %v112, %v128
  %v161 = vmax.f32 %v113, %v129
  %v162 = vmax.f32 %v114, %v130
  %v163 = vmax.f32 %v115, %v131
  %v164 = vmax.f32 %v116, %v132
  %v165 = vmax.f32 %v117, %v133
  %v166 = vmax.f32 %v118, %v134
  %v167 = vmax.f32 %v119, %v135
  %v168 = vrot.slane %v24, 3
  %v169 = vrot.slane %v25, 3
  %v170 = vrot.slane %v26, 3
  %v171 = vrot.slane %v27, 3
  %v172 = vrot.slane %v28, 3
  %v173 = vrot.slane %v29, 3
  %v174 = vrot.slane %v30, 3
  %v175 = vrot.slane %v31, 3
  %v176 = vrot.slane %v32, 3
  %v177 = vrot.slane %v33, 3
  %v178 = vrot.slane %v34, 3
  %v179 = vrot.slane %v35, 3
  %v180 = vrot.slane %v36, 3
  %v181 = vrot.slane %v37, 3
  %v182 = vrot.slane %v38, 3
  %v183 = vrot.slane %v39, 3
  %v200 = vmax.f32 %v152, %v168
  %v201 = vmax.f32 %v153, %v169
  %v202 = vmax.f32 %v154, %v170
  %v203 = vmax.f32 %v155, %v171
  %v204 = vmax.f32 %v156, %v172
  %v205 = vmax.f32 %v157, %v173
  %v206 = vmax.f32 %v158, %v174
  %v207 = vmax.f32 %v159, %v175
  %v208 = vmax.f32 %v160, %v176
  %v209 = vmax.f32 %v161, %v177
  %v210 = vmax.f32 %v162, %v178
  %v211 = vmax.f32 %v163, %v179
  %v212 = vmax.f32 %v164, %v180
  %v213 = vmax.f32 %v165, %v181
  %v214 = vmax.f32 %v166, %v182
  %v215 = vmax.f32 %v167, %v183
  %v216 = vrot.slane %v24, 4
  %v217 = vrot.slane %v25, 4
  %v218 = vrot.slane %v26, 4
  %v219 = vrot.slane %v27, 4
  %v220 = vrot.slane %v28, 4
  %v221 = vrot.slane %v29, 4
  %v222 = vrot.slane %v30, 4
  %v223 = vrot.slane %v31, 4
  %v224 = vrot.slane %v32, 4
  %v225 = vrot.slane %v33, 4
  %v226 = vrot.slane %v34, 4
  %v227 = vrot.slane %v35, 4
  %v228 = vrot.slane %v36, 4
  %v229 = vrot.slane %v37, 4
  %v230 = vrot.slane %v38, 4
  %v231 = vrot.slane %v39, 4
  %v248 = vmax.f32 %v200, %v216
  %v249 = vmax.f32 %v201, %v217
  %v250 = vmax.f32 %v202, %v218
  %v251 = vmax.f32 %v203, %v219
  %v252 = vmax.f32 %v204, %v220
  %v253 = vmax.f32 %v205, %v221
  %v254 = vmax.f32 %v206, %v222
  %v255 = vmax.f32 %v207, %v223
  %v256 = vmax.f32 %v208, %v224
  %v257 = vmax.f32 %v209, %v225
  %v258 = vmax.f32 %v210, %v226
  %v259 = vmax.f32 %v211, %v227
  %v260 = vmax.f32 %v212, %v228
  %v261 = vmax.f32 %v213, %v229
  %v262 = vmax.f32 %v214, %v230
  %v263 = vmax.f32 %v215, %v231
  %v264 = vrot.slane %v24, 5
  %v265 = vrot.slane %v25, 5
  %v266 = vrot.slane %v26, 5
  %v267 = vrot.slane %v27, 5
  %v268 = vrot.slane %v28, 5
  %v269 = vrot.slane %v29, 5
  %v270 = vrot.slane %v30, 5
  %v271 = vrot.slane %v31, 5
  %v272 = vrot.slane %v32, 5
  %v273 = vrot.slane %v33, 5
  %v274 = vrot.slane %v34, 5
  %v275 = vrot.slane %v35, 5
  %v276 = vrot.slane %v36, 5
  %v277 = vrot.slane %v37, 5
  %v278 = vrot.slane %v38, 5
  %v279 = vrot.slane %v39, 5
  %v296 = vmax.f32 %v248, %v264
  %v297 = vmax.f32 %v249, %v265
  %v298 = vmax.f32 %v250, %v266
  %v299 = vmax.f32 %v251, %v267
  %v300 = vmax.f32 %v252, %v268
  %v301 = vmax.f32 %v253, %v269
  %v302 = vmax.f32 %v254, %v270
  %v303 = vmax.f32 %v255, %v271
  %v304 = vmax.f32 %v256, %v272
  %v305 = vmax.f32 %v257, %v273
  %v306 = vmax.f32 %v258, %v274
  %v307 = vmax.f32 %v259, %v275
  %v308 = vmax.f32 %v260, %v276
  %v309 = vmax.f32 %v261, %v277
  %v310 = vmax.f32 %v262, %v278
  %v311 = vmax.f32 %v263, %v279
  %v312 = vrot.slane %v24, 6
  %v313 = vrot.slane %v25, 6
  %v314 = vrot.slane %v26, 6
  %v315 = vrot.slane %v27, 6
  %v316 = vrot.slane %v28, 6
  %v317 = vrot.slane %v29, 6
  %v318 = vrot.slane %v30, 6
  %v319 = vrot.slane %v31, 6
  %v320 = vrot.slane %v32, 6
  %v321 = vrot.slane %v33, 6
  %v322 = vrot.slane %v34, 6
  %v323 = vrot.slane %v35, 6
  %v324 = vrot.slane %v36, 6
  %v325 = vrot.slane %v37, 6
  %v326 = vrot.slane %v38, 6
  %v327 = vrot.slane %v39, 6
  %v344 = vmax.f32 %v296, %v312
  %v345 = vmax.f32 %v297, %v313
  %v346 = vmax.f32 %v298, %v314
  %v347 = vmax.f32 %v299, %v315
  %v348 = vmax.f32 %v300, %v316
  %v349 = vmax.f32 %v301, %v317
  %v350 = vmax.f32 %v302, %v318
  %v351 = vmax.f32 %v303, %v319
  %v352 = vmax.f32 %v304, %v320
  %v353 = vmax.f32 %v305, %v321
  %v354 = vmax.f32 %v306, %v322
  %v355 = vmax.f32 %v307, %v323
  %v356 = vmax.f32 %v308, %v324
  %v357 = vmax.f32 %v309, %v325
  %v358 = vmax.f32 %v310, %v326
  %v359 = vmax.f32 %v311, %v327
  %v360 = vrot.slane %v24, 7
  %v361 = vrot.slane %v25, 7
  %v362 = vrot.slane %v26, 7
  %v363 = vrot.slane %v27, 7
  %v364 = vrot.slane %v28, 7
  %v365 = vrot.slane %v29, 7
  %v366 = vrot.slane %v30, 7
  %v367 = vrot.slane %v31, 7
  %v368 = vrot.slane %v32, 7
  %v369 = vrot.slane %v33, 7
  %v370 = vrot.slane %v34, 7
  %v371 = vrot.slane %v35, 7
  %v372 = vrot.slane %v36, 7
  %v373 = vrot.slane %v37, 7
  %v374 = vrot.slane %v38, 7
  %v375 = vrot.slane %v39, 7
  %v392 = vmax.f32 %v344, %v360
  %v393 = vmax.f32 %v345, %v361
  %v394 = vmax.f32 %v346, %v362
  %v395 = vmax.f32 %v347, %v363
  %v396 = vmax.f32 %v348, %v364
  %v397 = vmax.f32 %v349, %v365
  %v398 = vmax.f32 %v350, %v366
  %v399 = vmax.f32 %v351, %v367
  %v400 = vmax.f32 %v352, %v368
  %v401 = vmax.f32 %v353, %v369
  %v402 = vmax.f32 %v354, %v370
  %v403 = vmax.f32 %v355, %v371
  %v404 = vmax.f32 %v356, %v372
  %v405 = vmax.f32 %v357, %v373
  %v406 = vmax.f32 %v358, %v374
  %v407 = vmax.f32 %v359, %v375
  %v408 = vmax.f32 %v392, %v40
  %v409 = vmax.f32 %v393, %v41
  %v410 = vmax.f32 %v394, %v42
  %v411 = vmax.f32 %v395, %v43
  %v412 = vmax.f32 %v396, %v44
  %v413 = vmax.f32 %v397, %v45
  %v414 = vmax.f32 %v398, %v46
  %v415 = vmax.f32 %v399, %v47
  %v416 = vmax.f32 %v400, %v48
  %v417 = vmax.f32 %v401, %v49
  %v418 = vmax.f32 %v402, %v50
  %v419 = vmax.f32 %v403, %v51
  %v420 = vmax.f32 %v404, %v52
  %v421 = vmax.f32 %v405, %v53
  %v422 = vmax.f32 %v406, %v54
  %v423 = vmax.f32 %v407, %v55
  %v424 = vpack.c.bf16 %v408, %v408
  %v425 = vpack.c.bf16 %v409, %v409
  %v426 = vpack.c.bf16 %v410, %v410
  %v427 = vpack.c.bf16 %v411, %v411
  %v428 = vpack.c.bf16 %v412, %v412
  %v429 = vpack.c.bf16 %v413, %v413
  %v430 = vpack.c.bf16 %v414, %v414
  %v431 = vpack.c.bf16 %v415, %v415
  %v432 = vpack.c.bf16 %v416, %v416
  %v433 = vpack.c.bf16 %v417, %v417
  %v434 = vpack.c.bf16 %v418, %v418
  %v435 = vpack.c.bf16 %v419, %v419
  %v436 = vpack.c.bf16 %v420, %v420
  %v437 = vpack.c.bf16 %v421, %v421
  %v438 = vpack.c.bf16 %v422, %v422
  %v439 = vpack.c.bf16 %v423, %v423
  %v456 = vcombine.low %v424, %v425
  %v457 = vcombine.low %v426, %v427
  %v458 = vcombine.low %v428, %v429
  %v459 = vcombine.low %v430, %v431
  %v461 = vunpack.c.l.s4 1966171168
  %v462 = vunpack.c.0.s8 %v461
  %v463 = vlaneseq
  %v464 = vshrl.u32 %v463, 7
  %v465 = vsub.s32 %v462, %v464
  %v466 = vrot.slane %v456, %v465
  %v468 = vunpack.c.l.s4 1966171168
  %v469 = vunpack.c.0.s8 %v468
  %v470 = vlaneseq
  %v471 = vshrl.u32 %v470, 7
  %v472 = vsub.s32 %v469, %v471
  %v473 = vrot.slane %v457, %v472
  %v475 = vunpack.c.l.s4 1966171168
  %v476 = vunpack.c.0.s8 %v475
  %v477 = vlaneseq
  %v478 = vshrl.u32 %v477, 7
  %v479 = vsub.s32 %v476, %v478
  %v480 = vrot.slane %v458, %v479
  %v482 = vunpack.c.l.s4 1966171168
  %v483 = vunpack.c.0.s8 %v482
  %v484 = vlaneseq
  %v485 = vshrl.u32 %v484, 7
  %v486 = vsub.s32 %v483, %v485
  %v487 = vrot.slane %v459, %v486
  %v488 = vcombine.low %v466, %v473
  %v489 = vcombine.low %v480, %v487
  %v491 = vunpack.c.l.s4 1966171168
  %v492 = vunpack.c.0.s8 %v491
  %v493 = vlaneseq
  %v494 = vshrl.u32 %v493, 7
  %v495 = vsub.s32 %v492, %v494
  %v496 = vrot.slane %v488, %v495
  %v498 = vunpack.c.l.s4 1966171168
  %v499 = vunpack.c.0.s8 %v498
  %v500 = vlaneseq
  %v501 = vshrl.u32 %v500, 7
  %v502 = vsub.s32 %v499, %v501
  %v503 = vrot.slane %v489, %v502
  %v504 = vcombine.low %v496, %v503
  %v505 = vcombine.low %v432, %v433
  %v506 = vcombine.low %v434, %v435
  %v507 = vcombine.low %v436, %v437
  %v508 = vcombine.low %v438, %v439
  %v510 = vunpack.c.l.s4 1966171168
  %v511 = vunpack.c.0.s8 %v510
  %v512 = vlaneseq
  %v513 = vshrl.u32 %v512, 7
  %v514 = vsub.s32 %v511, %v513
  %v515 = vrot.slane %v505, %v514
  %v517 = vunpack.c.l.s4 1966171168
  %v518 = vunpack.c.0.s8 %v517
  %v519 = vlaneseq
  %v520 = vshrl.u32 %v519, 7
  %v521 = vsub.s32 %v518, %v520
  %v522 = vrot.slane %v506, %v521
  %v524 = vunpack.c.l.s4 1966171168
  %v525 = vunpack.c.0.s8 %v524
  %v526 = vlaneseq
  %v527 = vshrl.u32 %v526, 7
  %v528 = vsub.s32 %v525, %v527
  %v529 = vrot.slane %v507, %v528
  %v531 = vunpack.c.l.s4 1966171168
  %v532 = vunpack.c.0.s8 %v531
  %v533 = vlaneseq
  %v534 = vshrl.u32 %v533, 7
  %v535 = vsub.s32 %v532, %v534
  %v536 = vrot.slane %v508, %v535
  %v537 = vcombine.low %v515, %v522
  %v538 = vcombine.low %v529, %v536
  %v540 = vunpack.c.l.s4 1966171168
  %v541 = vunpack.c.0.s8 %v540
  %v542 = vlaneseq
  %v543 = vshrl.u32 %v542, 7
  %v544 = vsub.s32 %v541, %v543
  %v545 = vrot.slane %v537, %v544
  %v547 = vunpack.c.l.s4 1966171168
  %v548 = vunpack.c.0.s8 %v547
  %v549 = vlaneseq
  %v550 = vshrl.u32 %v549, 7
  %v551 = vsub.s32 %v548, %v550
  %v552 = vrot.slane %v538, %v551
  %v553 = vcombine.low %v545, %v552
  %vm556 = vcmask 1040384
  %vm557 = vsmask.f32 256
  %vm558 = vmand %vm556, %vm557
  %vm559 = vcmask 1041409
  %vm560 = vsmask.f32 1280
  %vm561 = vmand %vm559, %vm560
  %vm562 = vmor %vm561, %vm558
  %vm563 = vcmask 1042434
  %vm564 = vsmask.f32 2304
  %vm565 = vmand %vm563, %vm564
  %vm566 = vmor %vm565, %vm562
  %vm567 = vcmask 1043459
  %vm568 = vsmask.f32 3328
  %vm569 = vmand %vm567, %vm568
  %vm570 = vmor %vm569, %vm566
  %vm571 = vcmask 1044484
  %vm572 = vsmask.f32 4352
  %vm573 = vmand %vm571, %vm572
  %vm574 = vmor %vm573, %vm570
  %vm575 = vcmask 1045509
  %vm576 = vsmask.f32 5376
  %vm577 = vmand %vm575, %vm576
  %vm578 = vmor %vm577, %vm574
  %vm579 = vcmask 1046534
  %vm580 = vsmask.f32 6400
  %vm581 = vmand %vm579, %vm580
  %vm582 = vmor %vm581, %vm578
  %vm583 = vcmask 1047559
  %vm584 = vsmask.f32 7424
  %vm585 = vmand %vm583, %vm584
  %vm586 = vmor %vm585, %vm582
  %v587 = vld [vmem:[%s1] sm:$0xff]
  %v588 = vsel %vm586, %v504, %v587
  %589 = vst [vmem:[%s1] sm:$0xff] %v588
  %v590 = vld [vmem:[%s1 + $0x8] sm:$0xff]
  %v591 = vsel %vm586, %v553, %v590
  %592 = vst [vmem:[%s1 + $0x8] sm:$0xff] %v591
  // Predicated region
  $region6: #{_lambda_.23} parent=0 // pred_check
    _
  $region7: #{_lambda_.23} parent=0 // pred_check_branch
    %594 = sbr.rel (0) target = $region9
  $region8: #{_lambda_.23} parent=0 // pred_region
    _
  $region9: #{_lambda_.23} parent=0 // pred_fallthru
    _
  // Predicated region
  $region10: #{_lambda_.23} parent=0 // pred_check
    _
  $region11: #{_lambda_.23} parent=0 // pred_check_branch
    %596 = sbr.rel (0) target = $region13
  $region12: #{_lambda_.23} parent=0 // pred_region
    _
  $region13: #{_lambda_.23} parent=0 // pred_fallthru
    _

// kernel: _lambda_.24
$region0: #{_lambda_.24}
  #allocation0 [shape = 'u32[]', space=smem, size = 0x4, offset = 0x4, fixed_abs, tag = 'smem constant byte address 0x4 - core index']
  #allocation1 [shape = 'u32[144,128]{1,0:T(1,128)}', space=vmem, size = 0x12000, scoped, tag = 'internal scratch']
  %s0 = inlined_call_operand.vmem [shape: bf16[128,144], index: 0, kind: input, shape index: {}]
  %s1 = inlined_call_operand.vmem [shape: bf16[144,16], index: 1, kind: input, shape index: {}]
  %s2 = inlined_call_operand.vmem [shape: f32[1,16], index: 2, kind: input, shape index: {}]
  %s3 = inlined_call_operand.vmem [shape: f32[1,16], index: 3, kind: input, shape index: {}]
  %s4 = inlined_call_operand.vmem [shape: bf16[128,16], index: 4, kind: output, shape index: {}]
  %s5 = sld [smem:[#allocation0]]
  $region26: #{_lambda_.24} parent=0
    _
  %s7 = ssub.s32 1, %s5
  %s8 = scalar_select 0, %s7, %s5
  // Predicated region
  $region2: #{_lambda_.24} parent=0 // pred_check
    _
  $region3: #{_lambda_.24} parent=0 // pred_check_branch
    %10 = sbr.rel (0) target = $region5
  $region4: #{_lambda_.24} parent=0 // pred_region
    _
  $region5: #{_lambda_.24} parent=0 // pred_fallthru
    _
  // Predicated region
  $region6: #{_lambda_.24} parent=0 // pred_check
    _
  $region7: #{_lambda_.24} parent=0 // pred_check_branch
    %12 = sbr.rel (0) target = $region9
  $region8: #{_lambda_.24} parent=0 // pred_region
    _
  $region9: #{_lambda_.24} parent=0 // pred_fallthru
    _
  // Predicated region
  $region10: #{_lambda_.24} parent=0 // pred_check
    _
  $region11: #{_lambda_.24} parent=0 // pred_check_branch
    %14 = sbr.rel (0) target = $region13
  $region12: #{_lambda_.24} parent=0 // pred_region
    _
  $region13: #{_lambda_.24} parent=0 // pred_fallthru
    _
  // Predicated region
  $region14: #{_lambda_.24} parent=0 // pred_check
    _
  $region15: #{_lambda_.24} parent=0 // pred_check_branch
    %16 = sbr.rel (0) target = $region17
  $region16: #{_lambda_.24} parent=0 // pred_region
    _
  $region17: #{_lambda_.24} parent=0 // pred_fallthru
    _
  %v18 = vld [vmem:[%s0] sm:$0xff]
  %v19 = vld [vmem:[%s0 + $0x8] sm:$0xff]
  %v20 = vld [vmem:[%s0 + $0x10] sm:$0xff]
  %v21 = vld [vmem:[%s0 + $0x18] sm:$0xff]
  %v22 = vld [vmem:[%s0 + $0x20] sm:$0xff]
  %v23 = vld [vmem:[%s0 + $0x28] sm:$0xff]
  %v24 = vld [vmem:[%s0 + $0x30] sm:$0xff]
  %v25 = vld [vmem:[%s0 + $0x38] sm:$0xff]
  %v26 = vld [vmem:[%s0 + $0x40] sm:$0xff]
  %v27 = vld [vmem:[%s0 + $0x48] sm:$0xff]
  %v28 = vld [vmem:[%s0 + $0x50] sm:$0xff]
  %v29 = vld [vmem:[%s0 + $0x58] sm:$0xff]
  %v30 = vld [vmem:[%s0 + $0x60] sm:$0xff]
  %v31 = vld [vmem:[%s0 + $0x68] sm:$0xff]
  %v32 = vld [vmem:[%s0 + $0x70] sm:$0xff]
  %v33 = vld [vmem:[%s0 + $0x78] sm:$0xff]
  %v34 = vld [vmem:[%s1] sm:$0xf]
  %v35 = vld [vmem:[%s1 + $0x4] sm:$0xf]
  %v36 = vld [vmem:[%s1 + $0x8] sm:$0xf]
  %v37 = vld [vmem:[%s1 + $0xc] sm:$0xf]
  %v38 = vld [vmem:[%s1 + $0x10] sm:$0xf]
  %v39 = vld [vmem:[%s1 + $0x14] sm:$0xf]
  %v40 = vld [vmem:[%s1 + $0x18] sm:$0xf]
  %v41 = vld [vmem:[%s1 + $0x1c] sm:$0xf]
  %v42 = vld [vmem:[%s1 + $0x20] sm:$0xf]
  %v43 = vld [vmem:[%s1 + $0x24] sm:$0xf]
  %v44 = vld [vmem:[%s1 + $0x28] sm:$0xf]
  %v45 = vld [vmem:[%s1 + $0x2c] sm:$0xf]
  %v46 = vld [vmem:[%s1 + $0x30] sm:$0xf]
  %v47 = vld [vmem:[%s1 + $0x34] sm:$0xf]
  %v48 = vld [vmem:[%s1 + $0x38] sm:$0xf]
  %v49 = vld [vmem:[%s1 + $0x3c] sm:$0xf]
  %v50 = vld [vmem:[%s1 + $0x40] sm:$0xf]
  %v51 = vld [vmem:[%s1 + $0x44] sm:$0xf]
  %v68 = vunpack.c.l.b16 %v18
  %v69 = vunpack.c.h.b16 %v18
  %v70 = vunpack.c.l.b16 %v19
  %v71 = vunpack.c.h.b16 %v19
  %v72 = vunpack.c.l.b16 %v20
  %v73 = vunpack.c.h.b16 %v20
  %v74 = vunpack.c.l.b16 %v21
  %v75 = vunpack.c.h.b16 %v21
  %v76 = vunpack.c.l.b16 %v22
  %v77 = vunpack.c.h.b16 %v22
  %v78 = vunpack.c.l.b16 %v23
  %v79 = vunpack.c.h.b16 %v23
  %v80 = vunpack.c.l.b16 %v24
  %v81 = vunpack.c.h.b16 %v24
  %v82 = vunpack.c.l.b16 %v25
  %v83 = vunpack.c.h.b16 %v25
  %v84 = vunpack.c.l.b16 %v26
  %v85 = vunpack.c.h.b16 %v26
  %v86 = vunpack.c.l.b16 %v27
  %v87 = vunpack.c.h.b16 %v27
  %v88 = vunpack.c.l.b16 %v28
  %v89 = vunpack.c.h.b16 %v28
  %v90 = vunpack.c.l.b16 %v29
  %v91 = vunpack.c.h.b16 %v29
  %v92 = vunpack.c.l.b16 %v30
  %v93 = vunpack.c.h.b16 %v30
  %v94 = vunpack.c.l.b16 %v31
  %v95 = vunpack.c.h.b16 %v31
  %v96 = vunpack.c.l.b16 %v32
  %v97 = vunpack.c.h.b16 %v32
  %v98 = vunpack.c.l.b16 %v33
  %v99 = vunpack.c.h.b16 %v33
  %v100 = vpack.c.b16 %v70, %v68
  %v101 = vpack.c.b16 %v71, %v69
  %v102 = vpack.c.b16 %v74, %v72
  %v103 = vpack.c.b16 %v75, %v73
  %v104 = vpack.c.b16 %v78, %v76
  %v105 = vpack.c.b16 %v79, %v77
  %v106 = vpack.c.b16 %v82, %v80
  %v107 = vpack.c.b16 %v83, %v81
  %v108 = vpack.c.b16 %v86, %v84
  %v109 = vpack.c.b16 %v87, %v85
  %v110 = vpack.c.b16 %v90, %v88
  %v111 = vpack.c.b16 %v91, %v89
  %v112 = vpack.c.b16 %v94, %v92
  %v113 = vpack.c.b16 %v95, %v93
  %v114 = vpack.c.b16 %v98, %v96
  %v115 = vpack.c.b16 %v99, %v97
  %v142 = vunpack.c.l.b16 %v34
  %v143 = vunpack.c.l.b16 %v35
  %v144 = vunpack.c.l.b16 %v36
  %v145 = vunpack.c.l.b16 %v37
  %v146 = vunpack.c.l.b16 %v38
  %v147 = vunpack.c.l.b16 %v39
  %v148 = vunpack.c.l.b16 %v40
  %v149 = vunpack.c.l.b16 %v41
  %v150 = vunpack.c.l.b16 %v42
  %v151 = vunpack.c.l.b16 %v43
  %v152 = vunpack.c.l.b16 %v44
  %v153 = vunpack.c.l.b16 %v45
  %v154 = vunpack.c.l.b16 %v46
  %v155 = vunpack.c.l.b16 %v47
  %v156 = vunpack.c.l.b16 %v48
  %v157 = vunpack.c.l.b16 %v49
  %v158 = vunpack.c.l.b16 %v50
  %v159 = vunpack.c.l.b16 %v51
  %v160 = vpack.c.b16 %v143, %v142
  %v161 = vpack.c.b16 %v145, %v144
  %v162 = vpack.c.b16 %v147, %v146
  %v163 = vpack.c.b16 %v149, %v148
  %v164 = vpack.c.b16 %v151, %v150
  %v165 = vpack.c.b16 %v153, %v152
  %v166 = vpack.c.b16 %v155, %v154
  %v167 = vpack.c.b16 %v157, %v156
  %v168 = vpack.c.b16 %v159, %v158
  %vm178 = vcmask 130048
  %v180 = vsel %vm178, %v101, 0
  %v183 = vsel %vm178, %v103, 0
  %v186 = vsel %vm178, %v105, 0
  %v189 = vsel %vm178, %v107, 0
  %v192 = vsel %vm178, %v109, 0
  %v195 = vsel %vm178, %v111, 0
  %v198 = vsel %vm178, %v113, 0
  %v201 = vsel %vm178, %v115, 0
  %203 = vmatprep.subr.bf16.mxu0 0
  %204 = vmatpush1.bf16.msra.mxu0 %v160
  %205 = vmatprep.subr.bf16.mxu0 0
  %206 = vmatpush1.bf16.msra.mxu0 %v161
  %207 = vmatprep.subr.bf16.mxu0 0
  %208 = vmatpush1.bf16.msra.mxu0 %v162
  %209 = vmatprep.subr.bf16.mxu0 0
  %210 = vmatpush1.bf16.msra.mxu0 %v163
  %211 = vmatprep.subr.bf16.mxu0 0
  %212 = vmatpush1.bf16.msra.mxu0 %v164
  %213 = vmatprep.subr.bf16.mxu0 0
  %214 = vmatpush1.bf16.msra.mxu0 %v165
  %215 = vmatprep.subr.bf16.mxu0 0
  %216 = vmatpush1.bf16.msra.mxu0 %v166
  %217 = vmatprep.subr.bf16.mxu0 0
  %218 = vmatpush1.bf16.msra.mxu0 %v167
  %219 = vmatprep.subr.bf16.mxu0 0
  %220 = vmatpush1.bf16.msra.mxu0 %v168
  %221 = vmatprep.subr.bf16.mxu0 0
  %222 = vmatpush1.bf16.msra.mxu0 0
  %223 = vmatprep.subr.bf16.mxu0 0
  %224 = vmatpush1.bf16.msra.mxu0 0
  %225 = vmatprep.subr.bf16.mxu0 0
  %226 = vmatpush1.bf16.msra.mxu0 0
  %227 = vmatprep.subr.bf16.mxu0 0
  %228 = vmatpush1.bf16.msra.mxu0 0
  %229 = vmatprep.subr.bf16.mxu0 0
  %230 = vmatpush1.bf16.msra.mxu0 0
  %231 = vmatprep.subr.bf16.mxu0 0
  %232 = vmatpush1.bf16.msra.mxu0 0
  %233 = vmatprep.subr.bf16.mxu0 0
  %234 = vmatpush1.bf16.msra.mxu0 0
  %235 = vmatprep.mubr.bf16.mxu0 %v180
  %236 = vmatmul.mubr.bf16.gmra.mrb[0].mxu0 %v100
  %v237 = vpop.f32.mrb[0].mxu0
  %v238 = vadd.f32 0.0, %v237
  %v239 = vpop.f32.mrb[0].mxu0
  %v240 = vpop.f32.mrb[0].mxu0
  %v241 = vadd.f32 0.0, %v240
  %v242 = vpop.f32.mrb[0].mxu0
  %243 = vmatprep.mubr.bf16.mxu0 %v183
  %244 = vmatmul.mubr.bf16.gmra.mrb[0].mxu0 %v102
  %v245 = vpop.f32.mrb[0].mxu0
  %v246 = vadd.f32 0.0, %v245
  %v247 = vpop.f32.mrb[0].mxu0
  %v248 = vpop.f32.mrb[0].mxu0
  %v249 = vadd.f32 0.0, %v248
  %v250 = vpop.f32.mrb[0].mxu0
  %251 = vmatprep.mubr.bf16.mxu0 %v186
  %252 = vmatmul.mubr.bf16.gmra.mrb[0].mxu0 %v104
  %v253 = vpop.f32.mrb[0].mxu0
  %v254 = vadd.f32 0.0, %v253
  %v255 = vpop.f32.mrb[0].mxu0
  %v256 = vpop.f32.mrb[0].mxu0
  %v257 = vadd.f32 0.0, %v256
  %v258 = vpop.f32.mrb[0].mxu0
  %259 = vmatprep.mubr.bf16.mxu0 %v189
  %260 = vmatmul.mubr.bf16.gmra.mrb[0].mxu0 %v106
  %v261 = vpop.f32.mrb[0].mxu0
  %v262 = vadd.f32 0.0, %v261
  %v263 = vpop.f32.mrb[0].mxu0
  %v264 = vpop.f32.mrb[0].mxu0
  %v265 = vadd.f32 0.0, %v264
  %v266 = vpop.f32.mrb[0].mxu0
  %267 = vmatprep.mubr.bf16.mxu0 %v192
  %268 = vmatmul.mubr.bf16.gmra.mrb[0].mxu0 %v108
  %v269 = vpop.f32.mrb[0].mxu0
  %v270 = vadd.f32 0.0, %v269
  %v271 = vpop.f32.mrb[0].mxu0
  %v272 = vpop.f32.mrb[0].mxu0
  %v273 = vadd.f32 0.0, %v272
  %v274 = vpop.f32.mrb[0].mxu0
  %275 = vmatprep.mubr.bf16.mxu0 %v195
  %276 = vmatmul.mubr.bf16.gmra.mrb[0].mxu0 %v110
  %v277 = vpop.f32.mrb[0].mxu0
  %v278 = vadd.f32 0.0, %v277
  %v279 = vpop.f32.mrb[0].mxu0
  %v280 = vpop.f32.mrb[0].mxu0
  %v281 = vadd.f32 0.0, %v280
  %v282 = vpop.f32.mrb[0].mxu0
  %283 = vmatprep.mubr.bf16.mxu0 %v198
  %284 = vmatmul.mubr.bf16.gmra.mrb[0].mxu0 %v112
  %v285 = vpop.f32.mrb[0].mxu0
  %v286 = vadd.f32 0.0, %v285
  %v287 = vpop.f32.mrb[0].mxu0
  %v288 = vpop.f32.mrb[0].mxu0
  %v289 = vadd.f32 0.0, %v288
  %v290 = vpop.f32.mrb[0].mxu0
  %291 = vmatprep.mubr.bf16.mxu0 %v201
  %292 = vmatmul.mubr.bf16.gmra.mrb[0].mxu0 %v114
  %v293 = vpop.f32.mrb[0].mxu0
  %v294 = vadd.f32 0.0, %v293
  %v295 = vpop.f32.mrb[0].mxu0
  %v296 = vpop.f32.mrb[0].mxu0
  %v297 = vadd.f32 0.0, %v296
  %v298 = vpop.f32.mrb[0].mxu0
  %299 = vdwg.mxu0
  %v300 = vld [vmem:[%s2] sm:$0x1]
  %v302 = vlaneseq
  %v303 = vshrl.u32 %v302, 7
  %v304 = vsub.s32 0, %v303
  %v305 = vrot.slane %v300, %v304
  %v307 = vmul.f32 %v238, %v305
  %v308 = vmul.f32 %v241, %v305
  %v309 = vmul.f32 %v246, %v305
  %v310 = vmul.f32 %v249, %v305
  %v311 = vmul.f32 %v254, %v305
  %v312 = vmul.f32 %v257, %v305
  %v313 = vmul.f32 %v262, %v305
  %v314 = vmul.f32 %v265, %v305
  %v315 = vmul.f32 %v270, %v305
  %v316 = vmul.f32 %v273, %v305
  %v317 = vmul.f32 %v278, %v305
  %v318 = vmul.f32 %v281, %v305
  %v319 = vmul.f32 %v286, %v305
  %v320 = vmul.f32 %v289, %v305
  %v321 = vmul.f32 %v294, %v305
  %v322 = vmul.f32 %v297, %v305
  %v323 = vld [vmem:[%s3] sm:$0x1]
  %v325 = vlaneseq
  %v326 = vshrl.u32 %v325, 7
  %v327 = vsub.s32 0, %v326
  %v328 = vrot.slane %v323, %v327
  %v330 = vadd.f32 %v307, %v328
  %v331 = vadd.f32 %v308, %v328
  %v332 = vadd.f32 %v309, %v328
  %v333 = vadd.f32 %v310, %v328
  %v334 = vadd.f32 %v311, %v328
  %v335 = vadd.f32 %v312, %v328
  %v336 = vadd.f32 %v313, %v328
  %v337 = vadd.f32 %v314, %v328
  %v338 = vadd.f32 %v315, %v328
  %v339 = vadd.f32 %v316, %v328
  %v340 = vadd.f32 %v317, %v328
  %v341 = vadd.f32 %v318, %v328
  %v342 = vadd.f32 %v319, %v328
  %v343 = vadd.f32 %v320, %v328
  %v344 = vadd.f32 %v321, %v328
  %v345 = vadd.f32 %v322, %v328
  %v346 = vmax.f32 %v330, 0.0
  %v347 = vmax.f32 %v331, 0.0
  %v348 = vmax.f32 %v332, 0.0
  %v349 = vmax.f32 %v333, 0.0
  %v350 = vmax.f32 %v334, 0.0
  %v351 = vmax.f32 %v335, 0.0
  %v352 = vmax.f32 %v336, 0.0
  %v353 = vmax.f32 %v337, 0.0
  %v354 = vmax.f32 %v338, 0.0
  %v355 = vmax.f32 %v339, 0.0
  %v356 = vmax.f32 %v340, 0.0
  %v357 = vmax.f32 %v341, 0.0
  %v358 = vmax.f32 %v342, 0.0
  %v359 = vmax.f32 %v343, 0.0
  %v360 = vmax.f32 %v344, 0.0
  %v361 = vmax.f32 %v345, 0.0
  %v362 = vpack.c.bf16 %v347, %v346
  %v363 = vpack.c.bf16 %v349, %v348
  %v364 = vpack.c.bf16 %v351, %v350
  %v365 = vpack.c.bf16 %v353, %v352
  %v366 = vpack.c.bf16 %v355, %v354
  %v367 = vpack.c.bf16 %v357, %v356
  %v368 = vpack.c.bf16 %v359, %v358
  %v369 = vpack.c.bf16 %v361, %v360
  %v378 = vunpack.c.l.b16 %v362
  %v379 = vunpack.c.h.b16 %v362
  %v380 = vunpack.c.l.b16 %v363
  %v381 = vunpack.c.h.b16 %v363
  %v382 = vunpack.c.l.b16 %v364
  %v383 = vunpack.c.h.b16 %v364
  %v384 = vunpack.c.l.b16 %v365
  %v385 = vunpack.c.h.b16 %v365
  %v386 = vunpack.c.l.b16 %v366
  %v387 = vunpack.c.h.b16 %v366
  %v388 = vunpack.c.l.b16 %v367
  %v389 = vunpack.c.h.b16 %v367
  %v390 = vunpack.c.l.b16 %v368
  %v391 = vunpack.c.h.b16 %v368
  %v392 = vunpack.c.l.b16 %v369
  %v393 = vunpack.c.h.b16 %v369
  %v394 = vpack.c.b16 %v378, %v378
  %v395 = vpack.c.b16 %v379, %v379
  %v396 = vpack.c.b16 %v380, %v380
  %v397 = vpack.c.b16 %v381, %v381
  %v398 = vpack.c.b16 %v382, %v382
  %v399 = vpack.c.b16 %v383, %v383
  %v400 = vpack.c.b16 %v384, %v384
  %v401 = vpack.c.b16 %v385, %v385
  %v402 = vpack.c.b16 %v386, %v386
  %v403 = vpack.c.b16 %v387, %v387
  %v404 = vpack.c.b16 %v388, %v388
  %v405 = vpack.c.b16 %v389, %v389
  %v406 = vpack.c.b16 %v390, %v390
  %v407 = vpack.c.b16 %v391, %v391
  %v408 = vpack.c.b16 %v392, %v392
  %v409 = vpack.c.b16 %v393, %v393
  %vm426 = vcmask 125952
  %427 = vst.msk [vmem:[%s4] sm:$0xf] %vm426, %v394
  %428 = vst.msk [vmem:[%s4 + $0x4] sm:$0xf] %vm426, %v395
  %429 = vst.msk [vmem:[%s4 + $0x8] sm:$0xf] %vm426, %v396
  %430 = vst.msk [vmem:[%s4 + $0xc] sm:$0xf] %vm426, %v397
  %431 = vst.msk [vmem:[%s4 + $0x10] sm:$0xf] %vm426, %v398
  %432 = vst.msk [vmem:[%s4 + $0x14] sm:$0xf] %vm426, %v399
  %433 = vst.msk [vmem:[%s4 + $0x18] sm:$0xf] %vm426, %v400
  %434 = vst.msk [vmem:[%s4 + $0x1c] sm:$0xf] %vm426, %v401
  %435 = vst.msk [vmem:[%s4 + $0x20] sm:$0xf] %vm426, %v402
  %436 = vst.msk [vmem:[%s4 + $0x24] sm:$0xf] %vm426, %v403
  %437 = vst.msk [vmem:[%s4 + $0x28] sm:$0xf] %vm426, %v404
  %438 = vst.msk [vmem:[%s4 + $0x2c] sm:$0xf] %vm426, %v405
  %439 = vst.msk [vmem:[%s4 + $0x30] sm:$0xf] %vm426, %v406
  %440 = vst.msk [vmem:[%s4 + $0x34] sm:$0xf] %vm426, %v407
  %441 = vst.msk [vmem:[%s4 + $0x38] sm:$0xf] %vm426, %v408
  %442 = vst.msk [vmem:[%s4 + $0x3c] sm:$0xf] %vm426, %v409
  // Predicated region
  $region18: #{_lambda_.24} parent=0 // pred_check
    _
  $region19: #{_lambda_.24} parent=0 // pred_check_branch
    %444 = sbr.rel (0) target = $region21
  $region20: #{_lambda_.24} parent=0 // pred_region
    _
  $region21: #{_lambda_.24} parent=0 // pred_fallthru
    _
  // Predicated region
  $region22: #{_lambda_.24} parent=0 // pred_check
    _
  $region23: #{_lambda_.24} parent=0 // pred_check_branch
    %446 = sbr.rel (0) target = $region25
  $region24: #{_lambda_.24} parent=0 // pred_region
    _
  $region25: #{_lambda_.24} parent=0 // pred_fallthru
    _

// kernel: _lambda_.25
$region0: #{_lambda_.25}
  #allocation0 [shape = 'u32[]', space=smem, size = 0x4, offset = 0x4, fixed_abs, tag = 'smem constant byte address 0x4 - core index']
  #allocation1 [shape = 'u32[144,128]{1,0:T(1,128)}', space=vmem, size = 0x12000, scoped, tag = 'internal scratch']
  %s0 = inlined_call_operand.vmem [shape: bf16[128,144], index: 0, kind: input, shape index: {}]
  %s1 = inlined_call_operand.vmem [shape: bf16[144,16], index: 1, kind: input, shape index: {}]
  %s2 = inlined_call_operand.vmem [shape: f32[1,16], index: 2, kind: input, shape index: {}]
  %s3 = inlined_call_operand.vmem [shape: f32[1,16], index: 3, kind: input, shape index: {}]
  %s4 = inlined_call_operand.vmem [shape: bf16[128,16], index: 4, kind: input, shape index: {}]
  %s5 = inlined_call_operand.vmem [shape: bf16[128,16], index: 5, kind: output, shape index: {}]
  %s6 = sld [smem:[#allocation0]]
  $region30: #{_lambda_.25} parent=0
    _
  %s8 = ssub.s32 1, %s6
  %s9 = scalar_select 0, %s8, %s6
  // Predicated region
  $region2: #{_lambda_.25} parent=0 // pred_check
    _
  $region3: #{_lambda_.25} parent=0 // pred_check_branch
    %11 = sbr.rel (0) target = $region5
  $region4: #{_lambda_.25} parent=0 // pred_region
    _
  $region5: #{_lambda_.25} parent=0 // pred_fallthru
    _
  // Predicated region
  $region6: #{_lambda_.25} parent=0 // pred_check
    _
  $region7: #{_lambda_.25} parent=0 // pred_check_branch
    %13 = sbr.rel (0) target = $region9
  $region8: #{_lambda_.25} parent=0 // pred_region
    _
  $region9: #{_lambda_.25} parent=0 // pred_fallthru
    _
  // Predicated region
  $region10: #{_lambda_.25} parent=0 // pred_check
    _
  $region11: #{_lambda_.25} parent=0 // pred_check_branch
    %15 = sbr.rel (0) target = $region13
  $region12: #{_lambda_.25} parent=0 // pred_region
    _
  $region13: #{_lambda_.25} parent=0 // pred_fallthru
    _
  // Predicated region
  $region14: #{_lambda_.25} parent=0 // pred_check
    _
  $region15: #{_lambda_.25} parent=0 // pred_check_branch
    %17 = sbr.rel (0) target = $region17
  $region16: #{_lambda_.25} parent=0 // pred_region
    _
  $region17: #{_lambda_.25} parent=0 // pred_fallthru
    _
  // Predicated region
  $region18: #{_lambda_.25} parent=0 // pred_check
    _
  $region19: #{_lambda_.25} parent=0 // pred_check_branch
    %19 = sbr.rel (0) target = $region21
  $region20: #{_lambda_.25} parent=0 // pred_region
    _
  $region21: #{_lambda_.25} parent=0 // pred_fallthru
    _
  %v21 = vld [vmem:[%s0] sm:$0xff]
  %v22 = vld [vmem:[%s0 + $0x8] sm:$0xff]
  %v23 = vld [vmem:[%s0 + $0x10] sm:$0xff]
  %v24 = vld [vmem:[%s0 + $0x18] sm:$0xff]
  %v25 = vld [vmem:[%s0 + $0x20] sm:$0xff]
  %v26 = vld [vmem:[%s0 + $0x28] sm:$0xff]
  %v27 = vld [vmem:[%s0 + $0x30] sm:$0xff]
  %v28 = vld [vmem:[%s0 + $0x38] sm:$0xff]
  %v29 = vld [vmem:[%s0 + $0x40] sm:$0xff]
  %v30 = vld [vmem:[%s0 + $0x48] sm:$0xff]
  %v31 = vld [vmem:[%s0 + $0x50] sm:$0xff]
  %v32 = vld [vmem:[%s0 + $0x58] sm:$0xff]
  %v33 = vld [vmem:[%s0 + $0x60] sm:$0xff]
  %v34 = vld [vmem:[%s0 + $0x68] sm:$0xff]
  %v35 = vld [vmem:[%s0 + $0x70] sm:$0xff]
  %v36 = vld [vmem:[%s0 + $0x78] sm:$0xff]
  %v37 = vld [vmem:[%s1] sm:$0xf]
  %v38 = vld [vmem:[%s1 + $0x4] sm:$0xf]
  %v39 = vld [vmem:[%s1 + $0x8] sm:$0xf]
  %v40 = vld [vmem:[%s1 + $0xc] sm:$0xf]
  %v41 = vld [vmem:[%s1 + $0x10] sm:$0xf]
  %v42 = vld [vmem:[%s1 + $0x14] sm:$0xf]
  %v43 = vld [vmem:[%s1 + $0x18] sm:$0xf]
  %v44 = vld [vmem:[%s1 + $0x1c] sm:$0xf]
  %v45 = vld [vmem:[%s1 + $0x20] sm:$0xf]
  %v46 = vld [vmem:[%s1 + $0x24] sm:$0xf]
  %v47 = vld [vmem:[%s1 + $0x28] sm:$0xf]
  %v48 = vld [vmem:[%s1 + $0x2c] sm:$0xf]
  %v49 = vld [vmem:[%s1 + $0x30] sm:$0xf]
  %v50 = vld [vmem:[%s1 + $0x34] sm:$0xf]
  %v51 = vld [vmem:[%s1 + $0x38] sm:$0xf]
  %v52 = vld [vmem:[%s1 + $0x3c] sm:$0xf]
  %v53 = vld [vmem:[%s1 + $0x40] sm:$0xf]
  %v54 = vld [vmem:[%s1 + $0x44] sm:$0xf]
  %v71 = vunpack.c.l.b16 %v21
  %v72 = vunpack.c.h.b16 %v21
  %v73 = vunpack.c.l.b16 %v22
  %v74 = vunpack.c.h.b16 %v22
  %v75 = vunpack.c.l.b16 %v23
  %v76 = vunpack.c.h.b16 %v23
  %v77 = vunpack.c.l.b16 %v24
  %v78 = vunpack.c.h.b16 %v24
  %v79 = vunpack.c.l.b16 %v25
  %v80 = vunpack.c.h.b16 %v25
  %v81 = vunpack.c.l.b16 %v26
  %v82 = vunpack.c.h.b16 %v26
  %v83 = vunpack.c.l.b16 %v27
  %v84 = vunpack.c.h.b16 %v27
  %v85 = vunpack.c.l.b16 %v28
  %v86 = vunpack.c.h.b16 %v28
  %v87 = vunpack.c.l.b16 %v29
  %v88 = vunpack.c.h.b16 %v29
  %v89 = vunpack.c.l.b16 %v30
  %v90 = vunpack.c.h.b16 %v30
  %v91 = vunpack.c.l.b16 %v31
  %v92 = vunpack.c.h.b16 %v31
  %v93 = vunpack.c.l.b16 %v32
  %v94 = vunpack.c.h.b16 %v32
  %v95 = vunpack.c.l.b16 %v33
  %v96 = vunpack.c.h.b16 %v33
  %v97 = vunpack.c.l.b16 %v34
  %v98 = vunpack.c.h.b16 %v34
  %v99 = vunpack.c.l.b16 %v35
  %v100 = vunpack.c.h.b16 %v35
  %v101 = vunpack.c.l.b16 %v36
  %v102 = vunpack.c.h.b16 %v36
  %v103 = vpack.c.b16 %v73, %v71
  %v104 = vpack.c.b16 %v74, %v72
  %v105 = vpack.c.b16 %v77, %v75
  %v106 = vpack.c.b16 %v78, %v76
  %v107 = vpack.c.b16 %v81, %v79
  %v108 = vpack.c.b16 %v82, %v80
  %v109 = vpack.c.b16 %v85, %v83
  %v110 = vpack.c.b16 %v86, %v84
  %v111 = vpack.c.b16 %v89, %v87
  %v112 = vpack.c.b16 %v90, %v88
  %v113 = vpack.c.b16 %v93, %v91
  %v114 = vpack.c.b16 %v94, %v92
  %v115 = vpack.c.b16 %v97, %v95
  %v116 = vpack.c.b16 %v98, %v96
  %v117 = vpack.c.b16 %v101, %v99
  %v118 = vpack.c.b16 %v102, %v100
  %v145 = vunpack.c.l.b16 %v37
  %v146 = vunpack.c.l.b16 %v38
  %v147 = vunpack.c.l.b16 %v39
  %v148 = vunpack.c.l.b16 %v40
  %v149 = vunpack.c.l.b16 %v41
  %v150 = vunpack.c.l.b16 %v42
  %v151 = vunpack.c.l.b16 %v43
  %v152 = vunpack.c.l.b16 %v44
  %v153 = vunpack.c.l.b16 %v45
  %v154 = vunpack.c.l.b16 %v46
  %v155 = vunpack.c.l.b16 %v47
  %v156 = vunpack.c.l.b16 %v48
  %v157 = vunpack.c.l.b16 %v49
  %v158 = vunpack.c.l.b16 %v50
  %v159 = vunpack.c.l.b16 %v51
  %v160 = vunpack.c.l.b16 %v52
  %v161 = vunpack.c.l.b16 %v53
  %v162 = vunpack.c.l.b16 %v54
  %v163 = vpack.c.b16 %v146, %v145
  %v164 = vpack.c.b16 %v148, %v147
  %v165 = vpack.c.b16 %v150, %v149
  %v166 = vpack.c.b16 %v152, %v151
  %v167 = vpack.c.b16 %v154, %v153
  %v168 = vpack.c.b16 %v156, %v155
  %v169 = vpack.c.b16 %v158, %v157
  %v170 = vpack.c.b16 %v160, %v159
  %v171 = vpack.c.b16 %v162, %v161
  %vm181 = vcmask 130048
  %v183 = vsel %vm181, %v104, 0
  %v186 = vsel %vm181, %v106, 0
  %v189 = vsel %vm181, %v108, 0
  %v192 = vsel %vm181, %v110, 0
  %v195 = vsel %vm181, %v112, 0
  %v198 = vsel %vm181, %v114, 0
  %v201 = vsel %vm181, %v116, 0
  %v204 = vsel %vm181, %v118, 0
  %206 = vmatprep.subr.bf16.mxu0 0
  %207 = vmatpush1.bf16.msra.mxu0 %v163
  %208 = vmatprep.subr.bf16.mxu0 0
  %209 = vmatpush1.bf16.msra.mxu0 %v164
  %210 = vmatprep.subr.bf16.mxu0 0
  %211 = vmatpush1.bf16.msra.mxu0 %v165
  %212 = vmatprep.subr.bf16.mxu0 0
  %213 = vmatpush1.bf16.msra.mxu0 %v166
  %214 = vmatprep.subr.bf16.mxu0 0
  %215 = vmatpush1.bf16.msra.mxu0 %v167
  %216 = vmatprep.subr.bf16.mxu0 0
  %217 = vmatpush1.bf16.msra.mxu0 %v168
  %218 = vmatprep.subr.bf16.mxu0 0
  %219 = vmatpush1.bf16.msra.mxu0 %v169
  %220 = vmatprep.subr.bf16.mxu0 0
  %221 = vmatpush1.bf16.msra.mxu0 %v170
  %222 = vmatprep.subr.bf16.mxu0 0
  %223 = vmatpush1.bf16.msra.mxu0 %v171
  %224 = vmatprep.subr.bf16.mxu0 0
  %225 = vmatpush1.bf16.msra.mxu0 0
  %226 = vmatprep.subr.bf16.mxu0 0
  %227 = vmatpush1.bf16.msra.mxu0 0
  %228 = vmatprep.subr.bf16.mxu0 0
  %229 = vmatpush1.bf16.msra.mxu0 0
  %230 = vmatprep.subr.bf16.mxu0 0
  %231 = vmatpush1.bf16.msra.mxu0 0
  %232 = vmatprep.subr.bf16.mxu0 0
  %233 = vmatpush1.bf16.msra.mxu0 0
  %234 = vmatprep.subr.bf16.mxu0 0
  %235 = vmatpush1.bf16.msra.mxu0 0
  %236 = vmatprep.subr.bf16.mxu0 0
  %237 = vmatpush1.bf16.msra.mxu0 0
  %238 = vmatprep.mubr.bf16.mxu0 %v183
  %239 = vmatmul.mubr.bf16.gmra.mrb[0].mxu0 %v103
  %v240 = vpop.f32.mrb[0].mxu0
  %v241 = vadd.f32 0.0, %v240
  %v242 = vpop.f32.mrb[0].mxu0
  %v243 = vpop.f32.mrb[0].mxu0
  %v244 = vadd.f32 0.0, %v243
  %v245 = vpop.f32.mrb[0].mxu0
  %246 = vmatprep.mubr.bf16.mxu0 %v186
  %247 = vmatmul.mubr.bf16.gmra.mrb[0].mxu0 %v105
  %v248 = vpop.f32.mrb[0].mxu0
  %v249 = vadd.f32 0.0, %v248
  %v250 = vpop.f32.mrb[0].mxu0
  %v251 = vpop.f32.mrb[0].mxu0
  %v252 = vadd.f32 0.0, %v251
  %v253 = vpop.f32.mrb[0].mxu0
  %254 = vmatprep.mubr.bf16.mxu0 %v189
  %255 = vmatmul.mubr.bf16.gmra.mrb[0].mxu0 %v107
  %v256 = vpop.f32.mrb[0].mxu0
  %v257 = vadd.f32 0.0, %v256
  %v258 = vpop.f32.mrb[0].mxu0
  %v259 = vpop.f32.mrb[0].mxu0
  %v260 = vadd.f32 0.0, %v259
  %v261 = vpop.f32.mrb[0].mxu0
  %262 = vmatprep.mubr.bf16.mxu0 %v192
  %263 = vmatmul.mubr.bf16.gmra.mrb[0].mxu0 %v109
  %v264 = vpop.f32.mrb[0].mxu0
  %v265 = vadd.f32 0.0, %v264
  %v266 = vpop.f32.mrb[0].mxu0
  %v267 = vpop.f32.mrb[0].mxu0
  %v268 = vadd.f32 0.0, %v267
  %v269 = vpop.f32.mrb[0].mxu0
  %270 = vmatprep.mubr.bf16.mxu0 %v195
  %271 = vmatmul.mubr.bf16.gmra.mrb[0].mxu0 %v111
  %v272 = vpop.f32.mrb[0].mxu0
  %v273 = vadd.f32 0.0, %v272
  %v274 = vpop.f32.mrb[0].mxu0
  %v275 = vpop.f32.mrb[0].mxu0
  %v276 = vadd.f32 0.0, %v275
  %v277 = vpop.f32.mrb[0].mxu0
  %278 = vmatprep.mubr.bf16.mxu0 %v198
  %279 = vmatmul.mubr.bf16.gmra.mrb[0].mxu0 %v113
  %v280 = vpop.f32.mrb[0].mxu0
  %v281 = vadd.f32 0.0, %v280
  %v282 = vpop.f32.mrb[0].mxu0
  %v283 = vpop.f32.mrb[0].mxu0
  %v284 = vadd.f32 0.0, %v283
  %v285 = vpop.f32.mrb[0].mxu0
  %286 = vmatprep.mubr.bf16.mxu0 %v201
  %287 = vmatmul.mubr.bf16.gmra.mrb[0].mxu0 %v115
  %v288 = vpop.f32.mrb[0].mxu0
  %v289 = vadd.f32 0.0, %v288
  %v290 = vpop.f32.mrb[0].mxu0
  %v291 = vpop.f32.mrb[0].mxu0
  %v292 = vadd.f32 0.0, %v291
  %v293 = vpop.f32.mrb[0].mxu0
  %294 = vmatprep.mubr.bf16.mxu0 %v204
  %295 = vmatmul.mubr.bf16.gmra.mrb[0].mxu0 %v117
  %v296 = vpop.f32.mrb[0].mxu0
  %v297 = vadd.f32 0.0, %v296
  %v298 = vpop.f32.mrb[0].mxu0
  %v299 = vpop.f32.mrb[0].mxu0
  %v300 = vadd.f32 0.0, %v299
  %v301 = vpop.f32.mrb[0].mxu0
  %302 = vdwg.mxu0
  %v303 = vld [vmem:[%s2] sm:$0x1]
  %v305 = vlaneseq
  %v306 = vshrl.u32 %v305, 7
  %v307 = vsub.s32 0, %v306
  %v308 = vrot.slane %v303, %v307
  %v310 = vmul.f32 %v241, %v308
  %v311 = vmul.f32 %v244, %v308
  %v312 = vmul.f32 %v249, %v308
  %v313 = vmul.f32 %v252, %v308
  %v314 = vmul.f32 %v257, %v308
  %v315 = vmul.f32 %v260, %v308
  %v316 = vmul.f32 %v265, %v308
  %v317 = vmul.f32 %v268, %v308
  %v318 = vmul.f32 %v273, %v308
  %v319 = vmul.f32 %v276, %v308
  %v320 = vmul.f32 %v281, %v308
  %v321 = vmul.f32 %v284, %v308
  %v322 = vmul.f32 %v289, %v308
  %v323 = vmul.f32 %v292, %v308
  %v324 = vmul.f32 %v297, %v308
  %v325 = vmul.f32 %v300, %v308
  %v326 = vld [vmem:[%s3] sm:$0x1]
  %v328 = vlaneseq
  %v329 = vshrl.u32 %v328, 7
  %v330 = vsub.s32 0, %v329
  %v331 = vrot.slane %v326, %v330
  %v333 = vadd.f32 %v310, %v331
  %v334 = vadd.f32 %v311, %v331
  %v335 = vadd.f32 %v312, %v331
  %v336 = vadd.f32 %v313, %v331
  %v337 = vadd.f32 %v314, %v331
  %v338 = vadd.f32 %v315, %v331
  %v339 = vadd.f32 %v316, %v331
  %v340 = vadd.f32 %v317, %v331
  %v341 = vadd.f32 %v318, %v331
  %v342 = vadd.f32 %v319, %v331
  %v343 = vadd.f32 %v320, %v331
  %v344 = vadd.f32 %v321, %v331
  %v345 = vadd.f32 %v322, %v331
  %v346 = vadd.f32 %v323, %v331
  %v347 = vadd.f32 %v324, %v331
  %v348 = vadd.f32 %v325, %v331
  %v349 = vld [vmem:[%s4] sm:$0xf]
  %v350 = vld [vmem:[%s4 + $0x4] sm:$0xf]
  %v351 = vld [vmem:[%s4 + $0x8] sm:$0xf]
  %v352 = vld [vmem:[%s4 + $0xc] sm:$0xf]
  %v353 = vld [vmem:[%s4 + $0x10] sm:$0xf]
  %v354 = vld [vmem:[%s4 + $0x14] sm:$0xf]
  %v355 = vld [vmem:[%s4 + $0x18] sm:$0xf]
  %v356 = vld [vmem:[%s4 + $0x1c] sm:$0xf]
  %v357 = vld [vmem:[%s4 + $0x20] sm:$0xf]
  %v358 = vld [vmem:[%s4 + $0x24] sm:$0xf]
  %v359 = vld [vmem:[%s4 + $0x28] sm:$0xf]
  %v360 = vld [vmem:[%s4 + $0x2c] sm:$0xf]
  %v361 = vld [vmem:[%s4 + $0x30] sm:$0xf]
  %v362 = vld [vmem:[%s4 + $0x34] sm:$0xf]
  %v363 = vld [vmem:[%s4 + $0x38] sm:$0xf]
  %v364 = vld [vmem:[%s4 + $0x3c] sm:$0xf]
  %v365 = vunpack.c.l.bf16 %v349
  %v366 = vunpack.c.l.bf16 %v350
  %v367 = vunpack.c.l.bf16 %v351
  %v368 = vunpack.c.l.bf16 %v352
  %v369 = vunpack.c.l.bf16 %v353
  %v370 = vunpack.c.l.bf16 %v354
  %v371 = vunpack.c.l.bf16 %v355
  %v372 = vunpack.c.l.bf16 %v356
  %v373 = vunpack.c.l.bf16 %v357
  %v374 = vunpack.c.l.bf16 %v358
  %v375 = vunpack.c.l.bf16 %v359
  %v376 = vunpack.c.l.bf16 %v360
  %v377 = vunpack.c.l.bf16 %v361
  %v378 = vunpack.c.l.bf16 %v362
  %v379 = vunpack.c.l.bf16 %v363
  %v380 = vunpack.c.l.bf16 %v364
  %v381 = vadd.f32 %v333, %v365
  %v382 = vadd.f32 %v334, %v366
  %v383 = vadd.f32 %v335, %v367
  %v384 = vadd.f32 %v336, %v368
  %v385 = vadd.f32 %v337, %v369
  %v386 = vadd.f32 %v338, %v370
  %v387 = vadd.f32 %v339, %v371
  %v388 = vadd.f32 %v340, %v372
  %v389 = vadd.f32 %v341, %v373
  %v390 = vadd.f32 %v342, %v374
  %v391 = vadd.f32 %v343, %v375
  %v392 = vadd.f32 %v344, %v376
  %v393 = vadd.f32 %v345, %v377
  %v394 = vadd.f32 %v346, %v378
  %v395 = vadd.f32 %v347, %v379
  %v396 = vadd.f32 %v348, %v380
  %v397 = vmax.f32 %v381, 0.0
  %v398 = vmax.f32 %v382, 0.0
  %v399 = vmax.f32 %v383, 0.0
  %v400 = vmax.f32 %v384, 0.0
  %v401 = vmax.f32 %v385, 0.0
  %v402 = vmax.f32 %v386, 0.0
  %v403 = vmax.f32 %v387, 0.0
  %v404 = vmax.f32 %v388, 0.0
  %v405 = vmax.f32 %v389, 0.0
  %v406 = vmax.f32 %v390, 0.0
  %v407 = vmax.f32 %v391, 0.0
  %v408 = vmax.f32 %v392, 0.0
  %v409 = vmax.f32 %v393, 0.0
  %v410 = vmax.f32 %v394, 0.0
  %v411 = vmax.f32 %v395, 0.0
  %v412 = vmax.f32 %v396, 0.0
  %v413 = vpack.c.bf16 %v398, %v397
  %v414 = vpack.c.bf16 %v400, %v399
  %v415 = vpack.c.bf16 %v402, %v401
  %v416 = vpack.c.bf16 %v404, %v403
  %v417 = vpack.c.bf16 %v406, %v405
  %v418 = vpack.c.bf16 %v408, %v407
  %v419 = vpack.c.bf16 %v410, %v409
  %v420 = vpack.c.bf16 %v412, %v411
  %v429 = vunpack.c.l.b16 %v413
  %v430 = vunpack.c.h.b16 %v413
  %v431 = vunpack.c.l.b16 %v414
  %v432 = vunpack.c.h.b16 %v414
  %v433 = vunpack.c.l.b16 %v415
  %v434 = vunpack.c.h.b16 %v415
  %v435 = vunpack.c.l.b16 %v416
  %v436 = vunpack.c.h.b16 %v416
  %v437 = vunpack.c.l.b16 %v417
  %v438 = vunpack.c.h.b16 %v417
  %v439 = vunpack.c.l.b16 %v418
  %v440 = vunpack.c.h.b16 %v418
  %v441 = vunpack.c.l.b16 %v419
  %v442 = vunpack.c.h.b16 %v419
  %v443 = vunpack.c.l.b16 %v420
  %v444 = vunpack.c.h.b16 %v420
  %v445 = vpack.c.b16 %v429, %v429
  %v446 = vpack.c.b16 %v430, %v430
  %v447 = vpack.c.b16 %v431, %v431
  %v448 = vpack.c.b16 %v432, %v432
  %v449 = vpack.c.b16 %v433, %v433
  %v450 = vpack.c.b16 %v434, %v434
  %v451 = vpack.c.b16 %v435, %v435
  %v452 = vpack.c.b16 %v436, %v436
  %v453 = vpack.c.b16 %v437, %v437
  %v454 = vpack.c.b16 %v438, %v438
  %v455 = vpack.c.b16 %v439, %v439
  %v456 = vpack.c.b16 %v440, %v440
  %v457 = vpack.c.b16 %v441, %v441
  %v458 = vpack.c.b16 %v442, %v442
  %v459 = vpack.c.b16 %v443, %v443
  %v460 = vpack.c.b16 %v444, %v444
  %vm477 = vcmask 125952
  %478 = vst.msk [vmem:[%s5] sm:$0xf] %vm477, %v445
  %479 = vst.msk [vmem:[%s5 + $0x4] sm:$0xf] %vm477, %v446
  %480 = vst.msk [vmem:[%s5 + $0x8] sm:$0xf] %vm477, %v447
  %481 = vst.msk [vmem:[%s5 + $0xc] sm:$0xf] %vm477, %v448
  %482 = vst.msk [vmem:[%s5 + $0x10] sm:$0xf] %vm477, %v449
  %483 = vst.msk [vmem:[%s5 + $0x14] sm:$0xf] %vm477, %v450
  %484 = vst.msk [vmem:[%s5 + $0x18] sm:$0xf] %vm477, %v451
  %485 = vst.msk [vmem:[%s5 + $0x1c] sm:$0xf] %vm477, %v452
  %486 = vst.msk [vmem:[%s5 + $0x20] sm:$0xf] %vm477, %v453
  %487 = vst.msk [vmem:[%s5 + $0x24] sm:$0xf] %vm477, %v454
  %488 = vst.msk [vmem:[%s5 + $0x28] sm:$0xf] %vm477, %v455
  %489 = vst.msk [vmem:[%s5 + $0x2c] sm:$0xf] %vm477, %v456
  %490 = vst.msk [vmem:[%s5 + $0x30] sm:$0xf] %vm477, %v457
  %491 = vst.msk [vmem:[%s5 + $0x34] sm:$0xf] %vm477, %v458
  %492 = vst.msk [vmem:[%s5 + $0x38] sm:$0xf] %vm477, %v459
  %493 = vst.msk [vmem:[%s5 + $0x3c] sm:$0xf] %vm477, %v460
  // Predicated region
  $region22: #{_lambda_.25} parent=0 // pred_check
    _
  $region23: #{_lambda_.25} parent=0 // pred_check_branch
    %495 = sbr.rel (0) target = $region25
  $region24: #{_lambda_.25} parent=0 // pred_region
    _
  $region25: #{_lambda_.25} parent=0 // pred_fallthru
    _
  // Predicated region
  $region26: #{_lambda_.25} parent=0 // pred_check
    _
  $region27: #{_lambda_.25} parent=0 // pred_check_branch
    %497 = sbr.rel (0) target = $region29
  $region28: #{_lambda_.25} parent=0 // pred_region
    _
  $region29: #{_lambda_.25} parent=0 // pred_fallthru
    _

// kernel: _lambda_.29
$region0: #{_lambda_.29}
  #allocation0 [shape = 'u32[]', space=smem, size = 0x4, offset = 0x4, fixed_abs, tag = 'smem constant byte address 0x4 - core index']
  #allocation1 [shape = 'u32[144,128]{1,0:T(1,128)}', space=vmem, size = 0x12000, scoped, tag = 'internal scratch']
  %s0 = inlined_call_operand.vmem [shape: bf16[32,144], index: 0, kind: input, shape index: {}]
  %s1 = inlined_call_operand.vmem [shape: bf16[144,32], index: 1, kind: input, shape index: {}]
  %s2 = inlined_call_operand.vmem [shape: f32[1,32], index: 2, kind: input, shape index: {}]
  %s3 = inlined_call_operand.vmem [shape: f32[1,32], index: 3, kind: input, shape index: {}]
  %s4 = inlined_call_operand.vmem [shape: bf16[32,32], index: 4, kind: output, shape index: {}]
  %s5 = sld [smem:[#allocation0]]
  $region26: #{_lambda_.29} parent=0
    _
  %s7 = ssub.s32 1, %s5
  %s8 = scalar_select 0, %s7, %s5
  // Predicated region
  $region2: #{_lambda_.29} parent=0 // pred_check
    _
  $region3: #{_lambda_.29} parent=0 // pred_check_branch
    %10 = sbr.rel (0) target = $region5
  $region4: #{_lambda_.29} parent=0 // pred_region
    _
  $region5: #{_lambda_.29} parent=0 // pred_fallthru
    _
  // Predicated region
  $region6: #{_lambda_.29} parent=0 // pred_check
    _
  $region7: #{_lambda_.29} parent=0 // pred_check_branch
    %12 = sbr.rel (0) target = $region9
  $region8: #{_lambda_.29} parent=0 // pred_region
    _
  $region9: #{_lambda_.29} parent=0 // pred_fallthru
    _
  // Predicated region
  $region10: #{_lambda_.29} parent=0 // pred_check
    _
  $region11: #{_lambda_.29} parent=0 // pred_check_branch
    %14 = sbr.rel (0) target = $region13
  $region12: #{_lambda_.29} parent=0 // pred_region
    _
  $region13: #{_lambda_.29} parent=0 // pred_fallthru
    _
  // Predicated region
  $region14: #{_lambda_.29} parent=0 // pred_check
    _
  $region15: #{_lambda_.29} parent=0 // pred_check_branch
    %16 = sbr.rel (0) target = $region17
  $region16: #{_lambda_.29} parent=0 // pred_region
    _
  $region17: #{_lambda_.29} parent=0 // pred_fallthru
    _
  %v18 = vld [vmem:[%s0] sm:$0xff]
  %v19 = vld [vmem:[%s0 + $0x8] sm:$0xff]
  %v20 = vld [vmem:[%s0 + $0x10] sm:$0xff]
  %v21 = vld [vmem:[%s0 + $0x18] sm:$0xff]
  %v22 = vld [vmem:[%s1] sm:$0xf]
  %v23 = vld [vmem:[%s1 + $0x4] sm:$0xf]
  %v24 = vld [vmem:[%s1 + $0x8] sm:$0xf]
  %v25 = vld [vmem:[%s1 + $0xc] sm:$0xf]
  %v26 = vld [vmem:[%s1 + $0x10] sm:$0xf]
  %v27 = vld [vmem:[%s1 + $0x14] sm:$0xf]
  %v28 = vld [vmem:[%s1 + $0x18] sm:$0xf]
  %v29 = vld [vmem:[%s1 + $0x1c] sm:$0xf]
  %v30 = vld [vmem:[%s1 + $0x20] sm:$0xf]
  %v31 = vld [vmem:[%s1 + $0x24] sm:$0xf]
  %v32 = vld [vmem:[%s1 + $0x28] sm:$0xf]
  %v33 = vld [vmem:[%s1 + $0x2c] sm:$0xf]
  %v34 = vld [vmem:[%s1 + $0x30] sm:$0xf]
  %v35 = vld [vmem:[%s1 + $0x34] sm:$0xf]
  %v36 = vld [vmem:[%s1 + $0x38] sm:$0xf]
  %v37 = vld [vmem:[%s1 + $0x3c] sm:$0xf]
  %v38 = vld [vmem:[%s1 + $0x40] sm:$0xf]
  %v39 = vld [vmem:[%s1 + $0x44] sm:$0xf]
  %v44 = vunpack.c.l.b16 %v18
  %v45 = vunpack.c.h.b16 %v18
  %v46 = vunpack.c.l.b16 %v19
  %v47 = vunpack.c.h.b16 %v19
  %v48 = vunpack.c.l.b16 %v20
  %v49 = vunpack.c.h.b16 %v20
  %v50 = vunpack.c.l.b16 %v21
  %v51 = vunpack.c.h.b16 %v21
  %v52 = vpack.c.b16 %v46, %v44
  %v53 = vpack.c.b16 %v47, %v45
  %v54 = vpack.c.b16 %v50, %v48
  %v55 = vpack.c.b16 %v51, %v49
  %v76 = vunpack.c.l.b16 %v22
  %v77 = vunpack.c.l.b16 %v23
  %v78 = vunpack.c.l.b16 %v24
  %v79 = vunpack.c.l.b16 %v25
  %v80 = vunpack.c.l.b16 %v26
  %v81 = vunpack.c.l.b16 %v27
  %v82 = vunpack.c.l.b16 %v28
  %v83 = vunpack.c.l.b16 %v29
  %v84 = vunpack.c.l.b16 %v30
  %v85 = vunpack.c.l.b16 %v31
  %v86 = vunpack.c.l.b16 %v32
  %v87 = vunpack.c.l.b16 %v33
  %v88 = vunpack.c.l.b16 %v34
  %v89 = vunpack.c.l.b16 %v35
  %v90 = vunpack.c.l.b16 %v36
  %v91 = vunpack.c.l.b16 %v37
  %v92 = vunpack.c.l.b16 %v38
  %v93 = vunpack.c.l.b16 %v39
  %v94 = vpack.c.b16 %v77, %v76
  %v95 = vpack.c.b16 %v79, %v78
  %v96 = vpack.c.b16 %v81, %v80
  %v97 = vpack.c.b16 %v83, %v82
  %v98 = vpack.c.b16 %v85, %v84
  %v99 = vpack.c.b16 %v87, %v86
  %v100 = vpack.c.b16 %v89, %v88
  %v101 = vpack.c.b16 %v91, %v90
  %v102 = vpack.c.b16 %v93, %v92
  %vm112 = vcmask 130048
  %v114 = vsel %vm112, %v53, 0
  %v117 = vsel %vm112, %v55, 0
  %119 = vmatprep.subr.bf16.mxu0 0
  %120 = vmatpush1.bf16.msra.mxu0 %v94
  %121 = vmatprep.subr.bf16.mxu0 0
  %122 = vmatpush1.bf16.msra.mxu0 %v95
  %123 = vmatprep.subr.bf16.mxu0 0
  %124 = vmatpush1.bf16.msra.mxu0 %v96
  %125 = vmatprep.subr.bf16.mxu0 0
  %126 = vmatpush1.bf16.msra.mxu0 %v97
  %127 = vmatprep.subr.bf16.mxu0 0
  %128 = vmatpush1.bf16.msra.mxu0 %v98
  %129 = vmatprep.subr.bf16.mxu0 0
  %130 = vmatpush1.bf16.msra.mxu0 %v99
  %131 = vmatprep.subr.bf16.mxu0 0
  %132 = vmatpush1.bf16.msra.mxu0 %v100
  %133 = vmatprep.subr.bf16.mxu0 0
  %134 = vmatpush1.bf16.msra.mxu0 %v101
  %135 = vmatprep.subr.bf16.mxu0 0
  %136 = vmatpush1.bf16.msra.mxu0 %v102
  %137 = vmatprep.subr.bf16.mxu0 0
  %138 = vmatpush1.bf16.msra.mxu0 0
  %139 = vmatprep.subr.bf16.mxu0 0
  %140 = vmatpush1.bf16.msra.mxu0 0
  %141 = vmatprep.subr.bf16.mxu0 0
  %142 = vmatpush1.bf16.msra.mxu0 0
  %143 = vmatprep.subr.bf16.mxu0 0
  %144 = vmatpush1.bf16.msra.mxu0 0
  %145 = vmatprep.subr.bf16.mxu0 0
  %146 = vmatpush1.bf16.msra.mxu0 0
  %147 = vmatprep.subr.bf16.mxu0 0
  %148 = vmatpush1.bf16.msra.mxu0 0
  %149 = vmatprep.subr.bf16.mxu0 0
  %150 = vmatpush1.bf16.msra.mxu0 0
  %151 = vmatprep.mubr.bf16.mxu0 %v114
  %152 = vmatmul.mubr.bf16.gmra.mrb[0].mxu0 %v52
  %v153 = vpop.f32.mrb[0].mxu0
  %v154 = vadd.f32 0.0, %v153
  %v155 = vpop.f32.mrb[0].mxu0
  %v156 = vpop.f32.mrb[0].mxu0
  %v157 = vadd.f32 0.0, %v156
  %v158 = vpop.f32.mrb[0].mxu0
  %159 = vmatprep.mubr.bf16.mxu0 %v117
  %160 = vmatmul.mubr.bf16.gmra.mrb[0].mxu0 %v54
  %v161 = vpop.f32.mrb[0].mxu0
  %v162 = vadd.f32 0.0, %v161
  %v163 = vpop.f32.mrb[0].mxu0
  %v164 = vpop.f32.mrb[0].mxu0
  %v165 = vadd.f32 0.0, %v164
  %v166 = vpop.f32.mrb[0].mxu0
  %167 = vdwg.mxu0
  %v168 = vld [vmem:[%s2] sm:$0x1]
  %v170 = vlaneseq
  %v171 = vshrl.u32 %v170, 7
  %v172 = vsub.s32 0, %v171
  %v173 = vrot.slane %v168, %v172
  %v175 = vmul.f32 %v154, %v173
  %v176 = vmul.f32 %v157, %v173
  %v177 = vmul.f32 %v162, %v173
  %v178 = vmul.f32 %v165, %v173
  %v179 = vld [vmem:[%s3] sm:$0x1]
  %v181 = vlaneseq
  %v182 = vshrl.u32 %v181, 7
  %v183 = vsub.s32 0, %v182
  %v184 = vrot.slane %v179, %v183
  %v186 = vadd.f32 %v175, %v184
  %v187 = vadd.f32 %v176, %v184
  %v188 = vadd.f32 %v177, %v184
  %v189 = vadd.f32 %v178, %v184
  %v190 = vmax.f32 %v186, 0.0
  %v191 = vmax.f32 %v187, 0.0
  %v192 = vmax.f32 %v188, 0.0
  %v193 = vmax.f32 %v189, 0.0
  %v194 = vpack.c.bf16 %v191, %v190
  %v195 = vpack.c.bf16 %v193, %v192
  %v198 = vunpack.c.l.b16 %v194
  %v199 = vunpack.c.h.b16 %v194
  %v200 = vunpack.c.l.b16 %v195
  %v201 = vunpack.c.h.b16 %v195
  %v202 = vpack.c.b16 %v198, %v198
  %v203 = vpack.c.b16 %v199, %v199
  %v204 = vpack.c.b16 %v200, %v200
  %v205 = vpack.c.b16 %v201, %v201
  %vm210 = vcmask 257024
  %211 = vst.msk [vmem:[%s4] sm:$0xf] %vm210, %v202
  %212 = vst.msk [vmem:[%s4 + $0x4] sm:$0xf] %vm210, %v203
  %213 = vst.msk [vmem:[%s4 + $0x8] sm:$0xf] %vm210, %v204
  %214 = vst.msk [vmem:[%s4 + $0xc] sm:$0xf] %vm210, %v205
  // Predicated region
  $region18: #{_lambda_.29} parent=0 // pred_check
    _
  $region19: #{_lambda_.29} parent=0 // pred_check_branch
    %216 = sbr.rel (0) target = $region21
  $region20: #{_lambda_.29} parent=0 // pred_region
    _
  $region21: #{_lambda_.29} parent=0 // pred_fallthru
    _
  // Predicated region
  $region22: #{_lambda_.29} parent=0 // pred_check
    _
  $region23: #{_lambda_.29} parent=0 // pred_check_branch
    %218 = sbr.rel (0) target = $region25
  $region24: #{_lambda_.29} parent=0 // pred_region
    _
  $region25: #{_lambda_.29} parent=0 // pred_fallthru
    _

// kernel: _lambda_.28
$region0: #{_lambda_.28}
  #allocation0 [shape = 'u32[]', space=smem, size = 0x4, offset = 0x4, fixed_abs, tag = 'smem constant byte address 0x4 - core index']
  #allocation1 [shape = 'u32[144,128]{1,0:T(1,128)}', space=vmem, size = 0x12000, scoped, tag = 'internal scratch']
  %s0 = inlined_call_operand.vmem [shape: bf16[32,16], index: 0, kind: input, shape index: {}]
  %s1 = inlined_call_operand.vmem [shape: bf16[16,32], index: 1, kind: input, shape index: {}]
  %s2 = inlined_call_operand.vmem [shape: f32[1,32], index: 2, kind: input, shape index: {}]
  %s3 = inlined_call_operand.vmem [shape: f32[1,32], index: 3, kind: input, shape index: {}]
  %s4 = inlined_call_operand.vmem [shape: bf16[32,32], index: 4, kind: output, shape index: {}]
  %s5 = sld [smem:[#allocation0]]
  $region26: #{_lambda_.28} parent=0
    _
  %s7 = ssub.s32 1, %s5
  %s8 = scalar_select 0, %s7, %s5
  // Predicated region
  $region2: #{_lambda_.28} parent=0 // pred_check
    _
  $region3: #{_lambda_.28} parent=0 // pred_check_branch
    %10 = sbr.rel (0) target = $region5
  $region4: #{_lambda_.28} parent=0 // pred_region
    _
  $region5: #{_lambda_.28} parent=0 // pred_fallthru
    _
  // Predicated region
  $region6: #{_lambda_.28} parent=0 // pred_check
    _
  $region7: #{_lambda_.28} parent=0 // pred_check_branch
    %12 = sbr.rel (0) target = $region9
  $region8: #{_lambda_.28} parent=0 // pred_region
    _
  $region9: #{_lambda_.28} parent=0 // pred_fallthru
    _
  // Predicated region
  $region10: #{_lambda_.28} parent=0 // pred_check
    _
  $region11: #{_lambda_.28} parent=0 // pred_check_branch
    %14 = sbr.rel (0) target = $region13
  $region12: #{_lambda_.28} parent=0 // pred_region
    _
  $region13: #{_lambda_.28} parent=0 // pred_fallthru
    _
  // Predicated region
  $region14: #{_lambda_.28} parent=0 // pred_check
    _
  $region15: #{_lambda_.28} parent=0 // pred_check_branch
    %16 = sbr.rel (0) target = $region17
  $region16: #{_lambda_.28} parent=0 // pred_region
    _
  $region17: #{_lambda_.28} parent=0 // pred_fallthru
    _
  %v18 = vld [vmem:[%s0] sm:$0xf]
  %v19 = vld [vmem:[%s0 + $0x4] sm:$0xf]
  %v20 = vld [vmem:[%s0 + $0x8] sm:$0xf]
  %v21 = vld [vmem:[%s0 + $0xc] sm:$0xf]
  %v22 = vld [vmem:[%s1] sm:$0xf]
  %v23 = vld [vmem:[%s1 + $0x4] sm:$0xf]
  %v28 = vunpack.c.l.b16 %v18
  %v29 = vunpack.c.l.b16 %v19
  %v30 = vunpack.c.l.b16 %v20
  %v31 = vunpack.c.l.b16 %v21
  %v32 = vpack.c.b16 %v29, %v28
  %v33 = vpack.c.b16 %v31, %v30
  %v36 = vunpack.c.l.b16 %v22
  %v37 = vunpack.c.l.b16 %v23
  %v38 = vpack.c.b16 %v37, %v36
  %vm40 = vcmask 130048
  %v42 = vsel %vm40, %v32, 0
  %v45 = vsel %vm40, %v33, 0
  %47 = vmatprep.subr.bf16.mxu0 0
  %48 = vmatpush1.bf16.msra.mxu0 %v38
  %49 = vmatprep.subr.bf16.mxu0 0
  %50 = vmatpush1.bf16.msra.mxu0 0
  %51 = vmatprep.subr.bf16.mxu0 0
  %52 = vmatpush1.bf16.msra.mxu0 0
  %53 = vmatprep.subr.bf16.mxu0 0
  %54 = vmatpush1.bf16.msra.mxu0 0
  %55 = vmatprep.subr.bf16.mxu0 0
  %56 = vmatpush1.bf16.msra.mxu0 0
  %57 = vmatprep.subr.bf16.mxu0 0
  %58 = vmatpush1.bf16.msra.mxu0 0
  %59 = vmatprep.subr.bf16.mxu0 0
  %60 = vmatpush1.bf16.msra.mxu0 0
  %61 = vmatprep.subr.bf16.mxu0 0
  %62 = vmatpush1.bf16.msra.mxu0 0
  %63 = vmatprep.subr.bf16.mxu0 0
  %64 = vmatpush1.bf16.msra.mxu0 0
  %65 = vmatprep.subr.bf16.mxu0 0
  %66 = vmatpush1.bf16.msra.mxu0 0
  %67 = vmatprep.subr.bf16.mxu0 0
  %68 = vmatpush1.bf16.msra.mxu0 0
  %69 = vmatprep.subr.bf16.mxu0 0
  %70 = vmatpush1.bf16.msra.mxu0 0
  %71 = vmatprep.subr.bf16.mxu0 0
  %72 = vmatpush1.bf16.msra.mxu0 0
  %73 = vmatprep.subr.bf16.mxu0 0
  %74 = vmatpush1.bf16.msra.mxu0 0
  %75 = vmatprep.subr.bf16.mxu0 0
  %76 = vmatpush1.bf16.msra.mxu0 0
  %77 = vmatprep.subr.bf16.mxu0 0
  %78 = vmatpush1.bf16.msra.mxu0 0
  %79 = vmatprep.mubr.bf16.mxu0 0
  %80 = vmatmul.mubr.bf16.gmra.mrb[0].mxu0 %v42
  %v81 = vpop.f32.mrb[0].mxu0
  %v82 = vadd.f32 0.0, %v81
  %v83 = vpop.f32.mrb[0].mxu0
  %v84 = vpop.f32.mrb[0].mxu0
  %v85 = vadd.f32 0.0, %v84
  %v86 = vpop.f32.mrb[0].mxu0
  %87 = vmatprep.mubr.bf16.mxu0 0
  %88 = vmatmul.mubr.bf16.gmra.mrb[0].mxu0 %v45
  %v89 = vpop.f32.mrb[0].mxu0
  %v90 = vadd.f32 0.0, %v89
  %v91 = vpop.f32.mrb[0].mxu0
  %v92 = vpop.f32.mrb[0].mxu0
  %v93 = vadd.f32 0.0, %v92
  %v94 = vpop.f32.mrb[0].mxu0
  %95 = vdwg.mxu0
  %v96 = vld [vmem:[%s2] sm:$0x1]
  %v98 = vlaneseq
  %v99 = vshrl.u32 %v98, 7
  %v100 = vsub.s32 0, %v99
  %v101 = vrot.slane %v96, %v100
  %v103 = vmul.f32 %v82, %v101
  %v104 = vmul.f32 %v85, %v101
  %v105 = vmul.f32 %v90, %v101
  %v106 = vmul.f32 %v93, %v101
  %v107 = vld [vmem:[%s3] sm:$0x1]
  %v109 = vlaneseq
  %v110 = vshrl.u32 %v109, 7
  %v111 = vsub.s32 0, %v110
  %v112 = vrot.slane %v107, %v111
  %v114 = vadd.f32 %v103, %v112
  %v115 = vadd.f32 %v104, %v112
  %v116 = vadd.f32 %v105, %v112
  %v117 = vadd.f32 %v106, %v112
  %v118 = vpack.c.bf16 %v115, %v114
  %v119 = vpack.c.bf16 %v117, %v116
  %v122 = vunpack.c.l.b16 %v118
  %v123 = vunpack.c.h.b16 %v118
  %v124 = vunpack.c.l.b16 %v119
  %v125 = vunpack.c.h.b16 %v119
  %v126 = vpack.c.b16 %v122, %v122
  %v127 = vpack.c.b16 %v123, %v123
  %v128 = vpack.c.b16 %v124, %v124
  %v129 = vpack.c.b16 %v125, %v125
  %vm134 = vcmask 257024
  %135 = vst.msk [vmem:[%s4] sm:$0xf] %vm134, %v126
  %136 = vst.msk [vmem:[%s4 + $0x4] sm:$0xf] %vm134, %v127
  %137 = vst.msk [vmem:[%s4 + $0x8] sm:$0xf] %vm134, %v128
  %138 = vst.msk [vmem:[%s4 + $0xc] sm:$0xf] %vm134, %v129
  // Predicated region
  $region18: #{_lambda_.28} parent=0 // pred_check
    _
  $region19: #{_lambda_.28} parent=0 // pred_check_branch
    %140 = sbr.rel (0) target = $region21
  $region20: #{_lambda_.28} parent=0 // pred_region
    _
  $region21: #{_lambda_.28} parent=0 // pred_fallthru
    _
  // Predicated region
  $region22: #{_lambda_.28} parent=0 // pred_check
    _
  $region23: #{_lambda_.28} parent=0 // pred_check_branch
    %142 = sbr.rel (0) target = $region25
  $region24: #{_lambda_.28} parent=0 // pred_region
    _
  $region25: #{_lambda_.28} parent=0 // pred_fallthru
    _

// kernel: _lambda_.30
$region0: #{_lambda_.30}
  #allocation0 [shape = 'u32[]', space=smem, size = 0x4, offset = 0x4, fixed_abs, tag = 'smem constant byte address 0x4 - core index']
  #allocation1 [shape = 'u32[144,128]{1,0:T(1,128)}', space=vmem, size = 0x12000, scoped, tag = 'internal scratch']
  %s0 = inlined_call_operand.vmem [shape: bf16[32,288], index: 0, kind: input, shape index: {}]
  %s1 = inlined_call_operand.vmem [shape: bf16[288,32], index: 1, kind: input, shape index: {}]
  %s2 = inlined_call_operand.vmem [shape: f32[1,32], index: 2, kind: input, shape index: {}]
  %s3 = inlined_call_operand.vmem [shape: f32[1,32], index: 3, kind: input, shape index: {}]
  %s4 = inlined_call_operand.vmem [shape: bf16[32,32], index: 4, kind: input, shape index: {}]
  %s5 = inlined_call_operand.vmem [shape: bf16[32,32], index: 5, kind: output, shape index: {}]
  %s6 = sld [smem:[#allocation0]]
  $region30: #{_lambda_.30} parent=0
    _
  %s8 = ssub.s32 1, %s6
  %s9 = scalar_select 0, %s8, %s6
  // Predicated region
  $region2: #{_lambda_.30} parent=0 // pred_check
    _
  $region3: #{_lambda_.30} parent=0 // pred_check_branch
    %11 = sbr.rel (0) target = $region5
  $region4: #{_lambda_.30} parent=0 // pred_region
    _
  $region5: #{_lambda_.30} parent=0 // pred_fallthru
    _
  // Predicated region
  $region6: #{_lambda_.30} parent=0 // pred_check
    _
  $region7: #{_lambda_.30} parent=0 // pred_check_branch
    %13 = sbr.rel (0) target = $region9
  $region8: #{_lambda_.30} parent=0 // pred_region
    _
  $region9: #{_lambda_.30} parent=0 // pred_fallthru
    _
  // Predicated region
  $region10: #{_lambda_.30} parent=0 // pred_check
    _
  $region11: #{_lambda_.30} parent=0 // pred_check_branch
    %15 = sbr.rel (0) target = $region13
  $region12: #{_lambda_.30} parent=0 // pred_region
    _
  $region13: #{_lambda_.30} parent=0 // pred_fallthru
    _
  // Predicated region
  $region14: #{_lambda_.30} parent=0 // pred_check
    _
  $region15: #{_lambda_.30} parent=0 // pred_check_branch
    %17 = sbr.rel (0) target = $region17
  $region16: #{_lambda_.30} parent=0 // pred_region
    _
  $region17: #{_lambda_.30} parent=0 // pred_fallthru
    _
  // Predicated region
  $region18: #{_lambda_.30} parent=0 // pred_check
    _
  $region19: #{_lambda_.30} parent=0 // pred_check_branch
    %19 = sbr.rel (0) target = $region21
  $region20: #{_lambda_.30} parent=0 // pred_region
    _
  $region21: #{_lambda_.30} parent=0 // pred_fallthru
    _
  %v21 = vld [vmem:[%s0] sm:$0xff]
  %v22 = vld [vmem:[%s0 + $0x8] sm:$0xf]
  %v23 = vld [vmem:[%s0 + $0xc] sm:$0xff]
  %v24 = vld [vmem:[%s0 + $0x14] sm:$0xf]
  %v25 = vld [vmem:[%s0 + $0x18] sm:$0xff]
  %v26 = vld [vmem:[%s0 + $0x20] sm:$0xf]
  %v27 = vld [vmem:[%s0 + $0x24] sm:$0xff]
  %v28 = vld [vmem:[%s0 + $0x2c] sm:$0xf]
  %v29 = vld [vmem:[%s1] sm:$0xf]
  %v30 = vld [vmem:[%s1 + $0x4] sm:$0xf]
  %v31 = vld [vmem:[%s1 + $0x8] sm:$0xf]
  %v32 = vld [vmem:[%s1 + $0xc] sm:$0xf]
  %v33 = vld [vmem:[%s1 + $0x10] sm:$0xf]
  %v34 = vld [vmem:[%s1 + $0x14] sm:$0xf]
  %v35 = vld [vmem:[%s1 + $0x18] sm:$0xf]
  %v36 = vld [vmem:[%s1 + $0x1c] sm:$0xf]
  %v37 = vld [vmem:[%s1 + $0x20] sm:$0xf]
  %v38 = vld [vmem:[%s1 + $0x24] sm:$0xf]
  %v39 = vld [vmem:[%s1 + $0x28] sm:$0xf]
  %v40 = vld [vmem:[%s1 + $0x2c] sm:$0xf]
  %v41 = vld [vmem:[%s1 + $0x30] sm:$0xf]
  %v42 = vld [vmem:[%s1 + $0x34] sm:$0xf]
  %v43 = vld [vmem:[%s1 + $0x38] sm:$0xf]
  %v44 = vld [vmem:[%s1 + $0x3c] sm:$0xf]
  %v45 = vld [vmem:[%s1 + $0x40] sm:$0xf]
  %v46 = vld [vmem:[%s1 + $0x44] sm:$0xf]
  %v47 = vld [vmem:[%s1 + $0x48] sm:$0xf]
  %v48 = vld [vmem:[%s1 + $0x4c] sm:$0xf]
  %v49 = vld [vmem:[%s1 + $0x50] sm:$0xf]
  %v50 = vld [vmem:[%s1 + $0x54] sm:$0xf]
  %v51 = vld [vmem:[%s1 + $0x58] sm:$0xf]
  %v52 = vld [vmem:[%s1 + $0x5c] sm:$0xf]
  %v53 = vld [vmem:[%s1 + $0x60] sm:$0xf]
  %v54 = vld [vmem:[%s1 + $0x64] sm:$0xf]
  %v55 = vld [vmem:[%s1 + $0x68] sm:$0xf]
  %v56 = vld [vmem:[%s1 + $0x6c] sm:$0xf]
  %v57 = vld [vmem:[%s1 + $0x70] sm:$0xf]
  %v58 = vld [vmem:[%s1 + $0x74] sm:$0xf]
  %v59 = vld [vmem:[%s1 + $0x78] sm:$0xf]
  %v60 = vld [vmem:[%s1 + $0x7c] sm:$0xf]
  %v61 = vld [vmem:[%s1 + $0x80] sm:$0xf]
  %v62 = vld [vmem:[%s1 + $0x84] sm:$0xf]
  %v63 = vld [vmem:[%s1 + $0x88] sm:$0xf]
  %v64 = vld [vmem:[%s1 + $0x8c] sm:$0xf]
  %v73 = vunpack.c.l.b16 %v21
  %v74 = vunpack.c.h.b16 %v21
  %v75 = vunpack.c.l.b16 %v22
  %v76 = vunpack.c.l.b16 %v23
  %v77 = vunpack.c.h.b16 %v23
  %v78 = vunpack.c.l.b16 %v24
  %v79 = vunpack.c.l.b16 %v25
  %v80 = vunpack.c.h.b16 %v25
  %v81 = vunpack.c.l.b16 %v26
  %v82 = vunpack.c.l.b16 %v27
  %v83 = vunpack.c.h.b16 %v27
  %v84 = vunpack.c.l.b16 %v28
  %v85 = vpack.c.b16 %v76, %v73
  %v86 = vpack.c.b16 %v77, %v74
  %v87 = vpack.c.b16 %v78, %v75
  %v88 = vpack.c.b16 %v82, %v79
  %v89 = vpack.c.b16 %v83, %v80
  %v90 = vpack.c.b16 %v84, %v81
  %v131 = vunpack.c.l.b16 %v29
  %v132 = vunpack.c.l.b16 %v30
  %v133 = vunpack.c.l.b16 %v31
  %v134 = vunpack.c.l.b16 %v32
  %v135 = vunpack.c.l.b16 %v33
  %v136 = vunpack.c.l.b16 %v34
  %v137 = vunpack.c.l.b16 %v35
  %v138 = vunpack.c.l.b16 %v36
  %v139 = vunpack.c.l.b16 %v37
  %v140 = vunpack.c.l.b16 %v38
  %v141 = vunpack.c.l.b16 %v39
  %v142 = vunpack.c.l.b16 %v40
  %v143 = vunpack.c.l.b16 %v41
  %v144 = vunpack.c.l.b16 %v42
  %v145 = vunpack.c.l.b16 %v43
  %v146 = vunpack.c.l.b16 %v44
  %v147 = vunpack.c.l.b16 %v45
  %v148 = vunpack.c.l.b16 %v46
  %v149 = vunpack.c.l.b16 %v47
  %v150 = vunpack.c.l.b16 %v48
  %v151 = vunpack.c.l.b16 %v49
  %v152 = vunpack.c.l.b16 %v50
  %v153 = vunpack.c.l.b16 %v51
  %v154 = vunpack.c.l.b16 %v52
  %v155 = vunpack.c.l.b16 %v53
  %v156 = vunpack.c.l.b16 %v54
  %v157 = vunpack.c.l.b16 %v55
  %v158 = vunpack.c.l.b16 %v56
  %v159 = vunpack.c.l.b16 %v57
  %v160 = vunpack.c.l.b16 %v58
  %v161 = vunpack.c.l.b16 %v59
  %v162 = vunpack.c.l.b16 %v60
  %v163 = vunpack.c.l.b16 %v61
  %v164 = vunpack.c.l.b16 %v62
  %v165 = vunpack.c.l.b16 %v63
  %v166 = vunpack.c.l.b16 %v64
  %v167 = vpack.c.b16 %v132, %v131
  %v168 = vpack.c.b16 %v134, %v133
  %v169 = vpack.c.b16 %v136, %v135
  %v170 = vpack.c.b16 %v138, %v137
  %v171 = vpack.c.b16 %v140, %v139
  %v172 = vpack.c.b16 %v142, %v141
  %v173 = vpack.c.b16 %v144, %v143
  %v174 = vpack.c.b16 %v146, %v145
  %v175 = vpack.c.b16 %v148, %v147
  %v176 = vpack.c.b16 %v150, %v149
  %v177 = vpack.c.b16 %v152, %v151
  %v178 = vpack.c.b16 %v154, %v153
  %v179 = vpack.c.b16 %v156, %v155
  %v180 = vpack.c.b16 %v158, %v157
  %v181 = vpack.c.b16 %v160, %v159
  %v182 = vpack.c.b16 %v162, %v161
  %v183 = vpack.c.b16 %v164, %v163
  %v184 = vpack.c.b16 %v166, %v165
  %vm203 = vcmask 261120
  %v205 = vsel %vm203, %v87, 0
  %v208 = vsel %vm203, %v90, 0
  %210 = vmatprep.subr.bf16.mxu0 0
  %211 = vmatpush1.bf16.msra.mxu0 %v167
  %212 = vmatprep.subr.bf16.mxu0 0
  %213 = vmatpush1.bf16.msra.mxu0 %v168
  %214 = vmatprep.subr.bf16.mxu0 0
  %215 = vmatpush1.bf16.msra.mxu0 %v169
  %216 = vmatprep.subr.bf16.mxu0 0
  %217 = vmatpush1.bf16.msra.mxu0 %v170
  %218 = vmatprep.subr.bf16.mxu0 0
  %219 = vmatpush1.bf16.msra.mxu0 %v171
  %220 = vmatprep.subr.bf16.mxu0 0
  %221 = vmatpush1.bf16.msra.mxu0 %v172
  %222 = vmatprep.subr.bf16.mxu0 0
  %223 = vmatpush1.bf16.msra.mxu0 %v173
  %224 = vmatprep.subr.bf16.mxu0 0
  %225 = vmatpush1.bf16.msra.mxu0 %v174
  %226 = vmatprep.subr.bf16.mxu0 0
  %227 = vmatpush1.bf16.msra.mxu0 %v175
  %228 = vmatprep.subr.bf16.mxu0 0
  %229 = vmatpush1.bf16.msra.mxu0 %v176
  %230 = vmatprep.subr.bf16.mxu0 0
  %231 = vmatpush1.bf16.msra.mxu0 %v177
  %232 = vmatprep.subr.bf16.mxu0 0
  %233 = vmatpush1.bf16.msra.mxu0 %v178
  %234 = vmatprep.subr.bf16.mxu0 0
  %235 = vmatpush1.bf16.msra.mxu0 %v179
  %236 = vmatprep.subr.bf16.mxu0 0
  %237 = vmatpush1.bf16.msra.mxu0 %v180
  %238 = vmatprep.subr.bf16.mxu0 0
  %239 = vmatpush1.bf16.msra.mxu0 %v181
  %240 = vmatprep.subr.bf16.mxu0 0
  %241 = vmatpush1.bf16.msra.mxu0 %v182
  %242 = vmatprep.mubr.bf16.mxu0 %v86
  %243 = vmatmul.mubr.bf16.gmra.mrb[0].mxu0 %v85
  %v244 = vpop.f32.mrb[0].mxu0
  %v245 = vadd.f32 0.0, %v244
  %v246 = vpop.f32.mrb[0].mxu0
  %v247 = vpop.f32.mrb[0].mxu0
  %v248 = vadd.f32 0.0, %v247
  %v249 = vpop.f32.mrb[0].mxu0
  %250 = vmatprep.mubr.bf16.mxu0 %v89
  %251 = vmatmul.mubr.bf16.gmra.mrb[0].mxu0 %v88
  %v252 = vpop.f32.mrb[0].mxu0
  %v253 = vadd.f32 0.0, %v252
  %v254 = vpop.f32.mrb[0].mxu0
  %v255 = vpop.f32.mrb[0].mxu0
  %v256 = vadd.f32 0.0, %v255
  %v257 = vpop.f32.mrb[0].mxu0
  %258 = vdwg.mxu0
  %259 = vmatprep.subr.bf16.mxu0 0
  %260 = vmatpush1.bf16.msra.mxu0 %v183
  %261 = vmatprep.subr.bf16.mxu0 0
  %262 = vmatpush1.bf16.msra.mxu0 %v184
  %263 = vmatprep.subr.bf16.mxu0 0
  %264 = vmatpush1.bf16.msra.mxu0 0
  %265 = vmatprep.subr.bf16.mxu0 0
  %266 = vmatpush1.bf16.msra.mxu0 0
  %267 = vmatprep.subr.bf16.mxu0 0
  %268 = vmatpush1.bf16.msra.mxu0 0
  %269 = vmatprep.subr.bf16.mxu0 0
  %270 = vmatpush1.bf16.msra.mxu0 0
  %271 = vmatprep.subr.bf16.mxu0 0
  %272 = vmatpush1.bf16.msra.mxu0 0
  %273 = vmatprep.subr.bf16.mxu0 0
  %274 = vmatpush1.bf16.msra.mxu0 0
  %275 = vmatprep.subr.bf16.mxu0 0
  %276 = vmatpush1.bf16.msra.mxu0 0
  %277 = vmatprep.subr.bf16.mxu0 0
  %278 = vmatpush1.bf16.msra.mxu0 0
  %279 = vmatprep.subr.bf16.mxu0 0
  %280 = vmatpush1.bf16.msra.mxu0 0
  %281 = vmatprep.subr.bf16.mxu0 0
  %282 = vmatpush1.bf16.msra.mxu0 0
  %283 = vmatprep.subr.bf16.mxu0 0
  %284 = vmatpush1.bf16.msra.mxu0 0
  %285 = vmatprep.subr.bf16.mxu0 0
  %286 = vmatpush1.bf16.msra.mxu0 0
  %287 = vmatprep.subr.bf16.mxu0 0
  %288 = vmatpush1.bf16.msra.mxu0 0
  %289 = vmatprep.subr.bf16.mxu0 0
  %290 = vmatpush1.bf16.msra.mxu0 0
  %291 = vmatprep.mubr.bf16.mxu0 0
  %292 = vmatmul.mubr.bf16.gmra.mrb[0].mxu0 %v205
  %v293 = vpop.f32.mrb[0].mxu0
  %v294 = vadd.f32 %v245, %v293
  %v295 = vpop.f32.mrb[0].mxu0
  %v296 = vpop.f32.mrb[0].mxu0
  %v297 = vadd.f32 %v248, %v296
  %v298 = vpop.f32.mrb[0].mxu0
  %299 = vmatprep.mubr.bf16.mxu0 0
  %300 = vmatmul.mubr.bf16.gmra.mrb[0].mxu0 %v208
  %v301 = vpop.f32.mrb[0].mxu0
  %v302 = vadd.f32 %v253, %v301
  %v303 = vpop.f32.mrb[0].mxu0
  %v304 = vpop.f32.mrb[0].mxu0
  %v305 = vadd.f32 %v256, %v304
  %v306 = vpop.f32.mrb[0].mxu0
  %307 = vdwg.mxu0
  %v308 = vld [vmem:[%s2] sm:$0x1]
  %v310 = vlaneseq
  %v311 = vshrl.u32 %v310, 7
  %v312 = vsub.s32 0, %v311
  %v313 = vrot.slane %v308, %v312
  %v315 = vmul.f32 %v294, %v313
  %v316 = vmul.f32 %v297, %v313
  %v317 = vmul.f32 %v302, %v313
  %v318 = vmul.f32 %v305, %v313
  %v319 = vld [vmem:[%s3] sm:$0x1]
  %v321 = vlaneseq
  %v322 = vshrl.u32 %v321, 7
  %v323 = vsub.s32 0, %v322
  %v324 = vrot.slane %v319, %v323
  %v326 = vadd.f32 %v315, %v324
  %v327 = vadd.f32 %v316, %v324
  %v328 = vadd.f32 %v317, %v324
  %v329 = vadd.f32 %v318, %v324
  %v330 = vld [vmem:[%s4] sm:$0xf]
  %v331 = vld [vmem:[%s4 + $0x4] sm:$0xf]
  %v332 = vld [vmem:[%s4 + $0x8] sm:$0xf]
  %v333 = vld [vmem:[%s4 + $0xc] sm:$0xf]
  %v334 = vunpack.c.l.bf16 %v330
  %v335 = vunpack.c.l.bf16 %v331
  %v336 = vunpack.c.l.bf16 %v332
  %v337 = vunpack.c.l.bf16 %v333
  %v338 = vadd.f32 %v326, %v334
  %v339 = vadd.f32 %v327, %v335
  %v340 = vadd.f32 %v328, %v336
  %v341 = vadd.f32 %v329, %v337
  %v342 = vmax.f32 %v338, 0.0
  %v343 = vmax.f32 %v339, 0.0
  %v344 = vmax.f32 %v340, 0.0
  %v345 = vmax.f32 %v341, 0.0
  %v346 = vpack.c.bf16 %v343, %v342
  %v347 = vpack.c.bf16 %v345, %v344
  %v350 = vunpack.c.l.b16 %v346
  %v351 = vunpack.c.h.b16 %v346
  %v352 = vunpack.c.l.b16 %v347
  %v353 = vunpack.c.h.b16 %v347
  %v354 = vpack.c.b16 %v350, %v350
  %v355 = vpack.c.b16 %v351, %v351
  %v356 = vpack.c.b16 %v352, %v352
  %v357 = vpack.c.b16 %v353, %v353
  %vm362 = vcmask 257024
  %363 = vst.msk [vmem:[%s5] sm:$0xf] %vm362, %v354
  %364 = vst.msk [vmem:[%s5 + $0x4] sm:$0xf] %vm362, %v355
  %365 = vst.msk [vmem:[%s5 + $0x8] sm:$0xf] %vm362, %v356
  %366 = vst.msk [vmem:[%s5 + $0xc] sm:$0xf] %vm362, %v357
  // Predicated region
  $region22: #{_lambda_.30} parent=0 // pred_check
    _
  $region23: #{_lambda_.30} parent=0 // pred_check_branch
    %368 = sbr.rel (0) target = $region25
  $region24: #{_lambda_.30} parent=0 // pred_region
    _
  $region25: #{_lambda_.30} parent=0 // pred_fallthru
    _
  // Predicated region
  $region26: #{_lambda_.30} parent=0 // pred_check
    _
  $region27: #{_lambda_.30} parent=0 // pred_check_branch
    %370 = sbr.rel (0) target = $region29
  $region28: #{_lambda_.30} parent=0 // pred_region
    _
  $region29: #{_lambda_.30} parent=0 // pred_fallthru
    _

// kernel: _lambda_.31
$region0: #{_lambda_.31}
  #allocation0 [shape = 'u32[]', space=smem, size = 0x4, offset = 0x4, fixed_abs, tag = 'smem constant byte address 0x4 - core index']
  #allocation1 [shape = 'u32[144,128]{1,0:T(1,128)}', space=vmem, size = 0x12000, scoped, tag = 'internal scratch']
  %s0 = inlined_call_operand.vmem [shape: bf16[32,288], index: 0, kind: input, shape index: {}]
  %s1 = inlined_call_operand.vmem [shape: bf16[288,32], index: 1, kind: input, shape index: {}]
  %s2 = inlined_call_operand.vmem [shape: f32[1,32], index: 2, kind: input, shape index: {}]
  %s3 = inlined_call_operand.vmem [shape: f32[1,32], index: 3, kind: input, shape index: {}]
  %s4 = inlined_call_operand.vmem [shape: bf16[32,32], index: 4, kind: output, shape index: {}]
  %s5 = sld [smem:[#allocation0]]
  $region26: #{_lambda_.31} parent=0
    _
  %s7 = ssub.s32 1, %s5
  %s8 = scalar_select 0, %s7, %s5
  // Predicated region
  $region2: #{_lambda_.31} parent=0 // pred_check
    _
  $region3: #{_lambda_.31} parent=0 // pred_check_branch
    %10 = sbr.rel (0) target = $region5
  $region4: #{_lambda_.31} parent=0 // pred_region
    _
  $region5: #{_lambda_.31} parent=0 // pred_fallthru
    _
  // Predicated region
  $region6: #{_lambda_.31} parent=0 // pred_check
    _
  $region7: #{_lambda_.31} parent=0 // pred_check_branch
    %12 = sbr.rel (0) target = $region9
  $region8: #{_lambda_.31} parent=0 // pred_region
    _
  $region9: #{_lambda_.31} parent=0 // pred_fallthru
    _
  // Predicated region
  $region10: #{_lambda_.31} parent=0 // pred_check
    _
  $region11: #{_lambda_.31} parent=0 // pred_check_branch
    %14 = sbr.rel (0) target = $region13
  $region12: #{_lambda_.31} parent=0 // pred_region
    _
  $region13: #{_lambda_.31} parent=0 // pred_fallthru
    _
  // Predicated region
  $region14: #{_lambda_.31} parent=0 // pred_check
    _
  $region15: #{_lambda_.31} parent=0 // pred_check_branch
    %16 = sbr.rel (0) target = $region17
  $region16: #{_lambda_.31} parent=0 // pred_region
    _
  $region17: #{_lambda_.31} parent=0 // pred_fallthru
    _
  %v18 = vld [vmem:[%s0] sm:$0xff]
  %v19 = vld [vmem:[%s0 + $0x8] sm:$0xf]
  %v20 = vld [vmem:[%s0 + $0xc] sm:$0xff]
  %v21 = vld [vmem:[%s0 + $0x14] sm:$0xf]
  %v22 = vld [vmem:[%s0 + $0x18] sm:$0xff]
  %v23 = vld [vmem:[%s0 + $0x20] sm:$0xf]
  %v24 = vld [vmem:[%s0 + $0x24] sm:$0xff]
  %v25 = vld [vmem:[%s0 + $0x2c] sm:$0xf]
  %v26 = vld [vmem:[%s1] sm:$0xf]
  %v27 = vld [vmem:[%s1 + $0x4] sm:$0xf]
  %v28 = vld [vmem:[%s1 + $0x8] sm:$0xf]
  %v29 = vld [vmem:[%s1 + $0xc] sm:$0xf]
  %v30 = vld [vmem:[%s1 + $0x10] sm:$0xf]
  %v31 = vld [vmem:[%s1 + $0x14] sm:$0xf]
  %v32 = vld [vmem:[%s1 + $0x18] sm:$0xf]
  %v33 = vld [vmem:[%s1 + $0x1c] sm:$0xf]
  %v34 = vld [vmem:[%s1 + $0x20] sm:$0xf]
  %v35 = vld [vmem:[%s1 + $0x24] sm:$0xf]
  %v36 = vld [vmem:[%s1 + $0x28] sm:$0xf]
  %v37 = vld [vmem:[%s1 + $0x2c] sm:$0xf]
  %v38 = vld [vmem:[%s1 + $0x30] sm:$0xf]
  %v39 = vld [vmem:[%s1 + $0x34] sm:$0xf]
  %v40 = vld [vmem:[%s1 + $0x38] sm:$0xf]
  %v41 = vld [vmem:[%s1 + $0x3c] sm:$0xf]
  %v42 = vld [vmem:[%s1 + $0x40] sm:$0xf]
  %v43 = vld [vmem:[%s1 + $0x44] sm:$0xf]
  %v44 = vld [vmem:[%s1 + $0x48] sm:$0xf]
  %v45 = vld [vmem:[%s1 + $0x4c] sm:$0xf]
  %v46 = vld [vmem:[%s1 + $0x50] sm:$0xf]
  %v47 = vld [vmem:[%s1 + $0x54] sm:$0xf]
  %v48 = vld [vmem:[%s1 + $0x58] sm:$0xf]
  %v49 = vld [vmem:[%s1 + $0x5c] sm:$0xf]
  %v50 = vld [vmem:[%s1 + $0x60] sm:$0xf]
  %v51 = vld [vmem:[%s1 + $0x64] sm:$0xf]
  %v52 = vld [vmem:[%s1 + $0x68] sm:$0xf]
  %v53 = vld [vmem:[%s1 + $0x6c] sm:$0xf]
  %v54 = vld [vmem:[%s1 + $0x70] sm:$0xf]
  %v55 = vld [vmem:[%s1 + $0x74] sm:$0xf]
  %v56 = vld [vmem:[%s1 + $0x78] sm:$0xf]
  %v57 = vld [vmem:[%s1 + $0x7c] sm:$0xf]
  %v58 = vld [vmem:[%s1 + $0x80] sm:$0xf]
  %v59 = vld [vmem:[%s1 + $0x84] sm:$0xf]
  %v60 = vld [vmem:[%s1 + $0x88] sm:$0xf]
  %v61 = vld [vmem:[%s1 + $0x8c] sm:$0xf]
  %v70 = vunpack.c.l.b16 %v18
  %v71 = vunpack.c.h.b16 %v18
  %v72 = vunpack.c.l.b16 %v19
  %v73 = vunpack.c.l.b16 %v20
  %v74 = vunpack.c.h.b16 %v20
  %v75 = vunpack.c.l.b16 %v21
  %v76 = vunpack.c.l.b16 %v22
  %v77 = vunpack.c.h.b16 %v22
  %v78 = vunpack.c.l.b16 %v23
  %v79 = vunpack.c.l.b16 %v24
  %v80 = vunpack.c.h.b16 %v24
  %v81 = vunpack.c.l.b16 %v25
  %v82 = vpack.c.b16 %v73, %v70
  %v83 = vpack.c.b16 %v74, %v71
  %v84 = vpack.c.b16 %v75, %v72
  %v85 = vpack.c.b16 %v79, %v76
  %v86 = vpack.c.b16 %v80, %v77
  %v87 = vpack.c.b16 %v81, %v78
  %v128 = vunpack.c.l.b16 %v26
  %v129 = vunpack.c.l.b16 %v27
  %v130 = vunpack.c.l.b16 %v28
  %v131 = vunpack.c.l.b16 %v29
  %v132 = vunpack.c.l.b16 %v30
  %v133 = vunpack.c.l.b16 %v31
  %v134 = vunpack.c.l.b16 %v32
  %v135 = vunpack.c.l.b16 %v33
  %v136 = vunpack.c.l.b16 %v34
  %v137 = vunpack.c.l.b16 %v35
  %v138 = vunpack.c.l.b16 %v36
  %v139 = vunpack.c.l.b16 %v37
  %v140 = vunpack.c.l.b16 %v38
  %v141 = vunpack.c.l.b16 %v39
  %v142 = vunpack.c.l.b16 %v40
  %v143 = vunpack.c.l.b16 %v41
  %v144 = vunpack.c.l.b16 %v42
  %v145 = vunpack.c.l.b16 %v43
  %v146 = vunpack.c.l.b16 %v44
  %v147 = vunpack.c.l.b16 %v45
  %v148 = vunpack.c.l.b16 %v46
  %v149 = vunpack.c.l.b16 %v47
  %v150 = vunpack.c.l.b16 %v48
  %v151 = vunpack.c.l.b16 %v49
  %v152 = vunpack.c.l.b16 %v50
  %v153 = vunpack.c.l.b16 %v51
  %v154 = vunpack.c.l.b16 %v52
  %v155 = vunpack.c.l.b16 %v53
  %v156 = vunpack.c.l.b16 %v54
  %v157 = vunpack.c.l.b16 %v55
  %v158 = vunpack.c.l.b16 %v56
  %v159 = vunpack.c.l.b16 %v57
  %v160 = vunpack.c.l.b16 %v58
  %v161 = vunpack.c.l.b16 %v59
  %v162 = vunpack.c.l.b16 %v60
  %v163 = vunpack.c.l.b16 %v61
  %v164 = vpack.c.b16 %v129, %v128
  %v165 = vpack.c.b16 %v131, %v130
  %v166 = vpack.c.b16 %v133, %v132
  %v167 = vpack.c.b16 %v135, %v134
  %v168 = vpack.c.b16 %v137, %v136
  %v169 = vpack.c.b16 %v139, %v138
  %v170 = vpack.c.b16 %v141, %v140
  %v171 = vpack.c.b16 %v143, %v142
  %v172 = vpack.c.b16 %v145, %v144
  %v173 = vpack.c.b16 %v147, %v146
  %v174 = vpack.c.b16 %v149, %v148
  %v175 = vpack.c.b16 %v151, %v150
  %v176 = vpack.c.b16 %v153, %v152
  %v177 = vpack.c.b16 %v155, %v154
  %v178 = vpack.c.b16 %v157, %v156
  %v179 = vpack.c.b16 %v159, %v158
  %v180 = vpack.c.b16 %v161, %v160
  %v181 = vpack.c.b16 %v163, %v162
  %vm200 = vcmask 261120
  %v202 = vsel %vm200, %v84, 0
  %v205 = vsel %vm200, %v87, 0
  %207 = vmatprep.subr.bf16.mxu0 0
  %208 = vmatpush1.bf16.msra.mxu0 %v164
  %209 = vmatprep.subr.bf16.mxu0 0
  %210 = vmatpush1.bf16.msra.mxu0 %v165
  %211 = vmatprep.subr.bf16.mxu0 0
  %212 = vmatpush1.bf16.msra.mxu0 %v166
  %213 = vmatprep.subr.bf16.mxu0 0
  %214 = vmatpush1.bf16.msra.mxu0 %v167
  %215 = vmatprep.subr.bf16.mxu0 0
  %216 = vmatpush1.bf16.msra.mxu0 %v168
  %217 = vmatprep.subr.bf16.mxu0 0
  %218 = vmatpush1.bf16.msra.mxu0 %v169
  %219 = vmatprep.subr.bf16.mxu0 0
  %220 = vmatpush1.bf16.msra.mxu0 %v170
  %221 = vmatprep.subr.bf16.mxu0 0
  %222 = vmatpush1.bf16.msra.mxu0 %v171
  %223 = vmatprep.subr.bf16.mxu0 0
  %224 = vmatpush1.bf16.msra.mxu0 %v172
  %225 = vmatprep.subr.bf16.mxu0 0
  %226 = vmatpush1.bf16.msra.mxu0 %v173
  %227 = vmatprep.subr.bf16.mxu0 0
  %228 = vmatpush1.bf16.msra.mxu0 %v174
  %229 = vmatprep.subr.bf16.mxu0 0
  %230 = vmatpush1.bf16.msra.mxu0 %v175
  %231 = vmatprep.subr.bf16.mxu0 0
  %232 = vmatpush1.bf16.msra.mxu0 %v176
  %233 = vmatprep.subr.bf16.mxu0 0
  %234 = vmatpush1.bf16.msra.mxu0 %v177
  %235 = vmatprep.subr.bf16.mxu0 0
  %236 = vmatpush1.bf16.msra.mxu0 %v178
  %237 = vmatprep.subr.bf16.mxu0 0
  %238 = vmatpush1.bf16.msra.mxu0 %v179
  %239 = vmatprep.mubr.bf16.mxu0 %v83
  %240 = vmatmul.mubr.bf16.gmra.mrb[0].mxu0 %v82
  %v241 = vpop.f32.mrb[0].mxu0
  %v242 = vadd.f32 0.0, %v241
  %v243 = vpop.f32.mrb[0].mxu0
  %v244 = vpop.f32.mrb[0].mxu0
  %v245 = vadd.f32 0.0, %v244
  %v246 = vpop.f32.mrb[0].mxu0
  %247 = vmatprep.mubr.bf16.mxu0 %v86
  %248 = vmatmul.mubr.bf16.gmra.mrb[0].mxu0 %v85
  %v249 = vpop.f32.mrb[0].mxu0
  %v250 = vadd.f32 0.0, %v249
  %v251 = vpop.f32.mrb[0].mxu0
  %v252 = vpop.f32.mrb[0].mxu0
  %v253 = vadd.f32 0.0, %v252
  %v254 = vpop.f32.mrb[0].mxu0
  %255 = vdwg.mxu0
  %256 = vmatprep.subr.bf16.mxu0 0
  %257 = vmatpush1.bf16.msra.mxu0 %v180
  %258 = vmatprep.subr.bf16.mxu0 0
  %259 = vmatpush1.bf16.msra.mxu0 %v181
  %260 = vmatprep.subr.bf16.mxu0 0
  %261 = vmatpush1.bf16.msra.mxu0 0
  %262 = vmatprep.subr.bf16.mxu0 0
  %263 = vmatpush1.bf16.msra.mxu0 0
  %264 = vmatprep.subr.bf16.mxu0 0
  %265 = vmatpush1.bf16.msra.mxu0 0
  %266 = vmatprep.subr.bf16.mxu0 0
  %267 = vmatpush1.bf16.msra.mxu0 0
  %268 = vmatprep.subr.bf16.mxu0 0
  %269 = vmatpush1.bf16.msra.mxu0 0
  %270 = vmatprep.subr.bf16.mxu0 0
  %271 = vmatpush1.bf16.msra.mxu0 0
  %272 = vmatprep.subr.bf16.mxu0 0
  %273 = vmatpush1.bf16.msra.mxu0 0
  %274 = vmatprep.subr.bf16.mxu0 0
  %275 = vmatpush1.bf16.msra.mxu0 0
  %276 = vmatprep.subr.bf16.mxu0 0
  %277 = vmatpush1.bf16.msra.mxu0 0
  %278 = vmatprep.subr.bf16.mxu0 0
  %279 = vmatpush1.bf16.msra.mxu0 0
  %280 = vmatprep.subr.bf16.mxu0 0
  %281 = vmatpush1.bf16.msra.mxu0 0
  %282 = vmatprep.subr.bf16.mxu0 0
  %283 = vmatpush1.bf16.msra.mxu0 0
  %284 = vmatprep.subr.bf16.mxu0 0
  %285 = vmatpush1.bf16.msra.mxu0 0
  %286 = vmatprep.subr.bf16.mxu0 0
  %287 = vmatpush1.bf16.msra.mxu0 0
  %288 = vmatprep.mubr.bf16.mxu0 0
  %289 = vmatmul.mubr.bf16.gmra.mrb[0].mxu0 %v202
  %v290 = vpop.f32.mrb[0].mxu0
  %v291 = vadd.f32 %v242, %v290
  %v292 = vpop.f32.mrb[0].mxu0
  %v293 = vpop.f32.mrb[0].mxu0
  %v294 = vadd.f32 %v245, %v293
  %v295 = vpop.f32.mrb[0].mxu0
  %296 = vmatprep.mubr.bf16.mxu0 0
  %297 = vmatmul.mubr.bf16.gmra.mrb[0].mxu0 %v205
  %v298 = vpop.f32.mrb[0].mxu0
  %v299 = vadd.f32 %v250, %v298
  %v300 = vpop.f32.mrb[0].mxu0
  %v301 = vpop.f32.mrb[0].mxu0
  %v302 = vadd.f32 %v253, %v301
  %v303 = vpop.f32.mrb[0].mxu0
  %304 = vdwg.mxu0
  %v305 = vld [vmem:[%s2] sm:$0x1]
  %v307 = vlaneseq
  %v308 = vshrl.u32 %v307, 7
  %v309 = vsub.s32 0, %v308
  %v310 = vrot.slane %v305, %v309
  %v312 = vmul.f32 %v291, %v310
  %v313 = vmul.f32 %v294, %v310
  %v314 = vmul.f32 %v299, %v310
  %v315 = vmul.f32 %v302, %v310
  %v316 = vld [vmem:[%s3] sm:$0x1]
  %v318 = vlaneseq
  %v319 = vshrl.u32 %v318, 7
  %v320 = vsub.s32 0, %v319
  %v321 = vrot.slane %v316, %v320
  %v323 = vadd.f32 %v312, %v321
  %v324 = vadd.f32 %v313, %v321
  %v325 = vadd.f32 %v314, %v321
  %v326 = vadd.f32 %v315, %v321
  %v327 = vmax.f32 %v323, 0.0
  %v328 = vmax.f32 %v324, 0.0
  %v329 = vmax.f32 %v325, 0.0
  %v330 = vmax.f32 %v326, 0.0
  %v331 = vpack.c.bf16 %v328, %v327
  %v332 = vpack.c.bf16 %v330, %v329
  %v335 = vunpack.c.l.b16 %v331
  %v336 = vunpack.c.h.b16 %v331
  %v337 = vunpack.c.l.b16 %v332
  %v338 = vunpack.c.h.b16 %v332
  %v339 = vpack.c.b16 %v335, %v335
  %v340 = vpack.c.b16 %v336, %v336
  %v341 = vpack.c.b16 %v337, %v337
  %v342 = vpack.c.b16 %v338, %v338
  %vm347 = vcmask 257024
  %348 = vst.msk [vmem:[%s4] sm:$0xf] %vm347, %v339
  %349 = vst.msk [vmem:[%s4 + $0x4] sm:$0xf] %vm347, %v340
  %350 = vst.msk [vmem:[%s4 + $0x8] sm:$0xf] %vm347, %v341
  %351 = vst.msk [vmem:[%s4 + $0xc] sm:$0xf] %vm347, %v342
  // Predicated region
  $region18: #{_lambda_.31} parent=0 // pred_check
    _
  $region19: #{_lambda_.31} parent=0 // pred_check_branch
    %353 = sbr.rel (0) target = $region21
  $region20: #{_lambda_.31} parent=0 // pred_region
    _
  $region21: #{_lambda_.31} parent=0 // pred_fallthru
    _
  // Predicated region
  $region22: #{_lambda_.31} parent=0 // pred_check
    _
  $region23: #{_lambda_.31} parent=0 // pred_check_branch
    %355 = sbr.rel (0) target = $region25
  $region24: #{_lambda_.31} parent=0 // pred_region
    _
  $region25: #{_lambda_.31} parent=0 // pred_fallthru
    _

// kernel: _lambda_.34
$region0: #{_lambda_.34}
  #allocation0 [shape = 'u32[]', space=smem, size = 0x4, offset = 0x4, fixed_abs, tag = 'smem constant byte address 0x4 - core index']
  #allocation1 [shape = 'u32[144,128]{1,0:T(1,128)}', space=vmem, size = 0x12000, scoped, tag = 'internal scratch']
  %s0 = inlined_call_operand.vmem [shape: bf16[8,288], index: 0, kind: input, shape index: {}]
  %s1 = inlined_call_operand.vmem [shape: bf16[288,64], index: 1, kind: input, shape index: {}]
  %s2 = inlined_call_operand.vmem [shape: f32[1,64], index: 2, kind: input, shape index: {}]
  %s3 = inlined_call_operand.vmem [shape: f32[1,64], index: 3, kind: input, shape index: {}]
  %s4 = inlined_call_operand.vmem [shape: bf16[8,64], index: 4, kind: output, shape index: {}]
  %s5 = sld [smem:[#allocation0]]
  $region26: #{_lambda_.34} parent=0
    _
  %s7 = ssub.s32 1, %s5
  %s8 = scalar_select 0, %s7, %s5
  // Predicated region
  $region2: #{_lambda_.34} parent=0 // pred_check
    _
  $region3: #{_lambda_.34} parent=0 // pred_check_branch
    %10 = sbr.rel (0) target = $region5
  $region4: #{_lambda_.34} parent=0 // pred_region
    _
  $region5: #{_lambda_.34} parent=0 // pred_fallthru
    _
  // Predicated region
  $region6: #{_lambda_.34} parent=0 // pred_check
    _
  $region7: #{_lambda_.34} parent=0 // pred_check_branch
    %12 = sbr.rel (0) target = $region9
  $region8: #{_lambda_.34} parent=0 // pred_region
    _
  $region9: #{_lambda_.34} parent=0 // pred_fallthru
    _
  // Predicated region
  $region10: #{_lambda_.34} parent=0 // pred_check
    _
  $region11: #{_lambda_.34} parent=0 // pred_check_branch
    %14 = sbr.rel (0) target = $region13
  $region12: #{_lambda_.34} parent=0 // pred_region
    _
  $region13: #{_lambda_.34} parent=0 // pred_fallthru
    _
  // Predicated region
  $region14: #{_lambda_.34} parent=0 // pred_check
    _
  $region15: #{_lambda_.34} parent=0 // pred_check_branch
    %16 = sbr.rel (0) target = $region17
  $region16: #{_lambda_.34} parent=0 // pred_region
    _
  $region17: #{_lambda_.34} parent=0 // pred_fallthru
    _
  %v18 = vld [vmem:[%s0] sm:$0xff]
  %v19 = vld [vmem:[%s0 + $0x8] sm:$0xf]
  %v20 = vld [vmem:[%s1] sm:$0xf]
  %v21 = vld [vmem:[%s1 + $0x4] sm:$0xf]
  %v22 = vld [vmem:[%s1 + $0x8] sm:$0xf]
  %v23 = vld [vmem:[%s1 + $0xc] sm:$0xf]
  %v24 = vld [vmem:[%s1 + $0x10] sm:$0xf]
  %v25 = vld [vmem:[%s1 + $0x14] sm:$0xf]
  %v26 = vld [vmem:[%s1 + $0x18] sm:$0xf]
  %v27 = vld [vmem:[%s1 + $0x1c] sm:$0xf]
  %v28 = vld [vmem:[%s1 + $0x20] sm:$0xf]
  %v29 = vld [vmem:[%s1 + $0x24] sm:$0xf]
  %v30 = vld [vmem:[%s1 + $0x28] sm:$0xf]
  %v31 = vld [vmem:[%s1 + $0x2c] sm:$0xf]
  %v32 = vld [vmem:[%s1 + $0x30] sm:$0xf]
  %v33 = vld [vmem:[%s1 + $0x34] sm:$0xf]
  %v34 = vld [vmem:[%s1 + $0x38] sm:$0xf]
  %v35 = vld [vmem:[%s1 + $0x3c] sm:$0xf]
  %v36 = vld [vmem:[%s1 + $0x40] sm:$0xf]
  %v37 = vld [vmem:[%s1 + $0x44] sm:$0xf]
  %v38 = vld [vmem:[%s1 + $0x48] sm:$0xf]
  %v39 = vld [vmem:[%s1 + $0x4c] sm:$0xf]
  %v40 = vld [vmem:[%s1 + $0x50] sm:$0xf]
  %v41 = vld [vmem:[%s1 + $0x54] sm:$0xf]
  %v42 = vld [vmem:[%s1 + $0x58] sm:$0xf]
  %v43 = vld [vmem:[%s1 + $0x5c] sm:$0xf]
  %v44 = vld [vmem:[%s1 + $0x60] sm:$0xf]
  %v45 = vld [vmem:[%s1 + $0x64] sm:$0xf]
  %v46 = vld [vmem:[%s1 + $0x68] sm:$0xf]
  %v47 = vld [vmem:[%s1 + $0x6c] sm:$0xf]
  %v48 = vld [vmem:[%s1 + $0x70] sm:$0xf]
  %v49 = vld [vmem:[%s1 + $0x74] sm:$0xf]
  %v50 = vld [vmem:[%s1 + $0x78] sm:$0xf]
  %v51 = vld [vmem:[%s1 + $0x7c] sm:$0xf]
  %v52 = vld [vmem:[%s1 + $0x80] sm:$0xf]
  %v53 = vld [vmem:[%s1 + $0x84] sm:$0xf]
  %v54 = vld [vmem:[%s1 + $0x88] sm:$0xf]
  %v55 = vld [vmem:[%s1 + $0x8c] sm:$0xf]
  %v58 = vunpack.c.l.b16 %v18
  %v59 = vunpack.c.h.b16 %v18
  %v60 = vunpack.c.l.b16 %v19
  %v61 = vpack.c.b16 %v58, %v58
  %v62 = vpack.c.b16 %v59, %v59
  %v63 = vpack.c.b16 %v60, %v60
  %v102 = vunpack.c.l.b16 %v20
  %v103 = vunpack.c.l.b16 %v21
  %v104 = vunpack.c.l.b16 %v22
  %v105 = vunpack.c.l.b16 %v23
  %v106 = vunpack.c.l.b16 %v24
  %v107 = vunpack.c.l.b16 %v25
  %v108 = vunpack.c.l.b16 %v26
  %v109 = vunpack.c.l.b16 %v27
  %v110 = vunpack.c.l.b16 %v28
  %v111 = vunpack.c.l.b16 %v29
  %v112 = vunpack.c.l.b16 %v30
  %v113 = vunpack.c.l.b16 %v31
  %v114 = vunpack.c.l.b16 %v32
  %v115 = vunpack.c.l.b16 %v33
  %v116 = vunpack.c.l.b16 %v34
  %v117 = vunpack.c.l.b16 %v35
  %v118 = vunpack.c.l.b16 %v36
  %v119 = vunpack.c.l.b16 %v37
  %v120 = vunpack.c.l.b16 %v38
  %v121 = vunpack.c.l.b16 %v39
  %v122 = vunpack.c.l.b16 %v40
  %v123 = vunpack.c.l.b16 %v41
  %v124 = vunpack.c.l.b16 %v42
  %v125 = vunpack.c.l.b16 %v43
  %v126 = vunpack.c.l.b16 %v44
  %v127 = vunpack.c.l.b16 %v45
  %v128 = vunpack.c.l.b16 %v46
  %v129 = vunpack.c.l.b16 %v47
  %v130 = vunpack.c.l.b16 %v48
  %v131 = vunpack.c.l.b16 %v49
  %v132 = vunpack.c.l.b16 %v50
  %v133 = vunpack.c.l.b16 %v51
  %v134 = vunpack.c.l.b16 %v52
  %v135 = vunpack.c.l.b16 %v53
  %v136 = vunpack.c.l.b16 %v54
  %v137 = vunpack.c.l.b16 %v55
  %v138 = vpack.c.b16 %v103, %v102
  %v139 = vpack.c.b16 %v105, %v104
  %v140 = vpack.c.b16 %v107, %v106
  %v141 = vpack.c.b16 %v109, %v108
  %v142 = vpack.c.b16 %v111, %v110
  %v143 = vpack.c.b16 %v113, %v112
  %v144 = vpack.c.b16 %v115, %v114
  %v145 = vpack.c.b16 %v117, %v116
  %v146 = vpack.c.b16 %v119, %v118
  %v147 = vpack.c.b16 %v121, %v120
  %v148 = vpack.c.b16 %v123, %v122
  %v149 = vpack.c.b16 %v125, %v124
  %v150 = vpack.c.b16 %v127, %v126
  %v151 = vpack.c.b16 %v129, %v128
  %v152 = vpack.c.b16 %v131, %v130
  %v153 = vpack.c.b16 %v133, %v132
  %v154 = vpack.c.b16 %v135, %v134
  %v155 = vpack.c.b16 %v137, %v136
  %vm174 = vcmask 261120
  %v176 = vsel %vm174, %v63, 0
  %178 = vmatprep.subr.bf16.mxu0 0
  %179 = vmatpush1.bf16.msra.mxu0 %v138
  %180 = vmatprep.subr.bf16.mxu0 0
  %181 = vmatpush1.bf16.msra.mxu0 %v139
  %182 = vmatprep.subr.bf16.mxu0 0
  %183 = vmatpush1.bf16.msra.mxu0 %v140
  %184 = vmatprep.subr.bf16.mxu0 0
  %185 = vmatpush1.bf16.msra.mxu0 %v141
  %186 = vmatprep.subr.bf16.mxu0 0
  %187 = vmatpush1.bf16.msra.mxu0 %v142
  %188 = vmatprep.subr.bf16.mxu0 0
  %189 = vmatpush1.bf16.msra.mxu0 %v143
  %190 = vmatprep.subr.bf16.mxu0 0
  %191 = vmatpush1.bf16.msra.mxu0 %v144
  %192 = vmatprep.subr.bf16.mxu0 0
  %193 = vmatpush1.bf16.msra.mxu0 %v145
  %194 = vmatprep.subr.bf16.mxu0 0
  %195 = vmatpush1.bf16.msra.mxu0 %v146
  %196 = vmatprep.subr.bf16.mxu0 0
  %197 = vmatpush1.bf16.msra.mxu0 %v147
  %198 = vmatprep.subr.bf16.mxu0 0
  %199 = vmatpush1.bf16.msra.mxu0 %v148
  %200 = vmatprep.subr.bf16.mxu0 0
  %201 = vmatpush1.bf16.msra.mxu0 %v149
  %202 = vmatprep.subr.bf16.mxu0 0
  %203 = vmatpush1.bf16.msra.mxu0 %v150
  %204 = vmatprep.subr.bf16.mxu0 0
  %205 = vmatpush1.bf16.msra.mxu0 %v151
  %206 = vmatprep.subr.bf16.mxu0 0
  %207 = vmatpush1.bf16.msra.mxu0 %v152
  %208 = vmatprep.subr.bf16.mxu0 0
  %209 = vmatpush1.bf16.msra.mxu0 %v153
  %210 = vmatprep.mubr.bf16.mxu0 %v62
  %211 = vmatmul.mubr.bf16.gmra.mrb[0].mxu0 %v61
  %v212 = vpop.f32.mrb[0].mxu0
  %v213 = vadd.f32 0.0, %v212
  %v214 = vpop.f32.mrb[0].mxu0
  %v215 = vpop.f32.mrb[0].mxu0
  %v216 = vpop.f32.mrb[0].mxu0
  %217 = vdwg.mxu0
  %218 = vmatprep.subr.bf16.mxu0 0
  %219 = vmatpush1.bf16.msra.mxu0 %v154
  %220 = vmatprep.subr.bf16.mxu0 0
  %221 = vmatpush1.bf16.msra.mxu0 %v155
  %222 = vmatprep.subr.bf16.mxu0 0
  %223 = vmatpush1.bf16.msra.mxu0 0
  %224 = vmatprep.subr.bf16.mxu0 0
  %225 = vmatpush1.bf16.msra.mxu0 0
  %226 = vmatprep.subr.bf16.mxu0 0
  %227 = vmatpush1.bf16.msra.mxu0 0
  %228 = vmatprep.subr.bf16.mxu0 0
  %229 = vmatpush1.bf16.msra.mxu0 0
  %230 = vmatprep.subr.bf16.mxu0 0
  %231 = vmatpush1.bf16.msra.mxu0 0
  %232 = vmatprep.subr.bf16.mxu0 0
  %233 = vmatpush1.bf16.msra.mxu0 0
  %234 = vmatprep.subr.bf16.mxu0 0
  %235 = vmatpush1.bf16.msra.mxu0 0
  %236 = vmatprep.subr.bf16.mxu0 0
  %237 = vmatpush1.bf16.msra.mxu0 0
  %238 = vmatprep.subr.bf16.mxu0 0
  %239 = vmatpush1.bf16.msra.mxu0 0
  %240 = vmatprep.subr.bf16.mxu0 0
  %241 = vmatpush1.bf16.msra.mxu0 0
  %242 = vmatprep.subr.bf16.mxu0 0
  %243 = vmatpush1.bf16.msra.mxu0 0
  %244 = vmatprep.subr.bf16.mxu0 0
  %245 = vmatpush1.bf16.msra.mxu0 0
  %246 = vmatprep.subr.bf16.mxu0 0
  %247 = vmatpush1.bf16.msra.mxu0 0
  %248 = vmatprep.subr.bf16.mxu0 0
  %249 = vmatpush1.bf16.msra.mxu0 0
  %250 = vmatprep.mubr.bf16.mxu0 0
  %251 = vmatmul.mubr.bf16.gmra.mrb[0].mxu0 %v176
  %v252 = vpop.f32.mrb[0].mxu0
  %v253 = vadd.f32 %v213, %v252
  %v254 = vpop.f32.mrb[0].mxu0
  %v255 = vpop.f32.mrb[0].mxu0
  %v256 = vpop.f32.mrb[0].mxu0
  %257 = vdwg.mxu0
  %v258 = vld [vmem:[%s2] sm:$0x1]
  %v260 = vlaneseq
  %v261 = vshrl.u32 %v260, 7
  %v262 = vsub.s32 0, %v261
  %v263 = vrot.slane %v258, %v262
  %v265 = vmul.f32 %v253, %v263
  %v266 = vld [vmem:[%s3] sm:$0x1]
  %v268 = vlaneseq
  %v269 = vshrl.u32 %v268, 7
  %v270 = vsub.s32 0, %v269
  %v271 = vrot.slane %v266, %v270
  %v273 = vadd.f32 %v265, %v271
  %v274 = vmax.f32 %v273, 0.0
  %v275 = vpack.c.bf16 %v274, %v274
  %vm276 = vcmask 519168
  %277 = vst.msk [vmem:[%s4] sm:$0xf] %vm276, %v275
  // Predicated region
  $region18: #{_lambda_.34} parent=0 // pred_check
    _
  $region19: #{_lambda_.34} parent=0 // pred_check_branch
    %279 = sbr.rel (0) target = $region21
  $region20: #{_lambda_.34} parent=0 // pred_region
    _
  $region21: #{_lambda_.34} parent=0 // pred_fallthru
    _
  // Predicated region
  $region22: #{_lambda_.34} parent=0 // pred_check
    _
  $region23: #{_lambda_.34} parent=0 // pred_check_branch
    %281 = sbr.rel (0) target = $region25
  $region24: #{_lambda_.34} parent=0 // pred_region
    _
  $region25: #{_lambda_.34} parent=0 // pred_fallthru
    _

// kernel: _lambda_.35
$region0: #{_lambda_.35}
  #allocation0 [shape = 'u32[]', space=smem, size = 0x4, offset = 0x4, fixed_abs, tag = 'smem constant byte address 0x4 - core index']
  #allocation1 [shape = 'u32[144,128]{1,0:T(1,128)}', space=vmem, size = 0x12000, scoped, tag = 'internal scratch']
  %s0 = inlined_call_operand.vmem [shape: bf16[8,576], index: 0, kind: input, shape index: {}]
  %s1 = inlined_call_operand.vmem [shape: bf16[576,64], index: 1, kind: input, shape index: {}]
  %s2 = inlined_call_operand.vmem [shape: f32[1,64], index: 2, kind: input, shape index: {}]
  %s3 = inlined_call_operand.vmem [shape: f32[1,64], index: 3, kind: input, shape index: {}]
  %s4 = inlined_call_operand.vmem [shape: bf16[8,64], index: 4, kind: input, shape index: {}]
  %s5 = inlined_call_operand.vmem [shape: bf16[8,64], index: 5, kind: output, shape index: {}]
  %s6 = sld [smem:[#allocation0]]
  $region30: #{_lambda_.35} parent=0
    _
  %s8 = ssub.s32 1, %s6
  %s9 = scalar_select 0, %s8, %s6
  // Predicated region
  $region2: #{_lambda_.35} parent=0 // pred_check
    _
  $region3: #{_lambda_.35} parent=0 // pred_check_branch
    %11 = sbr.rel (0) target = $region5
  $region4: #{_lambda_.35} parent=0 // pred_region
    _
  $region5: #{_lambda_.35} parent=0 // pred_fallthru
    _
  // Predicated region
  $region6: #{_lambda_.35} parent=0 // pred_check
    _
  $region7: #{_lambda_.35} parent=0 // pred_check_branch
    %13 = sbr.rel (0) target = $region9
  $region8: #{_lambda_.35} parent=0 // pred_region
    _
  $region9: #{_lambda_.35} parent=0 // pred_fallthru
    _
  // Predicated region
  $region10: #{_lambda_.35} parent=0 // pred_check
    _
  $region11: #{_lambda_.35} parent=0 // pred_check_branch
    %15 = sbr.rel (0) target = $region13
  $region12: #{_lambda_.35} parent=0 // pred_region
    _
  $region13: #{_lambda_.35} parent=0 // pred_fallthru
    _
  // Predicated region
  $region14: #{_lambda_.35} parent=0 // pred_check
    _
  $region15: #{_lambda_.35} parent=0 // pred_check_branch
    %17 = sbr.rel (0) target = $region17
  $region16: #{_lambda_.35} parent=0 // pred_region
    _
  $region17: #{_lambda_.35} parent=0 // pred_fallthru
    _
  // Predicated region
  $region18: #{_lambda_.35} parent=0 // pred_check
    _
  $region19: #{_lambda_.35} parent=0 // pred_check_branch
    %19 = sbr.rel (0) target = $region21
  $region20: #{_lambda_.35} parent=0 // pred_region
    _
  $region21: #{_lambda_.35} parent=0 // pred_fallthru
    _
  %v21 = vld [vmem:[%s0] sm:$0xff]
  %v22 = vld [vmem:[%s0 + $0x8] sm:$0xff]
  %v23 = vld [vmem:[%s0 + $0x10] sm:$0xf]
  %v24 = vld [vmem:[%s1] sm:$0xf]
  %v25 = vld [vmem:[%s1 + $0x4] sm:$0xf]
  %v26 = vld [vmem:[%s1 + $0x8] sm:$0xf]
  %v27 = vld [vmem:[%s1 + $0xc] sm:$0xf]
  %v28 = vld [vmem:[%s1 + $0x10] sm:$0xf]
  %v29 = vld [vmem:[%s1 + $0x14] sm:$0xf]
  %v30 = vld [vmem:[%s1 + $0x18] sm:$0xf]
  %v31 = vld [vmem:[%s1 + $0x1c] sm:$0xf]
  %v32 = vld [vmem:[%s1 + $0x20] sm:$0xf]
  %v33 = vld [vmem:[%s1 + $0x24] sm:$0xf]
  %v34 = vld [vmem:[%s1 + $0x28] sm:$0xf]
  %v35 = vld [vmem:[%s1 + $0x2c] sm:$0xf]
  %v36 = vld [vmem:[%s1 + $0x30] sm:$0xf]
  %v37 = vld [vmem:[%s1 + $0x34] sm:$0xf]
  %v38 = vld [vmem:[%s1 + $0x38] sm:$0xf]
  %v39 = vld [vmem:[%s1 + $0x3c] sm:$0xf]
  %v40 = vld [vmem:[%s1 + $0x40] sm:$0xf]
  %v41 = vld [vmem:[%s1 + $0x44] sm:$0xf]
  %v42 = vld [vmem:[%s1 + $0x48] sm:$0xf]
  %v43 = vld [vmem:[%s1 + $0x4c] sm:$0xf]
  %v44 = vld [vmem:[%s1 + $0x50] sm:$0xf]
  %v45 = vld [vmem:[%s1 + $0x54] sm:$0xf]
  %v46 = vld [vmem:[%s1 + $0x58] sm:$0xf]
  %v47 = vld [vmem:[%s1 + $0x5c] sm:$0xf]
  %v48 = vld [vmem:[%s1 + $0x60] sm:$0xf]
  %v49 = vld [vmem:[%s1 + $0x64] sm:$0xf]
  %v50 = vld [vmem:[%s1 + $0x68] sm:$0xf]
  %v51 = vld [vmem:[%s1 + $0x6c] sm:$0xf]
  %v52 = vld [vmem:[%s1 + $0x70] sm:$0xf]
  %v53 = vld [vmem:[%s1 + $0x74] sm:$0xf]
  %v54 = vld [vmem:[%s1 + $0x78] sm:$0xf]
  %v55 = vld [vmem:[%s1 + $0x7c] sm:$0xf]
  %v56 = vld [vmem:[%s1 + $0x80] sm:$0xf]
  %v57 = vld [vmem:[%s1 + $0x84] sm:$0xf]
  %v58 = vld [vmem:[%s1 + $0x88] sm:$0xf]
  %v59 = vld [vmem:[%s1 + $0x8c] sm:$0xf]
  %v60 = vld [vmem:[%s1 + $0x90] sm:$0xf]
  %v61 = vld [vmem:[%s1 + $0x94] sm:$0xf]
  %v62 = vld [vmem:[%s1 + $0x98] sm:$0xf]
  %v63 = vld [vmem:[%s1 + $0x9c] sm:$0xf]
  %v64 = vld [vmem:[%s1 + $0xa0] sm:$0xf]
  %v65 = vld [vmem:[%s1 + $0xa4] sm:$0xf]
  %v66 = vld [vmem:[%s1 + $0xa8] sm:$0xf]
  %v67 = vld [vmem:[%s1 + $0xac] sm:$0xf]
  %v68 = vld [vmem:[%s1 + $0xb0] sm:$0xf]
  %v69 = vld [vmem:[%s1 + $0xb4] sm:$0xf]
  %v70 = vld [vmem:[%s1 + $0xb8] sm:$0xf]
  %v71 = vld [vmem:[%s1 + $0xbc] sm:$0xf]
  %v72 = vld [vmem:[%s1 + $0xc0] sm:$0xf]
  %v73 = vld [vmem:[%s1 + $0xc4] sm:$0xf]
  %v74 = vld [vmem:[%s1 + $0xc8] sm:$0xf]
  %v75 = vld [vmem:[%s1 + $0xcc] sm:$0xf]
  %v76 = vld [vmem:[%s1 + $0xd0] sm:$0xf]
  %v77 = vld [vmem:[%s1 + $0xd4] sm:$0xf]
  %v78 = vld [vmem:[%s1 + $0xd8] sm:$0xf]
  %v79 = vld [vmem:[%s1 + $0xdc] sm:$0xf]
  %v80 = vld [vmem:[%s1 + $0xe0] sm:$0xf]
  %v81 = vld [vmem:[%s1 + $0xe4] sm:$0xf]
  %v82 = vld [vmem:[%s1 + $0xe8] sm:$0xf]
  %v83 = vld [vmem:[%s1 + $0xec] sm:$0xf]
  %v84 = vld [vmem:[%s1 + $0xf0] sm:$0xf]
  %v85 = vld [vmem:[%s1 + $0xf4] sm:$0xf]
  %v86 = vld [vmem:[%s1 + $0xf8] sm:$0xf]
  %v87 = vld [vmem:[%s1 + $0xfc] sm:$0xf]
  %v88 = vld [vmem:[%s1 + $0x100] sm:$0xf]
  %v89 = vld [vmem:[%s1 + $0x104] sm:$0xf]
  %v90 = vld [vmem:[%s1 + $0x108] sm:$0xf]
  %v91 = vld [vmem:[%s1 + $0x10c] sm:$0xf]
  %v92 = vld [vmem:[%s1 + $0x110] sm:$0xf]
  %v93 = vld [vmem:[%s1 + $0x114] sm:$0xf]
  %v94 = vld [vmem:[%s1 + $0x118] sm:$0xf]
  %v95 = vld [vmem:[%s1 + $0x11c] sm:$0xf]
  %v99 = vunpack.c.l.b16 %v21
  %v100 = vunpack.c.h.b16 %v21
  %v101 = vunpack.c.l.b16 %v22
  %v102 = vunpack.c.h.b16 %v22
  %v103 = vunpack.c.l.b16 %v23
  %v104 = vpack.c.b16 %v99, %v99
  %v105 = vpack.c.b16 %v100, %v100
  %v106 = vpack.c.b16 %v101, %v101
  %v107 = vpack.c.b16 %v102, %v102
  %v108 = vpack.c.b16 %v103, %v103
  %v185 = vunpack.c.l.b16 %v24
  %v186 = vunpack.c.l.b16 %v25
  %v187 = vunpack.c.l.b16 %v26
  %v188 = vunpack.c.l.b16 %v27
  %v189 = vunpack.c.l.b16 %v28
  %v190 = vunpack.c.l.b16 %v29
  %v191 = vunpack.c.l.b16 %v30
  %v192 = vunpack.c.l.b16 %v31
  %v193 = vunpack.c.l.b16 %v32
  %v194 = vunpack.c.l.b16 %v33
  %v195 = vunpack.c.l.b16 %v34
  %v196 = vunpack.c.l.b16 %v35
  %v197 = vunpack.c.l.b16 %v36
  %v198 = vunpack.c.l.b16 %v37
  %v199 = vunpack.c.l.b16 %v38
  %v200 = vunpack.c.l.b16 %v39
  %v201 = vunpack.c.l.b16 %v40
  %v202 = vunpack.c.l.b16 %v41
  %v203 = vunpack.c.l.b16 %v42
  %v204 = vunpack.c.l.b16 %v43
  %v205 = vunpack.c.l.b16 %v44
  %v206 = vunpack.c.l.b16 %v45
  %v207 = vunpack.c.l.b16 %v46
  %v208 = vunpack.c.l.b16 %v47
  %v209 = vunpack.c.l.b16 %v48
  %v210 = vunpack.c.l.b16 %v49
  %v211 = vunpack.c.l.b16 %v50
  %v212 = vunpack.c.l.b16 %v51
  %v213 = vunpack.c.l.b16 %v52
  %v214 = vunpack.c.l.b16 %v53
  %v215 = vunpack.c.l.b16 %v54
  %v216 = vunpack.c.l.b16 %v55
  %v217 = vunpack.c.l.b16 %v56
  %v218 = vunpack.c.l.b16 %v57
  %v219 = vunpack.c.l.b16 %v58
  %v220 = vunpack.c.l.b16 %v59
  %v221 = vunpack.c.l.b16 %v60
  %v222 = vunpack.c.l.b16 %v61
  %v223 = vunpack.c.l.b16 %v62
  %v224 = vunpack.c.l.b16 %v63
  %v225 = vunpack.c.l.b16 %v64
  %v226 = vunpack.c.l.b16 %v65
  %v227 = vunpack.c.l.b16 %v66
  %v228 = vunpack.c.l.b16 %v67
  %v229 = vunpack.c.l.b16 %v68
  %v230 = vunpack.c.l.b16 %v69
  %v231 = vunpack.c.l.b16 %v70
  %v232 = vunpack.c.l.b16 %v71
  %v233 = vunpack.c.l.b16 %v72
  %v234 = vunpack.c.l.b16 %v73
  %v235 = vunpack.c.l.b16 %v74
  %v236 = vunpack.c.l.b16 %v75
  %v237 = vunpack.c.l.b16 %v76
  %v238 = vunpack.c.l.b16 %v77
  %v239 = vunpack.c.l.b16 %v78
  %v240 = vunpack.c.l.b16 %v79
  %v241 = vunpack.c.l.b16 %v80
  %v242 = vunpack.c.l.b16 %v81
  %v243 = vunpack.c.l.b16 %v82
  %v244 = vunpack.c.l.b16 %v83
  %v245 = vunpack.c.l.b16 %v84
  %v246 = vunpack.c.l.b16 %v85
  %v247 = vunpack.c.l.b16 %v86
  %v248 = vunpack.c.l.b16 %v87
  %v249 = vunpack.c.l.b16 %v88
  %v250 = vunpack.c.l.b16 %v89
  %v251 = vunpack.c.l.b16 %v90
  %v252 = vunpack.c.l.b16 %v91
  %v253 = vunpack.c.l.b16 %v92
  %v254 = vunpack.c.l.b16 %v93
  %v255 = vunpack.c.l.b16 %v94
  %v256 = vunpack.c.l.b16 %v95
  %v257 = vpack.c.b16 %v186, %v185
  %v258 = vpack.c.b16 %v188, %v187
  %v259 = vpack.c.b16 %v190, %v189
  %v260 = vpack.c.b16 %v192, %v191
  %v261 = vpack.c.b16 %v194, %v193
  %v262 = vpack.c.b16 %v196, %v195
  %v263 = vpack.c.b16 %v198, %v197
  %v264 = vpack.c.b16 %v200, %v199
  %v265 = vpack.c.b16 %v202, %v201
  %v266 = vpack.c.b16 %v204, %v203
  %v267 = vpack.c.b16 %v206, %v205
  %v268 = vpack.c.b16 %v208, %v207
  %v269 = vpack.c.b16 %v210, %v209
  %v270 = vpack.c.b16 %v212, %v211
  %v271 = vpack.c.b16 %v214, %v213
  %v272 = vpack.c.b16 %v216, %v215
  %v273 = vpack.c.b16 %v218, %v217
  %v274 = vpack.c.b16 %v220, %v219
  %v275 = vpack.c.b16 %v222, %v221
  %v276 = vpack.c.b16 %v224, %v223
  %v277 = vpack.c.b16 %v226, %v225
  %v278 = vpack.c.b16 %v228, %v227
  %v279 = vpack.c.b16 %v230, %v229
  %v280 = vpack.c.b16 %v232, %v231
  %v281 = vpack.c.b16 %v234, %v233
  %v282 = vpack.c.b16 %v236, %v235
  %v283 = vpack.c.b16 %v238, %v237
  %v284 = vpack.c.b16 %v240, %v239
  %v285 = vpack.c.b16 %v242, %v241
  %v286 = vpack.c.b16 %v244, %v243
  %v287 = vpack.c.b16 %v246, %v245
  %v288 = vpack.c.b16 %v248, %v247
  %v289 = vpack.c.b16 %v250, %v249
  %v290 = vpack.c.b16 %v252, %v251
  %v291 = vpack.c.b16 %v254, %v253
  %v292 = vpack.c.b16 %v256, %v255
  %vm329 = vcmask 523264
  %v331 = vsel %vm329, %v108, 0
  %333 = vmatprep.subr.bf16.mxu0 0
  %334 = vmatpush1.bf16.msra.mxu0 %v257
  %335 = vmatprep.subr.bf16.mxu0 0
  %336 = vmatpush1.bf16.msra.mxu0 %v258
  %337 = vmatprep.subr.bf16.mxu0 0
  %338 = vmatpush1.bf16.msra.mxu0 %v259
  %339 = vmatprep.subr.bf16.mxu0 0
  %340 = vmatpush1.bf16.msra.mxu0 %v260
  %341 = vmatprep.subr.bf16.mxu0 0
  %342 = vmatpush1.bf16.msra.mxu0 %v261
  %343 = vmatprep.subr.bf16.mxu0 0
  %344 = vmatpush1.bf16.msra.mxu0 %v262
  %345 = vmatprep.subr.bf16.mxu0 0
  %346 = vmatpush1.bf16.msra.mxu0 %v263
  %347 = vmatprep.subr.bf16.mxu0 0
  %348 = vmatpush1.bf16.msra.mxu0 %v264
  %349 = vmatprep.subr.bf16.mxu0 0
  %350 = vmatpush1.bf16.msra.mxu0 %v265
  %351 = vmatprep.subr.bf16.mxu0 0
  %352 = vmatpush1.bf16.msra.mxu0 %v266
  %353 = vmatprep.subr.bf16.mxu0 0
  %354 = vmatpush1.bf16.msra.mxu0 %v267
  %355 = vmatprep.subr.bf16.mxu0 0
  %356 = vmatpush1.bf16.msra.mxu0 %v268
  %357 = vmatprep.subr.bf16.mxu0 0
  %358 = vmatpush1.bf16.msra.mxu0 %v269
  %359 = vmatprep.subr.bf16.mxu0 0
  %360 = vmatpush1.bf16.msra.mxu0 %v270
  %361 = vmatprep.subr.bf16.mxu0 0
  %362 = vmatpush1.bf16.msra.mxu0 %v271
  %363 = vmatprep.subr.bf16.mxu0 0
  %364 = vmatpush1.bf16.msra.mxu0 %v272
  %365 = vmatprep.mubr.bf16.mxu0 %v105
  %366 = vmatmul.mubr.bf16.gmra.mrb[0].mxu0 %v104
  %v367 = vpop.f32.mrb[0].mxu0
  %v368 = vadd.f32 0.0, %v367
  %v369 = vpop.f32.mrb[0].mxu0
  %v370 = vpop.f32.mrb[0].mxu0
  %v371 = vpop.f32.mrb[0].mxu0
  %372 = vdwg.mxu0
  %373 = vmatprep.subr.bf16.mxu0 0
  %374 = vmatpush1.bf16.msra.mxu0 %v273
  %375 = vmatprep.subr.bf16.mxu0 0
  %376 = vmatpush1.bf16.msra.mxu0 %v274
  %377 = vmatprep.subr.bf16.mxu0 0
  %378 = vmatpush1.bf16.msra.mxu0 %v275
  %379 = vmatprep.subr.bf16.mxu0 0
  %380 = vmatpush1.bf16.msra.mxu0 %v276
  %381 = vmatprep.subr.bf16.mxu0 0
  %382 = vmatpush1.bf16.msra.mxu0 %v277
  %383 = vmatprep.subr.bf16.mxu0 0
  %384 = vmatpush1.bf16.msra.mxu0 %v278
  %385 = vmatprep.subr.bf16.mxu0 0
  %386 = vmatpush1.bf16.msra.mxu0 %v279
  %387 = vmatprep.subr.bf16.mxu0 0
  %388 = vmatpush1.bf16.msra.mxu0 %v280
  %389 = vmatprep.subr.bf16.mxu0 0
  %390 = vmatpush1.bf16.msra.mxu0 %v281
  %391 = vmatprep.subr.bf16.mxu0 0
  %392 = vmatpush1.bf16.msra.mxu0 %v282
  %393 = vmatprep.subr.bf16.mxu0 0
  %394 = vmatpush1.bf16.msra.mxu0 %v283
  %395 = vmatprep.subr.bf16.mxu0 0
  %396 = vmatpush1.bf16.msra.mxu0 %v284
  %397 = vmatprep.subr.bf16.mxu0 0
  %398 = vmatpush1.bf16.msra.mxu0 %v285
  %399 = vmatprep.subr.bf16.mxu0 0
  %400 = vmatpush1.bf16.msra.mxu0 %v286
  %401 = vmatprep.subr.bf16.mxu0 0
  %402 = vmatpush1.bf16.msra.mxu0 %v287
  %403 = vmatprep.subr.bf16.mxu0 0
  %404 = vmatpush1.bf16.msra.mxu0 %v288
  %405 = vmatprep.mubr.bf16.mxu0 %v107
  %406 = vmatmul.mubr.bf16.gmra.mrb[0].mxu0 %v106
  %v407 = vpop.f32.mrb[0].mxu0
  %v408 = vadd.f32 %v368, %v407
  %v409 = vpop.f32.mrb[0].mxu0
  %v410 = vpop.f32.mrb[0].mxu0
  %v411 = vpop.f32.mrb[0].mxu0
  %412 = vdwg.mxu0
  %413 = vmatprep.subr.bf16.mxu0 0
  %414 = vmatpush1.bf16.msra.mxu0 %v289
  %415 = vmatprep.subr.bf16.mxu0 0
  %416 = vmatpush1.bf16.msra.mxu0 %v290
  %417 = vmatprep.subr.bf16.mxu0 0
  %418 = vmatpush1.bf16.msra.mxu0 %v291
  %419 = vmatprep.subr.bf16.mxu0 0
  %420 = vmatpush1.bf16.msra.mxu0 %v292
  %421 = vmatprep.subr.bf16.mxu0 0
  %422 = vmatpush1.bf16.msra.mxu0 0
  %423 = vmatprep.subr.bf16.mxu0 0
  %424 = vmatpush1.bf16.msra.mxu0 0
  %425 = vmatprep.subr.bf16.mxu0 0
  %426 = vmatpush1.bf16.msra.mxu0 0
  %427 = vmatprep.subr.bf16.mxu0 0
  %428 = vmatpush1.bf16.msra.mxu0 0
  %429 = vmatprep.subr.bf16.mxu0 0
  %430 = vmatpush1.bf16.msra.mxu0 0
  %431 = vmatprep.subr.bf16.mxu0 0
  %432 = vmatpush1.bf16.msra.mxu0 0
  %433 = vmatprep.subr.bf16.mxu0 0
  %434 = vmatpush1.bf16.msra.mxu0 0
  %435 = vmatprep.subr.bf16.mxu0 0
  %436 = vmatpush1.bf16.msra.mxu0 0
  %437 = vmatprep.subr.bf16.mxu0 0
  %438 = vmatpush1.bf16.msra.mxu0 0
  %439 = vmatprep.subr.bf16.mxu0 0
  %440 = vmatpush1.bf16.msra.mxu0 0
  %441 = vmatprep.subr.bf16.mxu0 0
  %442 = vmatpush1.bf16.msra.mxu0 0
  %443 = vmatprep.subr.bf16.mxu0 0
  %444 = vmatpush1.bf16.msra.mxu0 0
  %445 = vmatprep.mubr.bf16.mxu0 0
  %446 = vmatmul.mubr.bf16.gmra.mrb[0].mxu0 %v331
  %v447 = vpop.f32.mrb[0].mxu0
  %v448 = vadd.f32 %v408, %v447
  %v449 = vpop.f32.mrb[0].mxu0
  %v450 = vpop.f32.mrb[0].mxu0
  %v451 = vpop.f32.mrb[0].mxu0
  %452 = vdwg.mxu0
  %v453 = vld [vmem:[%s2] sm:$0x1]
  %v455 = vlaneseq
  %v456 = vshrl.u32 %v455, 7
  %v457 = vsub.s32 0, %v456
  %v458 = vrot.slane %v453, %v457
  %v460 = vmul.f32 %v448, %v458
  %v461 = vld [vmem:[%s3] sm:$0x1]
  %v463 = vlaneseq
  %v464 = vshrl.u32 %v463, 7
  %v465 = vsub.s32 0, %v464
  %v466 = vrot.slane %v461, %v465
  %v468 = vadd.f32 %v460, %v466
  %v469 = vld [vmem:[%s4] sm:$0xf]
  %v470 = vunpack.c.l.bf16 %v469
  %v471 = vadd.f32 %v468, %v470
  %v472 = vmax.f32 %v471, 0.0
  %v473 = vpack.c.bf16 %v472, %v472
  %vm474 = vcmask 519168
  %475 = vst.msk [vmem:[%s5] sm:$0xf] %vm474, %v473
  // Predicated region
  $region22: #{_lambda_.35} parent=0 // pred_check
    _
  $region23: #{_lambda_.35} parent=0 // pred_check_branch
    %477 = sbr.rel (0) target = $region25
  $region24: #{_lambda_.35} parent=0 // pred_region
    _
  $region25: #{_lambda_.35} parent=0 // pred_fallthru
    _
  // Predicated region
  $region26: #{_lambda_.35} parent=0 // pred_check
    _
  $region27: #{_lambda_.35} parent=0 // pred_check_branch
    %479 = sbr.rel (0) target = $region29
  $region28: #{_lambda_.35} parent=0 // pred_region
    _
  $region29: #{_lambda_.35} parent=0 // pred_fallthru
    _

// kernel: _lambda_.33
$region0: #{_lambda_.33}
  #allocation0 [shape = 'u32[]', space=smem, size = 0x4, offset = 0x4, fixed_abs, tag = 'smem constant byte address 0x4 - core index']
  #allocation1 [shape = 'u32[144,128]{1,0:T(1,128)}', space=vmem, size = 0x12000, scoped, tag = 'internal scratch']
  %s0 = inlined_call_operand.vmem [shape: bf16[8,32], index: 0, kind: input, shape index: {}]
  %s1 = inlined_call_operand.vmem [shape: bf16[32,64], index: 1, kind: input, shape index: {}]
  %s2 = inlined_call_operand.vmem [shape: f32[1,64], index: 2, kind: input, shape index: {}]
  %s3 = inlined_call_operand.vmem [shape: f32[1,64], index: 3, kind: input, shape index: {}]
  %s4 = inlined_call_operand.vmem [shape: bf16[8,64], index: 4, kind: output, shape index: {}]
  %s5 = sld [smem:[#allocation0]]
  $region26: #{_lambda_.33} parent=0
    _
  %s7 = ssub.s32 1, %s5
  %s8 = scalar_select 0, %s7, %s5
  // Predicated region
  $region2: #{_lambda_.33} parent=0 // pred_check
    _
  $region3: #{_lambda_.33} parent=0 // pred_check_branch
    %10 = sbr.rel (0) target = $region5
  $region4: #{_lambda_.33} parent=0 // pred_region
    _
  $region5: #{_lambda_.33} parent=0 // pred_fallthru
    _
  // Predicated region
  $region6: #{_lambda_.33} parent=0 // pred_check
    _
  $region7: #{_lambda_.33} parent=0 // pred_check_branch
    %12 = sbr.rel (0) target = $region9
  $region8: #{_lambda_.33} parent=0 // pred_region
    _
  $region9: #{_lambda_.33} parent=0 // pred_fallthru
    _
  // Predicated region
  $region10: #{_lambda_.33} parent=0 // pred_check
    _
  $region11: #{_lambda_.33} parent=0 // pred_check_branch
    %14 = sbr.rel (0) target = $region13
  $region12: #{_lambda_.33} parent=0 // pred_region
    _
  $region13: #{_lambda_.33} parent=0 // pred_fallthru
    _
  // Predicated region
  $region14: #{_lambda_.33} parent=0 // pred_check
    _
  $region15: #{_lambda_.33} parent=0 // pred_check_branch
    %16 = sbr.rel (0) target = $region17
  $region16: #{_lambda_.33} parent=0 // pred_region
    _
  $region17: #{_lambda_.33} parent=0 // pred_fallthru
    _
  %v18 = vld [vmem:[%s0] sm:$0xf]
  %v19 = vld [vmem:[%s1] sm:$0xf]
  %v20 = vld [vmem:[%s1 + $0x4] sm:$0xf]
  %v21 = vld [vmem:[%s1 + $0x8] sm:$0xf]
  %v22 = vld [vmem:[%s1 + $0xc] sm:$0xf]
  %v27 = vunpack.c.l.b16 %v19
  %v28 = vunpack.c.l.b16 %v20
  %v29 = vunpack.c.l.b16 %v21
  %v30 = vunpack.c.l.b16 %v22
  %v31 = vpack.c.b16 %v28, %v27
  %v32 = vpack.c.b16 %v30, %v29
  %vm35 = vcmask 261120
  %v37 = vsel %vm35, %v18, 0
  %39 = vmatprep.subr.bf16.mxu0 0
  %40 = vmatpush1.bf16.msra.mxu0 %v31
  %41 = vmatprep.subr.bf16.mxu0 0
  %42 = vmatpush1.bf16.msra.mxu0 %v32
  %43 = vmatprep.subr.bf16.mxu0 0
  %44 = vmatpush1.bf16.msra.mxu0 0
  %45 = vmatprep.subr.bf16.mxu0 0
  %46 = vmatpush1.bf16.msra.mxu0 0
  %47 = vmatprep.subr.bf16.mxu0 0
  %48 = vmatpush1.bf16.msra.mxu0 0
  %49 = vmatprep.subr.bf16.mxu0 0
  %50 = vmatpush1.bf16.msra.mxu0 0
  %51 = vmatprep.subr.bf16.mxu0 0
  %52 = vmatpush1.bf16.msra.mxu0 0
  %53 = vmatprep.subr.bf16.mxu0 0
  %54 = vmatpush1.bf16.msra.mxu0 0
  %55 = vmatprep.subr.bf16.mxu0 0
  %56 = vmatpush1.bf16.msra.mxu0 0
  %57 = vmatprep.subr.bf16.mxu0 0
  %58 = vmatpush1.bf16.msra.mxu0 0
  %59 = vmatprep.subr.bf16.mxu0 0
  %60 = vmatpush1.bf16.msra.mxu0 0
  %61 = vmatprep.subr.bf16.mxu0 0
  %62 = vmatpush1.bf16.msra.mxu0 0
  %63 = vmatprep.subr.bf16.mxu0 0
  %64 = vmatpush1.bf16.msra.mxu0 0
  %65 = vmatprep.subr.bf16.mxu0 0
  %66 = vmatpush1.bf16.msra.mxu0 0
  %67 = vmatprep.subr.bf16.mxu0 0
  %68 = vmatpush1.bf16.msra.mxu0 0
  %69 = vmatprep.subr.bf16.mxu0 0
  %70 = vmatpush1.bf16.msra.mxu0 0
  %71 = vmatprep.mubr.bf16.mxu0 0
  %72 = vmatmul.mubr.bf16.gmra.mrb[0].mxu0 %v37
  %v73 = vpop.f32.mrb[0].mxu0
  %v74 = vadd.f32 0.0, %v73
  %v75 = vpop.f32.mrb[0].mxu0
  %v76 = vpop.f32.mrb[0].mxu0
  %v77 = vpop.f32.mrb[0].mxu0
  %78 = vdwg.mxu0
  %v79 = vld [vmem:[%s2] sm:$0x1]
  %v81 = vlaneseq
  %v82 = vshrl.u32 %v81, 7
  %v83 = vsub.s32 0, %v82
  %v84 = vrot.slane %v79, %v83
  %v86 = vmul.f32 %v74, %v84
  %v87 = vld [vmem:[%s3] sm:$0x1]
  %v89 = vlaneseq
  %v90 = vshrl.u32 %v89, 7
  %v91 = vsub.s32 0, %v90
  %v92 = vrot.slane %v87, %v91
  %v94 = vadd.f32 %v86, %v92
  %v95 = vpack.c.bf16 %v94, %v94
  %vm96 = vcmask 519168
  %97 = vst.msk [vmem:[%s4] sm:$0xf] %vm96, %v95
  // Predicated region
  $region18: #{_lambda_.33} parent=0 // pred_check
    _
  $region19: #{_lambda_.33} parent=0 // pred_check_branch
    %99 = sbr.rel (0) target = $region21
  $region20: #{_lambda_.33} parent=0 // pred_region
    _
  $region21: #{_lambda_.33} parent=0 // pred_fallthru
    _
  // Predicated region
  $region22: #{_lambda_.33} parent=0 // pred_check
    _
  $region23: #{_lambda_.33} parent=0 // pred_check_branch
    %101 = sbr.rel (0) target = $region25
  $region24: #{_lambda_.33} parent=0 // pred_region
    _
  $region25: #{_lambda_.33} parent=0 // pred_fallthru
    _

// kernel: _lambda_.36
$region0: #{_lambda_.36}
  #allocation0 [shape = 'u32[]', space=smem, size = 0x4, offset = 0x4, fixed_abs, tag = 'smem constant byte address 0x4 - core index']
  #allocation1 [shape = 'u32[144,128]{1,0:T(1,128)}', space=vmem, size = 0x12000, scoped, tag = 'internal scratch']
  %s0 = inlined_call_operand.vmem [shape: bf16[8,576], index: 0, kind: input, shape index: {}]
  %s1 = inlined_call_operand.vmem [shape: bf16[576,64], index: 1, kind: input, shape index: {}]
  %s2 = inlined_call_operand.vmem [shape: f32[1,64], index: 2, kind: input, shape index: {}]
  %s3 = inlined_call_operand.vmem [shape: f32[1,64], index: 3, kind: input, shape index: {}]
  %s4 = inlined_call_operand.vmem [shape: bf16[8,64], index: 4, kind: output, shape index: {}]
  %s5 = sld [smem:[#allocation0]]
  $region26: #{_lambda_.36} parent=0
    _
  %s7 = ssub.s32 1, %s5
  %s8 = scalar_select 0, %s7, %s5
  // Predicated region
  $region2: #{_lambda_.36} parent=0 // pred_check
    _
  $region3: #{_lambda_.36} parent=0 // pred_check_branch
    %10 = sbr.rel (0) target = $region5
  $region4: #{_lambda_.36} parent=0 // pred_region
    _
  $region5: #{_lambda_.36} parent=0 // pred_fallthru
    _
  // Predicated region
  $region6: #{_lambda_.36} parent=0 // pred_check
    _
  $region7: #{_lambda_.36} parent=0 // pred_check_branch
    %12 = sbr.rel (0) target = $region9
  $region8: #{_lambda_.36} parent=0 // pred_region
    _
  $region9: #{_lambda_.36} parent=0 // pred_fallthru
    _
  // Predicated region
  $region10: #{_lambda_.36} parent=0 // pred_check
    _
  $region11: #{_lambda_.36} parent=0 // pred_check_branch
    %14 = sbr.rel (0) target = $region13
  $region12: #{_lambda_.36} parent=0 // pred_region
    _
  $region13: #{_lambda_.36} parent=0 // pred_fallthru
    _
  // Predicated region
  $region14: #{_lambda_.36} parent=0 // pred_check
    _
  $region15: #{_lambda_.36} parent=0 // pred_check_branch
    %16 = sbr.rel (0) target = $region17
  $region16: #{_lambda_.36} parent=0 // pred_region
    _
  $region17: #{_lambda_.36} parent=0 // pred_fallthru
    _
  %v18 = vld [vmem:[%s0] sm:$0xff]
  %v19 = vld [vmem:[%s0 + $0x8] sm:$0xff]
  %v20 = vld [vmem:[%s0 + $0x10] sm:$0xf]
  %v21 = vld [vmem:[%s1] sm:$0xf]
  %v22 = vld [vmem:[%s1 + $0x4] sm:$0xf]
  %v23 = vld [vmem:[%s1 + $0x8] sm:$0xf]
  %v24 = vld [vmem:[%s1 + $0xc] sm:$0xf]
  %v25 = vld [vmem:[%s1 + $0x10] sm:$0xf]
  %v26 = vld [vmem:[%s1 + $0x14] sm:$0xf]
  %v27 = vld [vmem:[%s1 + $0x18] sm:$0xf]
  %v28 = vld [vmem:[%s1 + $0x1c] sm:$0xf]
  %v29 = vld [vmem:[%s1 + $0x20] sm:$0xf]
  %v30 = vld [vmem:[%s1 + $0x24] sm:$0xf]
  %v31 = vld [vmem:[%s1 + $0x28] sm:$0xf]
  %v32 = vld [vmem:[%s1 + $0x2c] sm:$0xf]
  %v33 = vld [vmem:[%s1 + $0x30] sm:$0xf]
  %v34 = vld [vmem:[%s1 + $0x34] sm:$0xf]
  %v35 = vld [vmem:[%s1 + $0x38] sm:$0xf]
  %v36 = vld [vmem:[%s1 + $0x3c] sm:$0xf]
  %v37 = vld [vmem:[%s1 + $0x40] sm:$0xf]
  %v38 = vld [vmem:[%s1 + $0x44] sm:$0xf]
  %v39 = vld [vmem:[%s1 + $0x48] sm:$0xf]
  %v40 = vld [vmem:[%s1 + $0x4c] sm:$0xf]
  %v41 = vld [vmem:[%s1 + $0x50] sm:$0xf]
  %v42 = vld [vmem:[%s1 + $0x54] sm:$0xf]
  %v43 = vld [vmem:[%s1 + $0x58] sm:$0xf]
  %v44 = vld [vmem:[%s1 + $0x5c] sm:$0xf]
  %v45 = vld [vmem:[%s1 + $0x60] sm:$0xf]
  %v46 = vld [vmem:[%s1 + $0x64] sm:$0xf]
  %v47 = vld [vmem:[%s1 + $0x68] sm:$0xf]
  %v48 = vld [vmem:[%s1 + $0x6c] sm:$0xf]
  %v49 = vld [vmem:[%s1 + $0x70] sm:$0xf]
  %v50 = vld [vmem:[%s1 + $0x74] sm:$0xf]
  %v51 = vld [vmem:[%s1 + $0x78] sm:$0xf]
  %v52 = vld [vmem:[%s1 + $0x7c] sm:$0xf]
  %v53 = vld [vmem:[%s1 + $0x80] sm:$0xf]
  %v54 = vld [vmem:[%s1 + $0x84] sm:$0xf]
  %v55 = vld [vmem:[%s1 + $0x88] sm:$0xf]
  %v56 = vld [vmem:[%s1 + $0x8c] sm:$0xf]
  %v57 = vld [vmem:[%s1 + $0x90] sm:$0xf]
  %v58 = vld [vmem:[%s1 + $0x94] sm:$0xf]
  %v59 = vld [vmem:[%s1 + $0x98] sm:$0xf]
  %v60 = vld [vmem:[%s1 + $0x9c] sm:$0xf]
  %v61 = vld [vmem:[%s1 + $0xa0] sm:$0xf]
  %v62 = vld [vmem:[%s1 + $0xa4] sm:$0xf]
  %v63 = vld [vmem:[%s1 + $0xa8] sm:$0xf]
  %v64 = vld [vmem:[%s1 + $0xac] sm:$0xf]
  %v65 = vld [vmem:[%s1 + $0xb0] sm:$0xf]
  %v66 = vld [vmem:[%s1 + $0xb4] sm:$0xf]
  %v67 = vld [vmem:[%s1 + $0xb8] sm:$0xf]
  %v68 = vld [vmem:[%s1 + $0xbc] sm:$0xf]
  %v69 = vld [vmem:[%s1 + $0xc0] sm:$0xf]
  %v70 = vld [vmem:[%s1 + $0xc4] sm:$0xf]
  %v71 = vld [vmem:[%s1 + $0xc8] sm:$0xf]
  %v72 = vld [vmem:[%s1 + $0xcc] sm:$0xf]
  %v73 = vld [vmem:[%s1 + $0xd0] sm:$0xf]
  %v74 = vld [vmem:[%s1 + $0xd4] sm:$0xf]
  %v75 = vld [vmem:[%s1 + $0xd8] sm:$0xf]
  %v76 = vld [vmem:[%s1 + $0xdc] sm:$0xf]
  %v77 = vld [vmem:[%s1 + $0xe0] sm:$0xf]
  %v78 = vld [vmem:[%s1 + $0xe4] sm:$0xf]
  %v79 = vld [vmem:[%s1 + $0xe8] sm:$0xf]
  %v80 = vld [vmem:[%s1 + $0xec] sm:$0xf]
  %v81 = vld [vmem:[%s1 + $0xf0] sm:$0xf]
  %v82 = vld [vmem:[%s1 + $0xf4] sm:$0xf]
  %v83 = vld [vmem:[%s1 + $0xf8] sm:$0xf]
  %v84 = vld [vmem:[%s1 + $0xfc] sm:$0xf]
  %v85 = vld [vmem:[%s1 + $0x100] sm:$0xf]
  %v86 = vld [vmem:[%s1 + $0x104] sm:$0xf]
  %v87 = vld [vmem:[%s1 + $0x108] sm:$0xf]
  %v88 = vld [vmem:[%s1 + $0x10c] sm:$0xf]
  %v89 = vld [vmem:[%s1 + $0x110] sm:$0xf]
  %v90 = vld [vmem:[%s1 + $0x114] sm:$0xf]
  %v91 = vld [vmem:[%s1 + $0x118] sm:$0xf]
  %v92 = vld [vmem:[%s1 + $0x11c] sm:$0xf]
  %v96 = vunpack.c.l.b16 %v18
  %v97 = vunpack.c.h.b16 %v18
  %v98 = vunpack.c.l.b16 %v19
  %v99 = vunpack.c.h.b16 %v19
  %v100 = vunpack.c.l.b16 %v20
  %v101 = vpack.c.b16 %v96, %v96
  %v102 = vpack.c.b16 %v97, %v97
  %v103 = vpack.c.b16 %v98, %v98
  %v104 = vpack.c.b16 %v99, %v99
  %v105 = vpack.c.b16 %v100, %v100
  %v182 = vunpack.c.l.b16 %v21
  %v183 = vunpack.c.l.b16 %v22
  %v184 = vunpack.c.l.b16 %v23
  %v185 = vunpack.c.l.b16 %v24
  %v186 = vunpack.c.l.b16 %v25
  %v187 = vunpack.c.l.b16 %v26
  %v188 = vunpack.c.l.b16 %v27
  %v189 = vunpack.c.l.b16 %v28
  %v190 = vunpack.c.l.b16 %v29
  %v191 = vunpack.c.l.b16 %v30
  %v192 = vunpack.c.l.b16 %v31
  %v193 = vunpack.c.l.b16 %v32
  %v194 = vunpack.c.l.b16 %v33
  %v195 = vunpack.c.l.b16 %v34
  %v196 = vunpack.c.l.b16 %v35
  %v197 = vunpack.c.l.b16 %v36
  %v198 = vunpack.c.l.b16 %v37
  %v199 = vunpack.c.l.b16 %v38
  %v200 = vunpack.c.l.b16 %v39
  %v201 = vunpack.c.l.b16 %v40
  %v202 = vunpack.c.l.b16 %v41
  %v203 = vunpack.c.l.b16 %v42
  %v204 = vunpack.c.l.b16 %v43
  %v205 = vunpack.c.l.b16 %v44
  %v206 = vunpack.c.l.b16 %v45
  %v207 = vunpack.c.l.b16 %v46
  %v208 = vunpack.c.l.b16 %v47
  %v209 = vunpack.c.l.b16 %v48
  %v210 = vunpack.c.l.b16 %v49
  %v211 = vunpack.c.l.b16 %v50
  %v212 = vunpack.c.l.b16 %v51
  %v213 = vunpack.c.l.b16 %v52
  %v214 = vunpack.c.l.b16 %v53
  %v215 = vunpack.c.l.b16 %v54
  %v216 = vunpack.c.l.b16 %v55
  %v217 = vunpack.c.l.b16 %v56
  %v218 = vunpack.c.l.b16 %v57
  %v219 = vunpack.c.l.b16 %v58
  %v220 = vunpack.c.l.b16 %v59
  %v221 = vunpack.c.l.b16 %v60
  %v222 = vunpack.c.l.b16 %v61
  %v223 = vunpack.c.l.b16 %v62
  %v224 = vunpack.c.l.b16 %v63
  %v225 = vunpack.c.l.b16 %v64
  %v226 = vunpack.c.l.b16 %v65
  %v227 = vunpack.c.l.b16 %v66
  %v228 = vunpack.c.l.b16 %v67
  %v229 = vunpack.c.l.b16 %v68
  %v230 = vunpack.c.l.b16 %v69
  %v231 = vunpack.c.l.b16 %v70
  %v232 = vunpack.c.l.b16 %v71
  %v233 = vunpack.c.l.b16 %v72
  %v234 = vunpack.c.l.b16 %v73
  %v235 = vunpack.c.l.b16 %v74
  %v236 = vunpack.c.l.b16 %v75
  %v237 = vunpack.c.l.b16 %v76
  %v238 = vunpack.c.l.b16 %v77
  %v239 = vunpack.c.l.b16 %v78
  %v240 = vunpack.c.l.b16 %v79
  %v241 = vunpack.c.l.b16 %v80
  %v242 = vunpack.c.l.b16 %v81
  %v243 = vunpack.c.l.b16 %v82
  %v244 = vunpack.c.l.b16 %v83
  %v245 = vunpack.c.l.b16 %v84
  %v246 = vunpack.c.l.b16 %v85
  %v247 = vunpack.c.l.b16 %v86
  %v248 = vunpack.c.l.b16 %v87
  %v249 = vunpack.c.l.b16 %v88
  %v250 = vunpack.c.l.b16 %v89
  %v251 = vunpack.c.l.b16 %v90
  %v252 = vunpack.c.l.b16 %v91
  %v253 = vunpack.c.l.b16 %v92
  %v254 = vpack.c.b16 %v183, %v182
  %v255 = vpack.c.b16 %v185, %v184
  %v256 = vpack.c.b16 %v187, %v186
  %v257 = vpack.c.b16 %v189, %v188
  %v258 = vpack.c.b16 %v191, %v190
  %v259 = vpack.c.b16 %v193, %v192
  %v260 = vpack.c.b16 %v195, %v194
  %v261 = vpack.c.b16 %v197, %v196
  %v262 = vpack.c.b16 %v199, %v198
  %v263 = vpack.c.b16 %v201, %v200
  %v264 = vpack.c.b16 %v203, %v202
  %v265 = vpack.c.b16 %v205, %v204
  %v266 = vpack.c.b16 %v207, %v206
  %v267 = vpack.c.b16 %v209, %v208
  %v268 = vpack.c.b16 %v211, %v210
  %v269 = vpack.c.b16 %v213, %v212
  %v270 = vpack.c.b16 %v215, %v214
  %v271 = vpack.c.b16 %v217, %v216
  %v272 = vpack.c.b16 %v219, %v218
  %v273 = vpack.c.b16 %v221, %v220
  %v274 = vpack.c.b16 %v223, %v222
  %v275 = vpack.c.b16 %v225, %v224
  %v276 = vpack.c.b16 %v227, %v226
  %v277 = vpack.c.b16 %v229, %v228
  %v278 = vpack.c.b16 %v231, %v230
  %v279 = vpack.c.b16 %v233, %v232
  %v280 = vpack.c.b16 %v235, %v234
  %v281 = vpack.c.b16 %v237, %v236
  %v282 = vpack.c.b16 %v239, %v238
  %v283 = vpack.c.b16 %v241, %v240
  %v284 = vpack.c.b16 %v243, %v242
  %v285 = vpack.c.b16 %v245, %v244
  %v286 = vpack.c.b16 %v247, %v246
  %v287 = vpack.c.b16 %v249, %v248
  %v288 = vpack.c.b16 %v251, %v250
  %v289 = vpack.c.b16 %v253, %v252
  %vm326 = vcmask 523264
  %v328 = vsel %vm326, %v105, 0
  %330 = vmatprep.subr.bf16.mxu0 0
  %331 = vmatpush1.bf16.msra.mxu0 %v254
  %332 = vmatprep.subr.bf16.mxu0 0
  %333 = vmatpush1.bf16.msra.mxu0 %v255
  %334 = vmatprep.subr.bf16.mxu0 0
  %335 = vmatpush1.bf16.msra.mxu0 %v256
  %336 = vmatprep.subr.bf16.mxu0 0
  %337 = vmatpush1.bf16.msra.mxu0 %v257
  %338 = vmatprep.subr.bf16.mxu0 0
  %339 = vmatpush1.bf16.msra.mxu0 %v258
  %340 = vmatprep.subr.bf16.mxu0 0
  %341 = vmatpush1.bf16.msra.mxu0 %v259
  %342 = vmatprep.subr.bf16.mxu0 0
  %343 = vmatpush1.bf16.msra.mxu0 %v260
  %344 = vmatprep.subr.bf16.mxu0 0
  %345 = vmatpush1.bf16.msra.mxu0 %v261
  %346 = vmatprep.subr.bf16.mxu0 0
  %347 = vmatpush1.bf16.msra.mxu0 %v262
  %348 = vmatprep.subr.bf16.mxu0 0
  %349 = vmatpush1.bf16.msra.mxu0 %v263
  %350 = vmatprep.subr.bf16.mxu0 0
  %351 = vmatpush1.bf16.msra.mxu0 %v264
  %352 = vmatprep.subr.bf16.mxu0 0
  %353 = vmatpush1.bf16.msra.mxu0 %v265
  %354 = vmatprep.subr.bf16.mxu0 0
  %355 = vmatpush1.bf16.msra.mxu0 %v266
  %356 = vmatprep.subr.bf16.mxu0 0
  %357 = vmatpush1.bf16.msra.mxu0 %v267
  %358 = vmatprep.subr.bf16.mxu0 0
  %359 = vmatpush1.bf16.msra.mxu0 %v268
  %360 = vmatprep.subr.bf16.mxu0 0
  %361 = vmatpush1.bf16.msra.mxu0 %v269
  %362 = vmatprep.mubr.bf16.mxu0 %v102
  %363 = vmatmul.mubr.bf16.gmra.mrb[0].mxu0 %v101
  %v364 = vpop.f32.mrb[0].mxu0
  %v365 = vadd.f32 0.0, %v364
  %v366 = vpop.f32.mrb[0].mxu0
  %v367 = vpop.f32.mrb[0].mxu0
  %v368 = vpop.f32.mrb[0].mxu0
  %369 = vdwg.mxu0
  %370 = vmatprep.subr.bf16.mxu0 0
  %371 = vmatpush1.bf16.msra.mxu0 %v270
  %372 = vmatprep.subr.bf16.mxu0 0
  %373 = vmatpush1.bf16.msra.mxu0 %v271
  %374 = vmatprep.subr.bf16.mxu0 0
  %375 = vmatpush1.bf16.msra.mxu0 %v272
  %376 = vmatprep.subr.bf16.mxu0 0
  %377 = vmatpush1.bf16.msra.mxu0 %v273
  %378 = vmatprep.subr.bf16.mxu0 0
  %379 = vmatpush1.bf16.msra.mxu0 %v274
  %380 = vmatprep.subr.bf16.mxu0 0
  %381 = vmatpush1.bf16.msra.mxu0 %v275
  %382 = vmatprep.subr.bf16.mxu0 0
  %383 = vmatpush1.bf16.msra.mxu0 %v276
  %384 = vmatprep.subr.bf16.mxu0 0
  %385 = vmatpush1.bf16.msra.mxu0 %v277
  %386 = vmatprep.subr.bf16.mxu0 0
  %387 = vmatpush1.bf16.msra.mxu0 %v278
  %388 = vmatprep.subr.bf16.mxu0 0
  %389 = vmatpush1.bf16.msra.mxu0 %v279
  %390 = vmatprep.subr.bf16.mxu0 0
  %391 = vmatpush1.bf16.msra.mxu0 %v280
  %392 = vmatprep.subr.bf16.mxu0 0
  %393 = vmatpush1.bf16.msra.mxu0 %v281
  %394 = vmatprep.subr.bf16.mxu0 0
  %395 = vmatpush1.bf16.msra.mxu0 %v282
  %396 = vmatprep.subr.bf16.mxu0 0
  %397 = vmatpush1.bf16.msra.mxu0 %v283
  %398 = vmatprep.subr.bf16.mxu0 0
  %399 = vmatpush1.bf16.msra.mxu0 %v284
  %400 = vmatprep.subr.bf16.mxu0 0
  %401 = vmatpush1.bf16.msra.mxu0 %v285
  %402 = vmatprep.mubr.bf16.mxu0 %v104
  %403 = vmatmul.mubr.bf16.gmra.mrb[0].mxu0 %v103
  %v404 = vpop.f32.mrb[0].mxu0
  %v405 = vadd.f32 %v365, %v404
  %v406 = vpop.f32.mrb[0].mxu0
  %v407 = vpop.f32.mrb[0].mxu0
  %v408 = vpop.f32.mrb[0].mxu0
  %409 = vdwg.mxu0
  %410 = vmatprep.subr.bf16.mxu0 0
  %411 = vmatpush1.bf16.msra.mxu0 %v286
  %412 = vmatprep.subr.bf16.mxu0 0
  %413 = vmatpush1.bf16.msra.mxu0 %v287
  %414 = vmatprep.subr.bf16.mxu0 0
  %415 = vmatpush1.bf16.msra.mxu0 %v288
  %416 = vmatprep.subr.bf16.mxu0 0
  %417 = vmatpush1.bf16.msra.mxu0 %v289
  %418 = vmatprep.subr.bf16.mxu0 0
  %419 = vmatpush1.bf16.msra.mxu0 0
  %420 = vmatprep.subr.bf16.mxu0 0
  %421 = vmatpush1.bf16.msra.mxu0 0
  %422 = vmatprep.subr.bf16.mxu0 0
  %423 = vmatpush1.bf16.msra.mxu0 0
  %424 = vmatprep.subr.bf16.mxu0 0
  %425 = vmatpush1.bf16.msra.mxu0 0
  %426 = vmatprep.subr.bf16.mxu0 0
  %427 = vmatpush1.bf16.msra.mxu0 0
  %428 = vmatprep.subr.bf16.mxu0 0
  %429 = vmatpush1.bf16.msra.mxu0 0
  %430 = vmatprep.subr.bf16.mxu0 0
  %431 = vmatpush1.bf16.msra.mxu0 0
  %432 = vmatprep.subr.bf16.mxu0 0
  %433 = vmatpush1.bf16.msra.mxu0 0
  %434 = vmatprep.subr.bf16.mxu0 0
  %435 = vmatpush1.bf16.msra.mxu0 0
  %436 = vmatprep.subr.bf16.mxu0 0
  %437 = vmatpush1.bf16.msra.mxu0 0
  %438 = vmatprep.subr.bf16.mxu0 0
  %439 = vmatpush1.bf16.msra.mxu0 0
  %440 = vmatprep.subr.bf16.mxu0 0
  %441 = vmatpush1.bf16.msra.mxu0 0
  %442 = vmatprep.mubr.bf16.mxu0 0
  %443 = vmatmul.mubr.bf16.gmra.mrb[0].mxu0 %v328
  %v444 = vpop.f32.mrb[0].mxu0
  %v445 = vadd.f32 %v405, %v444
  %v446 = vpop.f32.mrb[0].mxu0
  %v447 = vpop.f32.mrb[0].mxu0
  %v448 = vpop.f32.mrb[0].mxu0
  %449 = vdwg.mxu0
  %v450 = vld [vmem:[%s2] sm:$0x1]
  %v452 = vlaneseq
  %v453 = vshrl.u32 %v452, 7
  %v454 = vsub.s32 0, %v453
  %v455 = vrot.slane %v450, %v454
  %v457 = vmul.f32 %v445, %v455
  %v458 = vld [vmem:[%s3] sm:$0x1]
  %v460 = vlaneseq
  %v461 = vshrl.u32 %v460, 7
  %v462 = vsub.s32 0, %v461
  %v463 = vrot.slane %v458, %v462
  %v465 = vadd.f32 %v457, %v463
  %v466 = vmax.f32 %v465, 0.0
  %v467 = vpack.c.bf16 %v466, %v466
  %vm468 = vcmask 519168
  %469 = vst.msk [vmem:[%s4] sm:$0xf] %vm468, %v467
  // Predicated region
  $region18: #{_lambda_.36} parent=0 // pred_check
    _
  $region19: #{_lambda_.36} parent=0 // pred_check_branch
    %471 = sbr.rel (0) target = $region21
  $region20: #{_lambda_.36} parent=0 // pred_region
    _
  $region21: #{_lambda_.36} parent=0 // pred_fallthru
    _
  // Predicated region
  $region22: #{_lambda_.36} parent=0 // pred_check
    _
  $region23: #{_lambda_.36} parent=0 // pred_check_branch
    %473 = sbr.rel (0) target = $region25
  $region24: #{_lambda_.36} parent=0 // pred_region
    _
  $region25: #{_lambda_.36} parent=0 // pred_fallthru
    _

// kernel: _lambda_.38
$region0: #{_lambda_.38}
  #allocation0 [shape = 'u32[]', space=smem, size = 0x4, offset = 0x4, fixed_abs, tag = 'smem constant byte address 0x4 - core index']
  #allocation1 [shape = 'u32[144,128]{1,0:T(1,128)}', space=vmem, size = 0x12000, scoped, tag = 'internal scratch']
  %s0 = inlined_call_operand.vmem [shape: bf16[2,64], index: 0, kind: input, shape index: {}]
  %s1 = inlined_call_operand.vmem [shape: bf16[64,128], index: 1, kind: input, shape index: {}]
  %s2 = inlined_call_operand.vmem [shape: f32[1,128], index: 2, kind: input, shape index: {}]
  %s3 = inlined_call_operand.vmem [shape: f32[1,128], index: 3, kind: input, shape index: {}]
  %s4 = inlined_call_operand.vmem [shape: bf16[2,128], index: 4, kind: output, shape index: {}]
  %s5 = sld [smem:[#allocation0]]
  $region26: #{_lambda_.38} parent=0
    _
  %s7 = ssub.s32 1, %s5
  %s8 = scalar_select 0, %s7, %s5
  // Predicated region
  $region2: #{_lambda_.38} parent=0 // pred_check
    _
  $region3: #{_lambda_.38} parent=0 // pred_check_branch
    %10 = sbr.rel (0) target = $region5
  $region4: #{_lambda_.38} parent=0 // pred_region
    _
  $region5: #{_lambda_.38} parent=0 // pred_fallthru
    _
  // Predicated region
  $region6: #{_lambda_.38} parent=0 // pred_check
    _
  $region7: #{_lambda_.38} parent=0 // pred_check_branch
    %12 = sbr.rel (0) target = $region9
  $region8: #{_lambda_.38} parent=0 // pred_region
    _
  $region9: #{_lambda_.38} parent=0 // pred_fallthru
    _
  // Predicated region
  $region10: #{_lambda_.38} parent=0 // pred_check
    _
  $region11: #{_lambda_.38} parent=0 // pred_check_branch
    %14 = sbr.rel (0) target = $region13
  $region12: #{_lambda_.38} parent=0 // pred_region
    _
  $region13: #{_lambda_.38} parent=0 // pred_fallthru
    _
  // Predicated region
  $region14: #{_lambda_.38} parent=0 // pred_check
    _
  $region15: #{_lambda_.38} parent=0 // pred_check_branch
    %16 = sbr.rel (0) target = $region17
  $region16: #{_lambda_.38} parent=0 // pred_region
    _
  $region17: #{_lambda_.38} parent=0 // pred_fallthru
    _
  %v18 = vld [vmem:[%s0] sm:$0x1]
  %v19 = vld [vmem:[%s1] sm:$0xf]
  %v20 = vld [vmem:[%s1 + $0x4] sm:$0xf]
  %v21 = vld [vmem:[%s1 + $0x8] sm:$0xf]
  %v22 = vld [vmem:[%s1 + $0xc] sm:$0xf]
  %v23 = vld [vmem:[%s1 + $0x10] sm:$0xf]
  %v24 = vld [vmem:[%s1 + $0x14] sm:$0xf]
  %v25 = vld [vmem:[%s1 + $0x18] sm:$0xf]
  %v26 = vld [vmem:[%s1 + $0x1c] sm:$0xf]
  %v35 = vunpack.c.l.b16 %v19
  %v36 = vunpack.c.l.b16 %v20
  %v37 = vunpack.c.l.b16 %v21
  %v38 = vunpack.c.l.b16 %v22
  %v39 = vunpack.c.l.b16 %v23
  %v40 = vunpack.c.l.b16 %v24
  %v41 = vunpack.c.l.b16 %v25
  %v42 = vunpack.c.l.b16 %v26
  %v43 = vpack.c.b16 %v36, %v35
  %v44 = vpack.c.b16 %v38, %v37
  %v45 = vpack.c.b16 %v40, %v39
  %v46 = vpack.c.b16 %v42, %v41
  %vm51 = vcmask 523264
  %v53 = vsel %vm51, %v18, 0
  %55 = vmatprep.subr.bf16.mxu0 0
  %56 = vmatpush1.bf16.msra.mxu0 %v43
  %57 = vmatprep.subr.bf16.mxu0 0
  %58 = vmatpush1.bf16.msra.mxu0 %v44
  %59 = vmatprep.subr.bf16.mxu0 0
  %60 = vmatpush1.bf16.msra.mxu0 %v45
  %61 = vmatprep.subr.bf16.mxu0 0
  %62 = vmatpush1.bf16.msra.mxu0 %v46
  %63 = vmatprep.subr.bf16.mxu0 0
  %64 = vmatpush1.bf16.msra.mxu0 0
  %65 = vmatprep.subr.bf16.mxu0 0
  %66 = vmatpush1.bf16.msra.mxu0 0
  %67 = vmatprep.subr.bf16.mxu0 0
  %68 = vmatpush1.bf16.msra.mxu0 0
  %69 = vmatprep.subr.bf16.mxu0 0
  %70 = vmatpush1.bf16.msra.mxu0 0
  %71 = vmatprep.subr.bf16.mxu0 0
  %72 = vmatpush1.bf16.msra.mxu0 0
  %73 = vmatprep.subr.bf16.mxu0 0
  %74 = vmatpush1.bf16.msra.mxu0 0
  %75 = vmatprep.subr.bf16.mxu0 0
  %76 = vmatpush1.bf16.msra.mxu0 0
  %77 = vmatprep.subr.bf16.mxu0 0
  %78 = vmatpush1.bf16.msra.mxu0 0
  %79 = vmatprep.subr.bf16.mxu0 0
  %80 = vmatpush1.bf16.msra.mxu0 0
  %81 = vmatprep.subr.bf16.mxu0 0
  %82 = vmatpush1.bf16.msra.mxu0 0
  %83 = vmatprep.subr.bf16.mxu0 0
  %84 = vmatpush1.bf16.msra.mxu0 0
  %85 = vmatprep.subr.bf16.mxu0 0
  %86 = vmatpush1.bf16.msra.mxu0 0
  %87 = vmatprep.mubr.bf16.mxu0 0
  %88 = vmatmul.mubr.bf16.gmra.mrb[0].mxu0 %v53
  %v89 = vpop.f32.mrb[0].mxu0
  %v90 = vadd.f32 0.0, %v89
  %v91 = vpop.f32.mrb[0].mxu0
  %v92 = vpop.f32.mrb[0].mxu0
  %v93 = vpop.f32.mrb[0].mxu0
  %94 = vdwg.mxu0
  %v95 = vld [vmem:[%s2] sm:$0x1]
  %v97 = vlaneseq
  %v98 = vshrl.u32 %v97, 7
  %v99 = vsub.s32 0, %v98
  %v100 = vrot.slane %v95, %v99
  %v102 = vmul.f32 %v90, %v100
  %v103 = vld [vmem:[%s3] sm:$0x1]
  %v105 = vlaneseq
  %v106 = vshrl.u32 %v105, 7
  %v107 = vsub.s32 0, %v106
  %v108 = vrot.slane %v103, %v107
  %v110 = vadd.f32 %v102, %v108
  %v111 = vpack.c.bf16 %v110, %v110
  %112 = vst [vmem:[%s4] sm:$0x1] %v111
  // Predicated region
  $region18: #{_lambda_.38} parent=0 // pred_check
    _
  $region19: #{_lambda_.38} parent=0 // pred_check_branch
    %114 = sbr.rel (0) target = $region21
  $region20: #{_lambda_.38} parent=0 // pred_region
    _
  $region21: #{_lambda_.38} parent=0 // pred_fallthru
    _
  // Predicated region
  $region22: #{_lambda_.38} parent=0 // pred_check
    _
  $region23: #{_lambda_.38} parent=0 // pred_check_branch
    %116 = sbr.rel (0) target = $region25
  $region24: #{_lambda_.38} parent=0 // pred_region
    _
  $region25: #{_lambda_.38} parent=0 // pred_fallthru
    _

// kernel: _lambda_.39
$region0: #{_lambda_.39}
  #allocation0 [shape = 'u32[]', space=smem, size = 0x4, offset = 0x4, fixed_abs, tag = 'smem constant byte address 0x4 - core index']
  #allocation1 [shape = 'u32[144,128]{1,0:T(1,128)}', space=vmem, size = 0x12000, scoped, tag = 'internal scratch']
  %s0 = inlined_call_operand.vmem [shape: bf16[2,576], index: 0, kind: input, shape index: {}]
  %s1 = inlined_call_operand.vmem [shape: bf16[576,128], index: 1, kind: input, shape index: {}]
  %s2 = inlined_call_operand.vmem [shape: f32[1,128], index: 2, kind: input, shape index: {}]
  %s3 = inlined_call_operand.vmem [shape: f32[1,128], index: 3, kind: input, shape index: {}]
  %s4 = inlined_call_operand.vmem [shape: bf16[2,128], index: 4, kind: output, shape index: {}]
  %s5 = sld [smem:[#allocation0]]
  $region26: #{_lambda_.39} parent=0
    _
  %s7 = ssub.s32 1, %s5
  %s8 = scalar_select 0, %s7, %s5
  // Predicated region
  $region2: #{_lambda_.39} parent=0 // pred_check
    _
  $region3: #{_lambda_.39} parent=0 // pred_check_branch
    %10 = sbr.rel (0) target = $region5
  $region4: #{_lambda_.39} parent=0 // pred_region
    _
  $region5: #{_lambda_.39} parent=0 // pred_fallthru
    _
  // Predicated region
  $region6: #{_lambda_.39} parent=0 // pred_check
    _
  $region7: #{_lambda_.39} parent=0 // pred_check_branch
    %12 = sbr.rel (0) target = $region9
  $region8: #{_lambda_.39} parent=0 // pred_region
    _
  $region9: #{_lambda_.39} parent=0 // pred_fallthru
    _
  // Predicated region
  $region10: #{_lambda_.39} parent=0 // pred_check
    _
  $region11: #{_lambda_.39} parent=0 // pred_check_branch
    %14 = sbr.rel (0) target = $region13
  $region12: #{_lambda_.39} parent=0 // pred_region
    _
  $region13: #{_lambda_.39} parent=0 // pred_fallthru
    _
  // Predicated region
  $region14: #{_lambda_.39} parent=0 // pred_check
    _
  $region15: #{_lambda_.39} parent=0 // pred_check_branch
    %16 = sbr.rel (0) target = $region17
  $region16: #{_lambda_.39} parent=0 // pred_region
    _
  $region17: #{_lambda_.39} parent=0 // pred_fallthru
    _
  %v18 = vld [vmem:[%s0] sm:$0x1f]
  %v19 = vld [vmem:[%s1] sm:$0xf]
  %v20 = vld [vmem:[%s1 + $0x4] sm:$0xf]
  %v21 = vld [vmem:[%s1 + $0x8] sm:$0xf]
  %v22 = vld [vmem:[%s1 + $0xc] sm:$0xf]
  %v23 = vld [vmem:[%s1 + $0x10] sm:$0xf]
  %v24 = vld [vmem:[%s1 + $0x14] sm:$0xf]
  %v25 = vld [vmem:[%s1 + $0x18] sm:$0xf]
  %v26 = vld [vmem:[%s1 + $0x1c] sm:$0xf]
  %v27 = vld [vmem:[%s1 + $0x20] sm:$0xf]
  %v28 = vld [vmem:[%s1 + $0x24] sm:$0xf]
  %v29 = vld [vmem:[%s1 + $0x28] sm:$0xf]
  %v30 = vld [vmem:[%s1 + $0x2c] sm:$0xf]
  %v31 = vld [vmem:[%s1 + $0x30] sm:$0xf]
  %v32 = vld [vmem:[%s1 + $0x34] sm:$0xf]
  %v33 = vld [vmem:[%s1 + $0x38] sm:$0xf]
  %v34 = vld [vmem:[%s1 + $0x3c] sm:$0xf]
  %v35 = vld [vmem:[%s1 + $0x40] sm:$0xf]
  %v36 = vld [vmem:[%s1 + $0x44] sm:$0xf]
  %v37 = vld [vmem:[%s1 + $0x48] sm:$0xf]
  %v38 = vld [vmem:[%s1 + $0x4c] sm:$0xf]
  %v39 = vld [vmem:[%s1 + $0x50] sm:$0xf]
  %v40 = vld [vmem:[%s1 + $0x54] sm:$0xf]
  %v41 = vld [vmem:[%s1 + $0x58] sm:$0xf]
  %v42 = vld [vmem:[%s1 + $0x5c] sm:$0xf]
  %v43 = vld [vmem:[%s1 + $0x60] sm:$0xf]
  %v44 = vld [vmem:[%s1 + $0x64] sm:$0xf]
  %v45 = vld [vmem:[%s1 + $0x68] sm:$0xf]
  %v46 = vld [vmem:[%s1 + $0x6c] sm:$0xf]
  %v47 = vld [vmem:[%s1 + $0x70] sm:$0xf]
  %v48 = vld [vmem:[%s1 + $0x74] sm:$0xf]
  %v49 = vld [vmem:[%s1 + $0x78] sm:$0xf]
  %v50 = vld [vmem:[%s1 + $0x7c] sm:$0xf]
  %v51 = vld [vmem:[%s1 + $0x80] sm:$0xf]
  %v52 = vld [vmem:[%s1 + $0x84] sm:$0xf]
  %v53 = vld [vmem:[%s1 + $0x88] sm:$0xf]
  %v54 = vld [vmem:[%s1 + $0x8c] sm:$0xf]
  %v55 = vld [vmem:[%s1 + $0x90] sm:$0xf]
  %v56 = vld [vmem:[%s1 + $0x94] sm:$0xf]
  %v57 = vld [vmem:[%s1 + $0x98] sm:$0xf]
  %v58 = vld [vmem:[%s1 + $0x9c] sm:$0xf]
  %v59 = vld [vmem:[%s1 + $0xa0] sm:$0xf]
  %v60 = vld [vmem:[%s1 + $0xa4] sm:$0xf]
  %v61 = vld [vmem:[%s1 + $0xa8] sm:$0xf]
  %v62 = vld [vmem:[%s1 + $0xac] sm:$0xf]
  %v63 = vld [vmem:[%s1 + $0xb0] sm:$0xf]
  %v64 = vld [vmem:[%s1 + $0xb4] sm:$0xf]
  %v65 = vld [vmem:[%s1 + $0xb8] sm:$0xf]
  %v66 = vld [vmem:[%s1 + $0xbc] sm:$0xf]
  %v67 = vld [vmem:[%s1 + $0xc0] sm:$0xf]
  %v68 = vld [vmem:[%s1 + $0xc4] sm:$0xf]
  %v69 = vld [vmem:[%s1 + $0xc8] sm:$0xf]
  %v70 = vld [vmem:[%s1 + $0xcc] sm:$0xf]
  %v71 = vld [vmem:[%s1 + $0xd0] sm:$0xf]
  %v72 = vld [vmem:[%s1 + $0xd4] sm:$0xf]
  %v73 = vld [vmem:[%s1 + $0xd8] sm:$0xf]
  %v74 = vld [vmem:[%s1 + $0xdc] sm:$0xf]
  %v75 = vld [vmem:[%s1 + $0xe0] sm:$0xf]
  %v76 = vld [vmem:[%s1 + $0xe4] sm:$0xf]
  %v77 = vld [vmem:[%s1 + $0xe8] sm:$0xf]
  %v78 = vld [vmem:[%s1 + $0xec] sm:$0xf]
  %v79 = vld [vmem:[%s1 + $0xf0] sm:$0xf]
  %v80 = vld [vmem:[%s1 + $0xf4] sm:$0xf]
  %v81 = vld [vmem:[%s1 + $0xf8] sm:$0xf]
  %v82 = vld [vmem:[%s1 + $0xfc] sm:$0xf]
  %v83 = vld [vmem:[%s1 + $0x100] sm:$0xf]
  %v84 = vld [vmem:[%s1 + $0x104] sm:$0xf]
  %v85 = vld [vmem:[%s1 + $0x108] sm:$0xf]
  %v86 = vld [vmem:[%s1 + $0x10c] sm:$0xf]
  %v87 = vld [vmem:[%s1 + $0x110] sm:$0xf]
  %v88 = vld [vmem:[%s1 + $0x114] sm:$0xf]
  %v89 = vld [vmem:[%s1 + $0x118] sm:$0xf]
  %v90 = vld [vmem:[%s1 + $0x11c] sm:$0xf]
  %v92 = vcombine.high %v18, %v18
  %v94 = vunpack.c.l.s4 1966171168
  %v95 = vunpack.c.0.s8 %v94
  %v96 = vlaneseq
  %v97 = vshrl.u32 %v96, 7
  %v98 = vsub.s32 %v95, %v97
  %v99 = vrot.slane %v18, %v98
  %v101 = vunpack.c.l.s4 1966171168
  %v102 = vunpack.c.0.s8 %v101
  %v103 = vlaneseq
  %v104 = vshrl.u32 %v103, 7
  %v105 = vsub.s32 %v102, %v104
  %v106 = vrot.slane %v92, %v105
  %v107 = vcombine.high %v99, %v99
  %v109 = vunpack.c.l.s4 1966171168
  %v110 = vunpack.c.0.s8 %v109
  %v111 = vlaneseq
  %v112 = vshrl.u32 %v111, 7
  %v113 = vsub.s32 %v110, %v112
  %v114 = vrot.slane %v99, %v113
  %v116 = vunpack.c.l.s4 1966171168
  %v117 = vunpack.c.0.s8 %v116
  %v118 = vlaneseq
  %v119 = vshrl.u32 %v118, 7
  %v120 = vsub.s32 %v117, %v119
  %v121 = vrot.slane %v106, %v120
  %v123 = vunpack.c.l.s4 1966171168
  %v124 = vunpack.c.0.s8 %v123
  %v125 = vlaneseq
  %v126 = vshrl.u32 %v125, 7
  %v127 = vsub.s32 %v124, %v126
  %v128 = vrot.slane %v107, %v127
  %v129 = vcombine.high %v114, %v114
  %v130 = vcombine.high %v128, %v128
  %v207 = vunpack.c.l.b16 %v19
  %v208 = vunpack.c.l.b16 %v20
  %v209 = vunpack.c.l.b16 %v21
  %v210 = vunpack.c.l.b16 %v22
  %v211 = vunpack.c.l.b16 %v23
  %v212 = vunpack.c.l.b16 %v24
  %v213 = vunpack.c.l.b16 %v25
  %v214 = vunpack.c.l.b16 %v26
  %v215 = vunpack.c.l.b16 %v27
  %v216 = vunpack.c.l.b16 %v28
  %v217 = vunpack.c.l.b16 %v29
  %v218 = vunpack.c.l.b16 %v30
  %v219 = vunpack.c.l.b16 %v31
  %v220 = vunpack.c.l.b16 %v32
  %v221 = vunpack.c.l.b16 %v33
  %v222 = vunpack.c.l.b16 %v34
  %v223 = vunpack.c.l.b16 %v35
  %v224 = vunpack.c.l.b16 %v36
  %v225 = vunpack.c.l.b16 %v37
  %v226 = vunpack.c.l.b16 %v38
  %v227 = vunpack.c.l.b16 %v39
  %v228 = vunpack.c.l.b16 %v40
  %v229 = vunpack.c.l.b16 %v41
  %v230 = vunpack.c.l.b16 %v42
  %v231 = vunpack.c.l.b16 %v43
  %v232 = vunpack.c.l.b16 %v44
  %v233 = vunpack.c.l.b16 %v45
  %v234 = vunpack.c.l.b16 %v46
  %v235 = vunpack.c.l.b16 %v47
  %v236 = vunpack.c.l.b16 %v48
  %v237 = vunpack.c.l.b16 %v49
  %v238 = vunpack.c.l.b16 %v50
  %v239 = vunpack.c.l.b16 %v51
  %v240 = vunpack.c.l.b16 %v52
  %v241 = vunpack.c.l.b16 %v53
  %v242 = vunpack.c.l.b16 %v54
  %v243 = vunpack.c.l.b16 %v55
  %v244 = vunpack.c.l.b16 %v56
  %v245 = vunpack.c.l.b16 %v57
  %v246 = vunpack.c.l.b16 %v58
  %v247 = vunpack.c.l.b16 %v59
  %v248 = vunpack.c.l.b16 %v60
  %v249 = vunpack.c.l.b16 %v61
  %v250 = vunpack.c.l.b16 %v62
  %v251 = vunpack.c.l.b16 %v63
  %v252 = vunpack.c.l.b16 %v64
  %v253 = vunpack.c.l.b16 %v65
  %v254 = vunpack.c.l.b16 %v66
  %v255 = vunpack.c.l.b16 %v67
  %v256 = vunpack.c.l.b16 %v68
  %v257 = vunpack.c.l.b16 %v69
  %v258 = vunpack.c.l.b16 %v70
  %v259 = vunpack.c.l.b16 %v71
  %v260 = vunpack.c.l.b16 %v72
  %v261 = vunpack.c.l.b16 %v73
  %v262 = vunpack.c.l.b16 %v74
  %v263 = vunpack.c.l.b16 %v75
  %v264 = vunpack.c.l.b16 %v76
  %v265 = vunpack.c.l.b16 %v77
  %v266 = vunpack.c.l.b16 %v78
  %v267 = vunpack.c.l.b16 %v79
  %v268 = vunpack.c.l.b16 %v80
  %v269 = vunpack.c.l.b16 %v81
  %v270 = vunpack.c.l.b16 %v82
  %v271 = vunpack.c.l.b16 %v83
  %v272 = vunpack.c.l.b16 %v84
  %v273 = vunpack.c.l.b16 %v85
  %v274 = vunpack.c.l.b16 %v86
  %v275 = vunpack.c.l.b16 %v87
  %v276 = vunpack.c.l.b16 %v88
  %v277 = vunpack.c.l.b16 %v89
  %v278 = vunpack.c.l.b16 %v90
  %v279 = vpack.c.b16 %v208, %v207
  %v280 = vpack.c.b16 %v210, %v209
  %v281 = vpack.c.b16 %v212, %v211
  %v282 = vpack.c.b16 %v214, %v213
  %v283 = vpack.c.b16 %v216, %v215
  %v284 = vpack.c.b16 %v218, %v217
  %v285 = vpack.c.b16 %v220, %v219
  %v286 = vpack.c.b16 %v222, %v221
  %v287 = vpack.c.b16 %v224, %v223
  %v288 = vpack.c.b16 %v226, %v225
  %v289 = vpack.c.b16 %v228, %v227
  %v290 = vpack.c.b16 %v230, %v229
  %v291 = vpack.c.b16 %v232, %v231
  %v292 = vpack.c.b16 %v234, %v233
  %v293 = vpack.c.b16 %v236, %v235
  %v294 = vpack.c.b16 %v238, %v237
  %v295 = vpack.c.b16 %v240, %v239
  %v296 = vpack.c.b16 %v242, %v241
  %v297 = vpack.c.b16 %v244, %v243
  %v298 = vpack.c.b16 %v246, %v245
  %v299 = vpack.c.b16 %v248, %v247
  %v300 = vpack.c.b16 %v250, %v249
  %v301 = vpack.c.b16 %v252, %v251
  %v302 = vpack.c.b16 %v254, %v253
  %v303 = vpack.c.b16 %v256, %v255
  %v304 = vpack.c.b16 %v258, %v257
  %v305 = vpack.c.b16 %v260, %v259
  %v306 = vpack.c.b16 %v262, %v261
  %v307 = vpack.c.b16 %v264, %v263
  %v308 = vpack.c.b16 %v266, %v265
  %v309 = vpack.c.b16 %v268, %v267
  %v310 = vpack.c.b16 %v270, %v269
  %v311 = vpack.c.b16 %v272, %v271
  %v312 = vpack.c.b16 %v274, %v273
  %v313 = vpack.c.b16 %v276, %v275
  %v314 = vpack.c.b16 %v278, %v277
  %vm351 = vcmask 523264
  %v353 = vsel %vm351, %v121, 0
  %355 = vmatprep.subr.bf16.mxu0 0
  %356 = vmatpush1.bf16.msra.mxu0 %v279
  %357 = vmatprep.subr.bf16.mxu0 0
  %358 = vmatpush1.bf16.msra.mxu0 %v280
  %359 = vmatprep.subr.bf16.mxu0 0
  %360 = vmatpush1.bf16.msra.mxu0 %v281
  %361 = vmatprep.subr.bf16.mxu0 0
  %362 = vmatpush1.bf16.msra.mxu0 %v282
  %363 = vmatprep.subr.bf16.mxu0 0
  %364 = vmatpush1.bf16.msra.mxu0 %v283
  %365 = vmatprep.subr.bf16.mxu0 0
  %366 = vmatpush1.bf16.msra.mxu0 %v284
  %367 = vmatprep.subr.bf16.mxu0 0
  %368 = vmatpush1.bf16.msra.mxu0 %v285
  %369 = vmatprep.subr.bf16.mxu0 0
  %370 = vmatpush1.bf16.msra.mxu0 %v286
  %371 = vmatprep.subr.bf16.mxu0 0
  %372 = vmatpush1.bf16.msra.mxu0 %v287
  %373 = vmatprep.subr.bf16.mxu0 0
  %374 = vmatpush1.bf16.msra.mxu0 %v288
  %375 = vmatprep.subr.bf16.mxu0 0
  %376 = vmatpush1.bf16.msra.mxu0 %v289
  %377 = vmatprep.subr.bf16.mxu0 0
  %378 = vmatpush1.bf16.msra.mxu0 %v290
  %379 = vmatprep.subr.bf16.mxu0 0
  %380 = vmatpush1.bf16.msra.mxu0 %v291
  %381 = vmatprep.subr.bf16.mxu0 0
  %382 = vmatpush1.bf16.msra.mxu0 %v292
  %383 = vmatprep.subr.bf16.mxu0 0
  %384 = vmatpush1.bf16.msra.mxu0 %v293
  %385 = vmatprep.subr.bf16.mxu0 0
  %386 = vmatpush1.bf16.msra.mxu0 %v294
  %387 = vmatprep.mubr.bf16.mxu0 %v128
  %388 = vmatmul.mubr.bf16.gmra.mrb[0].mxu0 %v114
  %v389 = vpop.f32.mrb[0].mxu0
  %v390 = vadd.f32 0.0, %v389
  %v391 = vpop.f32.mrb[0].mxu0
  %v392 = vpop.f32.mrb[0].mxu0
  %v393 = vpop.f32.mrb[0].mxu0
  %394 = vdwg.mxu0
  %395 = vmatprep.subr.bf16.mxu0 0
  %396 = vmatpush1.bf16.msra.mxu0 %v295
  %397 = vmatprep.subr.bf16.mxu0 0
  %398 = vmatpush1.bf16.msra.mxu0 %v296
  %399 = vmatprep.subr.bf16.mxu0 0
  %400 = vmatpush1.bf16.msra.mxu0 %v297
  %401 = vmatprep.subr.bf16.mxu0 0
  %402 = vmatpush1.bf16.msra.mxu0 %v298
  %403 = vmatprep.subr.bf16.mxu0 0
  %404 = vmatpush1.bf16.msra.mxu0 %v299
  %405 = vmatprep.subr.bf16.mxu0 0
  %406 = vmatpush1.bf16.msra.mxu0 %v300
  %407 = vmatprep.subr.bf16.mxu0 0
  %408 = vmatpush1.bf16.msra.mxu0 %v301
  %409 = vmatprep.subr.bf16.mxu0 0
  %410 = vmatpush1.bf16.msra.mxu0 %v302
  %411 = vmatprep.subr.bf16.mxu0 0
  %412 = vmatpush1.bf16.msra.mxu0 %v303
  %413 = vmatprep.subr.bf16.mxu0 0
  %414 = vmatpush1.bf16.msra.mxu0 %v304
  %415 = vmatprep.subr.bf16.mxu0 0
  %416 = vmatpush1.bf16.msra.mxu0 %v305
  %417 = vmatprep.subr.bf16.mxu0 0
  %418 = vmatpush1.bf16.msra.mxu0 %v306
  %419 = vmatprep.subr.bf16.mxu0 0
  %420 = vmatpush1.bf16.msra.mxu0 %v307
  %421 = vmatprep.subr.bf16.mxu0 0
  %422 = vmatpush1.bf16.msra.mxu0 %v308
  %423 = vmatprep.subr.bf16.mxu0 0
  %424 = vmatpush1.bf16.msra.mxu0 %v309
  %425 = vmatprep.subr.bf16.mxu0 0
  %426 = vmatpush1.bf16.msra.mxu0 %v310
  %427 = vmatprep.mubr.bf16.mxu0 %v130
  %428 = vmatmul.mubr.bf16.gmra.mrb[0].mxu0 %v129
  %v429 = vpop.f32.mrb[0].mxu0
  %v430 = vadd.f32 %v390, %v429
  %v431 = vpop.f32.mrb[0].mxu0
  %v432 = vpop.f32.mrb[0].mxu0
  %v433 = vpop.f32.mrb[0].mxu0
  %434 = vdwg.mxu0
  %435 = vmatprep.subr.bf16.mxu0 0
  %436 = vmatpush1.bf16.msra.mxu0 %v311
  %437 = vmatprep.subr.bf16.mxu0 0
  %438 = vmatpush1.bf16.msra.mxu0 %v312
  %439 = vmatprep.subr.bf16.mxu0 0
  %440 = vmatpush1.bf16.msra.mxu0 %v313
  %441 = vmatprep.subr.bf16.mxu0 0
  %442 = vmatpush1.bf16.msra.mxu0 %v314
  %443 = vmatprep.subr.bf16.mxu0 0
  %444 = vmatpush1.bf16.msra.mxu0 0
  %445 = vmatprep.subr.bf16.mxu0 0
  %446 = vmatpush1.bf16.msra.mxu0 0
  %447 = vmatprep.subr.bf16.mxu0 0
  %448 = vmatpush1.bf16.msra.mxu0 0
  %449 = vmatprep.subr.bf16.mxu0 0
  %450 = vmatpush1.bf16.msra.mxu0 0
  %451 = vmatprep.subr.bf16.mxu0 0
  %452 = vmatpush1.bf16.msra.mxu0 0
  %453 = vmatprep.subr.bf16.mxu0 0
  %454 = vmatpush1.bf16.msra.mxu0 0
  %455 = vmatprep.subr.bf16.mxu0 0
  %456 = vmatpush1.bf16.msra.mxu0 0
  %457 = vmatprep.subr.bf16.mxu0 0
  %458 = vmatpush1.bf16.msra.mxu0 0
  %459 = vmatprep.subr.bf16.mxu0 0
  %460 = vmatpush1.bf16.msra.mxu0 0
  %461 = vmatprep.subr.bf16.mxu0 0
  %462 = vmatpush1.bf16.msra.mxu0 0
  %463 = vmatprep.subr.bf16.mxu0 0
  %464 = vmatpush1.bf16.msra.mxu0 0
  %465 = vmatprep.subr.bf16.mxu0 0
  %466 = vmatpush1.bf16.msra.mxu0 0
  %467 = vmatprep.mubr.bf16.mxu0 0
  %468 = vmatmul.mubr.bf16.gmra.mrb[0].mxu0 %v353
  %v469 = vpop.f32.mrb[0].mxu0
  %v470 = vadd.f32 %v430, %v469
  %v471 = vpop.f32.mrb[0].mxu0
  %v472 = vpop.f32.mrb[0].mxu0
  %v473 = vpop.f32.mrb[0].mxu0
  %474 = vdwg.mxu0
  %v475 = vld [vmem:[%s2] sm:$0x1]
  %v477 = vlaneseq
  %v478 = vshrl.u32 %v477, 7
  %v479 = vsub.s32 0, %v478
  %v480 = vrot.slane %v475, %v479
  %v482 = vmul.f32 %v470, %v480
  %v483 = vld [vmem:[%s3] sm:$0x1]
  %v485 = vlaneseq
  %v486 = vshrl.u32 %v485, 7
  %v487 = vsub.s32 0, %v486
  %v488 = vrot.slane %v483, %v487
  %v490 = vadd.f32 %v482, %v488
  %v491 = vmax.f32 %v490, 0.0
  %v492 = vpack.c.bf16 %v491, %v491
  %493 = vst [vmem:[%s4] sm:$0x1] %v492
  // Predicated region
  $region18: #{_lambda_.39} parent=0 // pred_check
    _
  $region19: #{_lambda_.39} parent=0 // pred_check_branch
    %495 = sbr.rel (0) target = $region21
  $region20: #{_lambda_.39} parent=0 // pred_region
    _
  $region21: #{_lambda_.39} parent=0 // pred_fallthru
    _
  // Predicated region
  $region22: #{_lambda_.39} parent=0 // pred_check
    _
  $region23: #{_lambda_.39} parent=0 // pred_check_branch
    %497 = sbr.rel (0) target = $region25
  $region24: #{_lambda_.39} parent=0 // pred_region
    _
  $region25: #{_lambda_.39} parent=0 // pred_fallthru
    _

// kernel: _lambda_.40
$region0: #{_lambda_.40}
  #allocation0 [shape = 'u32[]', space=smem, size = 0x4, offset = 0x4, fixed_abs, tag = 'smem constant byte address 0x4 - core index']
  #allocation1 [shape = 'u32[144,128]{1,0:T(1,128)}', space=vmem, size = 0x12000, scoped, tag = 'internal scratch']
  %s0 = inlined_call_operand.vmem [shape: bf16[2,1152], index: 0, kind: input, shape index: {}]
  %s1 = inlined_call_operand.vmem [shape: bf16[1152,128], index: 1, kind: input, shape index: {}]
  %s2 = inlined_call_operand.vmem [shape: f32[1,128], index: 2, kind: input, shape index: {}]
  %s3 = inlined_call_operand.vmem [shape: f32[1,128], index: 3, kind: input, shape index: {}]
  %s4 = inlined_call_operand.vmem [shape: bf16[2,128], index: 4, kind: input, shape index: {}]
  %s5 = inlined_call_operand.vmem [shape: bf16[2,128], index: 5, kind: output, shape index: {}]
  %s6 = sld [smem:[#allocation0]]
  $region30: #{_lambda_.40} parent=0
    _
  %s8 = ssub.s32 1, %s6
  %s9 = scalar_select 0, %s8, %s6
  // Predicated region
  $region2: #{_lambda_.40} parent=0 // pred_check
    _
  $region3: #{_lambda_.40} parent=0 // pred_check_branch
    %11 = sbr.rel (0) target = $region5
  $region4: #{_lambda_.40} parent=0 // pred_region
    _
  $region5: #{_lambda_.40} parent=0 // pred_fallthru
    _
  // Predicated region
  $region6: #{_lambda_.40} parent=0 // pred_check
    _
  $region7: #{_lambda_.40} parent=0 // pred_check_branch
    %13 = sbr.rel (0) target = $region9
  $region8: #{_lambda_.40} parent=0 // pred_region
    _
  $region9: #{_lambda_.40} parent=0 // pred_fallthru
    _
  // Predicated region
  $region10: #{_lambda_.40} parent=0 // pred_check
    _
  $region11: #{_lambda_.40} parent=0 // pred_check_branch
    %15 = sbr.rel (0) target = $region13
  $region12: #{_lambda_.40} parent=0 // pred_region
    _
  $region13: #{_lambda_.40} parent=0 // pred_fallthru
    _
  // Predicated region
  $region14: #{_lambda_.40} parent=0 // pred_check
    _
  $region15: #{_lambda_.40} parent=0 // pred_check_branch
    %17 = sbr.rel (0) target = $region17
  $region16: #{_lambda_.40} parent=0 // pred_region
    _
  $region17: #{_lambda_.40} parent=0 // pred_fallthru
    _
  // Predicated region
  $region18: #{_lambda_.40} parent=0 // pred_check
    _
  $region19: #{_lambda_.40} parent=0 // pred_check_branch
    %19 = sbr.rel (0) target = $region21
  $region20: #{_lambda_.40} parent=0 // pred_region
    _
  $region21: #{_lambda_.40} parent=0 // pred_fallthru
    _
  %v21 = vld [vmem:[%s0] sm:$0xff]
  %v22 = vld [vmem:[%s0 + $0x8] sm:$0x1]
  %v23 = vld [vmem:[%s1] sm:$0xf]
  %v24 = vld [vmem:[%s1 + $0x4] sm:$0xf]
  %v25 = vld [vmem:[%s1 + $0x8] sm:$0xf]
  %v26 = vld [vmem:[%s1 + $0xc] sm:$0xf]
  %v27 = vld [vmem:[%s1 + $0x10] sm:$0xf]
  %v28 = vld [vmem:[%s1 + $0x14] sm:$0xf]
  %v29 = vld [vmem:[%s1 + $0x18] sm:$0xf]
  %v30 = vld [vmem:[%s1 + $0x1c] sm:$0xf]
  %v31 = vld [vmem:[%s1 + $0x20] sm:$0xf]
  %v32 = vld [vmem:[%s1 + $0x24] sm:$0xf]
  %v33 = vld [vmem:[%s1 + $0x28] sm:$0xf]
  %v34 = vld [vmem:[%s1 + $0x2c] sm:$0xf]
  %v35 = vld [vmem:[%s1 + $0x30] sm:$0xf]
  %v36 = vld [vmem:[%s1 + $0x34] sm:$0xf]
  %v37 = vld [vmem:[%s1 + $0x38] sm:$0xf]
  %v38 = vld [vmem:[%s1 + $0x3c] sm:$0xf]
  %v39 = vld [vmem:[%s1 + $0x40] sm:$0xf]
  %v40 = vld [vmem:[%s1 + $0x44] sm:$0xf]
  %v41 = vld [vmem:[%s1 + $0x48] sm:$0xf]
  %v42 = vld [vmem:[%s1 + $0x4c] sm:$0xf]
  %v43 = vld [vmem:[%s1 + $0x50] sm:$0xf]
  %v44 = vld [vmem:[%s1 + $0x54] sm:$0xf]
  %v45 = vld [vmem:[%s1 + $0x58] sm:$0xf]
  %v46 = vld [vmem:[%s1 + $0x5c] sm:$0xf]
  %v47 = vld [vmem:[%s1 + $0x60] sm:$0xf]
  %v48 = vld [vmem:[%s1 + $0x64] sm:$0xf]
  %v49 = vld [vmem:[%s1 + $0x68] sm:$0xf]
  %v50 = vld [vmem:[%s1 + $0x6c] sm:$0xf]
  %v51 = vld [vmem:[%s1 + $0x70] sm:$0xf]
  %v52 = vld [vmem:[%s1 + $0x74] sm:$0xf]
  %v53 = vld [vmem:[%s1 + $0x78] sm:$0xf]
  %v54 = vld [vmem:[%s1 + $0x7c] sm:$0xf]
  %v55 = vld [vmem:[%s1 + $0x80] sm:$0xf]
  %v56 = vld [vmem:[%s1 + $0x84] sm:$0xf]
  %v57 = vld [vmem:[%s1 + $0x88] sm:$0xf]
  %v58 = vld [vmem:[%s1 + $0x8c] sm:$0xf]
  %v59 = vld [vmem:[%s1 + $0x90] sm:$0xf]
  %v60 = vld [vmem:[%s1 + $0x94] sm:$0xf]
  %v61 = vld [vmem:[%s1 + $0x98] sm:$0xf]
  %v62 = vld [vmem:[%s1 + $0x9c] sm:$0xf]
  %v63 = vld [vmem:[%s1 + $0xa0] sm:$0xf]
  %v64 = vld [vmem:[%s1 + $0xa4] sm:$0xf]
  %v65 = vld [vmem:[%s1 + $0xa8] sm:$0xf]
  %v66 = vld [vmem:[%s1 + $0xac] sm:$0xf]
  %v67 = vld [vmem:[%s1 + $0xb0] sm:$0xf]
  %v68 = vld [vmem:[%s1 + $0xb4] sm:$0xf]
  %v69 = vld [vmem:[%s1 + $0xb8] sm:$0xf]
  %v70 = vld [vmem:[%s1 + $0xbc] sm:$0xf]
  %v71 = vld [vmem:[%s1 + $0xc0] sm:$0xf]
  %v72 = vld [vmem:[%s1 + $0xc4] sm:$0xf]
  %v73 = vld [vmem:[%s1 + $0xc8] sm:$0xf]
  %v74 = vld [vmem:[%s1 + $0xcc] sm:$0xf]
  %v75 = vld [vmem:[%s1 + $0xd0] sm:$0xf]
  %v76 = vld [vmem:[%s1 + $0xd4] sm:$0xf]
  %v77 = vld [vmem:[%s1 + $0xd8] sm:$0xf]
  %v78 = vld [vmem:[%s1 + $0xdc] sm:$0xf]
  %v79 = vld [vmem:[%s1 + $0xe0] sm:$0xf]
  %v80 = vld [vmem:[%s1 + $0xe4] sm:$0xf]
  %v81 = vld [vmem:[%s1 + $0xe8] sm:$0xf]
  %v82 = vld [vmem:[%s1 + $0xec] sm:$0xf]
  %v83 = vld [vmem:[%s1 + $0xf0] sm:$0xf]
  %v84 = vld [vmem:[%s1 + $0xf4] sm:$0xf]
  %v85 = vld [vmem:[%s1 + $0xf8] sm:$0xf]
  %v86 = vld [vmem:[%s1 + $0xfc] sm:$0xf]
  %v87 = vld [vmem:[%s1 + $0x100] sm:$0xf]
  %v88 = vld [vmem:[%s1 + $0x104] sm:$0xf]
  %v89 = vld [vmem:[%s1 + $0x108] sm:$0xf]
  %v90 = vld [vmem:[%s1 + $0x10c] sm:$0xf]
  %v91 = vld [vmem:[%s1 + $0x110] sm:$0xf]
  %v92 = vld [vmem:[%s1 + $0x114] sm:$0xf]
  %v93 = vld [vmem:[%s1 + $0x118] sm:$0xf]
  %v94 = vld [vmem:[%s1 + $0x11c] sm:$0xf]
  %v95 = vld [vmem:[%s1 + $0x120] sm:$0xf]
  %v96 = vld [vmem:[%s1 + $0x124] sm:$0xf]
  %v97 = vld [vmem:[%s1 + $0x128] sm:$0xf]
  %v98 = vld [vmem:[%s1 + $0x12c] sm:$0xf]
  %v99 = vld [vmem:[%s1 + $0x130] sm:$0xf]
  %v100 = vld [vmem:[%s1 + $0x134] sm:$0xf]
  %v101 = vld [vmem:[%s1 + $0x138] sm:$0xf]
  %v102 = vld [vmem:[%s1 + $0x13c] sm:$0xf]
  %v103 = vld [vmem:[%s1 + $0x140] sm:$0xf]
  %v104 = vld [vmem:[%s1 + $0x144] sm:$0xf]
  %v105 = vld [vmem:[%s1 + $0x148] sm:$0xf]
  %v106 = vld [vmem:[%s1 + $0x14c] sm:$0xf]
  %v107 = vld [vmem:[%s1 + $0x150] sm:$0xf]
  %v108 = vld [vmem:[%s1 + $0x154] sm:$0xf]
  %v109 = vld [vmem:[%s1 + $0x158] sm:$0xf]
  %v110 = vld [vmem:[%s1 + $0x15c] sm:$0xf]
  %v111 = vld [vmem:[%s1 + $0x160] sm:$0xf]
  %v112 = vld [vmem:[%s1 + $0x164] sm:$0xf]
  %v113 = vld [vmem:[%s1 + $0x168] sm:$0xf]
  %v114 = vld [vmem:[%s1 + $0x16c] sm:$0xf]
  %v115 = vld [vmem:[%s1 + $0x170] sm:$0xf]
  %v116 = vld [vmem:[%s1 + $0x174] sm:$0xf]
  %v117 = vld [vmem:[%s1 + $0x178] sm:$0xf]
  %v118 = vld [vmem:[%s1 + $0x17c] sm:$0xf]
  %v119 = vld [vmem:[%s1 + $0x180] sm:$0xf]
  %v120 = vld [vmem:[%s1 + $0x184] sm:$0xf]
  %v121 = vld [vmem:[%s1 + $0x188] sm:$0xf]
  %v122 = vld [vmem:[%s1 + $0x18c] sm:$0xf]
  %v123 = vld [vmem:[%s1 + $0x190] sm:$0xf]
  %v124 = vld [vmem:[%s1 + $0x194] sm:$0xf]
  %v125 = vld [vmem:[%s1 + $0x198] sm:$0xf]
  %v126 = vld [vmem:[%s1 + $0x19c] sm:$0xf]
  %v127 = vld [vmem:[%s1 + $0x1a0] sm:$0xf]
  %v128 = vld [vmem:[%s1 + $0x1a4] sm:$0xf]
  %v129 = vld [vmem:[%s1 + $0x1a8] sm:$0xf]
  %v130 = vld [vmem:[%s1 + $0x1ac] sm:$0xf]
  %v131 = vld [vmem:[%s1 + $0x1b0] sm:$0xf]
  %v132 = vld [vmem:[%s1 + $0x1b4] sm:$0xf]
  %v133 = vld [vmem:[%s1 + $0x1b8] sm:$0xf]
  %v134 = vld [vmem:[%s1 + $0x1bc] sm:$0xf]
  %v135 = vld [vmem:[%s1 + $0x1c0] sm:$0xf]
  %v136 = vld [vmem:[%s1 + $0x1c4] sm:$0xf]
  %v137 = vld [vmem:[%s1 + $0x1c8] sm:$0xf]
  %v138 = vld [vmem:[%s1 + $0x1cc] sm:$0xf]
  %v139 = vld [vmem:[%s1 + $0x1d0] sm:$0xf]
  %v140 = vld [vmem:[%s1 + $0x1d4] sm:$0xf]
  %v141 = vld [vmem:[%s1 + $0x1d8] sm:$0xf]
  %v142 = vld [vmem:[%s1 + $0x1dc] sm:$0xf]
  %v143 = vld [vmem:[%s1 + $0x1e0] sm:$0xf]
  %v144 = vld [vmem:[%s1 + $0x1e4] sm:$0xf]
  %v145 = vld [vmem:[%s1 + $0x1e8] sm:$0xf]
  %v146 = vld [vmem:[%s1 + $0x1ec] sm:$0xf]
  %v147 = vld [vmem:[%s1 + $0x1f0] sm:$0xf]
  %v148 = vld [vmem:[%s1 + $0x1f4] sm:$0xf]
  %v149 = vld [vmem:[%s1 + $0x1f8] sm:$0xf]
  %v150 = vld [vmem:[%s1 + $0x1fc] sm:$0xf]
  %v151 = vld [vmem:[%s1 + $0x200] sm:$0xf]
  %v152 = vld [vmem:[%s1 + $0x204] sm:$0xf]
  %v153 = vld [vmem:[%s1 + $0x208] sm:$0xf]
  %v154 = vld [vmem:[%s1 + $0x20c] sm:$0xf]
  %v155 = vld [vmem:[%s1 + $0x210] sm:$0xf]
  %v156 = vld [vmem:[%s1 + $0x214] sm:$0xf]
  %v157 = vld [vmem:[%s1 + $0x218] sm:$0xf]
  %v158 = vld [vmem:[%s1 + $0x21c] sm:$0xf]
  %v159 = vld [vmem:[%s1 + $0x220] sm:$0xf]
  %v160 = vld [vmem:[%s1 + $0x224] sm:$0xf]
  %v161 = vld [vmem:[%s1 + $0x228] sm:$0xf]
  %v162 = vld [vmem:[%s1 + $0x22c] sm:$0xf]
  %v163 = vld [vmem:[%s1 + $0x230] sm:$0xf]
  %v164 = vld [vmem:[%s1 + $0x234] sm:$0xf]
  %v165 = vld [vmem:[%s1 + $0x238] sm:$0xf]
  %v166 = vld [vmem:[%s1 + $0x23c] sm:$0xf]
  %v169 = vcombine.high %v21, %v21
  %v171 = vunpack.c.l.s4 1966171168
  %v172 = vunpack.c.0.s8 %v171
  %v173 = vlaneseq
  %v174 = vshrl.u32 %v173, 7
  %v175 = vsub.s32 %v172, %v174
  %v176 = vrot.slane %v21, %v175
  %v178 = vunpack.c.l.s4 1966171168
  %v179 = vunpack.c.0.s8 %v178
  %v180 = vlaneseq
  %v181 = vshrl.u32 %v180, 7
  %v182 = vsub.s32 %v179, %v181
  %v183 = vrot.slane %v169, %v182
  %v184 = vcombine.high %v176, %v176
  %v185 = vcombine.high %v183, %v183
  %v187 = vunpack.c.l.s4 1966171168
  %v188 = vunpack.c.0.s8 %v187
  %v189 = vlaneseq
  %v190 = vshrl.u32 %v189, 7
  %v191 = vsub.s32 %v188, %v190
  %v192 = vrot.slane %v176, %v191
  %v194 = vunpack.c.l.s4 1966171168
  %v195 = vunpack.c.0.s8 %v194
  %v196 = vlaneseq
  %v197 = vshrl.u32 %v196, 7
  %v198 = vsub.s32 %v195, %v197
  %v199 = vrot.slane %v183, %v198
  %v201 = vunpack.c.l.s4 1966171168
  %v202 = vunpack.c.0.s8 %v201
  %v203 = vlaneseq
  %v204 = vshrl.u32 %v203, 7
  %v205 = vsub.s32 %v202, %v204
  %v206 = vrot.slane %v184, %v205
  %v208 = vunpack.c.l.s4 1966171168
  %v209 = vunpack.c.0.s8 %v208
  %v210 = vlaneseq
  %v211 = vshrl.u32 %v210, 7
  %v212 = vsub.s32 %v209, %v211
  %v213 = vrot.slane %v185, %v212
  %v214 = vcombine.high %v192, %v192
  %v215 = vcombine.high %v199, %v199
  %v216 = vcombine.high %v206, %v206
  %v217 = vcombine.high %v213, %v213
  %v219 = vunpack.c.l.s4 1966171168
  %v220 = vunpack.c.0.s8 %v219
  %v221 = vlaneseq
  %v222 = vshrl.u32 %v221, 7
  %v223 = vsub.s32 %v220, %v222
  %v224 = vrot.slane %v22, %v223
  %v226 = vunpack.c.l.s4 1966171168
  %v227 = vunpack.c.0.s8 %v226
  %v228 = vlaneseq
  %v229 = vshrl.u32 %v228, 7
  %v230 = vsub.s32 %v227, %v229
  %v231 = vrot.slane %v224, %v230
  %v385 = vunpack.c.l.b16 %v23
  %v386 = vunpack.c.l.b16 %v24
  %v387 = vunpack.c.l.b16 %v25
  %v388 = vunpack.c.l.b16 %v26
  %v389 = vunpack.c.l.b16 %v27
  %v390 = vunpack.c.l.b16 %v28
  %v391 = vunpack.c.l.b16 %v29
  %v392 = vunpack.c.l.b16 %v30
  %v393 = vunpack.c.l.b16 %v31
  %v394 = vunpack.c.l.b16 %v32
  %v395 = vunpack.c.l.b16 %v33
  %v396 = vunpack.c.l.b16 %v34
  %v397 = vunpack.c.l.b16 %v35
  %v398 = vunpack.c.l.b16 %v36
  %v399 = vunpack.c.l.b16 %v37
  %v400 = vunpack.c.l.b16 %v38
  %v401 = vunpack.c.l.b16 %v39
  %v402 = vunpack.c.l.b16 %v40
  %v403 = vunpack.c.l.b16 %v41
  %v404 = vunpack.c.l.b16 %v42
  %v405 = vunpack.c.l.b16 %v43
  %v406 = vunpack.c.l.b16 %v44
  %v407 = vunpack.c.l.b16 %v45
  %v408 = vunpack.c.l.b16 %v46
  %v409 = vunpack.c.l.b16 %v47
  %v410 = vunpack.c.l.b16 %v48
  %v411 = vunpack.c.l.b16 %v49
  %v412 = vunpack.c.l.b16 %v50
  %v413 = vunpack.c.l.b16 %v51
  %v414 = vunpack.c.l.b16 %v52
  %v415 = vunpack.c.l.b16 %v53
  %v416 = vunpack.c.l.b16 %v54
  %v417 = vunpack.c.l.b16 %v55
  %v418 = vunpack.c.l.b16 %v56
  %v419 = vunpack.c.l.b16 %v57
  %v420 = vunpack.c.l.b16 %v58
  %v421 = vunpack.c.l.b16 %v59
  %v422 = vunpack.c.l.b16 %v60
  %v423 = vunpack.c.l.b16 %v61
  %v424 = vunpack.c.l.b16 %v62
  %v425 = vunpack.c.l.b16 %v63
  %v426 = vunpack.c.l.b16 %v64
  %v427 = vunpack.c.l.b16 %v65
  %v428 = vunpack.c.l.b16 %v66
  %v429 = vunpack.c.l.b16 %v67
  %v430 = vunpack.c.l.b16 %v68
  %v431 = vunpack.c.l.b16 %v69
  %v432 = vunpack.c.l.b16 %v70
  %v433 = vunpack.c.l.b16 %v71
  %v434 = vunpack.c.l.b16 %v72
  %v435 = vunpack.c.l.b16 %v73
  %v436 = vunpack.c.l.b16 %v74
  %v437 = vunpack.c.l.b16 %v75
  %v438 = vunpack.c.l.b16 %v76
  %v439 = vunpack.c.l.b16 %v77
  %v440 = vunpack.c.l.b16 %v78
  %v441 = vunpack.c.l.b16 %v79
  %v442 = vunpack.c.l.b16 %v80
  %v443 = vunpack.c.l.b16 %v81
  %v444 = vunpack.c.l.b16 %v82
  %v445 = vunpack.c.l.b16 %v83
  %v446 = vunpack.c.l.b16 %v84
  %v447 = vunpack.c.l.b16 %v85
  %v448 = vunpack.c.l.b16 %v86
  %v449 = vunpack.c.l.b16 %v87
  %v450 = vunpack.c.l.b16 %v88
  %v451 = vunpack.c.l.b16 %v89
  %v452 = vunpack.c.l.b16 %v90
  %v453 = vunpack.c.l.b16 %v91
  %v454 = vunpack.c.l.b16 %v92
  %v455 = vunpack.c.l.b16 %v93
  %v456 = vunpack.c.l.b16 %v94
  %v457 = vunpack.c.l.b16 %v95
  %v458 = vunpack.c.l.b16 %v96
  %v459 = vunpack.c.l.b16 %v97
  %v460 = vunpack.c.l.b16 %v98
  %v461 = vunpack.c.l.b16 %v99
  %v462 = vunpack.c.l.b16 %v100
  %v463 = vunpack.c.l.b16 %v101
  %v464 = vunpack.c.l.b16 %v102
  %v465 = vunpack.c.l.b16 %v103
  %v466 = vunpack.c.l.b16 %v104
  %v467 = vunpack.c.l.b16 %v105
  %v468 = vunpack.c.l.b16 %v106
  %v469 = vunpack.c.l.b16 %v107
  %v470 = vunpack.c.l.b16 %v108
  %v471 = vunpack.c.l.b16 %v109
  %v472 = vunpack.c.l.b16 %v110
  %v473 = vunpack.c.l.b16 %v111
  %v474 = vunpack.c.l.b16 %v112
  %v475 = vunpack.c.l.b16 %v113
  %v476 = vunpack.c.l.b16 %v114
  %v477 = vunpack.c.l.b16 %v115
  %v478 = vunpack.c.l.b16 %v116
  %v479 = vunpack.c.l.b16 %v117
  %v480 = vunpack.c.l.b16 %v118
  %v481 = vunpack.c.l.b16 %v119
  %v482 = vunpack.c.l.b16 %v120
  %v483 = vunpack.c.l.b16 %v121
  %v484 = vunpack.c.l.b16 %v122
  %v485 = vunpack.c.l.b16 %v123
  %v486 = vunpack.c.l.b16 %v124
  %v487 = vunpack.c.l.b16 %v125
  %v488 = vunpack.c.l.b16 %v126
  %v489 = vunpack.c.l.b16 %v127
  %v490 = vunpack.c.l.b16 %v128
  %v491 = vunpack.c.l.b16 %v129
  %v492 = vunpack.c.l.b16 %v130
  %v493 = vunpack.c.l.b16 %v131
  %v494 = vunpack.c.l.b16 %v132
  %v495 = vunpack.c.l.b16 %v133
  %v496 = vunpack.c.l.b16 %v134
  %v497 = vunpack.c.l.b16 %v135
  %v498 = vunpack.c.l.b16 %v136
  %v499 = vunpack.c.l.b16 %v137
  %v500 = vunpack.c.l.b16 %v138
  %v501 = vunpack.c.l.b16 %v139
  %v502 = vunpack.c.l.b16 %v140
  %v503 = vunpack.c.l.b16 %v141
  %v504 = vunpack.c.l.b16 %v142
  %v505 = vunpack.c.l.b16 %v143
  %v506 = vunpack.c.l.b16 %v144
  %v507 = vunpack.c.l.b16 %v145
  %v508 = vunpack.c.l.b16 %v146
  %v509 = vunpack.c.l.b16 %v147
  %v510 = vunpack.c.l.b16 %v148
  %v511 = vunpack.c.l.b16 %v149
  %v512 = vunpack.c.l.b16 %v150
  %v513 = vunpack.c.l.b16 %v151
  %v514 = vunpack.c.l.b16 %v152
  %v515 = vunpack.c.l.b16 %v153
  %v516 = vunpack.c.l.b16 %v154
  %v517 = vunpack.c.l.b16 %v155
  %v518 = vunpack.c.l.b16 %v156
  %v519 = vunpack.c.l.b16 %v157
  %v520 = vunpack.c.l.b16 %v158
  %v521 = vunpack.c.l.b16 %v159
  %v522 = vunpack.c.l.b16 %v160
  %v523 = vunpack.c.l.b16 %v161
  %v524 = vunpack.c.l.b16 %v162
  %v525 = vunpack.c.l.b16 %v163
  %v526 = vunpack.c.l.b16 %v164
  %v527 = vunpack.c.l.b16 %v165
  %v528 = vunpack.c.l.b16 %v166
  %v529 = vpack.c.b16 %v386, %v385
  %v530 = vpack.c.b16 %v388, %v387
  %v531 = vpack.c.b16 %v390, %v389
  %v532 = vpack.c.b16 %v392, %v391
  %v533 = vpack.c.b16 %v394, %v393
  %v534 = vpack.c.b16 %v396, %v395
  %v535 = vpack.c.b16 %v398, %v397
  %v536 = vpack.c.b16 %v400, %v399
  %v537 = vpack.c.b16 %v402, %v401
  %v538 = vpack.c.b16 %v404, %v403
  %v539 = vpack.c.b16 %v406, %v405
  %v540 = vpack.c.b16 %v408, %v407
  %v541 = vpack.c.b16 %v410, %v409
  %v542 = vpack.c.b16 %v412, %v411
  %v543 = vpack.c.b16 %v414, %v413
  %v544 = vpack.c.b16 %v416, %v415
  %v545 = vpack.c.b16 %v418, %v417
  %v546 = vpack.c.b16 %v420, %v419
  %v547 = vpack.c.b16 %v422, %v421
  %v548 = vpack.c.b16 %v424, %v423
  %v549 = vpack.c.b16 %v426, %v425
  %v550 = vpack.c.b16 %v428, %v427
  %v551 = vpack.c.b16 %v430, %v429
  %v552 = vpack.c.b16 %v432, %v431
  %v553 = vpack.c.b16 %v434, %v433
  %v554 = vpack.c.b16 %v436, %v435
  %v555 = vpack.c.b16 %v438, %v437
  %v556 = vpack.c.b16 %v440, %v439
  %v557 = vpack.c.b16 %v442, %v441
  %v558 = vpack.c.b16 %v444, %v443
  %v559 = vpack.c.b16 %v446, %v445
  %v560 = vpack.c.b16 %v448, %v447
  %v561 = vpack.c.b16 %v450, %v449
  %v562 = vpack.c.b16 %v452, %v451
  %v563 = vpack.c.b16 %v454, %v453
  %v564 = vpack.c.b16 %v456, %v455
  %v565 = vpack.c.b16 %v458, %v457
  %v566 = vpack.c.b16 %v460, %v459
  %v567 = vpack.c.b16 %v462, %v461
  %v568 = vpack.c.b16 %v464, %v463
  %v569 = vpack.c.b16 %v466, %v465
  %v570 = vpack.c.b16 %v468, %v467
  %v571 = vpack.c.b16 %v470, %v469
  %v572 = vpack.c.b16 %v472, %v471
  %v573 = vpack.c.b16 %v474, %v473
  %v574 = vpack.c.b16 %v476, %v475
  %v575 = vpack.c.b16 %v478, %v477
  %v576 = vpack.c.b16 %v480, %v479
  %v577 = vpack.c.b16 %v482, %v481
  %v578 = vpack.c.b16 %v484, %v483
  %v579 = vpack.c.b16 %v486, %v485
  %v580 = vpack.c.b16 %v488, %v487
  %v581 = vpack.c.b16 %v490, %v489
  %v582 = vpack.c.b16 %v492, %v491
  %v583 = vpack.c.b16 %v494, %v493
  %v584 = vpack.c.b16 %v496, %v495
  %v585 = vpack.c.b16 %v498, %v497
  %v586 = vpack.c.b16 %v500, %v499
  %v587 = vpack.c.b16 %v502, %v501
  %v588 = vpack.c.b16 %v504, %v503
  %v589 = vpack.c.b16 %v506, %v505
  %v590 = vpack.c.b16 %v508, %v507
  %v591 = vpack.c.b16 %v510, %v509
  %v592 = vpack.c.b16 %v512, %v511
  %v593 = vpack.c.b16 %v514, %v513
  %v594 = vpack.c.b16 %v516, %v515
  %v595 = vpack.c.b16 %v518, %v517
  %v596 = vpack.c.b16 %v520, %v519
  %v597 = vpack.c.b16 %v522, %v521
  %v598 = vpack.c.b16 %v524, %v523
  %v599 = vpack.c.b16 %v526, %v525
  %v600 = vpack.c.b16 %v528, %v527
  %673 = vmatprep.subr.bf16.mxu0 0
  %674 = vmatpush1.bf16.msra.mxu0 %v529
  %675 = vmatprep.subr.bf16.mxu0 0
  %676 = vmatpush1.bf16.msra.mxu0 %v530
  %677 = vmatprep.subr.bf16.mxu0 0
  %678 = vmatpush1.bf16.msra.mxu0 %v531
  %679 = vmatprep.subr.bf16.mxu0 0
  %680 = vmatpush1.bf16.msra.mxu0 %v532
  %681 = vmatprep.subr.bf16.mxu0 0
  %682 = vmatpush1.bf16.msra.mxu0 %v533
  %683 = vmatprep.subr.bf16.mxu0 0
  %684 = vmatpush1.bf16.msra.mxu0 %v534
  %685 = vmatprep.subr.bf16.mxu0 0
  %686 = vmatpush1.bf16.msra.mxu0 %v535
  %687 = vmatprep.subr.bf16.mxu0 0
  %688 = vmatpush1.bf16.msra.mxu0 %v536
  %689 = vmatprep.subr.bf16.mxu0 0
  %690 = vmatpush1.bf16.msra.mxu0 %v537
  %691 = vmatprep.subr.bf16.mxu0 0
  %692 = vmatpush1.bf16.msra.mxu0 %v538
  %693 = vmatprep.subr.bf16.mxu0 0
  %694 = vmatpush1.bf16.msra.mxu0 %v539
  %695 = vmatprep.subr.bf16.mxu0 0
  %696 = vmatpush1.bf16.msra.mxu0 %v540
  %697 = vmatprep.subr.bf16.mxu0 0
  %698 = vmatpush1.bf16.msra.mxu0 %v541
  %699 = vmatprep.subr.bf16.mxu0 0
  %700 = vmatpush1.bf16.msra.mxu0 %v542
  %701 = vmatprep.subr.bf16.mxu0 0
  %702 = vmatpush1.bf16.msra.mxu0 %v543
  %703 = vmatprep.subr.bf16.mxu0 0
  %704 = vmatpush1.bf16.msra.mxu0 %v544
  %705 = vmatprep.mubr.bf16.mxu0 %v206
  %706 = vmatmul.mubr.bf16.gmra.mrb[0].mxu0 %v192
  %v707 = vpop.f32.mrb[0].mxu0
  %v708 = vadd.f32 0.0, %v707
  %v709 = vpop.f32.mrb[0].mxu0
  %v710 = vpop.f32.mrb[0].mxu0
  %v711 = vpop.f32.mrb[0].mxu0
  %712 = vdwg.mxu0
  %713 = vmatprep.subr.bf16.mxu0 0
  %714 = vmatpush1.bf16.msra.mxu0 %v545
  %715 = vmatprep.subr.bf16.mxu0 0
  %716 = vmatpush1.bf16.msra.mxu0 %v546
  %717 = vmatprep.subr.bf16.mxu0 0
  %718 = vmatpush1.bf16.msra.mxu0 %v547
  %719 = vmatprep.subr.bf16.mxu0 0
  %720 = vmatpush1.bf16.msra.mxu0 %v548
  %721 = vmatprep.subr.bf16.mxu0 0
  %722 = vmatpush1.bf16.msra.mxu0 %v549
  %723 = vmatprep.subr.bf16.mxu0 0
  %724 = vmatpush1.bf16.msra.mxu0 %v550
  %725 = vmatprep.subr.bf16.mxu0 0
  %726 = vmatpush1.bf16.msra.mxu0 %v551
  %727 = vmatprep.subr.bf16.mxu0 0
  %728 = vmatpush1.bf16.msra.mxu0 %v552
  %729 = vmatprep.subr.bf16.mxu0 0
  %730 = vmatpush1.bf16.msra.mxu0 %v553
  %731 = vmatprep.subr.bf16.mxu0 0
  %732 = vmatpush1.bf16.msra.mxu0 %v554
  %733 = vmatprep.subr.bf16.mxu0 0
  %734 = vmatpush1.bf16.msra.mxu0 %v555
  %735 = vmatprep.subr.bf16.mxu0 0
  %736 = vmatpush1.bf16.msra.mxu0 %v556
  %737 = vmatprep.subr.bf16.mxu0 0
  %738 = vmatpush1.bf16.msra.mxu0 %v557
  %739 = vmatprep.subr.bf16.mxu0 0
  %740 = vmatpush1.bf16.msra.mxu0 %v558
  %741 = vmatprep.subr.bf16.mxu0 0
  %742 = vmatpush1.bf16.msra.mxu0 %v559
  %743 = vmatprep.subr.bf16.mxu0 0
  %744 = vmatpush1.bf16.msra.mxu0 %v560
  %745 = vmatprep.mubr.bf16.mxu0 %v216
  %746 = vmatmul.mubr.bf16.gmra.mrb[0].mxu0 %v214
  %v747 = vpop.f32.mrb[0].mxu0
  %v748 = vadd.f32 %v708, %v747
  %v749 = vpop.f32.mrb[0].mxu0
  %v750 = vpop.f32.mrb[0].mxu0
  %v751 = vpop.f32.mrb[0].mxu0
  %752 = vdwg.mxu0
  %753 = vmatprep.subr.bf16.mxu0 0
  %754 = vmatpush1.bf16.msra.mxu0 %v561
  %755 = vmatprep.subr.bf16.mxu0 0
  %756 = vmatpush1.bf16.msra.mxu0 %v562
  %757 = vmatprep.subr.bf16.mxu0 0
  %758 = vmatpush1.bf16.msra.mxu0 %v563
  %759 = vmatprep.subr.bf16.mxu0 0
  %760 = vmatpush1.bf16.msra.mxu0 %v564
  %761 = vmatprep.subr.bf16.mxu0 0
  %762 = vmatpush1.bf16.msra.mxu0 %v565
  %763 = vmatprep.subr.bf16.mxu0 0
  %764 = vmatpush1.bf16.msra.mxu0 %v566
  %765 = vmatprep.subr.bf16.mxu0 0
  %766 = vmatpush1.bf16.msra.mxu0 %v567
  %767 = vmatprep.subr.bf16.mxu0 0
  %768 = vmatpush1.bf16.msra.mxu0 %v568
  %769 = vmatprep.subr.bf16.mxu0 0
  %770 = vmatpush1.bf16.msra.mxu0 %v569
  %771 = vmatprep.subr.bf16.mxu0 0
  %772 = vmatpush1.bf16.msra.mxu0 %v570
  %773 = vmatprep.subr.bf16.mxu0 0
  %774 = vmatpush1.bf16.msra.mxu0 %v571
  %775 = vmatprep.subr.bf16.mxu0 0
  %776 = vmatpush1.bf16.msra.mxu0 %v572
  %777 = vmatprep.subr.bf16.mxu0 0
  %778 = vmatpush1.bf16.msra.mxu0 %v573
  %779 = vmatprep.subr.bf16.mxu0 0
  %780 = vmatpush1.bf16.msra.mxu0 %v574
  %781 = vmatprep.subr.bf16.mxu0 0
  %782 = vmatpush1.bf16.msra.mxu0 %v575
  %783 = vmatprep.subr.bf16.mxu0 0
  %784 = vmatpush1.bf16.msra.mxu0 %v576
  %785 = vmatprep.mubr.bf16.mxu0 %v213
  %786 = vmatmul.mubr.bf16.gmra.mrb[0].mxu0 %v199
  %v787 = vpop.f32.mrb[0].mxu0
  %v788 = vadd.f32 %v748, %v787
  %v789 = vpop.f32.mrb[0].mxu0
  %v790 = vpop.f32.mrb[0].mxu0
  %v791 = vpop.f32.mrb[0].mxu0
  %792 = vdwg.mxu0
  %793 = vmatprep.subr.bf16.mxu0 0
  %794 = vmatpush1.bf16.msra.mxu0 %v577
  %795 = vmatprep.subr.bf16.mxu0 0
  %796 = vmatpush1.bf16.msra.mxu0 %v578
  %797 = vmatprep.subr.bf16.mxu0 0
  %798 = vmatpush1.bf16.msra.mxu0 %v579
  %799 = vmatprep.subr.bf16.mxu0 0
  %800 = vmatpush1.bf16.msra.mxu0 %v580
  %801 = vmatprep.subr.bf16.mxu0 0
  %802 = vmatpush1.bf16.msra.mxu0 %v581
  %803 = vmatprep.subr.bf16.mxu0 0
  %804 = vmatpush1.bf16.msra.mxu0 %v582
  %805 = vmatprep.subr.bf16.mxu0 0
  %806 = vmatpush1.bf16.msra.mxu0 %v583
  %807 = vmatprep.subr.bf16.mxu0 0
  %808 = vmatpush1.bf16.msra.mxu0 %v584
  %809 = vmatprep.subr.bf16.mxu0 0
  %810 = vmatpush1.bf16.msra.mxu0 %v585
  %811 = vmatprep.subr.bf16.mxu0 0
  %812 = vmatpush1.bf16.msra.mxu0 %v586
  %813 = vmatprep.subr.bf16.mxu0 0
  %814 = vmatpush1.bf16.msra.mxu0 %v587
  %815 = vmatprep.subr.bf16.mxu0 0
  %816 = vmatpush1.bf16.msra.mxu0 %v588
  %817 = vmatprep.subr.bf16.mxu0 0
  %818 = vmatpush1.bf16.msra.mxu0 %v589
  %819 = vmatprep.subr.bf16.mxu0 0
  %820 = vmatpush1.bf16.msra.mxu0 %v590
  %821 = vmatprep.subr.bf16.mxu0 0
  %822 = vmatpush1.bf16.msra.mxu0 %v591
  %823 = vmatprep.subr.bf16.mxu0 0
  %824 = vmatpush1.bf16.msra.mxu0 %v592
  %825 = vmatprep.mubr.bf16.mxu0 %v217
  %826 = vmatmul.mubr.bf16.gmra.mrb[0].mxu0 %v215
  %v827 = vpop.f32.mrb[0].mxu0
  %v828 = vadd.f32 %v788, %v827
  %v829 = vpop.f32.mrb[0].mxu0
  %v830 = vpop.f32.mrb[0].mxu0
  %v831 = vpop.f32.mrb[0].mxu0
  %832 = vdwg.mxu0
  %833 = vmatprep.subr.bf16.mxu0 0
  %834 = vmatpush1.bf16.msra.mxu0 %v593
  %835 = vmatprep.subr.bf16.mxu0 0
  %836 = vmatpush1.bf16.msra.mxu0 %v594
  %837 = vmatprep.subr.bf16.mxu0 0
  %838 = vmatpush1.bf16.msra.mxu0 %v595
  %839 = vmatprep.subr.bf16.mxu0 0
  %840 = vmatpush1.bf16.msra.mxu0 %v596
  %841 = vmatprep.subr.bf16.mxu0 0
  %842 = vmatpush1.bf16.msra.mxu0 %v597
  %843 = vmatprep.subr.bf16.mxu0 0
  %844 = vmatpush1.bf16.msra.mxu0 %v598
  %845 = vmatprep.subr.bf16.mxu0 0
  %846 = vmatpush1.bf16.msra.mxu0 %v599
  %847 = vmatprep.subr.bf16.mxu0 0
  %848 = vmatpush1.bf16.msra.mxu0 %v600
  %849 = vmatprep.subr.bf16.mxu0 0
  %850 = vmatpush1.bf16.msra.mxu0 0
  %851 = vmatprep.subr.bf16.mxu0 0
  %852 = vmatpush1.bf16.msra.mxu0 0
  %853 = vmatprep.subr.bf16.mxu0 0
  %854 = vmatpush1.bf16.msra.mxu0 0
  %855 = vmatprep.subr.bf16.mxu0 0
  %856 = vmatpush1.bf16.msra.mxu0 0
  %857 = vmatprep.subr.bf16.mxu0 0
  %858 = vmatpush1.bf16.msra.mxu0 0
  %859 = vmatprep.subr.bf16.mxu0 0
  %860 = vmatpush1.bf16.msra.mxu0 0
  %861 = vmatprep.subr.bf16.mxu0 0
  %862 = vmatpush1.bf16.msra.mxu0 0
  %863 = vmatprep.subr.bf16.mxu0 0
  %864 = vmatpush1.bf16.msra.mxu0 0
  %865 = vmatprep.mubr.bf16.mxu0 0
  %866 = vmatmul.mubr.bf16.gmra.mrb[0].mxu0 %v231
  %v867 = vpop.f32.mrb[0].mxu0
  %v868 = vadd.f32 %v828, %v867
  %v869 = vpop.f32.mrb[0].mxu0
  %v870 = vpop.f32.mrb[0].mxu0
  %v871 = vpop.f32.mrb[0].mxu0
  %872 = vdwg.mxu0
  %v873 = vld [vmem:[%s2] sm:$0x1]
  %v875 = vlaneseq
  %v876 = vshrl.u32 %v875, 7
  %v877 = vsub.s32 0, %v876
  %v878 = vrot.slane %v873, %v877
  %v880 = vmul.f32 %v868, %v878
  %v881 = vld [vmem:[%s3] sm:$0x1]
  %v883 = vlaneseq
  %v884 = vshrl.u32 %v883, 7
  %v885 = vsub.s32 0, %v884
  %v886 = vrot.slane %v881, %v885
  %v888 = vadd.f32 %v880, %v886
  %v889 = vld [vmem:[%s4] sm:$0x1]
  %v890 = vunpack.c.l.bf16 %v889
  %v891 = vadd.f32 %v888, %v890
  %v892 = vmax.f32 %v891, 0.0
  %v893 = vpack.c.bf16 %v892, %v892
  %894 = vst [vmem:[%s5] sm:$0x1] %v893
  // Predicated region
  $region22: #{_lambda_.40} parent=0 // pred_check
    _
  $region23: #{_lambda_.40} parent=0 // pred_check_branch
    %896 = sbr.rel (0) target = $region25
  $region24: #{_lambda_.40} parent=0 // pred_region
    _
  $region25: #{_lambda_.40} parent=0 // pred_fallthru
    _
  // Predicated region
  $region26: #{_lambda_.40} parent=0 // pred_check
    _
  $region27: #{_lambda_.40} parent=0 // pred_check_branch
    %898 = sbr.rel (0) target = $region29
  $region28: #{_lambda_.40} parent=0 // pred_region
    _
  $region29: #{_lambda_.40} parent=0 // pred_fallthru
    _

// kernel: _lambda_.41
$region0: #{_lambda_.41}
  #allocation0 [shape = 'u32[]', space=smem, size = 0x4, offset = 0x4, fixed_abs, tag = 'smem constant byte address 0x4 - core index']
  #allocation1 [shape = 'u32[144,128]{1,0:T(1,128)}', space=vmem, size = 0x12000, scoped, tag = 'internal scratch']
  %s0 = inlined_call_operand.vmem [shape: bf16[2,1152], index: 0, kind: input, shape index: {}]
  %s1 = inlined_call_operand.vmem [shape: bf16[1152,128], index: 1, kind: input, shape index: {}]
  %s2 = inlined_call_operand.vmem [shape: f32[1,128], index: 2, kind: input, shape index: {}]
  %s3 = inlined_call_operand.vmem [shape: f32[1,128], index: 3, kind: input, shape index: {}]
  %s4 = inlined_call_operand.vmem [shape: bf16[2,128], index: 4, kind: output, shape index: {}]
  %s5 = sld [smem:[#allocation0]]
  $region26: #{_lambda_.41} parent=0
    _
  %s7 = ssub.s32 1, %s5
  %s8 = scalar_select 0, %s7, %s5
  // Predicated region
  $region2: #{_lambda_.41} parent=0 // pred_check
    _
  $region3: #{_lambda_.41} parent=0 // pred_check_branch
    %10 = sbr.rel (0) target = $region5
  $region4: #{_lambda_.41} parent=0 // pred_region
    _
  $region5: #{_lambda_.41} parent=0 // pred_fallthru
    _
  // Predicated region
  $region6: #{_lambda_.41} parent=0 // pred_check
    _
  $region7: #{_lambda_.41} parent=0 // pred_check_branch
    %12 = sbr.rel (0) target = $region9
  $region8: #{_lambda_.41} parent=0 // pred_region
    _
  $region9: #{_lambda_.41} parent=0 // pred_fallthru
    _
  // Predicated region
  $region10: #{_lambda_.41} parent=0 // pred_check
    _
  $region11: #{_lambda_.41} parent=0 // pred_check_branch
    %14 = sbr.rel (0) target = $region13
  $region12: #{_lambda_.41} parent=0 // pred_region
    _
  $region13: #{_lambda_.41} parent=0 // pred_fallthru
    _
  // Predicated region
  $region14: #{_lambda_.41} parent=0 // pred_check
    _
  $region15: #{_lambda_.41} parent=0 // pred_check_branch
    %16 = sbr.rel (0) target = $region17
  $region16: #{_lambda_.41} parent=0 // pred_region
    _
  $region17: #{_lambda_.41} parent=0 // pred_fallthru
    _
  %v18 = vld [vmem:[%s0] sm:$0xff]
  %v19 = vld [vmem:[%s0 + $0x8] sm:$0x1]
  %v20 = vld [vmem:[%s1] sm:$0xf]
  %v21 = vld [vmem:[%s1 + $0x4] sm:$0xf]
  %v22 = vld [vmem:[%s1 + $0x8] sm:$0xf]
  %v23 = vld [vmem:[%s1 + $0xc] sm:$0xf]
  %v24 = vld [vmem:[%s1 + $0x10] sm:$0xf]
  %v25 = vld [vmem:[%s1 + $0x14] sm:$0xf]
  %v26 = vld [vmem:[%s1 + $0x18] sm:$0xf]
  %v27 = vld [vmem:[%s1 + $0x1c] sm:$0xf]
  %v28 = vld [vmem:[%s1 + $0x20] sm:$0xf]
  %v29 = vld [vmem:[%s1 + $0x24] sm:$0xf]
  %v30 = vld [vmem:[%s1 + $0x28] sm:$0xf]
  %v31 = vld [vmem:[%s1 + $0x2c] sm:$0xf]
  %v32 = vld [vmem:[%s1 + $0x30] sm:$0xf]
  %v33 = vld [vmem:[%s1 + $0x34] sm:$0xf]
  %v34 = vld [vmem:[%s1 + $0x38] sm:$0xf]
  %v35 = vld [vmem:[%s1 + $0x3c] sm:$0xf]
  %v36 = vld [vmem:[%s1 + $0x40] sm:$0xf]
  %v37 = vld [vmem:[%s1 + $0x44] sm:$0xf]
  %v38 = vld [vmem:[%s1 + $0x48] sm:$0xf]
  %v39 = vld [vmem:[%s1 + $0x4c] sm:$0xf]
  %v40 = vld [vmem:[%s1 + $0x50] sm:$0xf]
  %v41 = vld [vmem:[%s1 + $0x54] sm:$0xf]
  %v42 = vld [vmem:[%s1 + $0x58] sm:$0xf]
  %v43 = vld [vmem:[%s1 + $0x5c] sm:$0xf]
  %v44 = vld [vmem:[%s1 + $0x60] sm:$0xf]
  %v45 = vld [vmem:[%s1 + $0x64] sm:$0xf]
  %v46 = vld [vmem:[%s1 + $0x68] sm:$0xf]
  %v47 = vld [vmem:[%s1 + $0x6c] sm:$0xf]
  %v48 = vld [vmem:[%s1 + $0x70] sm:$0xf]
  %v49 = vld [vmem:[%s1 + $0x74] sm:$0xf]
  %v50 = vld [vmem:[%s1 + $0x78] sm:$0xf]
  %v51 = vld [vmem:[%s1 + $0x7c] sm:$0xf]
  %v52 = vld [vmem:[%s1 + $0x80] sm:$0xf]
  %v53 = vld [vmem:[%s1 + $0x84] sm:$0xf]
  %v54 = vld [vmem:[%s1 + $0x88] sm:$0xf]
  %v55 = vld [vmem:[%s1 + $0x8c] sm:$0xf]
  %v56 = vld [vmem:[%s1 + $0x90] sm:$0xf]
  %v57 = vld [vmem:[%s1 + $0x94] sm:$0xf]
  %v58 = vld [vmem:[%s1 + $0x98] sm:$0xf]
  %v59 = vld [vmem:[%s1 + $0x9c] sm:$0xf]
  %v60 = vld [vmem:[%s1 + $0xa0] sm:$0xf]
  %v61 = vld [vmem:[%s1 + $0xa4] sm:$0xf]
  %v62 = vld [vmem:[%s1 + $0xa8] sm:$0xf]
  %v63 = vld [vmem:[%s1 + $0xac] sm:$0xf]
  %v64 = vld [vmem:[%s1 + $0xb0] sm:$0xf]
  %v65 = vld [vmem:[%s1 + $0xb4] sm:$0xf]
  %v66 = vld [vmem:[%s1 + $0xb8] sm:$0xf]
  %v67 = vld [vmem:[%s1 + $0xbc] sm:$0xf]
  %v68 = vld [vmem:[%s1 + $0xc0] sm:$0xf]
  %v69 = vld [vmem:[%s1 + $0xc4] sm:$0xf]
  %v70 = vld [vmem:[%s1 + $0xc8] sm:$0xf]
  %v71 = vld [vmem:[%s1 + $0xcc] sm:$0xf]
  %v72 = vld [vmem:[%s1 + $0xd0] sm:$0xf]
  %v73 = vld [vmem:[%s1 + $0xd4] sm:$0xf]
  %v74 = vld [vmem:[%s1 + $0xd8] sm:$0xf]
  %v75 = vld [vmem:[%s1 + $0xdc] sm:$0xf]
  %v76 = vld [vmem:[%s1 + $0xe0] sm:$0xf]
  %v77 = vld [vmem:[%s1 + $0xe4] sm:$0xf]
  %v78 = vld [vmem:[%s1 + $0xe8] sm:$0xf]
  %v79 = vld [vmem:[%s1 + $0xec] sm:$0xf]
  %v80 = vld [vmem:[%s1 + $0xf0] sm:$0xf]
  %v81 = vld [vmem:[%s1 + $0xf4] sm:$0xf]
  %v82 = vld [vmem:[%s1 + $0xf8] sm:$0xf]
  %v83 = vld [vmem:[%s1 + $0xfc] sm:$0xf]
  %v84 = vld [vmem:[%s1 + $0x100] sm:$0xf]
  %v85 = vld [vmem:[%s1 + $0x104] sm:$0xf]
  %v86 = vld [vmem:[%s1 + $0x108] sm:$0xf]
  %v87 = vld [vmem:[%s1 + $0x10c] sm:$0xf]
  %v88 = vld [vmem:[%s1 + $0x110] sm:$0xf]
  %v89 = vld [vmem:[%s1 + $0x114] sm:$0xf]
  %v90 = vld [vmem:[%s1 + $0x118] sm:$0xf]
  %v91 = vld [vmem:[%s1 + $0x11c] sm:$0xf]
  %v92 = vld [vmem:[%s1 + $0x120] sm:$0xf]
  %v93 = vld [vmem:[%s1 + $0x124] sm:$0xf]
  %v94 = vld [vmem:[%s1 + $0x128] sm:$0xf]
  %v95 = vld [vmem:[%s1 + $0x12c] sm:$0xf]
  %v96 = vld [vmem:[%s1 + $0x130] sm:$0xf]
  %v97 = vld [vmem:[%s1 + $0x134] sm:$0xf]
  %v98 = vld [vmem:[%s1 + $0x138] sm:$0xf]
  %v99 = vld [vmem:[%s1 + $0x13c] sm:$0xf]
  %v100 = vld [vmem:[%s1 + $0x140] sm:$0xf]
  %v101 = vld [vmem:[%s1 + $0x144] sm:$0xf]
  %v102 = vld [vmem:[%s1 + $0x148] sm:$0xf]
  %v103 = vld [vmem:[%s1 + $0x14c] sm:$0xf]
  %v104 = vld [vmem:[%s1 + $0x150] sm:$0xf]
  %v105 = vld [vmem:[%s1 + $0x154] sm:$0xf]
  %v106 = vld [vmem:[%s1 + $0x158] sm:$0xf]
  %v107 = vld [vmem:[%s1 + $0x15c] sm:$0xf]
  %v108 = vld [vmem:[%s1 + $0x160] sm:$0xf]
  %v109 = vld [vmem:[%s1 + $0x164] sm:$0xf]
  %v110 = vld [vmem:[%s1 + $0x168] sm:$0xf]
  %v111 = vld [vmem:[%s1 + $0x16c] sm:$0xf]
  %v112 = vld [vmem:[%s1 + $0x170] sm:$0xf]
  %v113 = vld [vmem:[%s1 + $0x174] sm:$0xf]
  %v114 = vld [vmem:[%s1 + $0x178] sm:$0xf]
  %v115 = vld [vmem:[%s1 + $0x17c] sm:$0xf]
  %v116 = vld [vmem:[%s1 + $0x180] sm:$0xf]
  %v117 = vld [vmem:[%s1 + $0x184] sm:$0xf]
  %v118 = vld [vmem:[%s1 + $0x188] sm:$0xf]
  %v119 = vld [vmem:[%s1 + $0x18c] sm:$0xf]
  %v120 = vld [vmem:[%s1 + $0x190] sm:$0xf]
  %v121 = vld [vmem:[%s1 + $0x194] sm:$0xf]
  %v122 = vld [vmem:[%s1 + $0x198] sm:$0xf]
  %v123 = vld [vmem:[%s1 + $0x19c] sm:$0xf]
  %v124 = vld [vmem:[%s1 + $0x1a0] sm:$0xf]
  %v125 = vld [vmem:[%s1 + $0x1a4] sm:$0xf]
  %v126 = vld [vmem:[%s1 + $0x1a8] sm:$0xf]
  %v127 = vld [vmem:[%s1 + $0x1ac] sm:$0xf]
  %v128 = vld [vmem:[%s1 + $0x1b0] sm:$0xf]
  %v129 = vld [vmem:[%s1 + $0x1b4] sm:$0xf]
  %v130 = vld [vmem:[%s1 + $0x1b8] sm:$0xf]
  %v131 = vld [vmem:[%s1 + $0x1bc] sm:$0xf]
  %v132 = vld [vmem:[%s1 + $0x1c0] sm:$0xf]
  %v133 = vld [vmem:[%s1 + $0x1c4] sm:$0xf]
  %v134 = vld [vmem:[%s1 + $0x1c8] sm:$0xf]
  %v135 = vld [vmem:[%s1 + $0x1cc] sm:$0xf]
  %v136 = vld [vmem:[%s1 + $0x1d0] sm:$0xf]
  %v137 = vld [vmem:[%s1 + $0x1d4] sm:$0xf]
  %v138 = vld [vmem:[%s1 + $0x1d8] sm:$0xf]
  %v139 = vld [vmem:[%s1 + $0x1dc] sm:$0xf]
  %v140 = vld [vmem:[%s1 + $0x1e0] sm:$0xf]
  %v141 = vld [vmem:[%s1 + $0x1e4] sm:$0xf]
  %v142 = vld [vmem:[%s1 + $0x1e8] sm:$0xf]
  %v143 = vld [vmem:[%s1 + $0x1ec] sm:$0xf]
  %v144 = vld [vmem:[%s1 + $0x1f0] sm:$0xf]
  %v145 = vld [vmem:[%s1 + $0x1f4] sm:$0xf]
  %v146 = vld [vmem:[%s1 + $0x1f8] sm:$0xf]
  %v147 = vld [vmem:[%s1 + $0x1fc] sm:$0xf]
  %v148 = vld [vmem:[%s1 + $0x200] sm:$0xf]
  %v149 = vld [vmem:[%s1 + $0x204] sm:$0xf]
  %v150 = vld [vmem:[%s1 + $0x208] sm:$0xf]
  %v151 = vld [vmem:[%s1 + $0x20c] sm:$0xf]
  %v152 = vld [vmem:[%s1 + $0x210] sm:$0xf]
  %v153 = vld [vmem:[%s1 + $0x214] sm:$0xf]
  %v154 = vld [vmem:[%s1 + $0x218] sm:$0xf]
  %v155 = vld [vmem:[%s1 + $0x21c] sm:$0xf]
  %v156 = vld [vmem:[%s1 + $0x220] sm:$0xf]
  %v157 = vld [vmem:[%s1 + $0x224] sm:$0xf]
  %v158 = vld [vmem:[%s1 + $0x228] sm:$0xf]
  %v159 = vld [vmem:[%s1 + $0x22c] sm:$0xf]
  %v160 = vld [vmem:[%s1 + $0x230] sm:$0xf]
  %v161 = vld [vmem:[%s1 + $0x234] sm:$0xf]
  %v162 = vld [vmem:[%s1 + $0x238] sm:$0xf]
  %v163 = vld [vmem:[%s1 + $0x23c] sm:$0xf]
  %v166 = vcombine.high %v18, %v18
  %v168 = vunpack.c.l.s4 1966171168
  %v169 = vunpack.c.0.s8 %v168
  %v170 = vlaneseq
  %v171 = vshrl.u32 %v170, 7
  %v172 = vsub.s32 %v169, %v171
  %v173 = vrot.slane %v18, %v172
  %v175 = vunpack.c.l.s4 1966171168
  %v176 = vunpack.c.0.s8 %v175
  %v177 = vlaneseq
  %v178 = vshrl.u32 %v177, 7
  %v179 = vsub.s32 %v176, %v178
  %v180 = vrot.slane %v166, %v179
  %v181 = vcombine.high %v173, %v173
  %v182 = vcombine.high %v180, %v180
  %v184 = vunpack.c.l.s4 1966171168
  %v185 = vunpack.c.0.s8 %v184
  %v186 = vlaneseq
  %v187 = vshrl.u32 %v186, 7
  %v188 = vsub.s32 %v185, %v187
  %v189 = vrot.slane %v173, %v188
  %v191 = vunpack.c.l.s4 1966171168
  %v192 = vunpack.c.0.s8 %v191
  %v193 = vlaneseq
  %v194 = vshrl.u32 %v193, 7
  %v195 = vsub.s32 %v192, %v194
  %v196 = vrot.slane %v180, %v195
  %v198 = vunpack.c.l.s4 1966171168
  %v199 = vunpack.c.0.s8 %v198
  %v200 = vlaneseq
  %v201 = vshrl.u32 %v200, 7
  %v202 = vsub.s32 %v199, %v201
  %v203 = vrot.slane %v181, %v202
  %v205 = vunpack.c.l.s4 1966171168
  %v206 = vunpack.c.0.s8 %v205
  %v207 = vlaneseq
  %v208 = vshrl.u32 %v207, 7
  %v209 = vsub.s32 %v206, %v208
  %v210 = vrot.slane %v182, %v209
  %v211 = vcombine.high %v189, %v189
  %v212 = vcombine.high %v196, %v196
  %v213 = vcombine.high %v203, %v203
  %v214 = vcombine.high %v210, %v210
  %v216 = vunpack.c.l.s4 1966171168
  %v217 = vunpack.c.0.s8 %v216
  %v218 = vlaneseq
  %v219 = vshrl.u32 %v218, 7
  %v220 = vsub.s32 %v217, %v219
  %v221 = vrot.slane %v19, %v220
  %v223 = vunpack.c.l.s4 1966171168
  %v224 = vunpack.c.0.s8 %v223
  %v225 = vlaneseq
  %v226 = vshrl.u32 %v225, 7
  %v227 = vsub.s32 %v224, %v226
  %v228 = vrot.slane %v221, %v227
  %v382 = vunpack.c.l.b16 %v20
  %v383 = vunpack.c.l.b16 %v21
  %v384 = vunpack.c.l.b16 %v22
  %v385 = vunpack.c.l.b16 %v23
  %v386 = vunpack.c.l.b16 %v24
  %v387 = vunpack.c.l.b16 %v25
  %v388 = vunpack.c.l.b16 %v26
  %v389 = vunpack.c.l.b16 %v27
  %v390 = vunpack.c.l.b16 %v28
  %v391 = vunpack.c.l.b16 %v29
  %v392 = vunpack.c.l.b16 %v30
  %v393 = vunpack.c.l.b16 %v31
  %v394 = vunpack.c.l.b16 %v32
  %v395 = vunpack.c.l.b16 %v33
  %v396 = vunpack.c.l.b16 %v34
  %v397 = vunpack.c.l.b16 %v35
  %v398 = vunpack.c.l.b16 %v36
  %v399 = vunpack.c.l.b16 %v37
  %v400 = vunpack.c.l.b16 %v38
  %v401 = vunpack.c.l.b16 %v39
  %v402 = vunpack.c.l.b16 %v40
  %v403 = vunpack.c.l.b16 %v41
  %v404 = vunpack.c.l.b16 %v42
  %v405 = vunpack.c.l.b16 %v43
  %v406 = vunpack.c.l.b16 %v44
  %v407 = vunpack.c.l.b16 %v45
  %v408 = vunpack.c.l.b16 %v46
  %v409 = vunpack.c.l.b16 %v47
  %v410 = vunpack.c.l.b16 %v48
  %v411 = vunpack.c.l.b16 %v49
  %v412 = vunpack.c.l.b16 %v50
  %v413 = vunpack.c.l.b16 %v51
  %v414 = vunpack.c.l.b16 %v52
  %v415 = vunpack.c.l.b16 %v53
  %v416 = vunpack.c.l.b16 %v54
  %v417 = vunpack.c.l.b16 %v55
  %v418 = vunpack.c.l.b16 %v56
  %v419 = vunpack.c.l.b16 %v57
  %v420 = vunpack.c.l.b16 %v58
  %v421 = vunpack.c.l.b16 %v59
  %v422 = vunpack.c.l.b16 %v60
  %v423 = vunpack.c.l.b16 %v61
  %v424 = vunpack.c.l.b16 %v62
  %v425 = vunpack.c.l.b16 %v63
  %v426 = vunpack.c.l.b16 %v64
  %v427 = vunpack.c.l.b16 %v65
  %v428 = vunpack.c.l.b16 %v66
  %v429 = vunpack.c.l.b16 %v67
  %v430 = vunpack.c.l.b16 %v68
  %v431 = vunpack.c.l.b16 %v69
  %v432 = vunpack.c.l.b16 %v70
  %v433 = vunpack.c.l.b16 %v71
  %v434 = vunpack.c.l.b16 %v72
  %v435 = vunpack.c.l.b16 %v73
  %v436 = vunpack.c.l.b16 %v74
  %v437 = vunpack.c.l.b16 %v75
  %v438 = vunpack.c.l.b16 %v76
  %v439 = vunpack.c.l.b16 %v77
  %v440 = vunpack.c.l.b16 %v78
  %v441 = vunpack.c.l.b16 %v79
  %v442 = vunpack.c.l.b16 %v80
  %v443 = vunpack.c.l.b16 %v81
  %v444 = vunpack.c.l.b16 %v82
  %v445 = vunpack.c.l.b16 %v83
  %v446 = vunpack.c.l.b16 %v84
  %v447 = vunpack.c.l.b16 %v85
  %v448 = vunpack.c.l.b16 %v86
  %v449 = vunpack.c.l.b16 %v87
  %v450 = vunpack.c.l.b16 %v88
  %v451 = vunpack.c.l.b16 %v89
  %v452 = vunpack.c.l.b16 %v90
  %v453 = vunpack.c.l.b16 %v91
  %v454 = vunpack.c.l.b16 %v92
  %v455 = vunpack.c.l.b16 %v93
  %v456 = vunpack.c.l.b16 %v94
  %v457 = vunpack.c.l.b16 %v95
  %v458 = vunpack.c.l.b16 %v96
  %v459 = vunpack.c.l.b16 %v97
  %v460 = vunpack.c.l.b16 %v98
  %v461 = vunpack.c.l.b16 %v99
  %v462 = vunpack.c.l.b16 %v100
  %v463 = vunpack.c.l.b16 %v101
  %v464 = vunpack.c.l.b16 %v102
  %v465 = vunpack.c.l.b16 %v103
  %v466 = vunpack.c.l.b16 %v104
  %v467 = vunpack.c.l.b16 %v105
  %v468 = vunpack.c.l.b16 %v106
  %v469 = vunpack.c.l.b16 %v107
  %v470 = vunpack.c.l.b16 %v108
  %v471 = vunpack.c.l.b16 %v109
  %v472 = vunpack.c.l.b16 %v110
  %v473 = vunpack.c.l.b16 %v111
  %v474 = vunpack.c.l.b16 %v112
  %v475 = vunpack.c.l.b16 %v113
  %v476 = vunpack.c.l.b16 %v114
  %v477 = vunpack.c.l.b16 %v115
  %v478 = vunpack.c.l.b16 %v116
  %v479 = vunpack.c.l.b16 %v117
  %v480 = vunpack.c.l.b16 %v118
  %v481 = vunpack.c.l.b16 %v119
  %v482 = vunpack.c.l.b16 %v120
  %v483 = vunpack.c.l.b16 %v121
  %v484 = vunpack.c.l.b16 %v122
  %v485 = vunpack.c.l.b16 %v123
  %v486 = vunpack.c.l.b16 %v124
  %v487 = vunpack.c.l.b16 %v125
  %v488 = vunpack.c.l.b16 %v126
  %v489 = vunpack.c.l.b16 %v127
  %v490 = vunpack.c.l.b16 %v128
  %v491 = vunpack.c.l.b16 %v129
  %v492 = vunpack.c.l.b16 %v130
  %v493 = vunpack.c.l.b16 %v131
  %v494 = vunpack.c.l.b16 %v132
  %v495 = vunpack.c.l.b16 %v133
  %v496 = vunpack.c.l.b16 %v134
  %v497 = vunpack.c.l.b16 %v135
  %v498 = vunpack.c.l.b16 %v136
  %v499 = vunpack.c.l.b16 %v137
  %v500 = vunpack.c.l.b16 %v138
  %v501 = vunpack.c.l.b16 %v139
  %v502 = vunpack.c.l.b16 %v140
  %v503 = vunpack.c.l.b16 %v141
  %v504 = vunpack.c.l.b16 %v142
  %v505 = vunpack.c.l.b16 %v143
  %v506 = vunpack.c.l.b16 %v144
  %v507 = vunpack.c.l.b16 %v145
  %v508 = vunpack.c.l.b16 %v146
  %v509 = vunpack.c.l.b16 %v147
  %v510 = vunpack.c.l.b16 %v148
  %v511 = vunpack.c.l.b16 %v149
  %v512 = vunpack.c.l.b16 %v150
  %v513 = vunpack.c.l.b16 %v151
  %v514 = vunpack.c.l.b16 %v152
  %v515 = vunpack.c.l.b16 %v153
  %v516 = vunpack.c.l.b16 %v154
  %v517 = vunpack.c.l.b16 %v155
  %v518 = vunpack.c.l.b16 %v156
  %v519 = vunpack.c.l.b16 %v157
  %v520 = vunpack.c.l.b16 %v158
  %v521 = vunpack.c.l.b16 %v159
  %v522 = vunpack.c.l.b16 %v160
  %v523 = vunpack.c.l.b16 %v161
  %v524 = vunpack.c.l.b16 %v162
  %v525 = vunpack.c.l.b16 %v163
  %v526 = vpack.c.b16 %v383, %v382
  %v527 = vpack.c.b16 %v385, %v384
  %v528 = vpack.c.b16 %v387, %v386
  %v529 = vpack.c.b16 %v389, %v388
  %v530 = vpack.c.b16 %v391, %v390
  %v531 = vpack.c.b16 %v393, %v392
  %v532 = vpack.c.b16 %v395, %v394
  %v533 = vpack.c.b16 %v397, %v396
  %v534 = vpack.c.b16 %v399, %v398
  %v535 = vpack.c.b16 %v401, %v400
  %v536 = vpack.c.b16 %v403, %v402
  %v537 = vpack.c.b16 %v405, %v404
  %v538 = vpack.c.b16 %v407, %v406
  %v539 = vpack.c.b16 %v409, %v408
  %v540 = vpack.c.b16 %v411, %v410
  %v541 = vpack.c.b16 %v413, %v412
  %v542 = vpack.c.b16 %v415, %v414
  %v543 = vpack.c.b16 %v417, %v416
  %v544 = vpack.c.b16 %v419, %v418
  %v545 = vpack.c.b16 %v421, %v420
  %v546 = vpack.c.b16 %v423, %v422
  %v547 = vpack.c.b16 %v425, %v424
  %v548 = vpack.c.b16 %v427, %v426
  %v549 = vpack.c.b16 %v429, %v428
  %v550 = vpack.c.b16 %v431, %v430
  %v551 = vpack.c.b16 %v433, %v432
  %v552 = vpack.c.b16 %v435, %v434
  %v553 = vpack.c.b16 %v437, %v436
  %v554 = vpack.c.b16 %v439, %v438
  %v555 = vpack.c.b16 %v441, %v440
  %v556 = vpack.c.b16 %v443, %v442
  %v557 = vpack.c.b16 %v445, %v444
  %v558 = vpack.c.b16 %v447, %v446
  %v559 = vpack.c.b16 %v449, %v448
  %v560 = vpack.c.b16 %v451, %v450
  %v561 = vpack.c.b16 %v453, %v452
  %v562 = vpack.c.b16 %v455, %v454
  %v563 = vpack.c.b16 %v457, %v456
  %v564 = vpack.c.b16 %v459, %v458
  %v565 = vpack.c.b16 %v461, %v460
  %v566 = vpack.c.b16 %v463, %v462
  %v567 = vpack.c.b16 %v465, %v464
  %v568 = vpack.c.b16 %v467, %v466
  %v569 = vpack.c.b16 %v469, %v468
  %v570 = vpack.c.b16 %v471, %v470
  %v571 = vpack.c.b16 %v473, %v472
  %v572 = vpack.c.b16 %v475, %v474
  %v573 = vpack.c.b16 %v477, %v476
  %v574 = vpack.c.b16 %v479, %v478
  %v575 = vpack.c.b16 %v481, %v480
  %v576 = vpack.c.b16 %v483, %v482
  %v577 = vpack.c.b16 %v485, %v484
  %v578 = vpack.c.b16 %v487, %v486
  %v579 = vpack.c.b16 %v489, %v488
  %v580 = vpack.c.b16 %v491, %v490
  %v581 = vpack.c.b16 %v493, %v492
  %v582 = vpack.c.b16 %v495, %v494
  %v583 = vpack.c.b16 %v497, %v496
  %v584 = vpack.c.b16 %v499, %v498
  %v585 = vpack.c.b16 %v501, %v500
  %v586 = vpack.c.b16 %v503, %v502
  %v587 = vpack.c.b16 %v505, %v504
  %v588 = vpack.c.b16 %v507, %v506
  %v589 = vpack.c.b16 %v509, %v508
  %v590 = vpack.c.b16 %v511, %v510
  %v591 = vpack.c.b16 %v513, %v512
  %v592 = vpack.c.b16 %v515, %v514
  %v593 = vpack.c.b16 %v517, %v516
  %v594 = vpack.c.b16 %v519, %v518
  %v595 = vpack.c.b16 %v521, %v520
  %v596 = vpack.c.b16 %v523, %v522
  %v597 = vpack.c.b16 %v525, %v524
  %670 = vmatprep.subr.bf16.mxu0 0
  %671 = vmatpush1.bf16.msra.mxu0 %v526
  %672 = vmatprep.subr.bf16.mxu0 0
  %673 = vmatpush1.bf16.msra.mxu0 %v527
  %674 = vmatprep.subr.bf16.mxu0 0
  %675 = vmatpush1.bf16.msra.mxu0 %v528
  %676 = vmatprep.subr.bf16.mxu0 0
  %677 = vmatpush1.bf16.msra.mxu0 %v529
  %678 = vmatprep.subr.bf16.mxu0 0
  %679 = vmatpush1.bf16.msra.mxu0 %v530
  %680 = vmatprep.subr.bf16.mxu0 0
  %681 = vmatpush1.bf16.msra.mxu0 %v531
  %682 = vmatprep.subr.bf16.mxu0 0
  %683 = vmatpush1.bf16.msra.mxu0 %v532
  %684 = vmatprep.subr.bf16.mxu0 0
  %685 = vmatpush1.bf16.msra.mxu0 %v533
  %686 = vmatprep.subr.bf16.mxu0 0
  %687 = vmatpush1.bf16.msra.mxu0 %v534
  %688 = vmatprep.subr.bf16.mxu0 0
  %689 = vmatpush1.bf16.msra.mxu0 %v535
  %690 = vmatprep.subr.bf16.mxu0 0
  %691 = vmatpush1.bf16.msra.mxu0 %v536
  %692 = vmatprep.subr.bf16.mxu0 0
  %693 = vmatpush1.bf16.msra.mxu0 %v537
  %694 = vmatprep.subr.bf16.mxu0 0
  %695 = vmatpush1.bf16.msra.mxu0 %v538
  %696 = vmatprep.subr.bf16.mxu0 0
  %697 = vmatpush1.bf16.msra.mxu0 %v539
  %698 = vmatprep.subr.bf16.mxu0 0
  %699 = vmatpush1.bf16.msra.mxu0 %v540
  %700 = vmatprep.subr.bf16.mxu0 0
  %701 = vmatpush1.bf16.msra.mxu0 %v541
  %702 = vmatprep.mubr.bf16.mxu0 %v203
  %703 = vmatmul.mubr.bf16.gmra.mrb[0].mxu0 %v189
  %v704 = vpop.f32.mrb[0].mxu0
  %v705 = vadd.f32 0.0, %v704
  %v706 = vpop.f32.mrb[0].mxu0
  %v707 = vpop.f32.mrb[0].mxu0
  %v708 = vpop.f32.mrb[0].mxu0
  %709 = vdwg.mxu0
  %710 = vmatprep.subr.bf16.mxu0 0
  %711 = vmatpush1.bf16.msra.mxu0 %v542
  %712 = vmatprep.subr.bf16.mxu0 0
  %713 = vmatpush1.bf16.msra.mxu0 %v543
  %714 = vmatprep.subr.bf16.mxu0 0
  %715 = vmatpush1.bf16.msra.mxu0 %v544
  %716 = vmatprep.subr.bf16.mxu0 0
  %717 = vmatpush1.bf16.msra.mxu0 %v545
  %718 = vmatprep.subr.bf16.mxu0 0
  %719 = vmatpush1.bf16.msra.mxu0 %v546
  %720 = vmatprep.subr.bf16.mxu0 0
  %721 = vmatpush1.bf16.msra.mxu0 %v547
  %722 = vmatprep.subr.bf16.mxu0 0
  %723 = vmatpush1.bf16.msra.mxu0 %v548
  %724 = vmatprep.subr.bf16.mxu0 0
  %725 = vmatpush1.bf16.msra.mxu0 %v549
  %726 = vmatprep.subr.bf16.mxu0 0
  %727 = vmatpush1.bf16.msra.mxu0 %v550
  %728 = vmatprep.subr.bf16.mxu0 0
  %729 = vmatpush1.bf16.msra.mxu0 %v551
  %730 = vmatprep.subr.bf16.mxu0 0
  %731 = vmatpush1.bf16.msra.mxu0 %v552
  %732 = vmatprep.subr.bf16.mxu0 0
  %733 = vmatpush1.bf16.msra.mxu0 %v553
  %734 = vmatprep.subr.bf16.mxu0 0
  %735 = vmatpush1.bf16.msra.mxu0 %v554
  %736 = vmatprep.subr.bf16.mxu0 0
  %737 = vmatpush1.bf16.msra.mxu0 %v555
  %738 = vmatprep.subr.bf16.mxu0 0
  %739 = vmatpush1.bf16.msra.mxu0 %v556
  %740 = vmatprep.subr.bf16.mxu0 0
  %741 = vmatpush1.bf16.msra.mxu0 %v557
  %742 = vmatprep.mubr.bf16.mxu0 %v213
  %743 = vmatmul.mubr.bf16.gmra.mrb[0].mxu0 %v211
  %v744 = vpop.f32.mrb[0].mxu0
  %v745 = vadd.f32 %v705, %v744
  %v746 = vpop.f32.mrb[0].mxu0
  %v747 = vpop.f32.mrb[0].mxu0
  %v748 = vpop.f32.mrb[0].mxu0
  %749 = vdwg.mxu0
  %750 = vmatprep.subr.bf16.mxu0 0
  %751 = vmatpush1.bf16.msra.mxu0 %v558
  %752 = vmatprep.subr.bf16.mxu0 0
  %753 = vmatpush1.bf16.msra.mxu0 %v559
  %754 = vmatprep.subr.bf16.mxu0 0
  %755 = vmatpush1.bf16.msra.mxu0 %v560
  %756 = vmatprep.subr.bf16.mxu0 0
  %757 = vmatpush1.bf16.msra.mxu0 %v561
  %758 = vmatprep.subr.bf16.mxu0 0
  %759 = vmatpush1.bf16.msra.mxu0 %v562
  %760 = vmatprep.subr.bf16.mxu0 0
  %761 = vmatpush1.bf16.msra.mxu0 %v563
  %762 = vmatprep.subr.bf16.mxu0 0
  %763 = vmatpush1.bf16.msra.mxu0 %v564
  %764 = vmatprep.subr.bf16.mxu0 0
  %765 = vmatpush1.bf16.msra.mxu0 %v565
  %766 = vmatprep.subr.bf16.mxu0 0
  %767 = vmatpush1.bf16.msra.mxu0 %v566
  %768 = vmatprep.subr.bf16.mxu0 0
  %769 = vmatpush1.bf16.msra.mxu0 %v567
  %770 = vmatprep.subr.bf16.mxu0 0
  %771 = vmatpush1.bf16.msra.mxu0 %v568
  %772 = vmatprep.subr.bf16.mxu0 0
  %773 = vmatpush1.bf16.msra.mxu0 %v569
  %774 = vmatprep.subr.bf16.mxu0 0
  %775 = vmatpush1.bf16.msra.mxu0 %v570
  %776 = vmatprep.subr.bf16.mxu0 0
  %777 = vmatpush1.bf16.msra.mxu0 %v571
  %778 = vmatprep.subr.bf16.mxu0 0
  %779 = vmatpush1.bf16.msra.mxu0 %v572
  %780 = vmatprep.subr.bf16.mxu0 0
  %781 = vmatpush1.bf16.msra.mxu0 %v573
  %782 = vmatprep.mubr.bf16.mxu0 %v210
  %783 = vmatmul.mubr.bf16.gmra.mrb[0].mxu0 %v196
  %v784 = vpop.f32.mrb[0].mxu0
  %v785 = vadd.f32 %v745, %v784
  %v786 = vpop.f32.mrb[0].mxu0
  %v787 = vpop.f32.mrb[0].mxu0
  %v788 = vpop.f32.mrb[0].mxu0
  %789 = vdwg.mxu0
  %790 = vmatprep.subr.bf16.mxu0 0
  %791 = vmatpush1.bf16.msra.mxu0 %v574
  %792 = vmatprep.subr.bf16.mxu0 0
  %793 = vmatpush1.bf16.msra.mxu0 %v575
  %794 = vmatprep.subr.bf16.mxu0 0
  %795 = vmatpush1.bf16.msra.mxu0 %v576
  %796 = vmatprep.subr.bf16.mxu0 0
  %797 = vmatpush1.bf16.msra.mxu0 %v577
  %798 = vmatprep.subr.bf16.mxu0 0
  %799 = vmatpush1.bf16.msra.mxu0 %v578
  %800 = vmatprep.subr.bf16.mxu0 0
  %801 = vmatpush1.bf16.msra.mxu0 %v579
  %802 = vmatprep.subr.bf16.mxu0 0
  %803 = vmatpush1.bf16.msra.mxu0 %v580
  %804 = vmatprep.subr.bf16.mxu0 0
  %805 = vmatpush1.bf16.msra.mxu0 %v581
  %806 = vmatprep.subr.bf16.mxu0 0
  %807 = vmatpush1.bf16.msra.mxu0 %v582
  %808 = vmatprep.subr.bf16.mxu0 0
  %809 = vmatpush1.bf16.msra.mxu0 %v583
  %810 = vmatprep.subr.bf16.mxu0 0
  %811 = vmatpush1.bf16.msra.mxu0 %v584
  %812 = vmatprep.subr.bf16.mxu0 0
  %813 = vmatpush1.bf16.msra.mxu0 %v585
  %814 = vmatprep.subr.bf16.mxu0 0
  %815 = vmatpush1.bf16.msra.mxu0 %v586
  %816 = vmatprep.subr.bf16.mxu0 0
  %817 = vmatpush1.bf16.msra.mxu0 %v587
  %818 = vmatprep.subr.bf16.mxu0 0
  %819 = vmatpush1.bf16.msra.mxu0 %v588
  %820 = vmatprep.subr.bf16.mxu0 0
  %821 = vmatpush1.bf16.msra.mxu0 %v589
  %822 = vmatprep.mubr.bf16.mxu0 %v214
  %823 = vmatmul.mubr.bf16.gmra.mrb[0].mxu0 %v212
  %v824 = vpop.f32.mrb[0].mxu0
  %v825 = vadd.f32 %v785, %v824
  %v826 = vpop.f32.mrb[0].mxu0
  %v827 = vpop.f32.mrb[0].mxu0
  %v828 = vpop.f32.mrb[0].mxu0
  %829 = vdwg.mxu0
  %830 = vmatprep.subr.bf16.mxu0 0
  %831 = vmatpush1.bf16.msra.mxu0 %v590
  %832 = vmatprep.subr.bf16.mxu0 0
  %833 = vmatpush1.bf16.msra.mxu0 %v591
  %834 = vmatprep.subr.bf16.mxu0 0
  %835 = vmatpush1.bf16.msra.mxu0 %v592
  %836 = vmatprep.subr.bf16.mxu0 0
  %837 = vmatpush1.bf16.msra.mxu0 %v593
  %838 = vmatprep.subr.bf16.mxu0 0
  %839 = vmatpush1.bf16.msra.mxu0 %v594
  %840 = vmatprep.subr.bf16.mxu0 0
  %841 = vmatpush1.bf16.msra.mxu0 %v595
  %842 = vmatprep.subr.bf16.mxu0 0
  %843 = vmatpush1.bf16.msra.mxu0 %v596
  %844 = vmatprep.subr.bf16.mxu0 0
  %845 = vmatpush1.bf16.msra.mxu0 %v597
  %846 = vmatprep.subr.bf16.mxu0 0
  %847 = vmatpush1.bf16.msra.mxu0 0
  %848 = vmatprep.subr.bf16.mxu0 0
  %849 = vmatpush1.bf16.msra.mxu0 0
  %850 = vmatprep.subr.bf16.mxu0 0
  %851 = vmatpush1.bf16.msra.mxu0 0
  %852 = vmatprep.subr.bf16.mxu0 0
  %853 = vmatpush1.bf16.msra.mxu0 0
  %854 = vmatprep.subr.bf16.mxu0 0
  %855 = vmatpush1.bf16.msra.mxu0 0
  %856 = vmatprep.subr.bf16.mxu0 0
  %857 = vmatpush1.bf16.msra.mxu0 0
  %858 = vmatprep.subr.bf16.mxu0 0
  %859 = vmatpush1.bf16.msra.mxu0 0
  %860 = vmatprep.subr.bf16.mxu0 0
  %861 = vmatpush1.bf16.msra.mxu0 0
  %862 = vmatprep.mubr.bf16.mxu0 0
  %863 = vmatmul.mubr.bf16.gmra.mrb[0].mxu0 %v228
  %v864 = vpop.f32.mrb[0].mxu0
  %v865 = vadd.f32 %v825, %v864
  %v866 = vpop.f32.mrb[0].mxu0
  %v867 = vpop.f32.mrb[0].mxu0
  %v868 = vpop.f32.mrb[0].mxu0
  %869 = vdwg.mxu0
  %v870 = vld [vmem:[%s2] sm:$0x1]
  %v872 = vlaneseq
  %v873 = vshrl.u32 %v872, 7
  %v874 = vsub.s32 0, %v873
  %v875 = vrot.slane %v870, %v874
  %v877 = vmul.f32 %v865, %v875
  %v878 = vld [vmem:[%s3] sm:$0x1]
  %v880 = vlaneseq
  %v881 = vshrl.u32 %v880, 7
  %v882 = vsub.s32 0, %v881
  %v883 = vrot.slane %v878, %v882
  %v885 = vadd.f32 %v877, %v883
  %v886 = vmax.f32 %v885, 0.0
  %v887 = vpack.c.bf16 %v886, %v886
  %888 = vst [vmem:[%s4] sm:$0x1] %v887
  // Predicated region
  $region18: #{_lambda_.41} parent=0 // pred_check
    _
  $region19: #{_lambda_.41} parent=0 // pred_check_branch
    %890 = sbr.rel (0) target = $region21
  $region20: #{_lambda_.41} parent=0 // pred_region
    _
  $region21: #{_lambda_.41} parent=0 // pred_fallthru
    _
  // Predicated region
  $region22: #{_lambda_.41} parent=0 // pred_check
    _
  $region23: #{_lambda_.41} parent=0 // pred_check_branch
    %892 = sbr.rel (0) target = $region25
  $region24: #{_lambda_.41} parent=0 // pred_region
    _
  $region25: #{_lambda_.41} parent=0 // pred_fallthru
    _

// kernel: _lambda_.43
$region0: #{_lambda_.43}
  #allocation0 [shape = 'u32[]', space=smem, size = 0x4, offset = 0x4, fixed_abs, tag = 'smem constant byte address 0x4 - core index']
  #allocation1 [shape = 'u32[144,128]{1,0:T(1,128)}', space=vmem, size = 0x12000, scoped, tag = 'internal scratch']
  %s0 = inlined_call_operand.vmem [shape: bf16[2,1,64], index: 0, kind: input, shape index: {}]
  %s1 = inlined_call_operand.vmem [shape: bf16[2,1,64], index: 1, kind: input, shape index: {}]
  %s2 = inlined_call_operand.hbm [shape: f32[2,64], index: 2, kind: output, shape index: {}]
  %s3 = sld [smem:[#allocation0]]
  $region18: #{_lambda_.43} parent=0
    _
  %s5 = ssub.s32 1, %s3
  %s6 = scalar_select 0, %s5, %s3
  $region1: #{_lambda_.43} parent=0
    #allocation2 [shape = 'u8[1024]{0}', space=vmem, size = 0x400, scoped, tag = 'output window, operand 0, single buffered']
    #allocation3 [shape = 's32[1]{0}', space=sflag, size = 0x4, scoped, tag = 'scoped memory for _lambda_.43']
    %7 = vsyncpa [#allocation3], 0
    // Predicated region
    $region2: #{_lambda_.43} parent=1 // pred_check
      _
    $region3: #{_lambda_.43} parent=1 // pred_check_branch
      %9 = sbr.rel (0) target = $region5
    $region4: #{_lambda_.43} parent=1 // pred_region
      _
    $region5: #{_lambda_.43} parent=1 // pred_fallthru
      _
    // Predicated region
    $region6: #{_lambda_.43} parent=1 // pred_check
      _
    $region7: #{_lambda_.43} parent=1 // pred_check_branch
      %11 = sbr.rel (0) target = $region9
    $region8: #{_lambda_.43} parent=1 // pred_region
      _
    $region9: #{_lambda_.43} parent=1 // pred_fallthru
      _
    %v12 = vld [vmem:[%s0] sm:$0x1]
    %v13 = vld [vmem:[%s0 + $0x1] sm:$0x1]
    %v14 = vunpack.c.l.bf16 %v12
    %v15 = vunpack.c.l.bf16 %v13
    %v16 = vld [vmem:[%s1] sm:$0x1]
    %v17 = vld [vmem:[%s1 + $0x1] sm:$0x1]
    %v18 = vunpack.c.l.bf16 %v16
    %v19 = vunpack.c.l.bf16 %v17
    %v20 = vsub.f32 %v14, %v18
    %v21 = vsub.f32 %v15, %v19
    %v22 = vadd.f32 %v20, 1e-06
    %v23 = vadd.f32 %v21, 1e-06
    %v24 = vand.u32 2147483647, %v22
    %v25 = vand.u32 2147483647, %v23
    %v28 = vlaneseq
    %v29 = vshrl.u32 %v28, 7
    %v30 = vsub.s32 0, %v29
    %v31 = vrot.slane %v24, %v30
    %v32 = vlaneseq
    %v33 = vshrl.u32 %v32, 7
    %v34 = vsub.s32 0, %v33
    %v35 = vrot.slane %v25, %v34
    %vm36 = vcmask 1041409
    %v37 = vsel %vm36, %v35, %v31
    %vm39 = vcmask 517120
    %40 = vst.msk [vmem:[#allocation2] sm:$0x3] %vm39, %v37
    // Predicated region
    $region10: #{_lambda_.43} parent=1 // pred_check
      _
    $region11: #{_lambda_.43} parent=1 // pred_check_branch
      %42 = sbr.rel (0) target = $region13
    $region12: #{_lambda_.43} parent=1 // pred_region
      %s44 = ssub.s32 32, 32
      %45 = vsyncadd [#allocation3], %s44
      %s47 = sshll.u32 [#allocation2], 4
      %s48 = int_to_ptr.vmem [resolvable:$true] %s47
      %50 = dma.vmem_to_hbm [thread:$0]  %s48, 32, %s2, [#allocation3]
    $region13: #{_lambda_.43} parent=1 // pred_fallthru
      _
    // Predicated region
    $region14: #{_lambda_.43} parent=1 // pred_check
      _
    $region15: #{_lambda_.43} parent=1 // pred_check_branch
      %52 = sbr.rel (0) target = $region17
    $region16: #{_lambda_.43} parent=1 // pred_region
      %53 = dma.done [#allocation3], 32
    $region17: #{_lambda_.43} parent=1 // pred_fallthru
      _
    %54 = vsyncpa [#allocation3], 1

</llo_original>
